<compile_context>
chip_gen: v7x
topology: tpu7x:2x2x1
jax: 0.10.0
libtpu: 0.0.40
codegen_flags: <defaults>
</compile_context>

<pallas_src>
import jax
import jax.numpy as jnp
from jax.experimental import pallas as pl
from jax.experimental.pallas import tpu as pltpu


# ----------------------------- model config ---------------------------------
DIM = 32          # embedding dim
DEPTH = 2         # number of (MSA, FF) layers
HEADS = 2         # attention heads
DIM_HEAD = 16     # per-head dim
INNER = HEADS * DIM_HEAD     # 32
MLP_DIM = 64      # FeedForward hidden dim
B = 2             # batch
N = 8             # sequence length
M = B * N         # flattened rows = 16
SCALE = DIM_HEAD ** (-0.5)
LN_EPS = 1e-5

VECS_PER_LAYER = 6           # ln1_g, ln1_b, ln2_g, ln2_b, b_out, b2
NUM_VEC_ROWS = DEPTH * VECS_PER_LAYER + 2   # + lnf_g, lnf_b

HIGHEST = jax.lax.Precision.HIGHEST


# ------------------------------ shared math ----------------------------------
def _layer_norm(x, gamma, beta):
    mu = jnp.mean(x, axis=-1, keepdims=True)
    var = jnp.mean((x - mu) ** 2, axis=-1, keepdims=True)
    return (x - mu) * jax.lax.rsqrt(var + LN_EPS) * gamma + beta


def _gelu_tanh(x):
    # tanh-approximate GELU (see TODO above); identical formula in kernel & reference.
    c = 0.7978845608028654  # sqrt(2/pi)
    return 0.5 * x * (1.0 + jnp.tanh(c * (x + 0.044715 * x * x * x)))


# -------------------------------- kernel -------------------------------------
def transformer_kernel(x_ref, wqkv_ref, wo_ref, w1_ref, w2_ref, vec_ref, b1_ref,
                       o_ref):
    x = x_ref[...]                                           # (M, D) f32

    for l in range(DEPTH):                                   # static unroll (DEPTH small)
        r = l * VECS_PER_LAYER
        ln1_g = vec_ref[r + 0:r + 1, :]                      # (1, D) static slices (free)
        ln1_b = vec_ref[r + 1:r + 2, :]
        ln2_g = vec_ref[r + 2:r + 3, :]
        ln2_b = vec_ref[r + 3:r + 4, :]
        b_out = vec_ref[r + 4:r + 5, :]
        b2 = vec_ref[r + 5:r + 6, :]
        b1 = b1_ref[l:l + 1, :]                              # (1, MLP)

        # ------------------ MSA block: x = x + MSA(LN(x)) ---------------------
        xn = _layer_norm(x, ln1_g, ln1_b)                    # (M, D)
        # Fused QKV projection: one (16,32)@(32,96) matmul.
        qkv = jnp.dot(xn, wqkv_ref[l], preferred_element_type=jnp.float32,
                      precision=HIGHEST)                     # (M, 3*INNER)

        head_outs = []
        for h in range(HEADS):                               # 2 heads, static slices
            q = qkv[:, 0 * INNER + h * DIM_HEAD: 0 * INNER + (h + 1) * DIM_HEAD]
            k = qkv[:, 1 * INNER + h * DIM_HEAD: 1 * INNER + (h + 1) * DIM_HEAD]
            v = qkv[:, 2 * INNER + h * DIM_HEAD: 2 * INNER + (h + 1) * DIM_HEAD]
            q = q.reshape(B, N, DIM_HEAD)
            k = k.reshape(B, N, DIM_HEAD)
            v = v.reshape(B, N, DIM_HEAD)

            s = jnp.einsum('bik,bjk->bij', q, k,
                           preferred_element_type=jnp.float32,
                           precision=HIGHEST) * SCALE        # (B, N, N)
            s = s - jnp.max(s, axis=-1, keepdims=True)
            p = jnp.exp(s)
            p = p / jnp.sum(p, axis=-1, keepdims=True)       # exact softmax
            head_outs.append(
                jnp.einsum('bij,bjk->bik', p, v,
                           preferred_element_type=jnp.float32,
                           precision=HIGHEST))               # (B, N, dh)

        a = jnp.concatenate(head_outs, axis=-1).reshape(M, INNER)   # head concat
        # Single fused output projection: (16,32)@(32,32).
        attn = jnp.dot(a, wo_ref[l], preferred_element_type=jnp.float32,
                       precision=HIGHEST)
        x = x + attn + b_out

        # --------------- FeedForward block: x = x + FF(LN(x)) -----------------
        xn2 = _layer_norm(x, ln2_g, ln2_b)
        h1 = jnp.dot(xn2, w1_ref[l], preferred_element_type=jnp.float32,
                     precision=HIGHEST) + b1
        h1 = _gelu_tanh(h1)
        x = x + jnp.dot(h1, w2_ref[l], preferred_element_type=jnp.float32,
                        precision=HIGHEST) + b2

    # ------------------------- final LayerNorm -------------------------------
    fr = DEPTH * VECS_PER_LAYER
    y = _layer_norm(x, vec_ref[fr:fr + 1, :], vec_ref[fr + 1:fr + 2, :])
    o_ref[...] = y.astype(o_ref.dtype)                       # direct (16, 32) store


# -------------------------- wrapper-side packing ------------------------------
def pack_params(params):
    """One-time layout plumbing: pack the small per-layer vectors into two arrays
    (cuts the number of prologue DMAs from 16 to 7). Done outside the hot path."""
    f32 = jnp.float32
    rows = []
    for l in range(DEPTH):
        rows += [params['ln1_g'][l], params['ln1_b'][l],
                 params['ln2_g'][l], params['ln2_b'][l],
                 params['b_out'][l], params['b2'][l]]
    rows += [params['lnf_g'], params['lnf_b']]
    vecs = jnp.stack([r.astype(f32) for r in rows], axis=0)   # (NUM_VEC_ROWS, DIM)
    assert vecs.shape == (NUM_VEC_ROWS, DIM)
    return {
        'w_qkv': params['w_qkv'].astype(f32),                 # (DEPTH, D, 3*INNER)
        'w_out': params['w_out'].astype(f32),                 # (DEPTH, INNER, D)
        'w1': params['w1'].astype(f32),                       # (DEPTH, D, MLP)
        'w2': params['w2'].astype(f32),                       # (DEPTH, MLP, D)
        'vecs': vecs,                                         # (NUM_VEC_ROWS, D)
        'b1': params['b1'].astype(f32),                       # (DEPTH, MLP)
    }


@jax.jit
def transformer_forward(x, packed):
    x_flat = x.astype(jnp.float32).reshape(M, DIM)

    y = pl.pallas_call(
        transformer_kernel,
        out_shape=jax.ShapeDtypeStruct((M, DIM), jnp.float32),
        in_specs=[pl.BlockSpec(memory_space=pltpu.MemorySpace.VMEM)] * 7,
        out_specs=pl.BlockSpec(memory_space=pltpu.MemorySpace.VMEM),
    )(x_flat, packed['w_qkv'], packed['w_out'], packed['w1'], packed['w2'],
      packed['vecs'], packed['b1'])

    return y.reshape(B, N, DIM).astype(x.dtype)


# --------------------------- pure-JAX reference -------------------------------
def transformer_reference(x, params):
    xf = x.astype(jnp.float32)
    for l in range(DEPTH):
        xn = _layer_norm(xf, params['ln1_g'][l], params['ln1_b'][l])
        qkv = jnp.einsum('bnd,de->bne', xn, params['w_qkv'][l], precision=HIGHEST)
        q, k, v = jnp.split(qkv, 3, axis=-1)

        def to_heads(t):  # 'b n (h d) -> b h n d'
            return t.reshape(B, N, HEADS, DIM_HEAD).transpose(0, 2, 1, 3)

        q, k, v = map(to_heads, (q, k, v))
        s = jnp.einsum('bhid,bhjd->bhij', q, k, precision=HIGHEST) * SCALE
        p = jax.nn.softmax(s, axis=-1)
        a = jnp.einsum('bhij,bhjd->bhid', p, v, precision=HIGHEST)
        out = a.transpose(0, 2, 1, 3).reshape(B, N, INNER)
        xf = xf + jnp.einsum('bni,id->bnd', out, params['w_out'][l],
                             precision=HIGHEST) + params['b_out'][l]

        xn2 = _layer_norm(xf, params['ln2_g'][l], params['ln2_b'][l])
        h = _gelu_tanh(jnp.einsum('bnd,dm->bnm', xn2, params['w1'][l],
                                  precision=HIGHEST) + params['b1'][l])
        xf = xf + jnp.einsum('bnm,md->bnd', h, params['w2'][l],
                             precision=HIGHEST) + params['b2'][l]

    return _layer_norm(xf, params['lnf_g'], params['lnf_b']).astype(x.dtype)


# ---------------------------------- main ---------------------------------------
if __name__ == "__main__":
    key = jax.random.PRNGKey(0)
    ks = jax.random.split(key, 8)

    x = jax.random.normal(ks[0], (B, N, DIM), dtype=jnp.float32)

    # Deterministic synthetic parameters (torch module shapes, stored as (in, out) = W.T).
    params = {
        'ln1_g': jnp.ones((DEPTH, DIM), jnp.float32),
        'ln1_b': jnp.zeros((DEPTH, DIM), jnp.float32),
        'w_qkv': jax.random.normal(ks[1], (DEPTH, DIM, 3 * INNER), jnp.float32) * (DIM ** -0.5),
        'w_out': jax.random.normal(ks[2], (DEPTH, INNER, DIM), jnp.float32) * (INNER ** -0.5),
        'b_out': jax.random.normal(ks[3], (DEPTH, DIM), jnp.float32) * 0.02,
        'ln2_g': jnp.ones((DEPTH, DIM), jnp.float32),
        'ln2_b': jnp.zeros((DEPTH, DIM), jnp.float32),
        'w1': jax.random.normal(ks[4], (DEPTH, DIM, MLP_DIM), jnp.float32) * (DIM ** -0.5),
        'b1': jax.random.normal(ks[5], (DEPTH, MLP_DIM), jnp.float32) * 0.02,
        'w2': jax.random.normal(ks[6], (DEPTH, MLP_DIM, DIM), jnp.float32) * (MLP_DIM ** -0.5),
        'b2': jax.random.normal(ks[7], (DEPTH, DIM), jnp.float32) * 0.02,
        'lnf_g': jnp.ones((DIM,), jnp.float32),
        'lnf_b': jnp.zeros((DIM,), jnp.float32),
    }

    packed = pack_params(params)          # one-time, outside the per-call path

    y = jax.block_until_ready(transformer_forward(x, packed))
    y_ref = transformer_reference(x, params)

    assert y.shape == (B, N, DIM)
    assert jnp.allclose(y, y_ref, atol=2e-3, rtol=2e-3), "Pallas output mismatch vs reference"

    print("KERNEL_OK")
</pallas_src>

<mosaic_0001>
module attributes {stable_mosaic.version = 11 : i64} {
  func.func @transformer_kernel(%arg0: memref<16x32xf32, #tpu.memory_space<vmem>>, %arg1: memref<2x32x96xf32, #tpu.memory_space<vmem>>, %arg2: memref<2x32x32xf32, #tpu.memory_space<vmem>>, %arg3: memref<2x32x64xf32, #tpu.memory_space<vmem>>, %arg4: memref<2x64x32xf32, #tpu.memory_space<vmem>>, %arg5: memref<14x32xf32, #tpu.memory_space<vmem>>, %arg6: memref<2x64xf32, #tpu.memory_space<vmem>>, %arg7: memref<16x32xf32, #tpu.memory_space<vmem>>) attributes {dimension_semantics = [], scalar_prefetch = 0 : i64, scratch_operands = 0 : i64, tpu.core_type = #tpu.core_type<tc>} {
    %c0 = arith.constant 0 : index
    %c0_0 = arith.constant 0 : index
    %0 = vector.load %arg0[%c0, %c0_0] : memref<16x32xf32, #tpu.memory_space<vmem>>, vector<16x32xf32>
    %c0_1 = arith.constant 0 : index
    %c0_2 = arith.constant 0 : index
    %1 = vector.load %arg5[%c0_1, %c0_2] : memref<14x32xf32, #tpu.memory_space<vmem>>, vector<1x32xf32>
    %c1 = arith.constant 1 : index
    %c0_3 = arith.constant 0 : index
    %2 = vector.load %arg5[%c1, %c0_3] : memref<14x32xf32, #tpu.memory_space<vmem>>, vector<1x32xf32>
    %c2 = arith.constant 2 : index
    %c0_4 = arith.constant 0 : index
    %3 = vector.load %arg5[%c2, %c0_4] : memref<14x32xf32, #tpu.memory_space<vmem>>, vector<1x32xf32>
    %c3 = arith.constant 3 : index
    %c0_5 = arith.constant 0 : index
    %4 = vector.load %arg5[%c3, %c0_5] : memref<14x32xf32, #tpu.memory_space<vmem>>, vector<1x32xf32>
    %c4 = arith.constant 4 : index
    %c0_6 = arith.constant 0 : index
    %5 = vector.load %arg5[%c4, %c0_6] : memref<14x32xf32, #tpu.memory_space<vmem>>, vector<1x32xf32>
    %c5 = arith.constant 5 : index
    %c0_7 = arith.constant 0 : index
    %6 = vector.load %arg5[%c5, %c0_7] : memref<14x32xf32, #tpu.memory_space<vmem>>, vector<1x32xf32>
    %c0_8 = arith.constant 0 : index
    %c0_9 = arith.constant 0 : index
    %7 = vector.load %arg6[%c0_8, %c0_9] : memref<2x64xf32, #tpu.memory_space<vmem>>, vector<1x64xf32>
    %cst = arith.constant dense<0.000000e+00> : vector<16xf32>
    %8 = vector.multi_reduction <add>, %0, %cst [1] : vector<16x32xf32> to vector<16xf32>
    %9 = vector.shape_cast %8 : vector<16xf32> to vector<16x1xf32>
    %cst_10 = arith.constant 3.200000e+01 : f32
    %10 = vector.broadcast %cst_10 : f32 to vector<16x1xf32>
    %11 = arith.divf %9, %10 : vector<16x1xf32>
    %12 = vector.broadcast %11 : vector<16x1xf32> to vector<16x32xf32>
    %13 = arith.subf %0, %12 : vector<16x32xf32>
    %14 = arith.mulf %13, %13 : vector<16x32xf32>
    %cst_11 = arith.constant dense<0.000000e+00> : vector<16xf32>
    %15 = vector.multi_reduction <add>, %14, %cst_11 [1] : vector<16x32xf32> to vector<16xf32>
    %16 = vector.shape_cast %15 : vector<16xf32> to vector<16x1xf32>
    %cst_12 = arith.constant 3.200000e+01 : f32
    %17 = vector.broadcast %cst_12 : f32 to vector<16x1xf32>
    %18 = arith.divf %16, %17 : vector<16x1xf32>
    %19 = vector.broadcast %11 : vector<16x1xf32> to vector<16x32xf32>
    %20 = arith.subf %0, %19 : vector<16x32xf32>
    %cst_13 = arith.constant 9.99999974E-6 : f32
    %21 = vector.broadcast %cst_13 : f32 to vector<16x1xf32>
    %22 = arith.addf %18, %21 : vector<16x1xf32>
    %23 = math.rsqrt %22 : vector<16x1xf32>
    %24 = vector.broadcast %23 : vector<16x1xf32> to vector<16x32xf32>
    %25 = arith.mulf %20, %24 : vector<16x32xf32>
    %26 = vector.broadcast %1 : vector<1x32xf32> to vector<16x32xf32>
    %27 = arith.mulf %25, %26 : vector<16x32xf32>
    %28 = vector.broadcast %2 : vector<1x32xf32> to vector<16x32xf32>
    %29 = arith.addf %27, %28 : vector<16x32xf32>
    %c0_14 = arith.constant 0 : index
    %c0_15 = arith.constant 0 : index
    %c0_16 = arith.constant 0 : index
    %30 = vector.load %arg1[%c0_14, %c0_15, %c0_16] : memref<2x32x96xf32, #tpu.memory_space<vmem>>, vector<1x32x96xf32>
    %31 = vector.shape_cast %30 : vector<1x32x96xf32> to vector<32x96xf32>
    %cst_17 = arith.constant dense<0.000000e+00> : vector<16x96xf32>
    %32 = tpu.matmul %29, %31, %cst_17 {dimension_numbers = #tpu.dot_dimension_numbers<[1], [0], [0], [1], [0, 0, 1, 1], [], []>, precision = #tpu.contract_precision<fp32>} : vector<16x32xf32>, vector<32x96xf32>, vector<16x96xf32> -> vector<16x96xf32>
    %33 = vector.extract_strided_slice %32 {offsets = [0, 0], sizes = [16, 16], strides = [1, 1]} : vector<16x96xf32> to vector<16x16xf32>
    %34 = vector.extract_strided_slice %32 {offsets = [0, 32], sizes = [16, 16], strides = [1, 1]} : vector<16x96xf32> to vector<16x16xf32>
    %35 = vector.extract_strided_slice %32 {offsets = [0, 64], sizes = [16, 16], strides = [1, 1]} : vector<16x96xf32> to vector<16x16xf32>
    %36 = vector.shape_cast %33 : vector<16x16xf32> to vector<2x8x16xf32>
    %37 = vector.shape_cast %34 : vector<16x16xf32> to vector<2x8x16xf32>
    %38 = vector.shape_cast %35 : vector<16x16xf32> to vector<2x8x16xf32>
    "tpu.trace_start"() <{level = 10 : i32, message = "bik,bjk->bij"}> : () -> ()
    %cst_18 = arith.constant dense<0.000000e+00> : vector<2x8x8xf32>
    %39 = tpu.matmul %36, %37, %cst_18 {dimension_numbers = #tpu.dot_dimension_numbers<[2], [2], [1], [1], [0, 0, 0, 1, 1, 1], [0], [0]>, precision = #tpu.contract_precision<fp32>} : vector<2x8x16xf32>, vector<2x8x16xf32>, vector<2x8x8xf32> -> vector<2x8x8xf32>
    "tpu.trace_stop"() : () -> ()
    %cst_19 = arith.constant 2.500000e-01 : f32
    %40 = vector.broadcast %cst_19 : f32 to vector<2x8x8xf32>
    %41 = arith.mulf %39, %40 : vector<2x8x8xf32>
    %cst_20 = arith.constant dense<0xFF800000> : vector<2x8xf32>
    %42 = vector.multi_reduction <maximumf>, %41, %cst_20 [2] : vector<2x8x8xf32> to vector<2x8xf32>
    %43 = vector.shape_cast %42 : vector<2x8xf32> to vector<2x8x1xf32>
    %44 = vector.broadcast %43 : vector<2x8x1xf32> to vector<2x8x8xf32>
    %45 = arith.subf %41, %44 : vector<2x8x8xf32>
    %46 = math.exp %45 : vector<2x8x8xf32>
    %cst_21 = arith.constant dense<0.000000e+00> : vector<2x8xf32>
    %47 = vector.multi_reduction <add>, %46, %cst_21 [2] : vector<2x8x8xf32> to vector<2x8xf32>
    %48 = vector.shape_cast %47 : vector<2x8xf32> to vector<2x8x1xf32>
    %49 = vector.broadcast %48 : vector<2x8x1xf32> to vector<2x8x8xf32>
    %50 = arith.divf %46, %49 : vector<2x8x8xf32>
    "tpu.trace_start"() <{level = 10 : i32, message = "bij,bjk->bik"}> : () -> ()
    %cst_22 = arith.constant dense<0.000000e+00> : vector<2x8x16xf32>
    %51 = tpu.matmul %50, %38, %cst_22 {dimension_numbers = #tpu.dot_dimension_numbers<[2], [1], [1], [2], [0, 0, 0, 1, 1, 2], [0], [0]>, precision = #tpu.contract_precision<fp32>} : vector<2x8x8xf32>, vector<2x8x16xf32>, vector<2x8x16xf32> -> vector<2x8x16xf32>
    "tpu.trace_stop"() : () -> ()
    %52 = vector.extract_strided_slice %32 {offsets = [0, 16], sizes = [16, 16], strides = [1, 1]} : vector<16x96xf32> to vector<16x16xf32>
    %53 = vector.extract_strided_slice %32 {offsets = [0, 48], sizes = [16, 16], strides = [1, 1]} : vector<16x96xf32> to vector<16x16xf32>
    %54 = vector.extract_strided_slice %32 {offsets = [0, 80], sizes = [16, 16], strides = [1, 1]} : vector<16x96xf32> to vector<16x16xf32>
    %55 = vector.shape_cast %52 : vector<16x16xf32> to vector<2x8x16xf32>
    %56 = vector.shape_cast %53 : vector<16x16xf32> to vector<2x8x16xf32>
    %57 = vector.shape_cast %54 : vector<16x16xf32> to vector<2x8x16xf32>
    "tpu.trace_start"() <{level = 10 : i32, message = "bik,bjk->bij"}> : () -> ()
    %cst_23 = arith.constant dense<0.000000e+00> : vector<2x8x8xf32>
    %58 = tpu.matmul %55, %56, %cst_23 {dimension_numbers = #tpu.dot_dimension_numbers<[2], [2], [1], [1], [0, 0, 0, 1, 1, 1], [0], [0]>, precision = #tpu.contract_precision<fp32>} : vector<2x8x16xf32>, vector<2x8x16xf32>, vector<2x8x8xf32> -> vector<2x8x8xf32>
    "tpu.trace_stop"() : () -> ()
    %cst_24 = arith.constant 2.500000e-01 : f32
    %59 = vector.broadcast %cst_24 : f32 to vector<2x8x8xf32>
    %60 = arith.mulf %58, %59 : vector<2x8x8xf32>
    %cst_25 = arith.constant dense<0xFF800000> : vector<2x8xf32>
    %61 = vector.multi_reduction <maximumf>, %60, %cst_25 [2] : vector<2x8x8xf32> to vector<2x8xf32>
    %62 = vector.shape_cast %61 : vector<2x8xf32> to vector<2x8x1xf32>
    %63 = vector.broadcast %62 : vector<2x8x1xf32> to vector<2x8x8xf32>
    %64 = arith.subf %60, %63 : vector<2x8x8xf32>
    %65 = math.exp %64 : vector<2x8x8xf32>
    %cst_26 = arith.constant dense<0.000000e+00> : vector<2x8xf32>
    %66 = vector.multi_reduction <add>, %65, %cst_26 [2] : vector<2x8x8xf32> to vector<2x8xf32>
    %67 = vector.shape_cast %66 : vector<2x8xf32> to vector<2x8x1xf32>
    %68 = vector.broadcast %67 : vector<2x8x1xf32> to vector<2x8x8xf32>
    %69 = arith.divf %65, %68 : vector<2x8x8xf32>
    "tpu.trace_start"() <{level = 10 : i32, message = "bij,bjk->bik"}> : () -> ()
    %cst_27 = arith.constant dense<0.000000e+00> : vector<2x8x16xf32>
    %70 = tpu.matmul %69, %57, %cst_27 {dimension_numbers = #tpu.dot_dimension_numbers<[2], [1], [1], [2], [0, 0, 0, 1, 1, 2], [0], [0]>, precision = #tpu.contract_precision<fp32>} : vector<2x8x8xf32>, vector<2x8x16xf32>, vector<2x8x16xf32> -> vector<2x8x16xf32>
    "tpu.trace_stop"() : () -> ()
    %71 = tpu.concatenate %51, %70 in 2 : vector<2x8x16xf32>, vector<2x8x16xf32> -> vector<2x8x32xf32>
    %72 = vector.shape_cast %71 : vector<2x8x32xf32> to vector<16x32xf32>
    %c0_28 = arith.constant 0 : index
    %c0_29 = arith.constant 0 : index
    %c0_30 = arith.constant 0 : index
    %73 = vector.load %arg2[%c0_28, %c0_29, %c0_30] : memref<2x32x32xf32, #tpu.memory_space<vmem>>, vector<1x32x32xf32>
    %74 = vector.shape_cast %73 : vector<1x32x32xf32> to vector<32x32xf32>
    %cst_31 = arith.constant dense<0.000000e+00> : vector<16x32xf32>
    %75 = tpu.matmul %72, %74, %cst_31 {dimension_numbers = #tpu.dot_dimension_numbers<[1], [0], [0], [1], [0, 0, 1, 1], [], []>, precision = #tpu.contract_precision<fp32>} : vector<16x32xf32>, vector<32x32xf32>, vector<16x32xf32> -> vector<16x32xf32>
    %76 = arith.addf %0, %75 : vector<16x32xf32>
    %77 = vector.broadcast %5 : vector<1x32xf32> to vector<16x32xf32>
    %78 = arith.addf %76, %77 : vector<16x32xf32>
    %cst_32 = arith.constant dense<0.000000e+00> : vector<16xf32>
    %79 = vector.multi_reduction <add>, %78, %cst_32 [1] : vector<16x32xf32> to vector<16xf32>
    %80 = vector.shape_cast %79 : vector<16xf32> to vector<16x1xf32>
    %cst_33 = arith.constant 3.200000e+01 : f32
    %81 = vector.broadcast %cst_33 : f32 to vector<16x1xf32>
    %82 = arith.divf %80, %81 : vector<16x1xf32>
    %83 = vector.broadcast %82 : vector<16x1xf32> to vector<16x32xf32>
    %84 = arith.subf %78, %83 : vector<16x32xf32>
    %85 = arith.mulf %84, %84 : vector<16x32xf32>
    %cst_34 = arith.constant dense<0.000000e+00> : vector<16xf32>
    %86 = vector.multi_reduction <add>, %85, %cst_34 [1] : vector<16x32xf32> to vector<16xf32>
    %87 = vector.shape_cast %86 : vector<16xf32> to vector<16x1xf32>
    %cst_35 = arith.constant 3.200000e+01 : f32
    %88 = vector.broadcast %cst_35 : f32 to vector<16x1xf32>
    %89 = arith.divf %87, %88 : vector<16x1xf32>
    %90 = vector.broadcast %82 : vector<16x1xf32> to vector<16x32xf32>
    %91 = arith.subf %78, %90 : vector<16x32xf32>
    %cst_36 = arith.constant 9.99999974E-6 : f32
    %92 = vector.broadcast %cst_36 : f32 to vector<16x1xf32>
    %93 = arith.addf %89, %92 : vector<16x1xf32>
    %94 = math.rsqrt %93 : vector<16x1xf32>
    %95 = vector.broadcast %94 : vector<16x1xf32> to vector<16x32xf32>
    %96 = arith.mulf %91, %95 : vector<16x32xf32>
    %97 = vector.broadcast %3 : vector<1x32xf32> to vector<16x32xf32>
    %98 = arith.mulf %96, %97 : vector<16x32xf32>
    %99 = vector.broadcast %4 : vector<1x32xf32> to vector<16x32xf32>
    %100 = arith.addf %98, %99 : vector<16x32xf32>
    %c0_37 = arith.constant 0 : index
    %c0_38 = arith.constant 0 : index
    %c0_39 = arith.constant 0 : index
    %101 = vector.load %arg3[%c0_37, %c0_38, %c0_39] : memref<2x32x64xf32, #tpu.memory_space<vmem>>, vector<1x32x64xf32>
    %102 = vector.shape_cast %101 : vector<1x32x64xf32> to vector<32x64xf32>
    %cst_40 = arith.constant dense<0.000000e+00> : vector<16x64xf32>
    %103 = tpu.matmul %100, %102, %cst_40 {dimension_numbers = #tpu.dot_dimension_numbers<[1], [0], [0], [1], [0, 0, 1, 1], [], []>, precision = #tpu.contract_precision<fp32>} : vector<16x32xf32>, vector<32x64xf32>, vector<16x64xf32> -> vector<16x64xf32>
    %104 = vector.broadcast %7 : vector<1x64xf32> to vector<16x64xf32>
    %105 = arith.addf %103, %104 : vector<16x64xf32>
    %cst_41 = arith.constant 5.000000e-01 : f32
    %106 = vector.broadcast %cst_41 : f32 to vector<16x64xf32>
    %107 = arith.mulf %106, %105 : vector<16x64xf32>
    %cst_42 = arith.constant 4.471500e-02 : f32
    %108 = vector.broadcast %cst_42 : f32 to vector<16x64xf32>
    %109 = arith.mulf %108, %105 : vector<16x64xf32>
    %110 = arith.mulf %109, %105 : vector<16x64xf32>
    %111 = arith.mulf %110, %105 : vector<16x64xf32>
    %112 = arith.addf %105, %111 : vector<16x64xf32>
    %cst_43 = arith.constant 0.797884583 : f32
    %113 = vector.broadcast %cst_43 : f32 to vector<16x64xf32>
    %114 = arith.mulf %113, %112 : vector<16x64xf32>
    %115 = math.tanh %114 : vector<16x64xf32>
    %cst_44 = arith.constant 1.000000e+00 : f32
    %116 = vector.broadcast %cst_44 : f32 to vector<16x64xf32>
    %117 = arith.addf %116, %115 : vector<16x64xf32>
    %118 = arith.mulf %107, %117 : vector<16x64xf32>
    %c0_45 = arith.constant 0 : index
    %c0_46 = arith.constant 0 : index
    %c0_47 = arith.constant 0 : index
    %119 = vector.load %arg4[%c0_45, %c0_46, %c0_47] : memref<2x64x32xf32, #tpu.memory_space<vmem>>, vector<1x64x32xf32>
    %120 = vector.shape_cast %119 : vector<1x64x32xf32> to vector<64x32xf32>
    %cst_48 = arith.constant dense<0.000000e+00> : vector<16x32xf32>
    %121 = tpu.matmul %118, %120, %cst_48 {dimension_numbers = #tpu.dot_dimension_numbers<[1], [0], [0], [1], [0, 0, 1, 1], [], []>, precision = #tpu.contract_precision<fp32>} : vector<16x64xf32>, vector<64x32xf32>, vector<16x32xf32> -> vector<16x32xf32>
    %122 = arith.addf %78, %121 : vector<16x32xf32>
    %123 = vector.broadcast %6 : vector<1x32xf32> to vector<16x32xf32>
    %124 = arith.addf %122, %123 : vector<16x32xf32>
    %c6 = arith.constant 6 : index
    %c0_49 = arith.constant 0 : index
    %125 = vector.load %arg5[%c6, %c0_49] : memref<14x32xf32, #tpu.memory_space<vmem>>, vector<1x32xf32>
    %c7 = arith.constant 7 : index
    %c0_50 = arith.constant 0 : index
    %126 = vector.load %arg5[%c7, %c0_50] : memref<14x32xf32, #tpu.memory_space<vmem>>, vector<1x32xf32>
    %c8 = arith.constant 8 : index
    %c0_51 = arith.constant 0 : index
    %127 = vector.load %arg5[%c8, %c0_51] : memref<14x32xf32, #tpu.memory_space<vmem>>, vector<1x32xf32>
    %c9 = arith.constant 9 : index
    %c0_52 = arith.constant 0 : index
    %128 = vector.load %arg5[%c9, %c0_52] : memref<14x32xf32, #tpu.memory_space<vmem>>, vector<1x32xf32>
    %c10 = arith.constant 10 : index
    %c0_53 = arith.constant 0 : index
    %129 = vector.load %arg5[%c10, %c0_53] : memref<14x32xf32, #tpu.memory_space<vmem>>, vector<1x32xf32>
    %c11 = arith.constant 11 : index
    %c0_54 = arith.constant 0 : index
    %130 = vector.load %arg5[%c11, %c0_54] : memref<14x32xf32, #tpu.memory_space<vmem>>, vector<1x32xf32>
    %c1_55 = arith.constant 1 : index
    %c0_56 = arith.constant 0 : index
    %131 = vector.load %arg6[%c1_55, %c0_56] : memref<2x64xf32, #tpu.memory_space<vmem>>, vector<1x64xf32>
    %cst_57 = arith.constant dense<0.000000e+00> : vector<16xf32>
    %132 = vector.multi_reduction <add>, %124, %cst_57 [1] : vector<16x32xf32> to vector<16xf32>
    %133 = vector.shape_cast %132 : vector<16xf32> to vector<16x1xf32>
    %cst_58 = arith.constant 3.200000e+01 : f32
    %134 = vector.broadcast %cst_58 : f32 to vector<16x1xf32>
    %135 = arith.divf %133, %134 : vector<16x1xf32>
    %136 = vector.broadcast %135 : vector<16x1xf32> to vector<16x32xf32>
    %137 = arith.subf %124, %136 : vector<16x32xf32>
    %138 = arith.mulf %137, %137 : vector<16x32xf32>
    %cst_59 = arith.constant dense<0.000000e+00> : vector<16xf32>
    %139 = vector.multi_reduction <add>, %138, %cst_59 [1] : vector<16x32xf32> to vector<16xf32>
    %140 = vector.shape_cast %139 : vector<16xf32> to vector<16x1xf32>
    %cst_60 = arith.constant 3.200000e+01 : f32
    %141 = vector.broadcast %cst_60 : f32 to vector<16x1xf32>
    %142 = arith.divf %140, %141 : vector<16x1xf32>
    %143 = vector.broadcast %135 : vector<16x1xf32> to vector<16x32xf32>
    %144 = arith.subf %124, %143 : vector<16x32xf32>
    %cst_61 = arith.constant 9.99999974E-6 : f32
    %145 = vector.broadcast %cst_61 : f32 to vector<16x1xf32>
    %146 = arith.addf %142, %145 : vector<16x1xf32>
    %147 = math.rsqrt %146 : vector<16x1xf32>
    %148 = vector.broadcast %147 : vector<16x1xf32> to vector<16x32xf32>
    %149 = arith.mulf %144, %148 : vector<16x32xf32>
    %150 = vector.broadcast %125 : vector<1x32xf32> to vector<16x32xf32>
    %151 = arith.mulf %149, %150 : vector<16x32xf32>
    %152 = vector.broadcast %126 : vector<1x32xf32> to vector<16x32xf32>
    %153 = arith.addf %151, %152 : vector<16x32xf32>
    %c1_62 = arith.constant 1 : index
    %c0_63 = arith.constant 0 : index
    %c0_64 = arith.constant 0 : index
    %154 = vector.load %arg1[%c1_62, %c0_63, %c0_64] : memref<2x32x96xf32, #tpu.memory_space<vmem>>, vector<1x32x96xf32>
    %155 = vector.shape_cast %154 : vector<1x32x96xf32> to vector<32x96xf32>
    %cst_65 = arith.constant dense<0.000000e+00> : vector<16x96xf32>
    %156 = tpu.matmul %153, %155, %cst_65 {dimension_numbers = #tpu.dot_dimension_numbers<[1], [0], [0], [1], [0, 0, 1, 1], [], []>, precision = #tpu.contract_precision<fp32>} : vector<16x32xf32>, vector<32x96xf32>, vector<16x96xf32> -> vector<16x96xf32>
    %157 = vector.extract_strided_slice %156 {offsets = [0, 0], sizes = [16, 16], strides = [1, 1]} : vector<16x96xf32> to vector<16x16xf32>
    %158 = vector.extract_strided_slice %156 {offsets = [0, 32], sizes = [16, 16], strides = [1, 1]} : vector<16x96xf32> to vector<16x16xf32>
    %159 = vector.extract_strided_slice %156 {offsets = [0, 64], sizes = [16, 16], strides = [1, 1]} : vector<16x96xf32> to vector<16x16xf32>
    %160 = vector.shape_cast %157 : vector<16x16xf32> to vector<2x8x16xf32>
    %161 = vector.shape_cast %158 : vector<16x16xf32> to vector<2x8x16xf32>
    %162 = vector.shape_cast %159 : vector<16x16xf32> to vector<2x8x16xf32>
    "tpu.trace_start"() <{level = 10 : i32, message = "bik,bjk->bij"}> : () -> ()
    %cst_66 = arith.constant dense<0.000000e+00> : vector<2x8x8xf32>
    %163 = tpu.matmul %160, %161, %cst_66 {dimension_numbers = #tpu.dot_dimension_numbers<[2], [2], [1], [1], [0, 0, 0, 1, 1, 1], [0], [0]>, precision = #tpu.contract_precision<fp32>} : vector<2x8x16xf32>, vector<2x8x16xf32>, vector<2x8x8xf32> -> vector<2x8x8xf32>
    "tpu.trace_stop"() : () -> ()
    %cst_67 = arith.constant 2.500000e-01 : f32
    %164 = vector.broadcast %cst_67 : f32 to vector<2x8x8xf32>
    %165 = arith.mulf %163, %164 : vector<2x8x8xf32>
    %cst_68 = arith.constant dense<0xFF800000> : vector<2x8xf32>
    %166 = vector.multi_reduction <maximumf>, %165, %cst_68 [2] : vector<2x8x8xf32> to vector<2x8xf32>
    %167 = vector.shape_cast %166 : vector<2x8xf32> to vector<2x8x1xf32>
    %168 = vector.broadcast %167 : vector<2x8x1xf32> to vector<2x8x8xf32>
    %169 = arith.subf %165, %168 : vector<2x8x8xf32>
    %170 = math.exp %169 : vector<2x8x8xf32>
    %cst_69 = arith.constant dense<0.000000e+00> : vector<2x8xf32>
    %171 = vector.multi_reduction <add>, %170, %cst_69 [2] : vector<2x8x8xf32> to vector<2x8xf32>
    %172 = vector.shape_cast %171 : vector<2x8xf32> to vector<2x8x1xf32>
    %173 = vector.broadcast %172 : vector<2x8x1xf32> to vector<2x8x8xf32>
    %174 = arith.divf %170, %173 : vector<2x8x8xf32>
    "tpu.trace_start"() <{level = 10 : i32, message = "bij,bjk->bik"}> : () -> ()
    %cst_70 = arith.constant dense<0.000000e+00> : vector<2x8x16xf32>
    %175 = tpu.matmul %174, %162, %cst_70 {dimension_numbers = #tpu.dot_dimension_numbers<[2], [1], [1], [2], [0, 0, 0, 1, 1, 2], [0], [0]>, precision = #tpu.contract_precision<fp32>} : vector<2x8x8xf32>, vector<2x8x16xf32>, vector<2x8x16xf32> -> vector<2x8x16xf32>
    "tpu.trace_stop"() : () -> ()
    %176 = vector.extract_strided_slice %156 {offsets = [0, 16], sizes = [16, 16], strides = [1, 1]} : vector<16x96xf32> to vector<16x16xf32>
    %177 = vector.extract_strided_slice %156 {offsets = [0, 48], sizes = [16, 16], strides = [1, 1]} : vector<16x96xf32> to vector<16x16xf32>
    %178 = vector.extract_strided_slice %156 {offsets = [0, 80], sizes = [16, 16], strides = [1, 1]} : vector<16x96xf32> to vector<16x16xf32>
    %179 = vector.shape_cast %176 : vector<16x16xf32> to vector<2x8x16xf32>
    %180 = vector.shape_cast %177 : vector<16x16xf32> to vector<2x8x16xf32>
    %181 = vector.shape_cast %178 : vector<16x16xf32> to vector<2x8x16xf32>
    "tpu.trace_start"() <{level = 10 : i32, message = "bik,bjk->bij"}> : () -> ()
    %cst_71 = arith.constant dense<0.000000e+00> : vector<2x8x8xf32>
    %182 = tpu.matmul %179, %180, %cst_71 {dimension_numbers = #tpu.dot_dimension_numbers<[2], [2], [1], [1], [0, 0, 0, 1, 1, 1], [0], [0]>, precision = #tpu.contract_precision<fp32>} : vector<2x8x16xf32>, vector<2x8x16xf32>, vector<2x8x8xf32> -> vector<2x8x8xf32>
    "tpu.trace_stop"() : () -> ()
    %cst_72 = arith.constant 2.500000e-01 : f32
    %183 = vector.broadcast %cst_72 : f32 to vector<2x8x8xf32>
    %184 = arith.mulf %182, %183 : vector<2x8x8xf32>
    %cst_73 = arith.constant dense<0xFF800000> : vector<2x8xf32>
    %185 = vector.multi_reduction <maximumf>, %184, %cst_73 [2] : vector<2x8x8xf32> to vector<2x8xf32>
    %186 = vector.shape_cast %185 : vector<2x8xf32> to vector<2x8x1xf32>
    %187 = vector.broadcast %186 : vector<2x8x1xf32> to vector<2x8x8xf32>
    %188 = arith.subf %184, %187 : vector<2x8x8xf32>
    %189 = math.exp %188 : vector<2x8x8xf32>
    %cst_74 = arith.constant dense<0.000000e+00> : vector<2x8xf32>
    %190 = vector.multi_reduction <add>, %189, %cst_74 [2] : vector<2x8x8xf32> to vector<2x8xf32>
    %191 = vector.shape_cast %190 : vector<2x8xf32> to vector<2x8x1xf32>
    %192 = vector.broadcast %191 : vector<2x8x1xf32> to vector<2x8x8xf32>
    %193 = arith.divf %189, %192 : vector<2x8x8xf32>
    "tpu.trace_start"() <{level = 10 : i32, message = "bij,bjk->bik"}> : () -> ()
    %cst_75 = arith.constant dense<0.000000e+00> : vector<2x8x16xf32>
    %194 = tpu.matmul %193, %181, %cst_75 {dimension_numbers = #tpu.dot_dimension_numbers<[2], [1], [1], [2], [0, 0, 0, 1, 1, 2], [0], [0]>, precision = #tpu.contract_precision<fp32>} : vector<2x8x8xf32>, vector<2x8x16xf32>, vector<2x8x16xf32> -> vector<2x8x16xf32>
    "tpu.trace_stop"() : () -> ()
    %195 = tpu.concatenate %175, %194 in 2 : vector<2x8x16xf32>, vector<2x8x16xf32> -> vector<2x8x32xf32>
    %196 = vector.shape_cast %195 : vector<2x8x32xf32> to vector<16x32xf32>
    %c1_76 = arith.constant 1 : index
    %c0_77 = arith.constant 0 : index
    %c0_78 = arith.constant 0 : index
    %197 = vector.load %arg2[%c1_76, %c0_77, %c0_78] : memref<2x32x32xf32, #tpu.memory_space<vmem>>, vector<1x32x32xf32>
    %198 = vector.shape_cast %197 : vector<1x32x32xf32> to vector<32x32xf32>
    %cst_79 = arith.constant dense<0.000000e+00> : vector<16x32xf32>
    %199 = tpu.matmul %196, %198, %cst_79 {dimension_numbers = #tpu.dot_dimension_numbers<[1], [0], [0], [1], [0, 0, 1, 1], [], []>, precision = #tpu.contract_precision<fp32>} : vector<16x32xf32>, vector<32x32xf32>, vector<16x32xf32> -> vector<16x32xf32>
    %200 = arith.addf %124, %199 : vector<16x32xf32>
    %201 = vector.broadcast %129 : vector<1x32xf32> to vector<16x32xf32>
    %202 = arith.addf %200, %201 : vector<16x32xf32>
    %cst_80 = arith.constant dense<0.000000e+00> : vector<16xf32>
    %203 = vector.multi_reduction <add>, %202, %cst_80 [1] : vector<16x32xf32> to vector<16xf32>
    %204 = vector.shape_cast %203 : vector<16xf32> to vector<16x1xf32>
    %cst_81 = arith.constant 3.200000e+01 : f32
    %205 = vector.broadcast %cst_81 : f32 to vector<16x1xf32>
    %206 = arith.divf %204, %205 : vector<16x1xf32>
    %207 = vector.broadcast %206 : vector<16x1xf32> to vector<16x32xf32>
    %208 = arith.subf %202, %207 : vector<16x32xf32>
    %209 = arith.mulf %208, %208 : vector<16x32xf32>
    %cst_82 = arith.constant dense<0.000000e+00> : vector<16xf32>
    %210 = vector.multi_reduction <add>, %209, %cst_82 [1] : vector<16x32xf32> to vector<16xf32>
    %211 = vector.shape_cast %210 : vector<16xf32> to vector<16x1xf32>
    %cst_83 = arith.constant 3.200000e+01 : f32
    %212 = vector.broadcast %cst_83 : f32 to vector<16x1xf32>
    %213 = arith.divf %211, %212 : vector<16x1xf32>
    %214 = vector.broadcast %206 : vector<16x1xf32> to vector<16x32xf32>
    %215 = arith.subf %202, %214 : vector<16x32xf32>
    %cst_84 = arith.constant 9.99999974E-6 : f32
    %216 = vector.broadcast %cst_84 : f32 to vector<16x1xf32>
    %217 = arith.addf %213, %216 : vector<16x1xf32>
    %218 = math.rsqrt %217 : vector<16x1xf32>
    %219 = vector.broadcast %218 : vector<16x1xf32> to vector<16x32xf32>
    %220 = arith.mulf %215, %219 : vector<16x32xf32>
    %221 = vector.broadcast %127 : vector<1x32xf32> to vector<16x32xf32>
    %222 = arith.mulf %220, %221 : vector<16x32xf32>
    %223 = vector.broadcast %128 : vector<1x32xf32> to vector<16x32xf32>
    %224 = arith.addf %222, %223 : vector<16x32xf32>
    %c1_85 = arith.constant 1 : index
    %c0_86 = arith.constant 0 : index
    %c0_87 = arith.constant 0 : index
    %225 = vector.load %arg3[%c1_85, %c0_86, %c0_87] : memref<2x32x64xf32, #tpu.memory_space<vmem>>, vector<1x32x64xf32>
    %226 = vector.shape_cast %225 : vector<1x32x64xf32> to vector<32x64xf32>
    %cst_88 = arith.constant dense<0.000000e+00> : vector<16x64xf32>
    %227 = tpu.matmul %224, %226, %cst_88 {dimension_numbers = #tpu.dot_dimension_numbers<[1], [0], [0], [1], [0, 0, 1, 1], [], []>, precision = #tpu.contract_precision<fp32>} : vector<16x32xf32>, vector<32x64xf32>, vector<16x64xf32> -> vector<16x64xf32>
    %228 = vector.broadcast %131 : vector<1x64xf32> to vector<16x64xf32>
    %229 = arith.addf %227, %228 : vector<16x64xf32>
    %cst_89 = arith.constant 5.000000e-01 : f32
    %230 = vector.broadcast %cst_89 : f32 to vector<16x64xf32>
    %231 = arith.mulf %230, %229 : vector<16x64xf32>
    %cst_90 = arith.constant 4.471500e-02 : f32
    %232 = vector.broadcast %cst_90 : f32 to vector<16x64xf32>
    %233 = arith.mulf %232, %229 : vector<16x64xf32>
    %234 = arith.mulf %233, %229 : vector<16x64xf32>
    %235 = arith.mulf %234, %229 : vector<16x64xf32>
    %236 = arith.addf %229, %235 : vector<16x64xf32>
    %cst_91 = arith.constant 0.797884583 : f32
    %237 = vector.broadcast %cst_91 : f32 to vector<16x64xf32>
    %238 = arith.mulf %237, %236 : vector<16x64xf32>
    %239 = math.tanh %238 : vector<16x64xf32>
    %cst_92 = arith.constant 1.000000e+00 : f32
    %240 = vector.broadcast %cst_92 : f32 to vector<16x64xf32>
    %241 = arith.addf %240, %239 : vector<16x64xf32>
    %242 = arith.mulf %231, %241 : vector<16x64xf32>
    %c1_93 = arith.constant 1 : index
    %c0_94 = arith.constant 0 : index
    %c0_95 = arith.constant 0 : index
    %243 = vector.load %arg4[%c1_93, %c0_94, %c0_95] : memref<2x64x32xf32, #tpu.memory_space<vmem>>, vector<1x64x32xf32>
    %244 = vector.shape_cast %243 : vector<1x64x32xf32> to vector<64x32xf32>
    %cst_96 = arith.constant dense<0.000000e+00> : vector<16x32xf32>
    %245 = tpu.matmul %242, %244, %cst_96 {dimension_numbers = #tpu.dot_dimension_numbers<[1], [0], [0], [1], [0, 0, 1, 1], [], []>, precision = #tpu.contract_precision<fp32>} : vector<16x64xf32>, vector<64x32xf32>, vector<16x32xf32> -> vector<16x32xf32>
    %246 = arith.addf %202, %245 : vector<16x32xf32>
    %247 = vector.broadcast %130 : vector<1x32xf32> to vector<16x32xf32>
    %248 = arith.addf %246, %247 : vector<16x32xf32>
    %c12 = arith.constant 12 : index
    %c0_97 = arith.constant 0 : index
    %249 = vector.load %arg5[%c12, %c0_97] : memref<14x32xf32, #tpu.memory_space<vmem>>, vector<1x32xf32>
    %c13 = arith.constant 13 : index
    %c0_98 = arith.constant 0 : index
    %250 = vector.load %arg5[%c13, %c0_98] : memref<14x32xf32, #tpu.memory_space<vmem>>, vector<1x32xf32>
    %cst_99 = arith.constant dense<0.000000e+00> : vector<16xf32>
    %251 = vector.multi_reduction <add>, %248, %cst_99 [1] : vector<16x32xf32> to vector<16xf32>
    %252 = vector.shape_cast %251 : vector<16xf32> to vector<16x1xf32>
    %cst_100 = arith.constant 3.200000e+01 : f32
    %253 = vector.broadcast %cst_100 : f32 to vector<16x1xf32>
    %254 = arith.divf %252, %253 : vector<16x1xf32>
    %255 = vector.broadcast %254 : vector<16x1xf32> to vector<16x32xf32>
    %256 = arith.subf %248, %255 : vector<16x32xf32>
    %257 = arith.mulf %256, %256 : vector<16x32xf32>
    %cst_101 = arith.constant dense<0.000000e+00> : vector<16xf32>
    %258 = vector.multi_reduction <add>, %257, %cst_101 [1] : vector<16x32xf32> to vector<16xf32>
    %259 = vector.shape_cast %258 : vector<16xf32> to vector<16x1xf32>
    %cst_102 = arith.constant 3.200000e+01 : f32
    %260 = vector.broadcast %cst_102 : f32 to vector<16x1xf32>
    %261 = arith.divf %259, %260 : vector<16x1xf32>
    %262 = vector.broadcast %254 : vector<16x1xf32> to vector<16x32xf32>
    %263 = arith.subf %248, %262 : vector<16x32xf32>
    %cst_103 = arith.constant 9.99999974E-6 : f32
    %264 = vector.broadcast %cst_103 : f32 to vector<16x1xf32>
    %265 = arith.addf %261, %264 : vector<16x1xf32>
    %266 = math.rsqrt %265 : vector<16x1xf32>
    %267 = vector.broadcast %266 : vector<16x1xf32> to vector<16x32xf32>
    %268 = arith.mulf %263, %267 : vector<16x32xf32>
    %269 = vector.broadcast %249 : vector<1x32xf32> to vector<16x32xf32>
    %270 = arith.mulf %268, %269 : vector<16x32xf32>
    %271 = vector.broadcast %250 : vector<1x32xf32> to vector<16x32xf32>
    %272 = arith.addf %270, %271 : vector<16x32xf32>
    %c0_104 = arith.constant 0 : index
    %c0_105 = arith.constant 0 : index
    %273 = vector.load %arg7[%c0_104, %c0_105] : memref<16x32xf32, #tpu.memory_space<vmem>>, vector<16x32xf32>
    tpu.vector_store %arg7[%c0_104, %c0_105], %272 {strides = array<i32>} : memref<16x32xf32, #tpu.memory_space<vmem>>, vector<16x32xf32>,
    return
  }
}

</mosaic_0001>

<llo_original>
// kernel: transformer_forward.1
$region0: #{transformer_forward.1}
  #allocation0 [shape = 'u32[]', space=smem, size = 0x4, offset = 0x4, fixed_abs, tag = 'smem constant byte address 0x4 - core index']
  #allocation1 [shape = 'u32[144,128]{1,0:T(1,128)}', space=vmem, size = 0x12000, scoped, tag = 'internal scratch']
  %s0 = inlined_call_operand.hbm [shape: f32[16,32], index: 0, kind: input, shape index: {}]
  %s1 = inlined_call_operand.vmem [shape: f32[2,32,96], index: 1, kind: input, shape index: {}]
  %s2 = inlined_call_operand.vmem [shape: f32[2,32,32], index: 2, kind: input, shape index: {}]
  %s3 = inlined_call_operand.vmem [shape: f32[2,32,64], index: 3, kind: input, shape index: {}]
  %s4 = inlined_call_operand.vmem [shape: f32[2,64,32], index: 4, kind: input, shape index: {}]
  %s5 = inlined_call_operand.hbm [shape: f32[14,32], index: 5, kind: input, shape index: {}]
  %s6 = inlined_call_operand.vmem [shape: f32[2,64], index: 6, kind: input, shape index: {}]
  %s7 = inlined_call_operand.hbm [shape: f32[16,32], index: 7, kind: output, shape index: {}]
  %s8 = sld [smem:[#allocation0]]
  $region46: #{transformer_forward.1} parent=0
    _
  %s10 = ssub.s32 1, %s8
  %s11 = scalar_select 0, %s10, %s8
  $region1: #{transformer_forward.1} parent=0
    #allocation2 [shape = 'u8[8192]{0}', space=vmem, size = 0x2000, scoped, tag = 'input window, operand 0, single buffered']
    #allocation3 [shape = 's32[1]{0}', space=sflag, size = 0x4, scoped, tag = 'scoped memory for transformer_forward.1']
    #allocation4 [shape = 's32[1]{0}', space=sflag, size = 0x4, scoped, tag = 'scoped memory for transformer_forward.1']
    #allocation5 [shape = 'u8[8192]{0}', space=vmem, size = 0x2000, scoped, tag = 'input window, operand 5, single buffered']
    #allocation6 [shape = 's32[1]{0}', space=sflag, size = 0x4, scoped, tag = 'scoped memory for transformer_forward.1']
    #allocation7 [shape = 'u8[8192]{0}', space=vmem, size = 0x2000, scoped, tag = 'output window, operand 0, single buffered']
    %12 = vsyncpa [#allocation3], 0
    %13 = vsyncpa [#allocation6], 0
    %14 = vsyncpa [#allocation4], 0
    // Predicated region
    $region2: #{transformer_forward.1} parent=1 // pred_check
      _
    $region3: #{transformer_forward.1} parent=1 // pred_check_branch
      %16 = sbr.rel (0) target = $region5
    $region4: #{transformer_forward.1} parent=1 // pred_region
      %s18 = ssub.s32 256, 256
      %19 = vsyncadd [#allocation3], %s18
      %s20 = sshll.u32 [#allocation2], 4
      %s21 = int_to_ptr.vmem [resolvable:$true] %s20
      %26 = dma.hbm_to_vmem [thread:$0]  %s0, 256, %s21, [#allocation3], 128, 128, 8
    $region5: #{transformer_forward.1} parent=1 // pred_fallthru
      _
    // Predicated region
    $region6: #{transformer_forward.1} parent=1 // pred_check
      _
    $region7: #{transformer_forward.1} parent=1 // pred_check_branch
      %28 = sbr.rel (0) target = $region9
    $region8: #{transformer_forward.1} parent=1 // pred_region
      _
    $region9: #{transformer_forward.1} parent=1 // pred_fallthru
      _
    // Predicated region
    $region10: #{transformer_forward.1} parent=1 // pred_check
      _
    $region11: #{transformer_forward.1} parent=1 // pred_check_branch
      %30 = sbr.rel (0) target = $region13
    $region12: #{transformer_forward.1} parent=1 // pred_region
      _
    $region13: #{transformer_forward.1} parent=1 // pred_fallthru
      _
    // Predicated region
    $region14: #{transformer_forward.1} parent=1 // pred_check
      _
    $region15: #{transformer_forward.1} parent=1 // pred_check_branch
      %32 = sbr.rel (0) target = $region17
    $region16: #{transformer_forward.1} parent=1 // pred_region
      _
    $region17: #{transformer_forward.1} parent=1 // pred_fallthru
      _
    // Predicated region
    $region18: #{transformer_forward.1} parent=1 // pred_check
      _
    $region19: #{transformer_forward.1} parent=1 // pred_check_branch
      %34 = sbr.rel (0) target = $region21
    $region20: #{transformer_forward.1} parent=1 // pred_region
      _
    $region21: #{transformer_forward.1} parent=1 // pred_fallthru
      _
    // Predicated region
    $region22: #{transformer_forward.1} parent=1 // pred_check
      _
    $region23: #{transformer_forward.1} parent=1 // pred_check_branch
      %36 = sbr.rel (0) target = $region25
    $region24: #{transformer_forward.1} parent=1 // pred_region
      %s38 = ssub.s32 256, 256
      %39 = vsyncadd [#allocation6], %s38
      %s40 = sshll.u32 [#allocation5], 4
      %s41 = int_to_ptr.vmem [resolvable:$true] %s40
      %46 = dma.hbm_to_vmem [thread:$0]  %s5, 256, %s41, [#allocation6], 128, 128, 8
    $region25: #{transformer_forward.1} parent=1 // pred_fallthru
      _
    // Predicated region
    $region26: #{transformer_forward.1} parent=1 // pred_check
      _
    $region27: #{transformer_forward.1} parent=1 // pred_check_branch
      %48 = sbr.rel (0) target = $region29
    $region28: #{transformer_forward.1} parent=1 // pred_region
      _
    $region29: #{transformer_forward.1} parent=1 // pred_fallthru
      _
    // Predicated region
    $region30: #{transformer_forward.1} parent=1 // pred_check
      _
    $region31: #{transformer_forward.1} parent=1 // pred_check_branch
      %50 = sbr.rel (0) target = $region33
    $region32: #{transformer_forward.1} parent=1 // pred_region
      %51 = dma.done [#allocation3], 256
    $region33: #{transformer_forward.1} parent=1 // pred_fallthru
      _
    // Predicated region
    $region34: #{transformer_forward.1} parent=1 // pred_check
      _
    $region35: #{transformer_forward.1} parent=1 // pred_check_branch
      %53 = sbr.rel (0) target = $region37
    $region36: #{transformer_forward.1} parent=1 // pred_region
      %54 = dma.done [#allocation6], 256
    $region37: #{transformer_forward.1} parent=1 // pred_fallthru
      _
    %v55 = vld [vmem:[#allocation2] sm:$0xff]
    %v56 = vld [vmem:[#allocation2 + $0x8] sm:$0xff]
    %v57 = vld [vmem:[#allocation5] sm:$0x1]
    %v58 = vld [vmem:[#allocation5 + $0x1] sm:$0x1]
    %v59 = vld [vmem:[#allocation5 + $0x2] sm:$0x1]
    %v60 = vld [vmem:[#allocation5 + $0x3] sm:$0x1]
    %v61 = vld [vmem:[#allocation5 + $0x4] sm:$0x1]
    %v62 = vld [vmem:[#allocation5 + $0x5] sm:$0x1]
    %v63 = vld [vmem:[%s6] sm:$0x1]
    %vm64 = vcmask 261120
    %v65 = vsel %vm64, %v55, 0.0
    %66 = vadd.xlane.f32.xlu0 %v65
    %v67 = vpop.xlane.xlu0 %66
    %v68 = vsel %vm64, %v56, 0.0
    %69 = vadd.xlane.f32.xlu0 %v68
    %v70 = vpop.xlane.xlu0 %69
    %v71 = vrcp.pop 32.0
    %v72 = vmul.f32 %v67, %v71
    %v73 = vmul.f32 %v70, %v71
    %v74 = vsub.f32 %v55, %v72
    %v75 = vsub.f32 %v56, %v73
    %v76 = vmul.f32 %v74, %v74
    %v77 = vmul.f32 %v75, %v75
    %v78 = vsel %vm64, %v76, 0.0
    %79 = vadd.xlane.f32.xlu0 %v78
    %v80 = vpop.xlane.xlu0 %79
    %v81 = vsel %vm64, %v77, 0.0
    %82 = vadd.xlane.f32.xlu0 %v81
    %v83 = vpop.xlane.xlu0 %82
    %v84 = vmul.f32 %v80, %v71
    %v85 = vmul.f32 %v83, %v71
    %v86 = vadd.f32 %v84, 1e-05
    %v87 = vadd.f32 %v85, 1e-05
    %v88 = vrsqrt.pop %v86
    %v89 = vrsqrt.pop %v87
    %v90 = vmul.f32 %v74, %v88
    %v91 = vmul.f32 %v75, %v89
    %v92 = vlaneseq
    %v93 = vshrl.u32 %v92, 7
    %v94 = vsub.s32 0, %v93
    %v95 = vrot.slane %v57, %v94
    %v96 = vmul.f32 %v90, %v95
    %v97 = vmul.f32 %v91, %v95
    %v98 = vlaneseq
    %v99 = vshrl.u32 %v98, 7
    %v100 = vsub.s32 0, %v99
    %v101 = vrot.slane %v58, %v100
    %v102 = vadd.f32 %v96, %v101
    %v103 = vadd.f32 %v97, %v101
    %v104 = vld [vmem:[%s1] sm:$0xff]
    %v105 = vld [vmem:[%s1 + $0x8] sm:$0xff]
    %v106 = vld [vmem:[%s1 + $0x10] sm:$0xff]
    %v107 = vld [vmem:[%s1 + $0x18] sm:$0xff]
    %v109 = vsel %vm64, %v102, 0
    %v112 = vsel %vm64, %v103, 0
    %114 = vmatprep.subr.mxu0 0.0
    %v115 = vand.u32 %v104, 4294901760
    %116 = vmatpush1.msra.mxu0 %v115
    %117 = vmatprep.subr.mxu0 0.0
    %v118 = vand.u32 %v105, 4294901760
    %119 = vmatpush1.msra.mxu0 %v118
    %120 = vmatprep.subr.mxu0 0.0
    %v121 = vand.u32 %v106, 4294901760
    %122 = vmatpush1.msra.mxu0 %v121
    %123 = vmatprep.subr.mxu0 0.0
    %v124 = vand.u32 %v107, 4294901760
    %125 = vmatpush1.msra.mxu0 %v124
    %126 = vmatprep.subr.mxu0 0.0
    %127 = vmatpush1.msra.mxu0 0.0
    %128 = vmatprep.subr.mxu0 0.0
    %129 = vmatpush1.msra.mxu0 0.0
    %130 = vmatprep.subr.mxu0 0.0
    %131 = vmatpush1.msra.mxu0 0.0
    %132 = vmatprep.subr.mxu0 0.0
    %133 = vmatpush1.msra.mxu0 0.0
    %134 = vmatprep.subr.mxu0 0.0
    %135 = vmatpush1.msra.mxu0 0.0
    %136 = vmatprep.subr.mxu0 0.0
    %137 = vmatpush1.msra.mxu0 0.0
    %138 = vmatprep.subr.mxu0 0.0
    %139 = vmatpush1.msra.mxu0 0.0
    %140 = vmatprep.subr.mxu0 0.0
    %141 = vmatpush1.msra.mxu0 0.0
    %142 = vmatprep.subr.mxu0 0.0
    %143 = vmatpush1.msra.mxu0 0.0
    %144 = vmatprep.subr.mxu0 0.0
    %145 = vmatpush1.msra.mxu0 0.0
    %146 = vmatprep.subr.mxu0 0.0
    %147 = vmatpush1.msra.mxu0 0.0
    %148 = vmatprep.subr.mxu0 0.0
    %149 = vmatpush1.msra.mxu0 0.0
    %150 = vmatprep.subr.mxu0 0.0
    %151 = vmatpush1.msra.mxu0 0.0
    %152 = vmatprep.subr.mxu0 0.0
    %153 = vmatpush1.msra.mxu0 0.0
    %154 = vmatprep.subr.mxu0 0.0
    %155 = vmatpush1.msra.mxu0 0.0
    %156 = vmatprep.subr.mxu0 0.0
    %157 = vmatpush1.msra.mxu0 0.0
    %158 = vmatprep.subr.mxu0 0.0
    %159 = vmatpush1.msra.mxu0 0.0
    %160 = vmatprep.subr.mxu0 0.0
    %161 = vmatpush1.msra.mxu0 0.0
    %162 = vmatprep.subr.mxu0 0.0
    %163 = vmatpush1.msra.mxu0 0.0
    %164 = vmatprep.subr.mxu0 0.0
    %165 = vmatpush1.msra.mxu0 0.0
    %166 = vmatprep.subr.mxu0 0.0
    %167 = vmatpush1.msra.mxu0 0.0
    %168 = vmatprep.subr.mxu0 0.0
    %169 = vmatpush1.msra.mxu0 0.0
    %170 = vmatprep.subr.mxu0 0.0
    %171 = vmatpush1.msra.mxu0 0.0
    %172 = vmatprep.subr.mxu0 0.0
    %173 = vmatpush1.msra.mxu0 0.0
    %174 = vmatprep.subr.mxu0 0.0
    %175 = vmatpush1.msra.mxu0 0.0
    %176 = vmatprep.subr.mxu0 0.0
    %177 = vmatpush1.msra.mxu0 0.0
    %178 = vmatprep.subr.mxu0 0.0
    %179 = vmatpush1.msra.mxu0 0.0
    %180 = vmatprep.subr.mxu0 0.0
    %181 = vmatpush1.msra.mxu0 0.0
    %182 = vmatprep.mubr.f32.mxu0 0.0
    %v183 = vand.u32 %v109, 4294901760
    %v184 = vsub.f32 %v109, %v183
    %v185 = vand.u32 %v184, 4294901760
    %v186 = vsub.f32 %v184, %v185
    %v187 = vand.u32 %v186, 4294901760
    %188 = vmatmul.mubr.f32.gmra.mrb[0].mxu0 %v187
    %v189 = vpop.f32.mrb[0].mxu0
    %v190 = vadd.f32 0.0, %v189
    %v191 = vpop.f32.mrb[0].mxu0
    %192 = vmatprep.mubr.f32.mxu0 0.0
    %v193 = vand.u32 %v112, 4294901760
    %v194 = vsub.f32 %v112, %v193
    %v195 = vand.u32 %v194, 4294901760
    %v196 = vsub.f32 %v194, %v195
    %v197 = vand.u32 %v196, 4294901760
    %198 = vmatmul.mubr.f32.gmra.mrb[0].mxu0 %v197
    %v199 = vpop.f32.mrb[0].mxu0
    %v200 = vadd.f32 0.0, %v199
    %v201 = vpop.f32.mrb[0].mxu0
    %202 = vdwg.mxu0
    %203 = vmatprep.subr.mxu0 0.0
    %v204 = vand.u32 %v104, 4294901760
    %v205 = vsub.f32 %v104, %v204
    %v206 = vand.u32 %v205, 4294901760
    %v207 = vsub.f32 %v205, %v206
    %v208 = vand.u32 %v207, 4294901760
    %209 = vmatpush1.msra.mxu0 %v208
    %210 = vmatprep.subr.mxu0 0.0
    %v211 = vand.u32 %v105, 4294901760
    %v212 = vsub.f32 %v105, %v211
    %v213 = vand.u32 %v212, 4294901760
    %v214 = vsub.f32 %v212, %v213
    %v215 = vand.u32 %v214, 4294901760
    %216 = vmatpush1.msra.mxu0 %v215
    %217 = vmatprep.subr.mxu0 0.0
    %v218 = vand.u32 %v106, 4294901760
    %v219 = vsub.f32 %v106, %v218
    %v220 = vand.u32 %v219, 4294901760
    %v221 = vsub.f32 %v219, %v220
    %v222 = vand.u32 %v221, 4294901760
    %223 = vmatpush1.msra.mxu0 %v222
    %224 = vmatprep.subr.mxu0 0.0
    %v225 = vand.u32 %v107, 4294901760
    %v226 = vsub.f32 %v107, %v225
    %v227 = vand.u32 %v226, 4294901760
    %v228 = vsub.f32 %v226, %v227
    %v229 = vand.u32 %v228, 4294901760
    %230 = vmatpush1.msra.mxu0 %v229
    %231 = vmatprep.subr.mxu0 0.0
    %232 = vmatpush1.msra.mxu0 0.0
    %233 = vmatprep.subr.mxu0 0.0
    %234 = vmatpush1.msra.mxu0 0.0
    %235 = vmatprep.subr.mxu0 0.0
    %236 = vmatpush1.msra.mxu0 0.0
    %237 = vmatprep.subr.mxu0 0.0
    %238 = vmatpush1.msra.mxu0 0.0
    %239 = vmatprep.subr.mxu0 0.0
    %240 = vmatpush1.msra.mxu0 0.0
    %241 = vmatprep.subr.mxu0 0.0
    %242 = vmatpush1.msra.mxu0 0.0
    %243 = vmatprep.subr.mxu0 0.0
    %244 = vmatpush1.msra.mxu0 0.0
    %245 = vmatprep.subr.mxu0 0.0
    %246 = vmatpush1.msra.mxu0 0.0
    %247 = vmatprep.subr.mxu0 0.0
    %248 = vmatpush1.msra.mxu0 0.0
    %249 = vmatprep.subr.mxu0 0.0
    %250 = vmatpush1.msra.mxu0 0.0
    %251 = vmatprep.subr.mxu0 0.0
    %252 = vmatpush1.msra.mxu0 0.0
    %253 = vmatprep.subr.mxu0 0.0
    %254 = vmatpush1.msra.mxu0 0.0
    %255 = vmatprep.subr.mxu0 0.0
    %256 = vmatpush1.msra.mxu0 0.0
    %257 = vmatprep.subr.mxu0 0.0
    %258 = vmatpush1.msra.mxu0 0.0
    %259 = vmatprep.subr.mxu0 0.0
    %260 = vmatpush1.msra.mxu0 0.0
    %261 = vmatprep.subr.mxu0 0.0
    %262 = vmatpush1.msra.mxu0 0.0
    %263 = vmatprep.subr.mxu0 0.0
    %264 = vmatpush1.msra.mxu0 0.0
    %265 = vmatprep.subr.mxu0 0.0
    %266 = vmatpush1.msra.mxu0 0.0
    %267 = vmatprep.subr.mxu0 0.0
    %268 = vmatpush1.msra.mxu0 0.0
    %269 = vmatprep.subr.mxu0 0.0
    %270 = vmatpush1.msra.mxu0 0.0
    %271 = vmatprep.subr.mxu0 0.0
    %272 = vmatpush1.msra.mxu0 0.0
    %273 = vmatprep.subr.mxu0 0.0
    %274 = vmatpush1.msra.mxu0 0.0
    %275 = vmatprep.subr.mxu0 0.0
    %276 = vmatpush1.msra.mxu0 0.0
    %277 = vmatprep.subr.mxu0 0.0
    %278 = vmatpush1.msra.mxu0 0.0
    %279 = vmatprep.subr.mxu0 0.0
    %280 = vmatpush1.msra.mxu0 0.0
    %281 = vmatprep.subr.mxu0 0.0
    %282 = vmatpush1.msra.mxu0 0.0
    %283 = vmatprep.subr.mxu0 0.0
    %284 = vmatpush1.msra.mxu0 0.0
    %285 = vmatprep.subr.mxu0 0.0
    %286 = vmatpush1.msra.mxu0 0.0
    %287 = vmatprep.mubr.f32.mxu0 0.0
    %v288 = vand.u32 %v109, 4294901760
    %289 = vmatmul.mubr.f32.gmra.mrb[0].mxu0 %v288
    %v290 = vpop.f32.mrb[0].mxu0
    %v291 = vadd.f32 %v190, %v290
    %v292 = vpop.f32.mrb[0].mxu0
    %293 = vmatprep.mubr.f32.mxu0 0.0
    %v294 = vand.u32 %v112, 4294901760
    %295 = vmatmul.mubr.f32.gmra.mrb[0].mxu0 %v294
    %v296 = vpop.f32.mrb[0].mxu0
    %v297 = vadd.f32 %v200, %v296
    %v298 = vpop.f32.mrb[0].mxu0
    %299 = vdwg.mxu0
    %300 = vmatprep.subr.mxu0 0.0
    %v301 = vand.u32 %v104, 4294901760
    %v302 = vsub.f32 %v104, %v301
    %303 = vmatpush1.msra.mxu0 %v302
    %304 = vmatprep.subr.mxu0 0.0
    %v305 = vand.u32 %v105, 4294901760
    %v306 = vsub.f32 %v105, %v305
    %307 = vmatpush1.msra.mxu0 %v306
    %308 = vmatprep.subr.mxu0 0.0
    %v309 = vand.u32 %v106, 4294901760
    %v310 = vsub.f32 %v106, %v309
    %311 = vmatpush1.msra.mxu0 %v310
    %312 = vmatprep.subr.mxu0 0.0
    %v313 = vand.u32 %v107, 4294901760
    %v314 = vsub.f32 %v107, %v313
    %315 = vmatpush1.msra.mxu0 %v314
    %316 = vmatprep.subr.mxu0 0.0
    %317 = vmatpush1.msra.mxu0 0.0
    %318 = vmatprep.subr.mxu0 0.0
    %319 = vmatpush1.msra.mxu0 0.0
    %320 = vmatprep.subr.mxu0 0.0
    %321 = vmatpush1.msra.mxu0 0.0
    %322 = vmatprep.subr.mxu0 0.0
    %323 = vmatpush1.msra.mxu0 0.0
    %324 = vmatprep.subr.mxu0 0.0
    %325 = vmatpush1.msra.mxu0 0.0
    %326 = vmatprep.subr.mxu0 0.0
    %327 = vmatpush1.msra.mxu0 0.0
    %328 = vmatprep.subr.mxu0 0.0
    %329 = vmatpush1.msra.mxu0 0.0
    %330 = vmatprep.subr.mxu0 0.0
    %331 = vmatpush1.msra.mxu0 0.0
    %332 = vmatprep.subr.mxu0 0.0
    %333 = vmatpush1.msra.mxu0 0.0
    %334 = vmatprep.subr.mxu0 0.0
    %335 = vmatpush1.msra.mxu0 0.0
    %336 = vmatprep.subr.mxu0 0.0
    %337 = vmatpush1.msra.mxu0 0.0
    %338 = vmatprep.subr.mxu0 0.0
    %339 = vmatpush1.msra.mxu0 0.0
    %340 = vmatprep.subr.mxu0 0.0
    %341 = vmatpush1.msra.mxu0 0.0
    %342 = vmatprep.subr.mxu0 0.0
    %343 = vmatpush1.msra.mxu0 0.0
    %344 = vmatprep.subr.mxu0 0.0
    %345 = vmatpush1.msra.mxu0 0.0
    %346 = vmatprep.subr.mxu0 0.0
    %347 = vmatpush1.msra.mxu0 0.0
    %348 = vmatprep.subr.mxu0 0.0
    %349 = vmatpush1.msra.mxu0 0.0
    %350 = vmatprep.subr.mxu0 0.0
    %351 = vmatpush1.msra.mxu0 0.0
    %352 = vmatprep.subr.mxu0 0.0
    %353 = vmatpush1.msra.mxu0 0.0
    %354 = vmatprep.subr.mxu0 0.0
    %355 = vmatpush1.msra.mxu0 0.0
    %356 = vmatprep.subr.mxu0 0.0
    %357 = vmatpush1.msra.mxu0 0.0
    %358 = vmatprep.subr.mxu0 0.0
    %359 = vmatpush1.msra.mxu0 0.0
    %360 = vmatprep.subr.mxu0 0.0
    %361 = vmatpush1.msra.mxu0 0.0
    %362 = vmatprep.subr.mxu0 0.0
    %363 = vmatpush1.msra.mxu0 0.0
    %364 = vmatprep.subr.mxu0 0.0
    %365 = vmatpush1.msra.mxu0 0.0
    %366 = vmatprep.subr.mxu0 0.0
    %367 = vmatpush1.msra.mxu0 0.0
    %368 = vmatprep.subr.mxu0 0.0
    %369 = vmatpush1.msra.mxu0 0.0
    %370 = vmatprep.subr.mxu0 0.0
    %371 = vmatpush1.msra.mxu0 0.0
    %372 = vmatprep.mubr.f32.mxu0 0.0
    %v373 = vand.u32 %v109, 4294901760
    %v374 = vsub.f32 %v109, %v373
    %375 = vmatmul.mubr.f32.gmra.mrb[0].mxu0 %v374
    %v376 = vpop.f32.mrb[0].mxu0
    %v377 = vadd.f32 %v291, %v376
    %v378 = vpop.f32.mrb[0].mxu0
    %379 = vmatprep.mubr.f32.mxu0 0.0
    %v380 = vand.u32 %v112, 4294901760
    %v381 = vsub.f32 %v112, %v380
    %382 = vmatmul.mubr.f32.gmra.mrb[0].mxu0 %v381
    %v383 = vpop.f32.mrb[0].mxu0
    %v384 = vadd.f32 %v297, %v383
    %v385 = vpop.f32.mrb[0].mxu0
    %386 = vdwg.mxu0
    %387 = vmatprep.subr.mxu0 0.0
    %v388 = vand.u32 %v104, 4294901760
    %389 = vmatpush1.msra.mxu0 %v388
    %390 = vmatprep.subr.mxu0 0.0
    %v391 = vand.u32 %v105, 4294901760
    %392 = vmatpush1.msra.mxu0 %v391
    %393 = vmatprep.subr.mxu0 0.0
    %v394 = vand.u32 %v106, 4294901760
    %395 = vmatpush1.msra.mxu0 %v394
    %396 = vmatprep.subr.mxu0 0.0
    %v397 = vand.u32 %v107, 4294901760
    %398 = vmatpush1.msra.mxu0 %v397
    %399 = vmatprep.subr.mxu0 0.0
    %400 = vmatpush1.msra.mxu0 0.0
    %401 = vmatprep.subr.mxu0 0.0
    %402 = vmatpush1.msra.mxu0 0.0
    %403 = vmatprep.subr.mxu0 0.0
    %404 = vmatpush1.msra.mxu0 0.0
    %405 = vmatprep.subr.mxu0 0.0
    %406 = vmatpush1.msra.mxu0 0.0
    %407 = vmatprep.subr.mxu0 0.0
    %408 = vmatpush1.msra.mxu0 0.0
    %409 = vmatprep.subr.mxu0 0.0
    %410 = vmatpush1.msra.mxu0 0.0
    %411 = vmatprep.subr.mxu0 0.0
    %412 = vmatpush1.msra.mxu0 0.0
    %413 = vmatprep.subr.mxu0 0.0
    %414 = vmatpush1.msra.mxu0 0.0
    %415 = vmatprep.subr.mxu0 0.0
    %416 = vmatpush1.msra.mxu0 0.0
    %417 = vmatprep.subr.mxu0 0.0
    %418 = vmatpush1.msra.mxu0 0.0
    %419 = vmatprep.subr.mxu0 0.0
    %420 = vmatpush1.msra.mxu0 0.0
    %421 = vmatprep.subr.mxu0 0.0
    %422 = vmatpush1.msra.mxu0 0.0
    %423 = vmatprep.subr.mxu0 0.0
    %424 = vmatpush1.msra.mxu0 0.0
    %425 = vmatprep.subr.mxu0 0.0
    %426 = vmatpush1.msra.mxu0 0.0
    %427 = vmatprep.subr.mxu0 0.0
    %428 = vmatpush1.msra.mxu0 0.0
    %429 = vmatprep.subr.mxu0 0.0
    %430 = vmatpush1.msra.mxu0 0.0
    %431 = vmatprep.subr.mxu0 0.0
    %432 = vmatpush1.msra.mxu0 0.0
    %433 = vmatprep.subr.mxu0 0.0
    %434 = vmatpush1.msra.mxu0 0.0
    %435 = vmatprep.subr.mxu0 0.0
    %436 = vmatpush1.msra.mxu0 0.0
    %437 = vmatprep.subr.mxu0 0.0
    %438 = vmatpush1.msra.mxu0 0.0
    %439 = vmatprep.subr.mxu0 0.0
    %440 = vmatpush1.msra.mxu0 0.0
    %441 = vmatprep.subr.mxu0 0.0
    %442 = vmatpush1.msra.mxu0 0.0
    %443 = vmatprep.subr.mxu0 0.0
    %444 = vmatpush1.msra.mxu0 0.0
    %445 = vmatprep.subr.mxu0 0.0
    %446 = vmatpush1.msra.mxu0 0.0
    %447 = vmatprep.subr.mxu0 0.0
    %448 = vmatpush1.msra.mxu0 0.0
    %449 = vmatprep.subr.mxu0 0.0
    %450 = vmatpush1.msra.mxu0 0.0
    %451 = vmatprep.subr.mxu0 0.0
    %452 = vmatpush1.msra.mxu0 0.0
    %453 = vmatprep.subr.mxu0 0.0
    %454 = vmatpush1.msra.mxu0 0.0
    %455 = vmatprep.mubr.f32.mxu0 0.0
    %v456 = vand.u32 %v109, 4294901760
    %v457 = vsub.f32 %v109, %v456
    %v458 = vand.u32 %v457, 4294901760
    %459 = vmatmul.mubr.f32.gmra.mrb[0].mxu0 %v458
    %v460 = vpop.f32.mrb[0].mxu0
    %v461 = vadd.f32 %v377, %v460
    %v462 = vpop.f32.mrb[0].mxu0
    %463 = vmatprep.mubr.f32.mxu0 0.0
    %v464 = vand.u32 %v112, 4294901760
    %v465 = vsub.f32 %v112, %v464
    %v466 = vand.u32 %v465, 4294901760
    %467 = vmatmul.mubr.f32.gmra.mrb[0].mxu0 %v466
    %v468 = vpop.f32.mrb[0].mxu0
    %v469 = vadd.f32 %v384, %v468
    %v470 = vpop.f32.mrb[0].mxu0
    %471 = vdwg.mxu0
    %472 = vmatprep.subr.mxu0 0.0
    %v473 = vand.u32 %v104, 4294901760
    %v474 = vsub.f32 %v104, %v473
    %v475 = vand.u32 %v474, 4294901760
    %476 = vmatpush1.msra.mxu0 %v475
    %477 = vmatprep.subr.mxu0 0.0
    %v478 = vand.u32 %v105, 4294901760
    %v479 = vsub.f32 %v105, %v478
    %v480 = vand.u32 %v479, 4294901760
    %481 = vmatpush1.msra.mxu0 %v480
    %482 = vmatprep.subr.mxu0 0.0
    %v483 = vand.u32 %v106, 4294901760
    %v484 = vsub.f32 %v106, %v483
    %v485 = vand.u32 %v484, 4294901760
    %486 = vmatpush1.msra.mxu0 %v485
    %487 = vmatprep.subr.mxu0 0.0
    %v488 = vand.u32 %v107, 4294901760
    %v489 = vsub.f32 %v107, %v488
    %v490 = vand.u32 %v489, 4294901760
    %491 = vmatpush1.msra.mxu0 %v490
    %492 = vmatprep.subr.mxu0 0.0
    %493 = vmatpush1.msra.mxu0 0.0
    %494 = vmatprep.subr.mxu0 0.0
    %495 = vmatpush1.msra.mxu0 0.0
    %496 = vmatprep.subr.mxu0 0.0
    %497 = vmatpush1.msra.mxu0 0.0
    %498 = vmatprep.subr.mxu0 0.0
    %499 = vmatpush1.msra.mxu0 0.0
    %500 = vmatprep.subr.mxu0 0.0
    %501 = vmatpush1.msra.mxu0 0.0
    %502 = vmatprep.subr.mxu0 0.0
    %503 = vmatpush1.msra.mxu0 0.0
    %504 = vmatprep.subr.mxu0 0.0
    %505 = vmatpush1.msra.mxu0 0.0
    %506 = vmatprep.subr.mxu0 0.0
    %507 = vmatpush1.msra.mxu0 0.0
    %508 = vmatprep.subr.mxu0 0.0
    %509 = vmatpush1.msra.mxu0 0.0
    %510 = vmatprep.subr.mxu0 0.0
    %511 = vmatpush1.msra.mxu0 0.0
    %512 = vmatprep.subr.mxu0 0.0
    %513 = vmatpush1.msra.mxu0 0.0
    %514 = vmatprep.subr.mxu0 0.0
    %515 = vmatpush1.msra.mxu0 0.0
    %516 = vmatprep.subr.mxu0 0.0
    %517 = vmatpush1.msra.mxu0 0.0
    %518 = vmatprep.subr.mxu0 0.0
    %519 = vmatpush1.msra.mxu0 0.0
    %520 = vmatprep.subr.mxu0 0.0
    %521 = vmatpush1.msra.mxu0 0.0
    %522 = vmatprep.subr.mxu0 0.0
    %523 = vmatpush1.msra.mxu0 0.0
    %524 = vmatprep.subr.mxu0 0.0
    %525 = vmatpush1.msra.mxu0 0.0
    %526 = vmatprep.subr.mxu0 0.0
    %527 = vmatpush1.msra.mxu0 0.0
    %528 = vmatprep.subr.mxu0 0.0
    %529 = vmatpush1.msra.mxu0 0.0
    %530 = vmatprep.subr.mxu0 0.0
    %531 = vmatpush1.msra.mxu0 0.0
    %532 = vmatprep.subr.mxu0 0.0
    %533 = vmatpush1.msra.mxu0 0.0
    %534 = vmatprep.subr.mxu0 0.0
    %535 = vmatpush1.msra.mxu0 0.0
    %536 = vmatprep.subr.mxu0 0.0
    %537 = vmatpush1.msra.mxu0 0.0
    %538 = vmatprep.subr.mxu0 0.0
    %539 = vmatpush1.msra.mxu0 0.0
    %540 = vmatprep.subr.mxu0 0.0
    %541 = vmatpush1.msra.mxu0 0.0
    %542 = vmatprep.subr.mxu0 0.0
    %543 = vmatpush1.msra.mxu0 0.0
    %544 = vmatprep.subr.mxu0 0.0
    %545 = vmatpush1.msra.mxu0 0.0
    %546 = vmatprep.subr.mxu0 0.0
    %547 = vmatpush1.msra.mxu0 0.0
    %548 = vmatprep.mubr.f32.mxu0 0.0
    %v549 = vand.u32 %v109, 4294901760
    %550 = vmatmul.mubr.f32.gmra.mrb[0].mxu0 %v549
    %v551 = vpop.f32.mrb[0].mxu0
    %v552 = vadd.f32 %v461, %v551
    %v553 = vpop.f32.mrb[0].mxu0
    %554 = vmatprep.mubr.f32.mxu0 0.0
    %v555 = vand.u32 %v112, 4294901760
    %556 = vmatmul.mubr.f32.gmra.mrb[0].mxu0 %v555
    %v557 = vpop.f32.mrb[0].mxu0
    %v558 = vadd.f32 %v469, %v557
    %v559 = vpop.f32.mrb[0].mxu0
    %560 = vdwg.mxu0
    %561 = vmatprep.subr.mxu0 0.0
    %v562 = vand.u32 %v104, 4294901760
    %563 = vmatpush1.msra.mxu0 %v562
    %564 = vmatprep.subr.mxu0 0.0
    %v565 = vand.u32 %v105, 4294901760
    %566 = vmatpush1.msra.mxu0 %v565
    %567 = vmatprep.subr.mxu0 0.0
    %v568 = vand.u32 %v106, 4294901760
    %569 = vmatpush1.msra.mxu0 %v568
    %570 = vmatprep.subr.mxu0 0.0
    %v571 = vand.u32 %v107, 4294901760
    %572 = vmatpush1.msra.mxu0 %v571
    %573 = vmatprep.subr.mxu0 0.0
    %574 = vmatpush1.msra.mxu0 0.0
    %575 = vmatprep.subr.mxu0 0.0
    %576 = vmatpush1.msra.mxu0 0.0
    %577 = vmatprep.subr.mxu0 0.0
    %578 = vmatpush1.msra.mxu0 0.0
    %579 = vmatprep.subr.mxu0 0.0
    %580 = vmatpush1.msra.mxu0 0.0
    %581 = vmatprep.subr.mxu0 0.0
    %582 = vmatpush1.msra.mxu0 0.0
    %583 = vmatprep.subr.mxu0 0.0
    %584 = vmatpush1.msra.mxu0 0.0
    %585 = vmatprep.subr.mxu0 0.0
    %586 = vmatpush1.msra.mxu0 0.0
    %587 = vmatprep.subr.mxu0 0.0
    %588 = vmatpush1.msra.mxu0 0.0
    %589 = vmatprep.subr.mxu0 0.0
    %590 = vmatpush1.msra.mxu0 0.0
    %591 = vmatprep.subr.mxu0 0.0
    %592 = vmatpush1.msra.mxu0 0.0
    %593 = vmatprep.subr.mxu0 0.0
    %594 = vmatpush1.msra.mxu0 0.0
    %595 = vmatprep.subr.mxu0 0.0
    %596 = vmatpush1.msra.mxu0 0.0
    %597 = vmatprep.subr.mxu0 0.0
    %598 = vmatpush1.msra.mxu0 0.0
    %599 = vmatprep.subr.mxu0 0.0
    %600 = vmatpush1.msra.mxu0 0.0
    %601 = vmatprep.subr.mxu0 0.0
    %602 = vmatpush1.msra.mxu0 0.0
    %603 = vmatprep.subr.mxu0 0.0
    %604 = vmatpush1.msra.mxu0 0.0
    %605 = vmatprep.subr.mxu0 0.0
    %606 = vmatpush1.msra.mxu0 0.0
    %607 = vmatprep.subr.mxu0 0.0
    %608 = vmatpush1.msra.mxu0 0.0
    %609 = vmatprep.subr.mxu0 0.0
    %610 = vmatpush1.msra.mxu0 0.0
    %611 = vmatprep.subr.mxu0 0.0
    %612 = vmatpush1.msra.mxu0 0.0
    %613 = vmatprep.subr.mxu0 0.0
    %614 = vmatpush1.msra.mxu0 0.0
    %615 = vmatprep.subr.mxu0 0.0
    %616 = vmatpush1.msra.mxu0 0.0
    %617 = vmatprep.subr.mxu0 0.0
    %618 = vmatpush1.msra.mxu0 0.0
    %619 = vmatprep.subr.mxu0 0.0
    %620 = vmatpush1.msra.mxu0 0.0
    %621 = vmatprep.subr.mxu0 0.0
    %622 = vmatpush1.msra.mxu0 0.0
    %623 = vmatprep.subr.mxu0 0.0
    %624 = vmatpush1.msra.mxu0 0.0
    %625 = vmatprep.subr.mxu0 0.0
    %626 = vmatpush1.msra.mxu0 0.0
    %627 = vmatprep.subr.mxu0 0.0
    %628 = vmatpush1.msra.mxu0 0.0
    %629 = vmatprep.mubr.f32.mxu0 0.0
    %v630 = vand.u32 %v109, 4294901760
    %631 = vmatmul.mubr.f32.gmra.mrb[0].mxu0 %v630
    %v632 = vpop.f32.mrb[0].mxu0
    %v633 = vadd.f32 %v552, %v632
    %v634 = vpop.f32.mrb[0].mxu0
    %635 = vmatprep.mubr.f32.mxu0 0.0
    %v636 = vand.u32 %v112, 4294901760
    %637 = vmatmul.mubr.f32.gmra.mrb[0].mxu0 %v636
    %v638 = vpop.f32.mrb[0].mxu0
    %v639 = vadd.f32 %v558, %v638
    %v640 = vpop.f32.mrb[0].mxu0
    %641 = vdwg.mxu0
    %643 = vrot.lane.b32.xlu0 %v633, 96
    %v644 = vpop.permute.xlu0 %643
    %vm645 = vcmask 130048
    %v646 = vsel %vm645, %v633, 0
    %v648 = vsel %vm645, %v644, 0
    %650 = vmatprep.subr.mxu0 0.0
    %v651 = vand.u32 %v648, 4294901760
    %652 = vmatpush1.xpose.msra.mxu0 %v651
    %653 = vmatprep.subr.mxu0 0.0
    %654 = vmatpush1.xpose.msra.mxu0 0.0
    %655 = vmatprep.subr.mxu0 0.0
    %656 = vmatpush1.xpose.msra.mxu0 0.0
    %657 = vmatprep.subr.mxu0 0.0
    %658 = vmatpush1.xpose.msra.mxu0 0.0
    %659 = vmatprep.subr.mxu0 0.0
    %660 = vmatpush1.xpose.msra.mxu0 0.0
    %661 = vmatprep.subr.mxu0 0.0
    %662 = vmatpush1.xpose.msra.mxu0 0.0
    %663 = vmatprep.subr.mxu0 0.0
    %664 = vmatpush1.xpose.msra.mxu0 0.0
    %665 = vmatprep.subr.mxu0 0.0
    %666 = vmatpush1.xpose.msra.mxu0 0.0
    %667 = vmatprep.subr.mxu0 0.0
    %668 = vmatpush1.xpose.msra.mxu0 0.0
    %669 = vmatprep.subr.mxu0 0.0
    %670 = vmatpush1.xpose.msra.mxu0 0.0
    %671 = vmatprep.subr.mxu0 0.0
    %672 = vmatpush1.xpose.msra.mxu0 0.0
    %673 = vmatprep.subr.mxu0 0.0
    %674 = vmatpush1.xpose.msra.mxu0 0.0
    %675 = vmatprep.subr.mxu0 0.0
    %676 = vmatpush1.xpose.msra.mxu0 0.0
    %677 = vmatprep.subr.mxu0 0.0
    %678 = vmatpush1.xpose.msra.mxu0 0.0
    %679 = vmatprep.subr.mxu0 0.0
    %680 = vmatpush1.xpose.msra.mxu0 0.0
    %681 = vmatprep.subr.mxu0 0.0
    %682 = vmatpush1.xpose.msra.mxu0 0.0
    %683 = vmatprep.subr.mxu0 0.0
    %684 = vmatpush1.xpose.msra.mxu0 0.0
    %685 = vmatprep.subr.mxu0 0.0
    %686 = vmatpush1.xpose.msra.mxu0 0.0
    %687 = vmatprep.subr.mxu0 0.0
    %688 = vmatpush1.xpose.msra.mxu0 0.0
    %689 = vmatprep.subr.mxu0 0.0
    %690 = vmatpush1.xpose.msra.mxu0 0.0
    %691 = vmatprep.subr.mxu0 0.0
    %692 = vmatpush1.xpose.msra.mxu0 0.0
    %693 = vmatprep.subr.mxu0 0.0
    %694 = vmatpush1.xpose.msra.mxu0 0.0
    %695 = vmatprep.subr.mxu0 0.0
    %696 = vmatpush1.xpose.msra.mxu0 0.0
    %697 = vmatprep.subr.mxu0 0.0
    %698 = vmatpush1.xpose.msra.mxu0 0.0
    %699 = vmatprep.subr.mxu0 0.0
    %700 = vmatpush1.xpose.msra.mxu0 0.0
    %701 = vmatprep.subr.mxu0 0.0
    %702 = vmatpush1.xpose.msra.mxu0 0.0
    %703 = vmatprep.subr.mxu0 0.0
    %704 = vmatpush1.xpose.msra.mxu0 0.0
    %705 = vmatprep.subr.mxu0 0.0
    %706 = vmatpush1.xpose.msra.mxu0 0.0
    %707 = vmatprep.subr.mxu0 0.0
    %708 = vmatpush1.xpose.msra.mxu0 0.0
    %709 = vmatprep.subr.mxu0 0.0
    %710 = vmatpush1.xpose.msra.mxu0 0.0
    %711 = vmatprep.subr.mxu0 0.0
    %712 = vmatpush1.xpose.msra.mxu0 0.0
    %713 = vmatprep.subr.mxu0 0.0
    %714 = vmatpush1.xpose.msra.mxu0 0.0
    %715 = vmatprep.mubr.f32.mxu0 0.0
    %v716 = vand.u32 %v646, 4294901760
    %v717 = vsub.f32 %v646, %v716
    %v718 = vand.u32 %v717, 4294901760
    %v719 = vsub.f32 %v717, %v718
    %v720 = vand.u32 %v719, 4294901760
    %721 = vmatmul.mubr.f32.gmra.mrb[0].mxu0 %v720
    %v722 = vpop.f32.mrb[0].mxu0
    %v723 = vadd.f32 0.0, %v722
    %v724 = vpop.f32.mrb[0].mxu0
    %725 = vdwg.mxu0
    %726 = vmatprep.subr.mxu0 0.0
    %v727 = vand.u32 %v648, 4294901760
    %v728 = vsub.f32 %v648, %v727
    %v729 = vand.u32 %v728, 4294901760
    %v730 = vsub.f32 %v728, %v729
    %v731 = vand.u32 %v730, 4294901760
    %732 = vmatpush1.xpose.msra.mxu0 %v731
    %733 = vmatprep.subr.mxu0 0.0
    %734 = vmatpush1.xpose.msra.mxu0 0.0
    %735 = vmatprep.subr.mxu0 0.0
    %736 = vmatpush1.xpose.msra.mxu0 0.0
    %737 = vmatprep.subr.mxu0 0.0
    %738 = vmatpush1.xpose.msra.mxu0 0.0
    %739 = vmatprep.subr.mxu0 0.0
    %740 = vmatpush1.xpose.msra.mxu0 0.0
    %741 = vmatprep.subr.mxu0 0.0
    %742 = vmatpush1.xpose.msra.mxu0 0.0
    %743 = vmatprep.subr.mxu0 0.0
    %744 = vmatpush1.xpose.msra.mxu0 0.0
    %745 = vmatprep.subr.mxu0 0.0
    %746 = vmatpush1.xpose.msra.mxu0 0.0
    %747 = vmatprep.subr.mxu0 0.0
    %748 = vmatpush1.xpose.msra.mxu0 0.0
    %749 = vmatprep.subr.mxu0 0.0
    %750 = vmatpush1.xpose.msra.mxu0 0.0
    %751 = vmatprep.subr.mxu0 0.0
    %752 = vmatpush1.xpose.msra.mxu0 0.0
    %753 = vmatprep.subr.mxu0 0.0
    %754 = vmatpush1.xpose.msra.mxu0 0.0
    %755 = vmatprep.subr.mxu0 0.0
    %756 = vmatpush1.xpose.msra.mxu0 0.0
    %757 = vmatprep.subr.mxu0 0.0
    %758 = vmatpush1.xpose.msra.mxu0 0.0
    %759 = vmatprep.subr.mxu0 0.0
    %760 = vmatpush1.xpose.msra.mxu0 0.0
    %761 = vmatprep.subr.mxu0 0.0
    %762 = vmatpush1.xpose.msra.mxu0 0.0
    %763 = vmatprep.subr.mxu0 0.0
    %764 = vmatpush1.xpose.msra.mxu0 0.0
    %765 = vmatprep.subr.mxu0 0.0
    %766 = vmatpush1.xpose.msra.mxu0 0.0
    %767 = vmatprep.subr.mxu0 0.0
    %768 = vmatpush1.xpose.msra.mxu0 0.0
    %769 = vmatprep.subr.mxu0 0.0
    %770 = vmatpush1.xpose.msra.mxu0 0.0
    %771 = vmatprep.subr.mxu0 0.0
    %772 = vmatpush1.xpose.msra.mxu0 0.0
    %773 = vmatprep.subr.mxu0 0.0
    %774 = vmatpush1.xpose.msra.mxu0 0.0
    %775 = vmatprep.subr.mxu0 0.0
    %776 = vmatpush1.xpose.msra.mxu0 0.0
    %777 = vmatprep.subr.mxu0 0.0
    %778 = vmatpush1.xpose.msra.mxu0 0.0
    %779 = vmatprep.subr.mxu0 0.0
    %780 = vmatpush1.xpose.msra.mxu0 0.0
    %781 = vmatprep.subr.mxu0 0.0
    %782 = vmatpush1.xpose.msra.mxu0 0.0
    %783 = vmatprep.subr.mxu0 0.0
    %784 = vmatpush1.xpose.msra.mxu0 0.0
    %785 = vmatprep.subr.mxu0 0.0
    %786 = vmatpush1.xpose.msra.mxu0 0.0
    %787 = vmatprep.subr.mxu0 0.0
    %788 = vmatpush1.xpose.msra.mxu0 0.0
    %789 = vmatprep.subr.mxu0 0.0
    %790 = vmatpush1.xpose.msra.mxu0 0.0
    %791 = vmatprep.subr.mxu0 0.0
    %792 = vmatpush1.xpose.msra.mxu0 0.0
    %793 = vmatprep.subr.mxu0 0.0
    %794 = vmatpush1.xpose.msra.mxu0 0.0
    %795 = vmatprep.mubr.f32.mxu0 0.0
    %v796 = vand.u32 %v646, 4294901760
    %797 = vmatmul.mubr.f32.gmra.mrb[0].mxu0 %v796
    %v798 = vpop.f32.mrb[0].mxu0
    %v799 = vadd.f32 %v723, %v798
    %v800 = vpop.f32.mrb[0].mxu0
    %801 = vdwg.mxu0
    %802 = vmatprep.subr.mxu0 0.0
    %v803 = vand.u32 %v648, 4294901760
    %v804 = vsub.f32 %v648, %v803
    %805 = vmatpush1.xpose.msra.mxu0 %v804
    %806 = vmatprep.subr.mxu0 0.0
    %807 = vmatpush1.xpose.msra.mxu0 0.0
    %808 = vmatprep.subr.mxu0 0.0
    %809 = vmatpush1.xpose.msra.mxu0 0.0
    %810 = vmatprep.subr.mxu0 0.0
    %811 = vmatpush1.xpose.msra.mxu0 0.0
    %812 = vmatprep.subr.mxu0 0.0
    %813 = vmatpush1.xpose.msra.mxu0 0.0
    %814 = vmatprep.subr.mxu0 0.0
    %815 = vmatpush1.xpose.msra.mxu0 0.0
    %816 = vmatprep.subr.mxu0 0.0
    %817 = vmatpush1.xpose.msra.mxu0 0.0
    %818 = vmatprep.subr.mxu0 0.0
    %819 = vmatpush1.xpose.msra.mxu0 0.0
    %820 = vmatprep.subr.mxu0 0.0
    %821 = vmatpush1.xpose.msra.mxu0 0.0
    %822 = vmatprep.subr.mxu0 0.0
    %823 = vmatpush1.xpose.msra.mxu0 0.0
    %824 = vmatprep.subr.mxu0 0.0
    %825 = vmatpush1.xpose.msra.mxu0 0.0
    %826 = vmatprep.subr.mxu0 0.0
    %827 = vmatpush1.xpose.msra.mxu0 0.0
    %828 = vmatprep.subr.mxu0 0.0
    %829 = vmatpush1.xpose.msra.mxu0 0.0
    %830 = vmatprep.subr.mxu0 0.0
    %831 = vmatpush1.xpose.msra.mxu0 0.0
    %832 = vmatprep.subr.mxu0 0.0
    %833 = vmatpush1.xpose.msra.mxu0 0.0
    %834 = vmatprep.subr.mxu0 0.0
    %835 = vmatpush1.xpose.msra.mxu0 0.0
    %836 = vmatprep.subr.mxu0 0.0
    %837 = vmatpush1.xpose.msra.mxu0 0.0
    %838 = vmatprep.subr.mxu0 0.0
    %839 = vmatpush1.xpose.msra.mxu0 0.0
    %840 = vmatprep.subr.mxu0 0.0
    %841 = vmatpush1.xpose.msra.mxu0 0.0
    %842 = vmatprep.subr.mxu0 0.0
    %843 = vmatpush1.xpose.msra.mxu0 0.0
    %844 = vmatprep.subr.mxu0 0.0
    %845 = vmatpush1.xpose.msra.mxu0 0.0
    %846 = vmatprep.subr.mxu0 0.0
    %847 = vmatpush1.xpose.msra.mxu0 0.0
    %848 = vmatprep.subr.mxu0 0.0
    %849 = vmatpush1.xpose.msra.mxu0 0.0
    %850 = vmatprep.subr.mxu0 0.0
    %851 = vmatpush1.xpose.msra.mxu0 0.0
    %852 = vmatprep.subr.mxu0 0.0
    %853 = vmatpush1.xpose.msra.mxu0 0.0
    %854 = vmatprep.subr.mxu0 0.0
    %855 = vmatpush1.xpose.msra.mxu0 0.0
    %856 = vmatprep.subr.mxu0 0.0
    %857 = vmatpush1.xpose.msra.mxu0 0.0
    %858 = vmatprep.subr.mxu0 0.0
    %859 = vmatpush1.xpose.msra.mxu0 0.0
    %860 = vmatprep.subr.mxu0 0.0
    %861 = vmatpush1.xpose.msra.mxu0 0.0
    %862 = vmatprep.subr.mxu0 0.0
    %863 = vmatpush1.xpose.msra.mxu0 0.0
    %864 = vmatprep.subr.mxu0 0.0
    %865 = vmatpush1.xpose.msra.mxu0 0.0
    %866 = vmatprep.subr.mxu0 0.0
    %867 = vmatpush1.xpose.msra.mxu0 0.0
    %868 = vmatprep.mubr.f32.mxu0 0.0
    %v869 = vand.u32 %v646, 4294901760
    %v870 = vsub.f32 %v646, %v869
    %871 = vmatmul.mubr.f32.gmra.mrb[0].mxu0 %v870
    %v872 = vpop.f32.mrb[0].mxu0
    %v873 = vadd.f32 %v799, %v872
    %v874 = vpop.f32.mrb[0].mxu0
    %875 = vdwg.mxu0
    %876 = vmatprep.subr.mxu0 0.0
    %v877 = vand.u32 %v648, 4294901760
    %878 = vmatpush1.xpose.msra.mxu0 %v877
    %879 = vmatprep.subr.mxu0 0.0
    %880 = vmatpush1.xpose.msra.mxu0 0.0
    %881 = vmatprep.subr.mxu0 0.0
    %882 = vmatpush1.xpose.msra.mxu0 0.0
    %883 = vmatprep.subr.mxu0 0.0
    %884 = vmatpush1.xpose.msra.mxu0 0.0
    %885 = vmatprep.subr.mxu0 0.0
    %886 = vmatpush1.xpose.msra.mxu0 0.0
    %887 = vmatprep.subr.mxu0 0.0
    %888 = vmatpush1.xpose.msra.mxu0 0.0
    %889 = vmatprep.subr.mxu0 0.0
    %890 = vmatpush1.xpose.msra.mxu0 0.0
    %891 = vmatprep.subr.mxu0 0.0
    %892 = vmatpush1.xpose.msra.mxu0 0.0
    %893 = vmatprep.subr.mxu0 0.0
    %894 = vmatpush1.xpose.msra.mxu0 0.0
    %895 = vmatprep.subr.mxu0 0.0
    %896 = vmatpush1.xpose.msra.mxu0 0.0
    %897 = vmatprep.subr.mxu0 0.0
    %898 = vmatpush1.xpose.msra.mxu0 0.0
    %899 = vmatprep.subr.mxu0 0.0
    %900 = vmatpush1.xpose.msra.mxu0 0.0
    %901 = vmatprep.subr.mxu0 0.0
    %902 = vmatpush1.xpose.msra.mxu0 0.0
    %903 = vmatprep.subr.mxu0 0.0
    %904 = vmatpush1.xpose.msra.mxu0 0.0
    %905 = vmatprep.subr.mxu0 0.0
    %906 = vmatpush1.xpose.msra.mxu0 0.0
    %907 = vmatprep.subr.mxu0 0.0
    %908 = vmatpush1.xpose.msra.mxu0 0.0
    %909 = vmatprep.subr.mxu0 0.0
    %910 = vmatpush1.xpose.msra.mxu0 0.0
    %911 = vmatprep.subr.mxu0 0.0
    %912 = vmatpush1.xpose.msra.mxu0 0.0
    %913 = vmatprep.subr.mxu0 0.0
    %914 = vmatpush1.xpose.msra.mxu0 0.0
    %915 = vmatprep.subr.mxu0 0.0
    %916 = vmatpush1.xpose.msra.mxu0 0.0
    %917 = vmatprep.subr.mxu0 0.0
    %918 = vmatpush1.xpose.msra.mxu0 0.0
    %919 = vmatprep.subr.mxu0 0.0
    %920 = vmatpush1.xpose.msra.mxu0 0.0
    %921 = vmatprep.subr.mxu0 0.0
    %922 = vmatpush1.xpose.msra.mxu0 0.0
    %923 = vmatprep.subr.mxu0 0.0
    %924 = vmatpush1.xpose.msra.mxu0 0.0
    %925 = vmatprep.subr.mxu0 0.0
    %926 = vmatpush1.xpose.msra.mxu0 0.0
    %927 = vmatprep.subr.mxu0 0.0
    %928 = vmatpush1.xpose.msra.mxu0 0.0
    %929 = vmatprep.subr.mxu0 0.0
    %930 = vmatpush1.xpose.msra.mxu0 0.0
    %931 = vmatprep.subr.mxu0 0.0
    %932 = vmatpush1.xpose.msra.mxu0 0.0
    %933 = vmatprep.subr.mxu0 0.0
    %934 = vmatpush1.xpose.msra.mxu0 0.0
    %935 = vmatprep.subr.mxu0 0.0
    %936 = vmatpush1.xpose.msra.mxu0 0.0
    %937 = vmatprep.subr.mxu0 0.0
    %938 = vmatpush1.xpose.msra.mxu0 0.0
    %939 = vmatprep.subr.mxu0 0.0
    %940 = vmatpush1.xpose.msra.mxu0 0.0
    %941 = vmatprep.mubr.f32.mxu0 0.0
    %v942 = vand.u32 %v646, 4294901760
    %v943 = vsub.f32 %v646, %v942
    %v944 = vand.u32 %v943, 4294901760
    %945 = vmatmul.mubr.f32.gmra.mrb[0].mxu0 %v944
    %v946 = vpop.f32.mrb[0].mxu0
    %v947 = vadd.f32 %v873, %v946
    %v948 = vpop.f32.mrb[0].mxu0
    %949 = vdwg.mxu0
    %950 = vmatprep.subr.mxu0 0.0
    %v951 = vand.u32 %v648, 4294901760
    %v952 = vsub.f32 %v648, %v951
    %v953 = vand.u32 %v952, 4294901760
    %954 = vmatpush1.xpose.msra.mxu0 %v953
    %955 = vmatprep.subr.mxu0 0.0
    %956 = vmatpush1.xpose.msra.mxu0 0.0
    %957 = vmatprep.subr.mxu0 0.0
    %958 = vmatpush1.xpose.msra.mxu0 0.0
    %959 = vmatprep.subr.mxu0 0.0
    %960 = vmatpush1.xpose.msra.mxu0 0.0
    %961 = vmatprep.subr.mxu0 0.0
    %962 = vmatpush1.xpose.msra.mxu0 0.0
    %963 = vmatprep.subr.mxu0 0.0
    %964 = vmatpush1.xpose.msra.mxu0 0.0
    %965 = vmatprep.subr.mxu0 0.0
    %966 = vmatpush1.xpose.msra.mxu0 0.0
    %967 = vmatprep.subr.mxu0 0.0
    %968 = vmatpush1.xpose.msra.mxu0 0.0
    %969 = vmatprep.subr.mxu0 0.0
    %970 = vmatpush1.xpose.msra.mxu0 0.0
    %971 = vmatprep.subr.mxu0 0.0
    %972 = vmatpush1.xpose.msra.mxu0 0.0
    %973 = vmatprep.subr.mxu0 0.0
    %974 = vmatpush1.xpose.msra.mxu0 0.0
    %975 = vmatprep.subr.mxu0 0.0
    %976 = vmatpush1.xpose.msra.mxu0 0.0
    %977 = vmatprep.subr.mxu0 0.0
    %978 = vmatpush1.xpose.msra.mxu0 0.0
    %979 = vmatprep.subr.mxu0 0.0
    %980 = vmatpush1.xpose.msra.mxu0 0.0
    %981 = vmatprep.subr.mxu0 0.0
    %982 = vmatpush1.xpose.msra.mxu0 0.0
    %983 = vmatprep.subr.mxu0 0.0
    %984 = vmatpush1.xpose.msra.mxu0 0.0
    %985 = vmatprep.subr.mxu0 0.0
    %986 = vmatpush1.xpose.msra.mxu0 0.0
    %987 = vmatprep.subr.mxu0 0.0
    %988 = vmatpush1.xpose.msra.mxu0 0.0
    %989 = vmatprep.subr.mxu0 0.0
    %990 = vmatpush1.xpose.msra.mxu0 0.0
    %991 = vmatprep.subr.mxu0 0.0
    %992 = vmatpush1.xpose.msra.mxu0 0.0
    %993 = vmatprep.subr.mxu0 0.0
    %994 = vmatpush1.xpose.msra.mxu0 0.0
    %995 = vmatprep.subr.mxu0 0.0
    %996 = vmatpush1.xpose.msra.mxu0 0.0
    %997 = vmatprep.subr.mxu0 0.0
    %998 = vmatpush1.xpose.msra.mxu0 0.0
    %999 = vmatprep.subr.mxu0 0.0
    %1000 = vmatpush1.xpose.msra.mxu0 0.0
    %1001 = vmatprep.subr.mxu0 0.0
    %1002 = vmatpush1.xpose.msra.mxu0 0.0
    %1003 = vmatprep.subr.mxu0 0.0
    %1004 = vmatpush1.xpose.msra.mxu0 0.0
    %1005 = vmatprep.subr.mxu0 0.0
    %1006 = vmatpush1.xpose.msra.mxu0 0.0
    %1007 = vmatprep.subr.mxu0 0.0
    %1008 = vmatpush1.xpose.msra.mxu0 0.0
    %1009 = vmatprep.subr.mxu0 0.0
    %1010 = vmatpush1.xpose.msra.mxu0 0.0
    %1011 = vmatprep.subr.mxu0 0.0
    %1012 = vmatpush1.xpose.msra.mxu0 0.0
    %1013 = vmatprep.subr.mxu0 0.0
    %1014 = vmatpush1.xpose.msra.mxu0 0.0
    %1015 = vmatprep.subr.mxu0 0.0
    %1016 = vmatpush1.xpose.msra.mxu0 0.0
    %1017 = vmatprep.mubr.f32.mxu0 0.0
    %v1018 = vand.u32 %v646, 4294901760
    %1019 = vmatmul.mubr.f32.gmra.mrb[0].mxu0 %v1018
    %v1020 = vpop.f32.mrb[0].mxu0
    %v1021 = vadd.f32 %v947, %v1020
    %v1022 = vpop.f32.mrb[0].mxu0
    %1023 = vdwg.mxu0
    %1024 = vmatprep.subr.mxu0 0.0
    %v1025 = vand.u32 %v648, 4294901760
    %1026 = vmatpush1.xpose.msra.mxu0 %v1025
    %1027 = vmatprep.subr.mxu0 0.0
    %1028 = vmatpush1.xpose.msra.mxu0 0.0
    %1029 = vmatprep.subr.mxu0 0.0
    %1030 = vmatpush1.xpose.msra.mxu0 0.0
    %1031 = vmatprep.subr.mxu0 0.0
    %1032 = vmatpush1.xpose.msra.mxu0 0.0
    %1033 = vmatprep.subr.mxu0 0.0
    %1034 = vmatpush1.xpose.msra.mxu0 0.0
    %1035 = vmatprep.subr.mxu0 0.0
    %1036 = vmatpush1.xpose.msra.mxu0 0.0
    %1037 = vmatprep.subr.mxu0 0.0
    %1038 = vmatpush1.xpose.msra.mxu0 0.0
    %1039 = vmatprep.subr.mxu0 0.0
    %1040 = vmatpush1.xpose.msra.mxu0 0.0
    %1041 = vmatprep.subr.mxu0 0.0
    %1042 = vmatpush1.xpose.msra.mxu0 0.0
    %1043 = vmatprep.subr.mxu0 0.0
    %1044 = vmatpush1.xpose.msra.mxu0 0.0
    %1045 = vmatprep.subr.mxu0 0.0
    %1046 = vmatpush1.xpose.msra.mxu0 0.0
    %1047 = vmatprep.subr.mxu0 0.0
    %1048 = vmatpush1.xpose.msra.mxu0 0.0
    %1049 = vmatprep.subr.mxu0 0.0
    %1050 = vmatpush1.xpose.msra.mxu0 0.0
    %1051 = vmatprep.subr.mxu0 0.0
    %1052 = vmatpush1.xpose.msra.mxu0 0.0
    %1053 = vmatprep.subr.mxu0 0.0
    %1054 = vmatpush1.xpose.msra.mxu0 0.0
    %1055 = vmatprep.subr.mxu0 0.0
    %1056 = vmatpush1.xpose.msra.mxu0 0.0
    %1057 = vmatprep.subr.mxu0 0.0
    %1058 = vmatpush1.xpose.msra.mxu0 0.0
    %1059 = vmatprep.subr.mxu0 0.0
    %1060 = vmatpush1.xpose.msra.mxu0 0.0
    %1061 = vmatprep.subr.mxu0 0.0
    %1062 = vmatpush1.xpose.msra.mxu0 0.0
    %1063 = vmatprep.subr.mxu0 0.0
    %1064 = vmatpush1.xpose.msra.mxu0 0.0
    %1065 = vmatprep.subr.mxu0 0.0
    %1066 = vmatpush1.xpose.msra.mxu0 0.0
    %1067 = vmatprep.subr.mxu0 0.0
    %1068 = vmatpush1.xpose.msra.mxu0 0.0
    %1069 = vmatprep.subr.mxu0 0.0
    %1070 = vmatpush1.xpose.msra.mxu0 0.0
    %1071 = vmatprep.subr.mxu0 0.0
    %1072 = vmatpush1.xpose.msra.mxu0 0.0
    %1073 = vmatprep.subr.mxu0 0.0
    %1074 = vmatpush1.xpose.msra.mxu0 0.0
    %1075 = vmatprep.subr.mxu0 0.0
    %1076 = vmatpush1.xpose.msra.mxu0 0.0
    %1077 = vmatprep.subr.mxu0 0.0
    %1078 = vmatpush1.xpose.msra.mxu0 0.0
    %1079 = vmatprep.subr.mxu0 0.0
    %1080 = vmatpush1.xpose.msra.mxu0 0.0
    %1081 = vmatprep.subr.mxu0 0.0
    %1082 = vmatpush1.xpose.msra.mxu0 0.0
    %1083 = vmatprep.subr.mxu0 0.0
    %1084 = vmatpush1.xpose.msra.mxu0 0.0
    %1085 = vmatprep.subr.mxu0 0.0
    %1086 = vmatpush1.xpose.msra.mxu0 0.0
    %1087 = vmatprep.subr.mxu0 0.0
    %1088 = vmatpush1.xpose.msra.mxu0 0.0
    %1089 = vmatprep.mubr.f32.mxu0 0.0
    %v1090 = vand.u32 %v646, 4294901760
    %1091 = vmatmul.mubr.f32.gmra.mrb[0].mxu0 %v1090
    %v1092 = vpop.f32.mrb[0].mxu0
    %v1093 = vadd.f32 %v1021, %v1092
    %v1094 = vpop.f32.mrb[0].mxu0
    %1095 = vdwg.mxu0
    %1097 = vrot.lane.b32.xlu0 %v639, 96
    %v1098 = vpop.permute.xlu0 %1097
    %v1099 = vsel %vm645, %v639, 0
    %v1101 = vsel %vm645, %v1098, 0
    %1103 = vmatprep.subr.mxu0 0.0
    %v1104 = vand.u32 %v1101, 4294901760
    %1105 = vmatpush1.xpose.msra.mxu0 %v1104
    %1106 = vmatprep.subr.mxu0 0.0
    %1107 = vmatpush1.xpose.msra.mxu0 0.0
    %1108 = vmatprep.subr.mxu0 0.0
    %1109 = vmatpush1.xpose.msra.mxu0 0.0
    %1110 = vmatprep.subr.mxu0 0.0
    %1111 = vmatpush1.xpose.msra.mxu0 0.0
    %1112 = vmatprep.subr.mxu0 0.0
    %1113 = vmatpush1.xpose.msra.mxu0 0.0
    %1114 = vmatprep.subr.mxu0 0.0
    %1115 = vmatpush1.xpose.msra.mxu0 0.0
    %1116 = vmatprep.subr.mxu0 0.0
    %1117 = vmatpush1.xpose.msra.mxu0 0.0
    %1118 = vmatprep.subr.mxu0 0.0
    %1119 = vmatpush1.xpose.msra.mxu0 0.0
    %1120 = vmatprep.subr.mxu0 0.0
    %1121 = vmatpush1.xpose.msra.mxu0 0.0
    %1122 = vmatprep.subr.mxu0 0.0
    %1123 = vmatpush1.xpose.msra.mxu0 0.0
    %1124 = vmatprep.subr.mxu0 0.0
    %1125 = vmatpush1.xpose.msra.mxu0 0.0
    %1126 = vmatprep.subr.mxu0 0.0
    %1127 = vmatpush1.xpose.msra.mxu0 0.0
    %1128 = vmatprep.subr.mxu0 0.0
    %1129 = vmatpush1.xpose.msra.mxu0 0.0
    %1130 = vmatprep.subr.mxu0 0.0
    %1131 = vmatpush1.xpose.msra.mxu0 0.0
    %1132 = vmatprep.subr.mxu0 0.0
    %1133 = vmatpush1.xpose.msra.mxu0 0.0
    %1134 = vmatprep.subr.mxu0 0.0
    %1135 = vmatpush1.xpose.msra.mxu0 0.0
    %1136 = vmatprep.subr.mxu0 0.0
    %1137 = vmatpush1.xpose.msra.mxu0 0.0
    %1138 = vmatprep.subr.mxu0 0.0
    %1139 = vmatpush1.xpose.msra.mxu0 0.0
    %1140 = vmatprep.subr.mxu0 0.0
    %1141 = vmatpush1.xpose.msra.mxu0 0.0
    %1142 = vmatprep.subr.mxu0 0.0
    %1143 = vmatpush1.xpose.msra.mxu0 0.0
    %1144 = vmatprep.subr.mxu0 0.0
    %1145 = vmatpush1.xpose.msra.mxu0 0.0
    %1146 = vmatprep.subr.mxu0 0.0
    %1147 = vmatpush1.xpose.msra.mxu0 0.0
    %1148 = vmatprep.subr.mxu0 0.0
    %1149 = vmatpush1.xpose.msra.mxu0 0.0
    %1150 = vmatprep.subr.mxu0 0.0
    %1151 = vmatpush1.xpose.msra.mxu0 0.0
    %1152 = vmatprep.subr.mxu0 0.0
    %1153 = vmatpush1.xpose.msra.mxu0 0.0
    %1154 = vmatprep.subr.mxu0 0.0
    %1155 = vmatpush1.xpose.msra.mxu0 0.0
    %1156 = vmatprep.subr.mxu0 0.0
    %1157 = vmatpush1.xpose.msra.mxu0 0.0
    %1158 = vmatprep.subr.mxu0 0.0
    %1159 = vmatpush1.xpose.msra.mxu0 0.0
    %1160 = vmatprep.subr.mxu0 0.0
    %1161 = vmatpush1.xpose.msra.mxu0 0.0
    %1162 = vmatprep.subr.mxu0 0.0
    %1163 = vmatpush1.xpose.msra.mxu0 0.0
    %1164 = vmatprep.subr.mxu0 0.0
    %1165 = vmatpush1.xpose.msra.mxu0 0.0
    %1166 = vmatprep.subr.mxu0 0.0
    %1167 = vmatpush1.xpose.msra.mxu0 0.0
    %1168 = vmatprep.mubr.f32.mxu0 0.0
    %v1169 = vand.u32 %v1099, 4294901760
    %v1170 = vsub.f32 %v1099, %v1169
    %v1171 = vand.u32 %v1170, 4294901760
    %v1172 = vsub.f32 %v1170, %v1171
    %v1173 = vand.u32 %v1172, 4294901760
    %1174 = vmatmul.mubr.f32.gmra.mrb[0].mxu0 %v1173
    %v1175 = vpop.f32.mrb[0].mxu0
    %v1176 = vadd.f32 0.0, %v1175
    %v1177 = vpop.f32.mrb[0].mxu0
    %1178 = vdwg.mxu0
    %1179 = vmatprep.subr.mxu0 0.0
    %v1180 = vand.u32 %v1101, 4294901760
    %v1181 = vsub.f32 %v1101, %v1180
    %v1182 = vand.u32 %v1181, 4294901760
    %v1183 = vsub.f32 %v1181, %v1182
    %v1184 = vand.u32 %v1183, 4294901760
    %1185 = vmatpush1.xpose.msra.mxu0 %v1184
    %1186 = vmatprep.subr.mxu0 0.0
    %1187 = vmatpush1.xpose.msra.mxu0 0.0
    %1188 = vmatprep.subr.mxu0 0.0
    %1189 = vmatpush1.xpose.msra.mxu0 0.0
    %1190 = vmatprep.subr.mxu0 0.0
    %1191 = vmatpush1.xpose.msra.mxu0 0.0
    %1192 = vmatprep.subr.mxu0 0.0
    %1193 = vmatpush1.xpose.msra.mxu0 0.0
    %1194 = vmatprep.subr.mxu0 0.0
    %1195 = vmatpush1.xpose.msra.mxu0 0.0
    %1196 = vmatprep.subr.mxu0 0.0
    %1197 = vmatpush1.xpose.msra.mxu0 0.0
    %1198 = vmatprep.subr.mxu0 0.0
    %1199 = vmatpush1.xpose.msra.mxu0 0.0
    %1200 = vmatprep.subr.mxu0 0.0
    %1201 = vmatpush1.xpose.msra.mxu0 0.0
    %1202 = vmatprep.subr.mxu0 0.0
    %1203 = vmatpush1.xpose.msra.mxu0 0.0
    %1204 = vmatprep.subr.mxu0 0.0
    %1205 = vmatpush1.xpose.msra.mxu0 0.0
    %1206 = vmatprep.subr.mxu0 0.0
    %1207 = vmatpush1.xpose.msra.mxu0 0.0
    %1208 = vmatprep.subr.mxu0 0.0
    %1209 = vmatpush1.xpose.msra.mxu0 0.0
    %1210 = vmatprep.subr.mxu0 0.0
    %1211 = vmatpush1.xpose.msra.mxu0 0.0
    %1212 = vmatprep.subr.mxu0 0.0
    %1213 = vmatpush1.xpose.msra.mxu0 0.0
    %1214 = vmatprep.subr.mxu0 0.0
    %1215 = vmatpush1.xpose.msra.mxu0 0.0
    %1216 = vmatprep.subr.mxu0 0.0
    %1217 = vmatpush1.xpose.msra.mxu0 0.0
    %1218 = vmatprep.subr.mxu0 0.0
    %1219 = vmatpush1.xpose.msra.mxu0 0.0
    %1220 = vmatprep.subr.mxu0 0.0
    %1221 = vmatpush1.xpose.msra.mxu0 0.0
    %1222 = vmatprep.subr.mxu0 0.0
    %1223 = vmatpush1.xpose.msra.mxu0 0.0
    %1224 = vmatprep.subr.mxu0 0.0
    %1225 = vmatpush1.xpose.msra.mxu0 0.0
    %1226 = vmatprep.subr.mxu0 0.0
    %1227 = vmatpush1.xpose.msra.mxu0 0.0
    %1228 = vmatprep.subr.mxu0 0.0
    %1229 = vmatpush1.xpose.msra.mxu0 0.0
    %1230 = vmatprep.subr.mxu0 0.0
    %1231 = vmatpush1.xpose.msra.mxu0 0.0
    %1232 = vmatprep.subr.mxu0 0.0
    %1233 = vmatpush1.xpose.msra.mxu0 0.0
    %1234 = vmatprep.subr.mxu0 0.0
    %1235 = vmatpush1.xpose.msra.mxu0 0.0
    %1236 = vmatprep.subr.mxu0 0.0
    %1237 = vmatpush1.xpose.msra.mxu0 0.0
    %1238 = vmatprep.subr.mxu0 0.0
    %1239 = vmatpush1.xpose.msra.mxu0 0.0
    %1240 = vmatprep.subr.mxu0 0.0
    %1241 = vmatpush1.xpose.msra.mxu0 0.0
    %1242 = vmatprep.subr.mxu0 0.0
    %1243 = vmatpush1.xpose.msra.mxu0 0.0
    %1244 = vmatprep.subr.mxu0 0.0
    %1245 = vmatpush1.xpose.msra.mxu0 0.0
    %1246 = vmatprep.subr.mxu0 0.0
    %1247 = vmatpush1.xpose.msra.mxu0 0.0
    %1248 = vmatprep.mubr.f32.mxu0 0.0
    %v1249 = vand.u32 %v1099, 4294901760
    %1250 = vmatmul.mubr.f32.gmra.mrb[0].mxu0 %v1249
    %v1251 = vpop.f32.mrb[0].mxu0
    %v1252 = vadd.f32 %v1176, %v1251
    %v1253 = vpop.f32.mrb[0].mxu0
    %1254 = vdwg.mxu0
    %1255 = vmatprep.subr.mxu0 0.0
    %v1256 = vand.u32 %v1101, 4294901760
    %v1257 = vsub.f32 %v1101, %v1256
    %1258 = vmatpush1.xpose.msra.mxu0 %v1257
    %1259 = vmatprep.subr.mxu0 0.0
    %1260 = vmatpush1.xpose.msra.mxu0 0.0
    %1261 = vmatprep.subr.mxu0 0.0
    %1262 = vmatpush1.xpose.msra.mxu0 0.0
    %1263 = vmatprep.subr.mxu0 0.0
    %1264 = vmatpush1.xpose.msra.mxu0 0.0
    %1265 = vmatprep.subr.mxu0 0.0
    %1266 = vmatpush1.xpose.msra.mxu0 0.0
    %1267 = vmatprep.subr.mxu0 0.0
    %1268 = vmatpush1.xpose.msra.mxu0 0.0
    %1269 = vmatprep.subr.mxu0 0.0
    %1270 = vmatpush1.xpose.msra.mxu0 0.0
    %1271 = vmatprep.subr.mxu0 0.0
    %1272 = vmatpush1.xpose.msra.mxu0 0.0
    %1273 = vmatprep.subr.mxu0 0.0
    %1274 = vmatpush1.xpose.msra.mxu0 0.0
    %1275 = vmatprep.subr.mxu0 0.0
    %1276 = vmatpush1.xpose.msra.mxu0 0.0
    %1277 = vmatprep.subr.mxu0 0.0
    %1278 = vmatpush1.xpose.msra.mxu0 0.0
    %1279 = vmatprep.subr.mxu0 0.0
    %1280 = vmatpush1.xpose.msra.mxu0 0.0
    %1281 = vmatprep.subr.mxu0 0.0
    %1282 = vmatpush1.xpose.msra.mxu0 0.0
    %1283 = vmatprep.subr.mxu0 0.0
    %1284 = vmatpush1.xpose.msra.mxu0 0.0
    %1285 = vmatprep.subr.mxu0 0.0
    %1286 = vmatpush1.xpose.msra.mxu0 0.0
    %1287 = vmatprep.subr.mxu0 0.0
    %1288 = vmatpush1.xpose.msra.mxu0 0.0
    %1289 = vmatprep.subr.mxu0 0.0
    %1290 = vmatpush1.xpose.msra.mxu0 0.0
    %1291 = vmatprep.subr.mxu0 0.0
    %1292 = vmatpush1.xpose.msra.mxu0 0.0
    %1293 = vmatprep.subr.mxu0 0.0
    %1294 = vmatpush1.xpose.msra.mxu0 0.0
    %1295 = vmatprep.subr.mxu0 0.0
    %1296 = vmatpush1.xpose.msra.mxu0 0.0
    %1297 = vmatprep.subr.mxu0 0.0
    %1298 = vmatpush1.xpose.msra.mxu0 0.0
    %1299 = vmatprep.subr.mxu0 0.0
    %1300 = vmatpush1.xpose.msra.mxu0 0.0
    %1301 = vmatprep.subr.mxu0 0.0
    %1302 = vmatpush1.xpose.msra.mxu0 0.0
    %1303 = vmatprep.subr.mxu0 0.0
    %1304 = vmatpush1.xpose.msra.mxu0 0.0
    %1305 = vmatprep.subr.mxu0 0.0
    %1306 = vmatpush1.xpose.msra.mxu0 0.0
    %1307 = vmatprep.subr.mxu0 0.0
    %1308 = vmatpush1.xpose.msra.mxu0 0.0
    %1309 = vmatprep.subr.mxu0 0.0
    %1310 = vmatpush1.xpose.msra.mxu0 0.0
    %1311 = vmatprep.subr.mxu0 0.0
    %1312 = vmatpush1.xpose.msra.mxu0 0.0
    %1313 = vmatprep.subr.mxu0 0.0
    %1314 = vmatpush1.xpose.msra.mxu0 0.0
    %1315 = vmatprep.subr.mxu0 0.0
    %1316 = vmatpush1.xpose.msra.mxu0 0.0
    %1317 = vmatprep.subr.mxu0 0.0
    %1318 = vmatpush1.xpose.msra.mxu0 0.0
    %1319 = vmatprep.subr.mxu0 0.0
    %1320 = vmatpush1.xpose.msra.mxu0 0.0
    %1321 = vmatprep.mubr.f32.mxu0 0.0
    %v1322 = vand.u32 %v1099, 4294901760
    %v1323 = vsub.f32 %v1099, %v1322
    %1324 = vmatmul.mubr.f32.gmra.mrb[0].mxu0 %v1323
    %v1325 = vpop.f32.mrb[0].mxu0
    %v1326 = vadd.f32 %v1252, %v1325
    %v1327 = vpop.f32.mrb[0].mxu0
    %1328 = vdwg.mxu0
    %1329 = vmatprep.subr.mxu0 0.0
    %v1330 = vand.u32 %v1101, 4294901760
    %1331 = vmatpush1.xpose.msra.mxu0 %v1330
    %1332 = vmatprep.subr.mxu0 0.0
    %1333 = vmatpush1.xpose.msra.mxu0 0.0
    %1334 = vmatprep.subr.mxu0 0.0
    %1335 = vmatpush1.xpose.msra.mxu0 0.0
    %1336 = vmatprep.subr.mxu0 0.0
    %1337 = vmatpush1.xpose.msra.mxu0 0.0
    %1338 = vmatprep.subr.mxu0 0.0
    %1339 = vmatpush1.xpose.msra.mxu0 0.0
    %1340 = vmatprep.subr.mxu0 0.0
    %1341 = vmatpush1.xpose.msra.mxu0 0.0
    %1342 = vmatprep.subr.mxu0 0.0
    %1343 = vmatpush1.xpose.msra.mxu0 0.0
    %1344 = vmatprep.subr.mxu0 0.0
    %1345 = vmatpush1.xpose.msra.mxu0 0.0
    %1346 = vmatprep.subr.mxu0 0.0
    %1347 = vmatpush1.xpose.msra.mxu0 0.0
    %1348 = vmatprep.subr.mxu0 0.0
    %1349 = vmatpush1.xpose.msra.mxu0 0.0
    %1350 = vmatprep.subr.mxu0 0.0
    %1351 = vmatpush1.xpose.msra.mxu0 0.0
    %1352 = vmatprep.subr.mxu0 0.0
    %1353 = vmatpush1.xpose.msra.mxu0 0.0
    %1354 = vmatprep.subr.mxu0 0.0
    %1355 = vmatpush1.xpose.msra.mxu0 0.0
    %1356 = vmatprep.subr.mxu0 0.0
    %1357 = vmatpush1.xpose.msra.mxu0 0.0
    %1358 = vmatprep.subr.mxu0 0.0
    %1359 = vmatpush1.xpose.msra.mxu0 0.0
    %1360 = vmatprep.subr.mxu0 0.0
    %1361 = vmatpush1.xpose.msra.mxu0 0.0
    %1362 = vmatprep.subr.mxu0 0.0
    %1363 = vmatpush1.xpose.msra.mxu0 0.0
    %1364 = vmatprep.subr.mxu0 0.0
    %1365 = vmatpush1.xpose.msra.mxu0 0.0
    %1366 = vmatprep.subr.mxu0 0.0
    %1367 = vmatpush1.xpose.msra.mxu0 0.0
    %1368 = vmatprep.subr.mxu0 0.0
    %1369 = vmatpush1.xpose.msra.mxu0 0.0
    %1370 = vmatprep.subr.mxu0 0.0
    %1371 = vmatpush1.xpose.msra.mxu0 0.0
    %1372 = vmatprep.subr.mxu0 0.0
    %1373 = vmatpush1.xpose.msra.mxu0 0.0
    %1374 = vmatprep.subr.mxu0 0.0
    %1375 = vmatpush1.xpose.msra.mxu0 0.0
    %1376 = vmatprep.subr.mxu0 0.0
    %1377 = vmatpush1.xpose.msra.mxu0 0.0
    %1378 = vmatprep.subr.mxu0 0.0
    %1379 = vmatpush1.xpose.msra.mxu0 0.0
    %1380 = vmatprep.subr.mxu0 0.0
    %1381 = vmatpush1.xpose.msra.mxu0 0.0
    %1382 = vmatprep.subr.mxu0 0.0
    %1383 = vmatpush1.xpose.msra.mxu0 0.0
    %1384 = vmatprep.subr.mxu0 0.0
    %1385 = vmatpush1.xpose.msra.mxu0 0.0
    %1386 = vmatprep.subr.mxu0 0.0
    %1387 = vmatpush1.xpose.msra.mxu0 0.0
    %1388 = vmatprep.subr.mxu0 0.0
    %1389 = vmatpush1.xpose.msra.mxu0 0.0
    %1390 = vmatprep.subr.mxu0 0.0
    %1391 = vmatpush1.xpose.msra.mxu0 0.0
    %1392 = vmatprep.subr.mxu0 0.0
    %1393 = vmatpush1.xpose.msra.mxu0 0.0
    %1394 = vmatprep.mubr.f32.mxu0 0.0
    %v1395 = vand.u32 %v1099, 4294901760
    %v1396 = vsub.f32 %v1099, %v1395
    %v1397 = vand.u32 %v1396, 4294901760
    %1398 = vmatmul.mubr.f32.gmra.mrb[0].mxu0 %v1397
    %v1399 = vpop.f32.mrb[0].mxu0
    %v1400 = vadd.f32 %v1326, %v1399
    %v1401 = vpop.f32.mrb[0].mxu0
    %1402 = vdwg.mxu0
    %1403 = vmatprep.subr.mxu0 0.0
    %v1404 = vand.u32 %v1101, 4294901760
    %v1405 = vsub.f32 %v1101, %v1404
    %v1406 = vand.u32 %v1405, 4294901760
    %1407 = vmatpush1.xpose.msra.mxu0 %v1406
    %1408 = vmatprep.subr.mxu0 0.0
    %1409 = vmatpush1.xpose.msra.mxu0 0.0
    %1410 = vmatprep.subr.mxu0 0.0
    %1411 = vmatpush1.xpose.msra.mxu0 0.0
    %1412 = vmatprep.subr.mxu0 0.0
    %1413 = vmatpush1.xpose.msra.mxu0 0.0
    %1414 = vmatprep.subr.mxu0 0.0
    %1415 = vmatpush1.xpose.msra.mxu0 0.0
    %1416 = vmatprep.subr.mxu0 0.0
    %1417 = vmatpush1.xpose.msra.mxu0 0.0
    %1418 = vmatprep.subr.mxu0 0.0
    %1419 = vmatpush1.xpose.msra.mxu0 0.0
    %1420 = vmatprep.subr.mxu0 0.0
    %1421 = vmatpush1.xpose.msra.mxu0 0.0
    %1422 = vmatprep.subr.mxu0 0.0
    %1423 = vmatpush1.xpose.msra.mxu0 0.0
    %1424 = vmatprep.subr.mxu0 0.0
    %1425 = vmatpush1.xpose.msra.mxu0 0.0
    %1426 = vmatprep.subr.mxu0 0.0
    %1427 = vmatpush1.xpose.msra.mxu0 0.0
    %1428 = vmatprep.subr.mxu0 0.0
    %1429 = vmatpush1.xpose.msra.mxu0 0.0
    %1430 = vmatprep.subr.mxu0 0.0
    %1431 = vmatpush1.xpose.msra.mxu0 0.0
    %1432 = vmatprep.subr.mxu0 0.0
    %1433 = vmatpush1.xpose.msra.mxu0 0.0
    %1434 = vmatprep.subr.mxu0 0.0
    %1435 = vmatpush1.xpose.msra.mxu0 0.0
    %1436 = vmatprep.subr.mxu0 0.0
    %1437 = vmatpush1.xpose.msra.mxu0 0.0
    %1438 = vmatprep.subr.mxu0 0.0
    %1439 = vmatpush1.xpose.msra.mxu0 0.0
    %1440 = vmatprep.subr.mxu0 0.0
    %1441 = vmatpush1.xpose.msra.mxu0 0.0
    %1442 = vmatprep.subr.mxu0 0.0
    %1443 = vmatpush1.xpose.msra.mxu0 0.0
    %1444 = vmatprep.subr.mxu0 0.0
    %1445 = vmatpush1.xpose.msra.mxu0 0.0
    %1446 = vmatprep.subr.mxu0 0.0
    %1447 = vmatpush1.xpose.msra.mxu0 0.0
    %1448 = vmatprep.subr.mxu0 0.0
    %1449 = vmatpush1.xpose.msra.mxu0 0.0
    %1450 = vmatprep.subr.mxu0 0.0
    %1451 = vmatpush1.xpose.msra.mxu0 0.0
    %1452 = vmatprep.subr.mxu0 0.0
    %1453 = vmatpush1.xpose.msra.mxu0 0.0
    %1454 = vmatprep.subr.mxu0 0.0
    %1455 = vmatpush1.xpose.msra.mxu0 0.0
    %1456 = vmatprep.subr.mxu0 0.0
    %1457 = vmatpush1.xpose.msra.mxu0 0.0
    %1458 = vmatprep.subr.mxu0 0.0
    %1459 = vmatpush1.xpose.msra.mxu0 0.0
    %1460 = vmatprep.subr.mxu0 0.0
    %1461 = vmatpush1.xpose.msra.mxu0 0.0
    %1462 = vmatprep.subr.mxu0 0.0
    %1463 = vmatpush1.xpose.msra.mxu0 0.0
    %1464 = vmatprep.subr.mxu0 0.0
    %1465 = vmatpush1.xpose.msra.mxu0 0.0
    %1466 = vmatprep.subr.mxu0 0.0
    %1467 = vmatpush1.xpose.msra.mxu0 0.0
    %1468 = vmatprep.subr.mxu0 0.0
    %1469 = vmatpush1.xpose.msra.mxu0 0.0
    %1470 = vmatprep.mubr.f32.mxu0 0.0
    %v1471 = vand.u32 %v1099, 4294901760
    %1472 = vmatmul.mubr.f32.gmra.mrb[0].mxu0 %v1471
    %v1473 = vpop.f32.mrb[0].mxu0
    %v1474 = vadd.f32 %v1400, %v1473
    %v1475 = vpop.f32.mrb[0].mxu0
    %1476 = vdwg.mxu0
    %1477 = vmatprep.subr.mxu0 0.0
    %v1478 = vand.u32 %v1101, 4294901760
    %1479 = vmatpush1.xpose.msra.mxu0 %v1478
    %1480 = vmatprep.subr.mxu0 0.0
    %1481 = vmatpush1.xpose.msra.mxu0 0.0
    %1482 = vmatprep.subr.mxu0 0.0
    %1483 = vmatpush1.xpose.msra.mxu0 0.0
    %1484 = vmatprep.subr.mxu0 0.0
    %1485 = vmatpush1.xpose.msra.mxu0 0.0
    %1486 = vmatprep.subr.mxu0 0.0
    %1487 = vmatpush1.xpose.msra.mxu0 0.0
    %1488 = vmatprep.subr.mxu0 0.0
    %1489 = vmatpush1.xpose.msra.mxu0 0.0
    %1490 = vmatprep.subr.mxu0 0.0
    %1491 = vmatpush1.xpose.msra.mxu0 0.0
    %1492 = vmatprep.subr.mxu0 0.0
    %1493 = vmatpush1.xpose.msra.mxu0 0.0
    %1494 = vmatprep.subr.mxu0 0.0
    %1495 = vmatpush1.xpose.msra.mxu0 0.0
    %1496 = vmatprep.subr.mxu0 0.0
    %1497 = vmatpush1.xpose.msra.mxu0 0.0
    %1498 = vmatprep.subr.mxu0 0.0
    %1499 = vmatpush1.xpose.msra.mxu0 0.0
    %1500 = vmatprep.subr.mxu0 0.0
    %1501 = vmatpush1.xpose.msra.mxu0 0.0
    %1502 = vmatprep.subr.mxu0 0.0
    %1503 = vmatpush1.xpose.msra.mxu0 0.0
    %1504 = vmatprep.subr.mxu0 0.0
    %1505 = vmatpush1.xpose.msra.mxu0 0.0
    %1506 = vmatprep.subr.mxu0 0.0
    %1507 = vmatpush1.xpose.msra.mxu0 0.0
    %1508 = vmatprep.subr.mxu0 0.0
    %1509 = vmatpush1.xpose.msra.mxu0 0.0
    %1510 = vmatprep.subr.mxu0 0.0
    %1511 = vmatpush1.xpose.msra.mxu0 0.0
    %1512 = vmatprep.subr.mxu0 0.0
    %1513 = vmatpush1.xpose.msra.mxu0 0.0
    %1514 = vmatprep.subr.mxu0 0.0
    %1515 = vmatpush1.xpose.msra.mxu0 0.0
    %1516 = vmatprep.subr.mxu0 0.0
    %1517 = vmatpush1.xpose.msra.mxu0 0.0
    %1518 = vmatprep.subr.mxu0 0.0
    %1519 = vmatpush1.xpose.msra.mxu0 0.0
    %1520 = vmatprep.subr.mxu0 0.0
    %1521 = vmatpush1.xpose.msra.mxu0 0.0
    %1522 = vmatprep.subr.mxu0 0.0
    %1523 = vmatpush1.xpose.msra.mxu0 0.0
    %1524 = vmatprep.subr.mxu0 0.0
    %1525 = vmatpush1.xpose.msra.mxu0 0.0
    %1526 = vmatprep.subr.mxu0 0.0
    %1527 = vmatpush1.xpose.msra.mxu0 0.0
    %1528 = vmatprep.subr.mxu0 0.0
    %1529 = vmatpush1.xpose.msra.mxu0 0.0
    %1530 = vmatprep.subr.mxu0 0.0
    %1531 = vmatpush1.xpose.msra.mxu0 0.0
    %1532 = vmatprep.subr.mxu0 0.0
    %1533 = vmatpush1.xpose.msra.mxu0 0.0
    %1534 = vmatprep.subr.mxu0 0.0
    %1535 = vmatpush1.xpose.msra.mxu0 0.0
    %1536 = vmatprep.subr.mxu0 0.0
    %1537 = vmatpush1.xpose.msra.mxu0 0.0
    %1538 = vmatprep.subr.mxu0 0.0
    %1539 = vmatpush1.xpose.msra.mxu0 0.0
    %1540 = vmatprep.subr.mxu0 0.0
    %1541 = vmatpush1.xpose.msra.mxu0 0.0
    %1542 = vmatprep.mubr.f32.mxu0 0.0
    %v1543 = vand.u32 %v1099, 4294901760
    %1544 = vmatmul.mubr.f32.gmra.mrb[0].mxu0 %v1543
    %v1545 = vpop.f32.mrb[0].mxu0
    %v1546 = vadd.f32 %v1474, %v1545
    %v1547 = vpop.f32.mrb[0].mxu0
    %1548 = vdwg.mxu0
    %v1549 = vmul.f32 %v1093, 0.25
    %v1550 = vmul.f32 %v1546, 0.25
    %vm1551 = vcmask 64512
    %v1552 = vsel %vm1551, %v1549, -inf
    %1553 = vmax.xlane.f32.xlu0 %v1552
    %v1554 = vpop.xlane.xlu0 %1553
    %v1555 = vsel %vm1551, %v1550, -inf
    %1556 = vmax.xlane.f32.xlu0 %v1555
    %v1557 = vpop.xlane.xlu0 %1556
    %v1558 = vsub.f32 %v1549, %v1554
    %v1559 = vsub.f32 %v1550, %v1557
    %v1560 = vmul.f32 %v1558, 1.442695
    %v1561 = vpow.pop %v1560
    %v1562 = vmul.f32 %v1559, 1.442695
    %v1563 = vpow.pop %v1562
    %v1564 = vsel %vm1551, %v1561, 0.0
    %1565 = vadd.xlane.f32.xlu0 %v1564
    %v1566 = vpop.xlane.xlu0 %1565
    %v1567 = vsel %vm1551, %v1563, 0.0
    %1568 = vadd.xlane.f32.xlu0 %v1567
    %v1569 = vpop.xlane.xlu0 %1568
    %v1570 = vrcp.pop %v1566
    %v1571 = vmul.f32 %v1561, %v1570
    %v1572 = vrcp.pop %v1569
    %v1573 = vmul.f32 %v1563, %v1572
    %1574 = vrot.lane.b32.xlu0 %v633, 64
    %v1575 = vpop.permute.xlu0 %1574
    %v1578 = vsel %vm1551, %v1571, 0
    %1580 = vmatprep.subr.mxu0 0.0
    %v1581 = vand.u32 %v1575, 4294901760
    %1582 = vmatpush1.msra.mxu0 %v1581
    %1583 = vmatprep.subr.mxu0 0.0
    %1584 = vmatpush1.msra.mxu0 0.0
    %1585 = vmatprep.subr.mxu0 0.0
    %1586 = vmatpush1.msra.mxu0 0.0
    %1587 = vmatprep.subr.mxu0 0.0
    %1588 = vmatpush1.msra.mxu0 0.0
    %1589 = vmatprep.subr.mxu0 0.0
    %1590 = vmatpush1.msra.mxu0 0.0
    %1591 = vmatprep.subr.mxu0 0.0
    %1592 = vmatpush1.msra.mxu0 0.0
    %1593 = vmatprep.subr.mxu0 0.0
    %1594 = vmatpush1.msra.mxu0 0.0
    %1595 = vmatprep.subr.mxu0 0.0
    %1596 = vmatpush1.msra.mxu0 0.0
    %1597 = vmatprep.subr.mxu0 0.0
    %1598 = vmatpush1.msra.mxu0 0.0
    %1599 = vmatprep.subr.mxu0 0.0
    %1600 = vmatpush1.msra.mxu0 0.0
    %1601 = vmatprep.subr.mxu0 0.0
    %1602 = vmatpush1.msra.mxu0 0.0
    %1603 = vmatprep.subr.mxu0 0.0
    %1604 = vmatpush1.msra.mxu0 0.0
    %1605 = vmatprep.subr.mxu0 0.0
    %1606 = vmatpush1.msra.mxu0 0.0
    %1607 = vmatprep.subr.mxu0 0.0
    %1608 = vmatpush1.msra.mxu0 0.0
    %1609 = vmatprep.subr.mxu0 0.0
    %1610 = vmatpush1.msra.mxu0 0.0
    %1611 = vmatprep.subr.mxu0 0.0
    %1612 = vmatpush1.msra.mxu0 0.0
    %1613 = vmatprep.subr.mxu0 0.0
    %1614 = vmatpush1.msra.mxu0 0.0
    %1615 = vmatprep.subr.mxu0 0.0
    %1616 = vmatpush1.msra.mxu0 0.0
    %1617 = vmatprep.subr.mxu0 0.0
    %1618 = vmatpush1.msra.mxu0 0.0
    %1619 = vmatprep.subr.mxu0 0.0
    %1620 = vmatpush1.msra.mxu0 0.0
    %1621 = vmatprep.subr.mxu0 0.0
    %1622 = vmatpush1.msra.mxu0 0.0
    %1623 = vmatprep.subr.mxu0 0.0
    %1624 = vmatpush1.msra.mxu0 0.0
    %1625 = vmatprep.subr.mxu0 0.0
    %1626 = vmatpush1.msra.mxu0 0.0
    %1627 = vmatprep.subr.mxu0 0.0
    %1628 = vmatpush1.msra.mxu0 0.0
    %1629 = vmatprep.subr.mxu0 0.0
    %1630 = vmatpush1.msra.mxu0 0.0
    %1631 = vmatprep.subr.mxu0 0.0
    %1632 = vmatpush1.msra.mxu0 0.0
    %1633 = vmatprep.subr.mxu0 0.0
    %1634 = vmatpush1.msra.mxu0 0.0
    %1635 = vmatprep.subr.mxu0 0.0
    %1636 = vmatpush1.msra.mxu0 0.0
    %1637 = vmatprep.subr.mxu0 0.0
    %1638 = vmatpush1.msra.mxu0 0.0
    %1639 = vmatprep.subr.mxu0 0.0
    %1640 = vmatpush1.msra.mxu0 0.0
    %1641 = vmatprep.subr.mxu0 0.0
    %1642 = vmatpush1.msra.mxu0 0.0
    %1643 = vmatprep.subr.mxu0 0.0
    %1644 = vmatpush1.msra.mxu0 0.0
    %1645 = vmatprep.mubr.f32.mxu0 0.0
    %v1646 = vand.u32 %v1578, 4294901760
    %v1647 = vsub.f32 %v1578, %v1646
    %v1648 = vand.u32 %v1647, 4294901760
    %v1649 = vsub.f32 %v1647, %v1648
    %v1650 = vand.u32 %v1649, 4294901760
    %1651 = vmatmul.mubr.f32.gmra.mrb[0].mxu0 %v1650
    %v1652 = vpop.f32.mrb[0].mxu0
    %v1653 = vadd.f32 0.0, %v1652
    %v1654 = vpop.f32.mrb[0].mxu0
    %1655 = vdwg.mxu0
    %1656 = vmatprep.subr.mxu0 0.0
    %v1657 = vand.u32 %v1575, 4294901760
    %v1658 = vsub.f32 %v1575, %v1657
    %v1659 = vand.u32 %v1658, 4294901760
    %v1660 = vsub.f32 %v1658, %v1659
    %v1661 = vand.u32 %v1660, 4294901760
    %1662 = vmatpush1.msra.mxu0 %v1661
    %1663 = vmatprep.subr.mxu0 0.0
    %1664 = vmatpush1.msra.mxu0 0.0
    %1665 = vmatprep.subr.mxu0 0.0
    %1666 = vmatpush1.msra.mxu0 0.0
    %1667 = vmatprep.subr.mxu0 0.0
    %1668 = vmatpush1.msra.mxu0 0.0
    %1669 = vmatprep.subr.mxu0 0.0
    %1670 = vmatpush1.msra.mxu0 0.0
    %1671 = vmatprep.subr.mxu0 0.0
    %1672 = vmatpush1.msra.mxu0 0.0
    %1673 = vmatprep.subr.mxu0 0.0
    %1674 = vmatpush1.msra.mxu0 0.0
    %1675 = vmatprep.subr.mxu0 0.0
    %1676 = vmatpush1.msra.mxu0 0.0
    %1677 = vmatprep.subr.mxu0 0.0
    %1678 = vmatpush1.msra.mxu0 0.0
    %1679 = vmatprep.subr.mxu0 0.0
    %1680 = vmatpush1.msra.mxu0 0.0
    %1681 = vmatprep.subr.mxu0 0.0
    %1682 = vmatpush1.msra.mxu0 0.0
    %1683 = vmatprep.subr.mxu0 0.0
    %1684 = vmatpush1.msra.mxu0 0.0
    %1685 = vmatprep.subr.mxu0 0.0
    %1686 = vmatpush1.msra.mxu0 0.0
    %1687 = vmatprep.subr.mxu0 0.0
    %1688 = vmatpush1.msra.mxu0 0.0
    %1689 = vmatprep.subr.mxu0 0.0
    %1690 = vmatpush1.msra.mxu0 0.0
    %1691 = vmatprep.subr.mxu0 0.0
    %1692 = vmatpush1.msra.mxu0 0.0
    %1693 = vmatprep.subr.mxu0 0.0
    %1694 = vmatpush1.msra.mxu0 0.0
    %1695 = vmatprep.subr.mxu0 0.0
    %1696 = vmatpush1.msra.mxu0 0.0
    %1697 = vmatprep.subr.mxu0 0.0
    %1698 = vmatpush1.msra.mxu0 0.0
    %1699 = vmatprep.subr.mxu0 0.0
    %1700 = vmatpush1.msra.mxu0 0.0
    %1701 = vmatprep.subr.mxu0 0.0
    %1702 = vmatpush1.msra.mxu0 0.0
    %1703 = vmatprep.subr.mxu0 0.0
    %1704 = vmatpush1.msra.mxu0 0.0
    %1705 = vmatprep.subr.mxu0 0.0
    %1706 = vmatpush1.msra.mxu0 0.0
    %1707 = vmatprep.subr.mxu0 0.0
    %1708 = vmatpush1.msra.mxu0 0.0
    %1709 = vmatprep.subr.mxu0 0.0
    %1710 = vmatpush1.msra.mxu0 0.0
    %1711 = vmatprep.subr.mxu0 0.0
    %1712 = vmatpush1.msra.mxu0 0.0
    %1713 = vmatprep.subr.mxu0 0.0
    %1714 = vmatpush1.msra.mxu0 0.0
    %1715 = vmatprep.subr.mxu0 0.0
    %1716 = vmatpush1.msra.mxu0 0.0
    %1717 = vmatprep.subr.mxu0 0.0
    %1718 = vmatpush1.msra.mxu0 0.0
    %1719 = vmatprep.subr.mxu0 0.0
    %1720 = vmatpush1.msra.mxu0 0.0
    %1721 = vmatprep.subr.mxu0 0.0
    %1722 = vmatpush1.msra.mxu0 0.0
    %1723 = vmatprep.subr.mxu0 0.0
    %1724 = vmatpush1.msra.mxu0 0.0
    %1725 = vmatprep.mubr.f32.mxu0 0.0
    %v1726 = vand.u32 %v1578, 4294901760
    %1727 = vmatmul.mubr.f32.gmra.mrb[0].mxu0 %v1726
    %v1728 = vpop.f32.mrb[0].mxu0
    %v1729 = vadd.f32 %v1653, %v1728
    %v1730 = vpop.f32.mrb[0].mxu0
    %1731 = vdwg.mxu0
    %1732 = vmatprep.subr.mxu0 0.0
    %v1733 = vand.u32 %v1575, 4294901760
    %v1734 = vsub.f32 %v1575, %v1733
    %1735 = vmatpush1.msra.mxu0 %v1734
    %1736 = vmatprep.subr.mxu0 0.0
    %1737 = vmatpush1.msra.mxu0 0.0
    %1738 = vmatprep.subr.mxu0 0.0
    %1739 = vmatpush1.msra.mxu0 0.0
    %1740 = vmatprep.subr.mxu0 0.0
    %1741 = vmatpush1.msra.mxu0 0.0
    %1742 = vmatprep.subr.mxu0 0.0
    %1743 = vmatpush1.msra.mxu0 0.0
    %1744 = vmatprep.subr.mxu0 0.0
    %1745 = vmatpush1.msra.mxu0 0.0
    %1746 = vmatprep.subr.mxu0 0.0
    %1747 = vmatpush1.msra.mxu0 0.0
    %1748 = vmatprep.subr.mxu0 0.0
    %1749 = vmatpush1.msra.mxu0 0.0
    %1750 = vmatprep.subr.mxu0 0.0
    %1751 = vmatpush1.msra.mxu0 0.0
    %1752 = vmatprep.subr.mxu0 0.0
    %1753 = vmatpush1.msra.mxu0 0.0
    %1754 = vmatprep.subr.mxu0 0.0
    %1755 = vmatpush1.msra.mxu0 0.0
    %1756 = vmatprep.subr.mxu0 0.0
    %1757 = vmatpush1.msra.mxu0 0.0
    %1758 = vmatprep.subr.mxu0 0.0
    %1759 = vmatpush1.msra.mxu0 0.0
    %1760 = vmatprep.subr.mxu0 0.0
    %1761 = vmatpush1.msra.mxu0 0.0
    %1762 = vmatprep.subr.mxu0 0.0
    %1763 = vmatpush1.msra.mxu0 0.0
    %1764 = vmatprep.subr.mxu0 0.0
    %1765 = vmatpush1.msra.mxu0 0.0
    %1766 = vmatprep.subr.mxu0 0.0
    %1767 = vmatpush1.msra.mxu0 0.0
    %1768 = vmatprep.subr.mxu0 0.0
    %1769 = vmatpush1.msra.mxu0 0.0
    %1770 = vmatprep.subr.mxu0 0.0
    %1771 = vmatpush1.msra.mxu0 0.0
    %1772 = vmatprep.subr.mxu0 0.0
    %1773 = vmatpush1.msra.mxu0 0.0
    %1774 = vmatprep.subr.mxu0 0.0
    %1775 = vmatpush1.msra.mxu0 0.0
    %1776 = vmatprep.subr.mxu0 0.0
    %1777 = vmatpush1.msra.mxu0 0.0
    %1778 = vmatprep.subr.mxu0 0.0
    %1779 = vmatpush1.msra.mxu0 0.0
    %1780 = vmatprep.subr.mxu0 0.0
    %1781 = vmatpush1.msra.mxu0 0.0
    %1782 = vmatprep.subr.mxu0 0.0
    %1783 = vmatpush1.msra.mxu0 0.0
    %1784 = vmatprep.subr.mxu0 0.0
    %1785 = vmatpush1.msra.mxu0 0.0
    %1786 = vmatprep.subr.mxu0 0.0
    %1787 = vmatpush1.msra.mxu0 0.0
    %1788 = vmatprep.subr.mxu0 0.0
    %1789 = vmatpush1.msra.mxu0 0.0
    %1790 = vmatprep.subr.mxu0 0.0
    %1791 = vmatpush1.msra.mxu0 0.0
    %1792 = vmatprep.subr.mxu0 0.0
    %1793 = vmatpush1.msra.mxu0 0.0
    %1794 = vmatprep.subr.mxu0 0.0
    %1795 = vmatpush1.msra.mxu0 0.0
    %1796 = vmatprep.subr.mxu0 0.0
    %1797 = vmatpush1.msra.mxu0 0.0
    %1798 = vmatprep.mubr.f32.mxu0 0.0
    %v1799 = vand.u32 %v1578, 4294901760
    %v1800 = vsub.f32 %v1578, %v1799
    %1801 = vmatmul.mubr.f32.gmra.mrb[0].mxu0 %v1800
    %v1802 = vpop.f32.mrb[0].mxu0
    %v1803 = vadd.f32 %v1729, %v1802
    %v1804 = vpop.f32.mrb[0].mxu0
    %1805 = vdwg.mxu0
    %1806 = vmatprep.subr.mxu0 0.0
    %v1807 = vand.u32 %v1575, 4294901760
    %1808 = vmatpush1.msra.mxu0 %v1807
    %1809 = vmatprep.subr.mxu0 0.0
    %1810 = vmatpush1.msra.mxu0 0.0
    %1811 = vmatprep.subr.mxu0 0.0
    %1812 = vmatpush1.msra.mxu0 0.0
    %1813 = vmatprep.subr.mxu0 0.0
    %1814 = vmatpush1.msra.mxu0 0.0
    %1815 = vmatprep.subr.mxu0 0.0
    %1816 = vmatpush1.msra.mxu0 0.0
    %1817 = vmatprep.subr.mxu0 0.0
    %1818 = vmatpush1.msra.mxu0 0.0
    %1819 = vmatprep.subr.mxu0 0.0
    %1820 = vmatpush1.msra.mxu0 0.0
    %1821 = vmatprep.subr.mxu0 0.0
    %1822 = vmatpush1.msra.mxu0 0.0
    %1823 = vmatprep.subr.mxu0 0.0
    %1824 = vmatpush1.msra.mxu0 0.0
    %1825 = vmatprep.subr.mxu0 0.0
    %1826 = vmatpush1.msra.mxu0 0.0
    %1827 = vmatprep.subr.mxu0 0.0
    %1828 = vmatpush1.msra.mxu0 0.0
    %1829 = vmatprep.subr.mxu0 0.0
    %1830 = vmatpush1.msra.mxu0 0.0
    %1831 = vmatprep.subr.mxu0 0.0
    %1832 = vmatpush1.msra.mxu0 0.0
    %1833 = vmatprep.subr.mxu0 0.0
    %1834 = vmatpush1.msra.mxu0 0.0
    %1835 = vmatprep.subr.mxu0 0.0
    %1836 = vmatpush1.msra.mxu0 0.0
    %1837 = vmatprep.subr.mxu0 0.0
    %1838 = vmatpush1.msra.mxu0 0.0
    %1839 = vmatprep.subr.mxu0 0.0
    %1840 = vmatpush1.msra.mxu0 0.0
    %1841 = vmatprep.subr.mxu0 0.0
    %1842 = vmatpush1.msra.mxu0 0.0
    %1843 = vmatprep.subr.mxu0 0.0
    %1844 = vmatpush1.msra.mxu0 0.0
    %1845 = vmatprep.subr.mxu0 0.0
    %1846 = vmatpush1.msra.mxu0 0.0
    %1847 = vmatprep.subr.mxu0 0.0
    %1848 = vmatpush1.msra.mxu0 0.0
    %1849 = vmatprep.subr.mxu0 0.0
    %1850 = vmatpush1.msra.mxu0 0.0
    %1851 = vmatprep.subr.mxu0 0.0
    %1852 = vmatpush1.msra.mxu0 0.0
    %1853 = vmatprep.subr.mxu0 0.0
    %1854 = vmatpush1.msra.mxu0 0.0
    %1855 = vmatprep.subr.mxu0 0.0
    %1856 = vmatpush1.msra.mxu0 0.0
    %1857 = vmatprep.subr.mxu0 0.0
    %1858 = vmatpush1.msra.mxu0 0.0
    %1859 = vmatprep.subr.mxu0 0.0
    %1860 = vmatpush1.msra.mxu0 0.0
    %1861 = vmatprep.subr.mxu0 0.0
    %1862 = vmatpush1.msra.mxu0 0.0
    %1863 = vmatprep.subr.mxu0 0.0
    %1864 = vmatpush1.msra.mxu0 0.0
    %1865 = vmatprep.subr.mxu0 0.0
    %1866 = vmatpush1.msra.mxu0 0.0
    %1867 = vmatprep.subr.mxu0 0.0
    %1868 = vmatpush1.msra.mxu0 0.0
    %1869 = vmatprep.subr.mxu0 0.0
    %1870 = vmatpush1.msra.mxu0 0.0
    %1871 = vmatprep.mubr.f32.mxu0 0.0
    %v1872 = vand.u32 %v1578, 4294901760
    %v1873 = vsub.f32 %v1578, %v1872
    %v1874 = vand.u32 %v1873, 4294901760
    %1875 = vmatmul.mubr.f32.gmra.mrb[0].mxu0 %v1874
    %v1876 = vpop.f32.mrb[0].mxu0
    %v1877 = vadd.f32 %v1803, %v1876
    %v1878 = vpop.f32.mrb[0].mxu0
    %1879 = vdwg.mxu0
    %1880 = vmatprep.subr.mxu0 0.0
    %v1881 = vand.u32 %v1575, 4294901760
    %v1882 = vsub.f32 %v1575, %v1881
    %v1883 = vand.u32 %v1882, 4294901760
    %1884 = vmatpush1.msra.mxu0 %v1883
    %1885 = vmatprep.subr.mxu0 0.0
    %1886 = vmatpush1.msra.mxu0 0.0
    %1887 = vmatprep.subr.mxu0 0.0
    %1888 = vmatpush1.msra.mxu0 0.0
    %1889 = vmatprep.subr.mxu0 0.0
    %1890 = vmatpush1.msra.mxu0 0.0
    %1891 = vmatprep.subr.mxu0 0.0
    %1892 = vmatpush1.msra.mxu0 0.0
    %1893 = vmatprep.subr.mxu0 0.0
    %1894 = vmatpush1.msra.mxu0 0.0
    %1895 = vmatprep.subr.mxu0 0.0
    %1896 = vmatpush1.msra.mxu0 0.0
    %1897 = vmatprep.subr.mxu0 0.0
    %1898 = vmatpush1.msra.mxu0 0.0
    %1899 = vmatprep.subr.mxu0 0.0
    %1900 = vmatpush1.msra.mxu0 0.0
    %1901 = vmatprep.subr.mxu0 0.0
    %1902 = vmatpush1.msra.mxu0 0.0
    %1903 = vmatprep.subr.mxu0 0.0
    %1904 = vmatpush1.msra.mxu0 0.0
    %1905 = vmatprep.subr.mxu0 0.0
    %1906 = vmatpush1.msra.mxu0 0.0
    %1907 = vmatprep.subr.mxu0 0.0
    %1908 = vmatpush1.msra.mxu0 0.0
    %1909 = vmatprep.subr.mxu0 0.0
    %1910 = vmatpush1.msra.mxu0 0.0
    %1911 = vmatprep.subr.mxu0 0.0
    %1912 = vmatpush1.msra.mxu0 0.0
    %1913 = vmatprep.subr.mxu0 0.0
    %1914 = vmatpush1.msra.mxu0 0.0
    %1915 = vmatprep.subr.mxu0 0.0
    %1916 = vmatpush1.msra.mxu0 0.0
    %1917 = vmatprep.subr.mxu0 0.0
    %1918 = vmatpush1.msra.mxu0 0.0
    %1919 = vmatprep.subr.mxu0 0.0
    %1920 = vmatpush1.msra.mxu0 0.0
    %1921 = vmatprep.subr.mxu0 0.0
    %1922 = vmatpush1.msra.mxu0 0.0
    %1923 = vmatprep.subr.mxu0 0.0
    %1924 = vmatpush1.msra.mxu0 0.0
    %1925 = vmatprep.subr.mxu0 0.0
    %1926 = vmatpush1.msra.mxu0 0.0
    %1927 = vmatprep.subr.mxu0 0.0
    %1928 = vmatpush1.msra.mxu0 0.0
    %1929 = vmatprep.subr.mxu0 0.0
    %1930 = vmatpush1.msra.mxu0 0.0
    %1931 = vmatprep.subr.mxu0 0.0
    %1932 = vmatpush1.msra.mxu0 0.0
    %1933 = vmatprep.subr.mxu0 0.0
    %1934 = vmatpush1.msra.mxu0 0.0
    %1935 = vmatprep.subr.mxu0 0.0
    %1936 = vmatpush1.msra.mxu0 0.0
    %1937 = vmatprep.subr.mxu0 0.0
    %1938 = vmatpush1.msra.mxu0 0.0
    %1939 = vmatprep.subr.mxu0 0.0
    %1940 = vmatpush1.msra.mxu0 0.0
    %1941 = vmatprep.subr.mxu0 0.0
    %1942 = vmatpush1.msra.mxu0 0.0
    %1943 = vmatprep.subr.mxu0 0.0
    %1944 = vmatpush1.msra.mxu0 0.0
    %1945 = vmatprep.subr.mxu0 0.0
    %1946 = vmatpush1.msra.mxu0 0.0
    %1947 = vmatprep.mubr.f32.mxu0 0.0
    %v1948 = vand.u32 %v1578, 4294901760
    %1949 = vmatmul.mubr.f32.gmra.mrb[0].mxu0 %v1948
    %v1950 = vpop.f32.mrb[0].mxu0
    %v1951 = vadd.f32 %v1877, %v1950
    %v1952 = vpop.f32.mrb[0].mxu0
    %1953 = vdwg.mxu0
    %1954 = vmatprep.subr.mxu0 0.0
    %v1955 = vand.u32 %v1575, 4294901760
    %1956 = vmatpush1.msra.mxu0 %v1955
    %1957 = vmatprep.subr.mxu0 0.0
    %1958 = vmatpush1.msra.mxu0 0.0
    %1959 = vmatprep.subr.mxu0 0.0
    %1960 = vmatpush1.msra.mxu0 0.0
    %1961 = vmatprep.subr.mxu0 0.0
    %1962 = vmatpush1.msra.mxu0 0.0
    %1963 = vmatprep.subr.mxu0 0.0
    %1964 = vmatpush1.msra.mxu0 0.0
    %1965 = vmatprep.subr.mxu0 0.0
    %1966 = vmatpush1.msra.mxu0 0.0
    %1967 = vmatprep.subr.mxu0 0.0
    %1968 = vmatpush1.msra.mxu0 0.0
    %1969 = vmatprep.subr.mxu0 0.0
    %1970 = vmatpush1.msra.mxu0 0.0
    %1971 = vmatprep.subr.mxu0 0.0
    %1972 = vmatpush1.msra.mxu0 0.0
    %1973 = vmatprep.subr.mxu0 0.0
    %1974 = vmatpush1.msra.mxu0 0.0
    %1975 = vmatprep.subr.mxu0 0.0
    %1976 = vmatpush1.msra.mxu0 0.0
    %1977 = vmatprep.subr.mxu0 0.0
    %1978 = vmatpush1.msra.mxu0 0.0
    %1979 = vmatprep.subr.mxu0 0.0
    %1980 = vmatpush1.msra.mxu0 0.0
    %1981 = vmatprep.subr.mxu0 0.0
    %1982 = vmatpush1.msra.mxu0 0.0
    %1983 = vmatprep.subr.mxu0 0.0
    %1984 = vmatpush1.msra.mxu0 0.0
    %1985 = vmatprep.subr.mxu0 0.0
    %1986 = vmatpush1.msra.mxu0 0.0
    %1987 = vmatprep.subr.mxu0 0.0
    %1988 = vmatpush1.msra.mxu0 0.0
    %1989 = vmatprep.subr.mxu0 0.0
    %1990 = vmatpush1.msra.mxu0 0.0
    %1991 = vmatprep.subr.mxu0 0.0
    %1992 = vmatpush1.msra.mxu0 0.0
    %1993 = vmatprep.subr.mxu0 0.0
    %1994 = vmatpush1.msra.mxu0 0.0
    %1995 = vmatprep.subr.mxu0 0.0
    %1996 = vmatpush1.msra.mxu0 0.0
    %1997 = vmatprep.subr.mxu0 0.0
    %1998 = vmatpush1.msra.mxu0 0.0
    %1999 = vmatprep.subr.mxu0 0.0
    %2000 = vmatpush1.msra.mxu0 0.0
    %2001 = vmatprep.subr.mxu0 0.0
    %2002 = vmatpush1.msra.mxu0 0.0
    %2003 = vmatprep.subr.mxu0 0.0
    %2004 = vmatpush1.msra.mxu0 0.0
    %2005 = vmatprep.subr.mxu0 0.0
    %2006 = vmatpush1.msra.mxu0 0.0
    %2007 = vmatprep.subr.mxu0 0.0
    %2008 = vmatpush1.msra.mxu0 0.0
    %2009 = vmatprep.subr.mxu0 0.0
    %2010 = vmatpush1.msra.mxu0 0.0
    %2011 = vmatprep.subr.mxu0 0.0
    %2012 = vmatpush1.msra.mxu0 0.0
    %2013 = vmatprep.subr.mxu0 0.0
    %2014 = vmatpush1.msra.mxu0 0.0
    %2015 = vmatprep.subr.mxu0 0.0
    %2016 = vmatpush1.msra.mxu0 0.0
    %2017 = vmatprep.subr.mxu0 0.0
    %2018 = vmatpush1.msra.mxu0 0.0
    %2019 = vmatprep.mubr.f32.mxu0 0.0
    %v2020 = vand.u32 %v1578, 4294901760
    %2021 = vmatmul.mubr.f32.gmra.mrb[0].mxu0 %v2020
    %v2022 = vpop.f32.mrb[0].mxu0
    %v2023 = vadd.f32 %v1951, %v2022
    %v2024 = vpop.f32.mrb[0].mxu0
    %2025 = vdwg.mxu0
    %2026 = vrot.lane.b32.xlu0 %v639, 64
    %v2027 = vpop.permute.xlu0 %2026
    %v2030 = vsel %vm1551, %v1573, 0
    %2032 = vmatprep.subr.mxu0 0.0
    %v2033 = vand.u32 %v2027, 4294901760
    %2034 = vmatpush1.msra.mxu0 %v2033
    %2035 = vmatprep.subr.mxu0 0.0
    %2036 = vmatpush1.msra.mxu0 0.0
    %2037 = vmatprep.subr.mxu0 0.0
    %2038 = vmatpush1.msra.mxu0 0.0
    %2039 = vmatprep.subr.mxu0 0.0
    %2040 = vmatpush1.msra.mxu0 0.0
    %2041 = vmatprep.subr.mxu0 0.0
    %2042 = vmatpush1.msra.mxu0 0.0
    %2043 = vmatprep.subr.mxu0 0.0
    %2044 = vmatpush1.msra.mxu0 0.0
    %2045 = vmatprep.subr.mxu0 0.0
    %2046 = vmatpush1.msra.mxu0 0.0
    %2047 = vmatprep.subr.mxu0 0.0
    %2048 = vmatpush1.msra.mxu0 0.0
    %2049 = vmatprep.subr.mxu0 0.0
    %2050 = vmatpush1.msra.mxu0 0.0
    %2051 = vmatprep.subr.mxu0 0.0
    %2052 = vmatpush1.msra.mxu0 0.0
    %2053 = vmatprep.subr.mxu0 0.0
    %2054 = vmatpush1.msra.mxu0 0.0
    %2055 = vmatprep.subr.mxu0 0.0
    %2056 = vmatpush1.msra.mxu0 0.0
    %2057 = vmatprep.subr.mxu0 0.0
    %2058 = vmatpush1.msra.mxu0 0.0
    %2059 = vmatprep.subr.mxu0 0.0
    %2060 = vmatpush1.msra.mxu0 0.0
    %2061 = vmatprep.subr.mxu0 0.0
    %2062 = vmatpush1.msra.mxu0 0.0
    %2063 = vmatprep.subr.mxu0 0.0
    %2064 = vmatpush1.msra.mxu0 0.0
    %2065 = vmatprep.subr.mxu0 0.0
    %2066 = vmatpush1.msra.mxu0 0.0
    %2067 = vmatprep.subr.mxu0 0.0
    %2068 = vmatpush1.msra.mxu0 0.0
    %2069 = vmatprep.subr.mxu0 0.0
    %2070 = vmatpush1.msra.mxu0 0.0
    %2071 = vmatprep.subr.mxu0 0.0
    %2072 = vmatpush1.msra.mxu0 0.0
    %2073 = vmatprep.subr.mxu0 0.0
    %2074 = vmatpush1.msra.mxu0 0.0
    %2075 = vmatprep.subr.mxu0 0.0
    %2076 = vmatpush1.msra.mxu0 0.0
    %2077 = vmatprep.subr.mxu0 0.0
    %2078 = vmatpush1.msra.mxu0 0.0
    %2079 = vmatprep.subr.mxu0 0.0
    %2080 = vmatpush1.msra.mxu0 0.0
    %2081 = vmatprep.subr.mxu0 0.0
    %2082 = vmatpush1.msra.mxu0 0.0
    %2083 = vmatprep.subr.mxu0 0.0
    %2084 = vmatpush1.msra.mxu0 0.0
    %2085 = vmatprep.subr.mxu0 0.0
    %2086 = vmatpush1.msra.mxu0 0.0
    %2087 = vmatprep.subr.mxu0 0.0
    %2088 = vmatpush1.msra.mxu0 0.0
    %2089 = vmatprep.subr.mxu0 0.0
    %2090 = vmatpush1.msra.mxu0 0.0
    %2091 = vmatprep.subr.mxu0 0.0
    %2092 = vmatpush1.msra.mxu0 0.0
    %2093 = vmatprep.subr.mxu0 0.0
    %2094 = vmatpush1.msra.mxu0 0.0
    %2095 = vmatprep.subr.mxu0 0.0
    %2096 = vmatpush1.msra.mxu0 0.0
    %2097 = vmatprep.mubr.f32.mxu0 0.0
    %v2098 = vand.u32 %v2030, 4294901760
    %v2099 = vsub.f32 %v2030, %v2098
    %v2100 = vand.u32 %v2099, 4294901760
    %v2101 = vsub.f32 %v2099, %v2100
    %v2102 = vand.u32 %v2101, 4294901760
    %2103 = vmatmul.mubr.f32.gmra.mrb[0].mxu0 %v2102
    %v2104 = vpop.f32.mrb[0].mxu0
    %v2105 = vadd.f32 0.0, %v2104
    %v2106 = vpop.f32.mrb[0].mxu0
    %2107 = vdwg.mxu0
    %2108 = vmatprep.subr.mxu0 0.0
    %v2109 = vand.u32 %v2027, 4294901760
    %v2110 = vsub.f32 %v2027, %v2109
    %v2111 = vand.u32 %v2110, 4294901760
    %v2112 = vsub.f32 %v2110, %v2111
    %v2113 = vand.u32 %v2112, 4294901760
    %2114 = vmatpush1.msra.mxu0 %v2113
    %2115 = vmatprep.subr.mxu0 0.0
    %2116 = vmatpush1.msra.mxu0 0.0
    %2117 = vmatprep.subr.mxu0 0.0
    %2118 = vmatpush1.msra.mxu0 0.0
    %2119 = vmatprep.subr.mxu0 0.0
    %2120 = vmatpush1.msra.mxu0 0.0
    %2121 = vmatprep.subr.mxu0 0.0
    %2122 = vmatpush1.msra.mxu0 0.0
    %2123 = vmatprep.subr.mxu0 0.0
    %2124 = vmatpush1.msra.mxu0 0.0
    %2125 = vmatprep.subr.mxu0 0.0
    %2126 = vmatpush1.msra.mxu0 0.0
    %2127 = vmatprep.subr.mxu0 0.0
    %2128 = vmatpush1.msra.mxu0 0.0
    %2129 = vmatprep.subr.mxu0 0.0
    %2130 = vmatpush1.msra.mxu0 0.0
    %2131 = vmatprep.subr.mxu0 0.0
    %2132 = vmatpush1.msra.mxu0 0.0
    %2133 = vmatprep.subr.mxu0 0.0
    %2134 = vmatpush1.msra.mxu0 0.0
    %2135 = vmatprep.subr.mxu0 0.0
    %2136 = vmatpush1.msra.mxu0 0.0
    %2137 = vmatprep.subr.mxu0 0.0
    %2138 = vmatpush1.msra.mxu0 0.0
    %2139 = vmatprep.subr.mxu0 0.0
    %2140 = vmatpush1.msra.mxu0 0.0
    %2141 = vmatprep.subr.mxu0 0.0
    %2142 = vmatpush1.msra.mxu0 0.0
    %2143 = vmatprep.subr.mxu0 0.0
    %2144 = vmatpush1.msra.mxu0 0.0
    %2145 = vmatprep.subr.mxu0 0.0
    %2146 = vmatpush1.msra.mxu0 0.0
    %2147 = vmatprep.subr.mxu0 0.0
    %2148 = vmatpush1.msra.mxu0 0.0
    %2149 = vmatprep.subr.mxu0 0.0
    %2150 = vmatpush1.msra.mxu0 0.0
    %2151 = vmatprep.subr.mxu0 0.0
    %2152 = vmatpush1.msra.mxu0 0.0
    %2153 = vmatprep.subr.mxu0 0.0
    %2154 = vmatpush1.msra.mxu0 0.0
    %2155 = vmatprep.subr.mxu0 0.0
    %2156 = vmatpush1.msra.mxu0 0.0
    %2157 = vmatprep.subr.mxu0 0.0
    %2158 = vmatpush1.msra.mxu0 0.0
    %2159 = vmatprep.subr.mxu0 0.0
    %2160 = vmatpush1.msra.mxu0 0.0
    %2161 = vmatprep.subr.mxu0 0.0
    %2162 = vmatpush1.msra.mxu0 0.0
    %2163 = vmatprep.subr.mxu0 0.0
    %2164 = vmatpush1.msra.mxu0 0.0
    %2165 = vmatprep.subr.mxu0 0.0
    %2166 = vmatpush1.msra.mxu0 0.0
    %2167 = vmatprep.subr.mxu0 0.0
    %2168 = vmatpush1.msra.mxu0 0.0
    %2169 = vmatprep.subr.mxu0 0.0
    %2170 = vmatpush1.msra.mxu0 0.0
    %2171 = vmatprep.subr.mxu0 0.0
    %2172 = vmatpush1.msra.mxu0 0.0
    %2173 = vmatprep.subr.mxu0 0.0
    %2174 = vmatpush1.msra.mxu0 0.0
    %2175 = vmatprep.subr.mxu0 0.0
    %2176 = vmatpush1.msra.mxu0 0.0
    %2177 = vmatprep.mubr.f32.mxu0 0.0
    %v2178 = vand.u32 %v2030, 4294901760
    %2179 = vmatmul.mubr.f32.gmra.mrb[0].mxu0 %v2178
    %v2180 = vpop.f32.mrb[0].mxu0
    %v2181 = vadd.f32 %v2105, %v2180
    %v2182 = vpop.f32.mrb[0].mxu0
    %2183 = vdwg.mxu0
    %2184 = vmatprep.subr.mxu0 0.0
    %v2185 = vand.u32 %v2027, 4294901760
    %v2186 = vsub.f32 %v2027, %v2185
    %2187 = vmatpush1.msra.mxu0 %v2186
    %2188 = vmatprep.subr.mxu0 0.0
    %2189 = vmatpush1.msra.mxu0 0.0
    %2190 = vmatprep.subr.mxu0 0.0
    %2191 = vmatpush1.msra.mxu0 0.0
    %2192 = vmatprep.subr.mxu0 0.0
    %2193 = vmatpush1.msra.mxu0 0.0
    %2194 = vmatprep.subr.mxu0 0.0
    %2195 = vmatpush1.msra.mxu0 0.0
    %2196 = vmatprep.subr.mxu0 0.0
    %2197 = vmatpush1.msra.mxu0 0.0
    %2198 = vmatprep.subr.mxu0 0.0
    %2199 = vmatpush1.msra.mxu0 0.0
    %2200 = vmatprep.subr.mxu0 0.0
    %2201 = vmatpush1.msra.mxu0 0.0
    %2202 = vmatprep.subr.mxu0 0.0
    %2203 = vmatpush1.msra.mxu0 0.0
    %2204 = vmatprep.subr.mxu0 0.0
    %2205 = vmatpush1.msra.mxu0 0.0
    %2206 = vmatprep.subr.mxu0 0.0
    %2207 = vmatpush1.msra.mxu0 0.0
    %2208 = vmatprep.subr.mxu0 0.0
    %2209 = vmatpush1.msra.mxu0 0.0
    %2210 = vmatprep.subr.mxu0 0.0
    %2211 = vmatpush1.msra.mxu0 0.0
    %2212 = vmatprep.subr.mxu0 0.0
    %2213 = vmatpush1.msra.mxu0 0.0
    %2214 = vmatprep.subr.mxu0 0.0
    %2215 = vmatpush1.msra.mxu0 0.0
    %2216 = vmatprep.subr.mxu0 0.0
    %2217 = vmatpush1.msra.mxu0 0.0
    %2218 = vmatprep.subr.mxu0 0.0
    %2219 = vmatpush1.msra.mxu0 0.0
    %2220 = vmatprep.subr.mxu0 0.0
    %2221 = vmatpush1.msra.mxu0 0.0
    %2222 = vmatprep.subr.mxu0 0.0
    %2223 = vmatpush1.msra.mxu0 0.0
    %2224 = vmatprep.subr.mxu0 0.0
    %2225 = vmatpush1.msra.mxu0 0.0
    %2226 = vmatprep.subr.mxu0 0.0
    %2227 = vmatpush1.msra.mxu0 0.0
    %2228 = vmatprep.subr.mxu0 0.0
    %2229 = vmatpush1.msra.mxu0 0.0
    %2230 = vmatprep.subr.mxu0 0.0
    %2231 = vmatpush1.msra.mxu0 0.0
    %2232 = vmatprep.subr.mxu0 0.0
    %2233 = vmatpush1.msra.mxu0 0.0
    %2234 = vmatprep.subr.mxu0 0.0
    %2235 = vmatpush1.msra.mxu0 0.0
    %2236 = vmatprep.subr.mxu0 0.0
    %2237 = vmatpush1.msra.mxu0 0.0
    %2238 = vmatprep.subr.mxu0 0.0
    %2239 = vmatpush1.msra.mxu0 0.0
    %2240 = vmatprep.subr.mxu0 0.0
    %2241 = vmatpush1.msra.mxu0 0.0
    %2242 = vmatprep.subr.mxu0 0.0
    %2243 = vmatpush1.msra.mxu0 0.0
    %2244 = vmatprep.subr.mxu0 0.0
    %2245 = vmatpush1.msra.mxu0 0.0
    %2246 = vmatprep.subr.mxu0 0.0
    %2247 = vmatpush1.msra.mxu0 0.0
    %2248 = vmatprep.subr.mxu0 0.0
    %2249 = vmatpush1.msra.mxu0 0.0
    %2250 = vmatprep.mubr.f32.mxu0 0.0
    %v2251 = vand.u32 %v2030, 4294901760
    %v2252 = vsub.f32 %v2030, %v2251
    %2253 = vmatmul.mubr.f32.gmra.mrb[0].mxu0 %v2252
    %v2254 = vpop.f32.mrb[0].mxu0
    %v2255 = vadd.f32 %v2181, %v2254
    %v2256 = vpop.f32.mrb[0].mxu0
    %2257 = vdwg.mxu0
    %2258 = vmatprep.subr.mxu0 0.0
    %v2259 = vand.u32 %v2027, 4294901760
    %2260 = vmatpush1.msra.mxu0 %v2259
    %2261 = vmatprep.subr.mxu0 0.0
    %2262 = vmatpush1.msra.mxu0 0.0
    %2263 = vmatprep.subr.mxu0 0.0
    %2264 = vmatpush1.msra.mxu0 0.0
    %2265 = vmatprep.subr.mxu0 0.0
    %2266 = vmatpush1.msra.mxu0 0.0
    %2267 = vmatprep.subr.mxu0 0.0
    %2268 = vmatpush1.msra.mxu0 0.0
    %2269 = vmatprep.subr.mxu0 0.0
    %2270 = vmatpush1.msra.mxu0 0.0
    %2271 = vmatprep.subr.mxu0 0.0
    %2272 = vmatpush1.msra.mxu0 0.0
    %2273 = vmatprep.subr.mxu0 0.0
    %2274 = vmatpush1.msra.mxu0 0.0
    %2275 = vmatprep.subr.mxu0 0.0
    %2276 = vmatpush1.msra.mxu0 0.0
    %2277 = vmatprep.subr.mxu0 0.0
    %2278 = vmatpush1.msra.mxu0 0.0
    %2279 = vmatprep.subr.mxu0 0.0
    %2280 = vmatpush1.msra.mxu0 0.0
    %2281 = vmatprep.subr.mxu0 0.0
    %2282 = vmatpush1.msra.mxu0 0.0
    %2283 = vmatprep.subr.mxu0 0.0
    %2284 = vmatpush1.msra.mxu0 0.0
    %2285 = vmatprep.subr.mxu0 0.0
    %2286 = vmatpush1.msra.mxu0 0.0
    %2287 = vmatprep.subr.mxu0 0.0
    %2288 = vmatpush1.msra.mxu0 0.0
    %2289 = vmatprep.subr.mxu0 0.0
    %2290 = vmatpush1.msra.mxu0 0.0
    %2291 = vmatprep.subr.mxu0 0.0
    %2292 = vmatpush1.msra.mxu0 0.0
    %2293 = vmatprep.subr.mxu0 0.0
    %2294 = vmatpush1.msra.mxu0 0.0
    %2295 = vmatprep.subr.mxu0 0.0
    %2296 = vmatpush1.msra.mxu0 0.0
    %2297 = vmatprep.subr.mxu0 0.0
    %2298 = vmatpush1.msra.mxu0 0.0
    %2299 = vmatprep.subr.mxu0 0.0
    %2300 = vmatpush1.msra.mxu0 0.0
    %2301 = vmatprep.subr.mxu0 0.0
    %2302 = vmatpush1.msra.mxu0 0.0
    %2303 = vmatprep.subr.mxu0 0.0
    %2304 = vmatpush1.msra.mxu0 0.0
    %2305 = vmatprep.subr.mxu0 0.0
    %2306 = vmatpush1.msra.mxu0 0.0
    %2307 = vmatprep.subr.mxu0 0.0
    %2308 = vmatpush1.msra.mxu0 0.0
    %2309 = vmatprep.subr.mxu0 0.0
    %2310 = vmatpush1.msra.mxu0 0.0
    %2311 = vmatprep.subr.mxu0 0.0
    %2312 = vmatpush1.msra.mxu0 0.0
    %2313 = vmatprep.subr.mxu0 0.0
    %2314 = vmatpush1.msra.mxu0 0.0
    %2315 = vmatprep.subr.mxu0 0.0
    %2316 = vmatpush1.msra.mxu0 0.0
    %2317 = vmatprep.subr.mxu0 0.0
    %2318 = vmatpush1.msra.mxu0 0.0
    %2319 = vmatprep.subr.mxu0 0.0
    %2320 = vmatpush1.msra.mxu0 0.0
    %2321 = vmatprep.subr.mxu0 0.0
    %2322 = vmatpush1.msra.mxu0 0.0
    %2323 = vmatprep.mubr.f32.mxu0 0.0
    %v2324 = vand.u32 %v2030, 4294901760
    %v2325 = vsub.f32 %v2030, %v2324
    %v2326 = vand.u32 %v2325, 4294901760
    %2327 = vmatmul.mubr.f32.gmra.mrb[0].mxu0 %v2326
    %v2328 = vpop.f32.mrb[0].mxu0
    %v2329 = vadd.f32 %v2255, %v2328
    %v2330 = vpop.f32.mrb[0].mxu0
    %2331 = vdwg.mxu0
    %2332 = vmatprep.subr.mxu0 0.0
    %v2333 = vand.u32 %v2027, 4294901760
    %v2334 = vsub.f32 %v2027, %v2333
    %v2335 = vand.u32 %v2334, 4294901760
    %2336 = vmatpush1.msra.mxu0 %v2335
    %2337 = vmatprep.subr.mxu0 0.0
    %2338 = vmatpush1.msra.mxu0 0.0
    %2339 = vmatprep.subr.mxu0 0.0
    %2340 = vmatpush1.msra.mxu0 0.0
    %2341 = vmatprep.subr.mxu0 0.0
    %2342 = vmatpush1.msra.mxu0 0.0
    %2343 = vmatprep.subr.mxu0 0.0
    %2344 = vmatpush1.msra.mxu0 0.0
    %2345 = vmatprep.subr.mxu0 0.0
    %2346 = vmatpush1.msra.mxu0 0.0
    %2347 = vmatprep.subr.mxu0 0.0
    %2348 = vmatpush1.msra.mxu0 0.0
    %2349 = vmatprep.subr.mxu0 0.0
    %2350 = vmatpush1.msra.mxu0 0.0
    %2351 = vmatprep.subr.mxu0 0.0
    %2352 = vmatpush1.msra.mxu0 0.0
    %2353 = vmatprep.subr.mxu0 0.0
    %2354 = vmatpush1.msra.mxu0 0.0
    %2355 = vmatprep.subr.mxu0 0.0
    %2356 = vmatpush1.msra.mxu0 0.0
    %2357 = vmatprep.subr.mxu0 0.0
    %2358 = vmatpush1.msra.mxu0 0.0
    %2359 = vmatprep.subr.mxu0 0.0
    %2360 = vmatpush1.msra.mxu0 0.0
    %2361 = vmatprep.subr.mxu0 0.0
    %2362 = vmatpush1.msra.mxu0 0.0
    %2363 = vmatprep.subr.mxu0 0.0
    %2364 = vmatpush1.msra.mxu0 0.0
    %2365 = vmatprep.subr.mxu0 0.0
    %2366 = vmatpush1.msra.mxu0 0.0
    %2367 = vmatprep.subr.mxu0 0.0
    %2368 = vmatpush1.msra.mxu0 0.0
    %2369 = vmatprep.subr.mxu0 0.0
    %2370 = vmatpush1.msra.mxu0 0.0
    %2371 = vmatprep.subr.mxu0 0.0
    %2372 = vmatpush1.msra.mxu0 0.0
    %2373 = vmatprep.subr.mxu0 0.0
    %2374 = vmatpush1.msra.mxu0 0.0
    %2375 = vmatprep.subr.mxu0 0.0
    %2376 = vmatpush1.msra.mxu0 0.0
    %2377 = vmatprep.subr.mxu0 0.0
    %2378 = vmatpush1.msra.mxu0 0.0
    %2379 = vmatprep.subr.mxu0 0.0
    %2380 = vmatpush1.msra.mxu0 0.0
    %2381 = vmatprep.subr.mxu0 0.0
    %2382 = vmatpush1.msra.mxu0 0.0
    %2383 = vmatprep.subr.mxu0 0.0
    %2384 = vmatpush1.msra.mxu0 0.0
    %2385 = vmatprep.subr.mxu0 0.0
    %2386 = vmatpush1.msra.mxu0 0.0
    %2387 = vmatprep.subr.mxu0 0.0
    %2388 = vmatpush1.msra.mxu0 0.0
    %2389 = vmatprep.subr.mxu0 0.0
    %2390 = vmatpush1.msra.mxu0 0.0
    %2391 = vmatprep.subr.mxu0 0.0
    %2392 = vmatpush1.msra.mxu0 0.0
    %2393 = vmatprep.subr.mxu0 0.0
    %2394 = vmatpush1.msra.mxu0 0.0
    %2395 = vmatprep.subr.mxu0 0.0
    %2396 = vmatpush1.msra.mxu0 0.0
    %2397 = vmatprep.subr.mxu0 0.0
    %2398 = vmatpush1.msra.mxu0 0.0
    %2399 = vmatprep.mubr.f32.mxu0 0.0
    %v2400 = vand.u32 %v2030, 4294901760
    %2401 = vmatmul.mubr.f32.gmra.mrb[0].mxu0 %v2400
    %v2402 = vpop.f32.mrb[0].mxu0
    %v2403 = vadd.f32 %v2329, %v2402
    %v2404 = vpop.f32.mrb[0].mxu0
    %2405 = vdwg.mxu0
    %2406 = vmatprep.subr.mxu0 0.0
    %v2407 = vand.u32 %v2027, 4294901760
    %2408 = vmatpush1.msra.mxu0 %v2407
    %2409 = vmatprep.subr.mxu0 0.0
    %2410 = vmatpush1.msra.mxu0 0.0
    %2411 = vmatprep.subr.mxu0 0.0
    %2412 = vmatpush1.msra.mxu0 0.0
    %2413 = vmatprep.subr.mxu0 0.0
    %2414 = vmatpush1.msra.mxu0 0.0
    %2415 = vmatprep.subr.mxu0 0.0
    %2416 = vmatpush1.msra.mxu0 0.0
    %2417 = vmatprep.subr.mxu0 0.0
    %2418 = vmatpush1.msra.mxu0 0.0
    %2419 = vmatprep.subr.mxu0 0.0
    %2420 = vmatpush1.msra.mxu0 0.0
    %2421 = vmatprep.subr.mxu0 0.0
    %2422 = vmatpush1.msra.mxu0 0.0
    %2423 = vmatprep.subr.mxu0 0.0
    %2424 = vmatpush1.msra.mxu0 0.0
    %2425 = vmatprep.subr.mxu0 0.0
    %2426 = vmatpush1.msra.mxu0 0.0
    %2427 = vmatprep.subr.mxu0 0.0
    %2428 = vmatpush1.msra.mxu0 0.0
    %2429 = vmatprep.subr.mxu0 0.0
    %2430 = vmatpush1.msra.mxu0 0.0
    %2431 = vmatprep.subr.mxu0 0.0
    %2432 = vmatpush1.msra.mxu0 0.0
    %2433 = vmatprep.subr.mxu0 0.0
    %2434 = vmatpush1.msra.mxu0 0.0
    %2435 = vmatprep.subr.mxu0 0.0
    %2436 = vmatpush1.msra.mxu0 0.0
    %2437 = vmatprep.subr.mxu0 0.0
    %2438 = vmatpush1.msra.mxu0 0.0
    %2439 = vmatprep.subr.mxu0 0.0
    %2440 = vmatpush1.msra.mxu0 0.0
    %2441 = vmatprep.subr.mxu0 0.0
    %2442 = vmatpush1.msra.mxu0 0.0
    %2443 = vmatprep.subr.mxu0 0.0
    %2444 = vmatpush1.msra.mxu0 0.0
    %2445 = vmatprep.subr.mxu0 0.0
    %2446 = vmatpush1.msra.mxu0 0.0
    %2447 = vmatprep.subr.mxu0 0.0
    %2448 = vmatpush1.msra.mxu0 0.0
    %2449 = vmatprep.subr.mxu0 0.0
    %2450 = vmatpush1.msra.mxu0 0.0
    %2451 = vmatprep.subr.mxu0 0.0
    %2452 = vmatpush1.msra.mxu0 0.0
    %2453 = vmatprep.subr.mxu0 0.0
    %2454 = vmatpush1.msra.mxu0 0.0
    %2455 = vmatprep.subr.mxu0 0.0
    %2456 = vmatpush1.msra.mxu0 0.0
    %2457 = vmatprep.subr.mxu0 0.0
    %2458 = vmatpush1.msra.mxu0 0.0
    %2459 = vmatprep.subr.mxu0 0.0
    %2460 = vmatpush1.msra.mxu0 0.0
    %2461 = vmatprep.subr.mxu0 0.0
    %2462 = vmatpush1.msra.mxu0 0.0
    %2463 = vmatprep.subr.mxu0 0.0
    %2464 = vmatpush1.msra.mxu0 0.0
    %2465 = vmatprep.subr.mxu0 0.0
    %2466 = vmatpush1.msra.mxu0 0.0
    %2467 = vmatprep.subr.mxu0 0.0
    %2468 = vmatpush1.msra.mxu0 0.0
    %2469 = vmatprep.subr.mxu0 0.0
    %2470 = vmatpush1.msra.mxu0 0.0
    %2471 = vmatprep.mubr.f32.mxu0 0.0
    %v2472 = vand.u32 %v2030, 4294901760
    %2473 = vmatmul.mubr.f32.gmra.mrb[0].mxu0 %v2472
    %v2474 = vpop.f32.mrb[0].mxu0
    %v2475 = vadd.f32 %v2403, %v2474
    %v2476 = vpop.f32.mrb[0].mxu0
    %2477 = vdwg.mxu0
    %2478 = vrot.lane.b32.xlu0 %v633, 112
    %v2479 = vpop.permute.xlu0 %2478
    %2480 = vrot.lane.b32.xlu0 %v633, 80
    %v2481 = vpop.permute.xlu0 %2480
    %v2482 = vsel %vm645, %v2479, 0
    %v2484 = vsel %vm645, %v2481, 0
    %2486 = vmatprep.subr.mxu0 0.0
    %v2487 = vand.u32 %v2484, 4294901760
    %2488 = vmatpush1.xpose.msra.mxu0 %v2487
    %2489 = vmatprep.subr.mxu0 0.0
    %2490 = vmatpush1.xpose.msra.mxu0 0.0
    %2491 = vmatprep.subr.mxu0 0.0
    %2492 = vmatpush1.xpose.msra.mxu0 0.0
    %2493 = vmatprep.subr.mxu0 0.0
    %2494 = vmatpush1.xpose.msra.mxu0 0.0
    %2495 = vmatprep.subr.mxu0 0.0
    %2496 = vmatpush1.xpose.msra.mxu0 0.0
    %2497 = vmatprep.subr.mxu0 0.0
    %2498 = vmatpush1.xpose.msra.mxu0 0.0
    %2499 = vmatprep.subr.mxu0 0.0
    %2500 = vmatpush1.xpose.msra.mxu0 0.0
    %2501 = vmatprep.subr.mxu0 0.0
    %2502 = vmatpush1.xpose.msra.mxu0 0.0
    %2503 = vmatprep.subr.mxu0 0.0
    %2504 = vmatpush1.xpose.msra.mxu0 0.0
    %2505 = vmatprep.subr.mxu0 0.0
    %2506 = vmatpush1.xpose.msra.mxu0 0.0
    %2507 = vmatprep.subr.mxu0 0.0
    %2508 = vmatpush1.xpose.msra.mxu0 0.0
    %2509 = vmatprep.subr.mxu0 0.0
    %2510 = vmatpush1.xpose.msra.mxu0 0.0
    %2511 = vmatprep.subr.mxu0 0.0
    %2512 = vmatpush1.xpose.msra.mxu0 0.0
    %2513 = vmatprep.subr.mxu0 0.0
    %2514 = vmatpush1.xpose.msra.mxu0 0.0
    %2515 = vmatprep.subr.mxu0 0.0
    %2516 = vmatpush1.xpose.msra.mxu0 0.0
    %2517 = vmatprep.subr.mxu0 0.0
    %2518 = vmatpush1.xpose.msra.mxu0 0.0
    %2519 = vmatprep.subr.mxu0 0.0
    %2520 = vmatpush1.xpose.msra.mxu0 0.0
    %2521 = vmatprep.subr.mxu0 0.0
    %2522 = vmatpush1.xpose.msra.mxu0 0.0
    %2523 = vmatprep.subr.mxu0 0.0
    %2524 = vmatpush1.xpose.msra.mxu0 0.0
    %2525 = vmatprep.subr.mxu0 0.0
    %2526 = vmatpush1.xpose.msra.mxu0 0.0
    %2527 = vmatprep.subr.mxu0 0.0
    %2528 = vmatpush1.xpose.msra.mxu0 0.0
    %2529 = vmatprep.subr.mxu0 0.0
    %2530 = vmatpush1.xpose.msra.mxu0 0.0
    %2531 = vmatprep.subr.mxu0 0.0
    %2532 = vmatpush1.xpose.msra.mxu0 0.0
    %2533 = vmatprep.subr.mxu0 0.0
    %2534 = vmatpush1.xpose.msra.mxu0 0.0
    %2535 = vmatprep.subr.mxu0 0.0
    %2536 = vmatpush1.xpose.msra.mxu0 0.0
    %2537 = vmatprep.subr.mxu0 0.0
    %2538 = vmatpush1.xpose.msra.mxu0 0.0
    %2539 = vmatprep.subr.mxu0 0.0
    %2540 = vmatpush1.xpose.msra.mxu0 0.0
    %2541 = vmatprep.subr.mxu0 0.0
    %2542 = vmatpush1.xpose.msra.mxu0 0.0
    %2543 = vmatprep.subr.mxu0 0.0
    %2544 = vmatpush1.xpose.msra.mxu0 0.0
    %2545 = vmatprep.subr.mxu0 0.0
    %2546 = vmatpush1.xpose.msra.mxu0 0.0
    %2547 = vmatprep.subr.mxu0 0.0
    %2548 = vmatpush1.xpose.msra.mxu0 0.0
    %2549 = vmatprep.subr.mxu0 0.0
    %2550 = vmatpush1.xpose.msra.mxu0 0.0
    %2551 = vmatprep.mubr.f32.mxu0 0.0
    %v2552 = vand.u32 %v2482, 4294901760
    %v2553 = vsub.f32 %v2482, %v2552
    %v2554 = vand.u32 %v2553, 4294901760
    %v2555 = vsub.f32 %v2553, %v2554
    %v2556 = vand.u32 %v2555, 4294901760
    %2557 = vmatmul.mubr.f32.gmra.mrb[0].mxu0 %v2556
    %v2558 = vpop.f32.mrb[0].mxu0
    %v2559 = vadd.f32 0.0, %v2558
    %v2560 = vpop.f32.mrb[0].mxu0
    %2561 = vdwg.mxu0
    %2562 = vmatprep.subr.mxu0 0.0
    %v2563 = vand.u32 %v2484, 4294901760
    %v2564 = vsub.f32 %v2484, %v2563
    %v2565 = vand.u32 %v2564, 4294901760
    %v2566 = vsub.f32 %v2564, %v2565
    %v2567 = vand.u32 %v2566, 4294901760
    %2568 = vmatpush1.xpose.msra.mxu0 %v2567
    %2569 = vmatprep.subr.mxu0 0.0
    %2570 = vmatpush1.xpose.msra.mxu0 0.0
    %2571 = vmatprep.subr.mxu0 0.0
    %2572 = vmatpush1.xpose.msra.mxu0 0.0
    %2573 = vmatprep.subr.mxu0 0.0
    %2574 = vmatpush1.xpose.msra.mxu0 0.0
    %2575 = vmatprep.subr.mxu0 0.0
    %2576 = vmatpush1.xpose.msra.mxu0 0.0
    %2577 = vmatprep.subr.mxu0 0.0
    %2578 = vmatpush1.xpose.msra.mxu0 0.0
    %2579 = vmatprep.subr.mxu0 0.0
    %2580 = vmatpush1.xpose.msra.mxu0 0.0
    %2581 = vmatprep.subr.mxu0 0.0
    %2582 = vmatpush1.xpose.msra.mxu0 0.0
    %2583 = vmatprep.subr.mxu0 0.0
    %2584 = vmatpush1.xpose.msra.mxu0 0.0
    %2585 = vmatprep.subr.mxu0 0.0
    %2586 = vmatpush1.xpose.msra.mxu0 0.0
    %2587 = vmatprep.subr.mxu0 0.0
    %2588 = vmatpush1.xpose.msra.mxu0 0.0
    %2589 = vmatprep.subr.mxu0 0.0
    %2590 = vmatpush1.xpose.msra.mxu0 0.0
    %2591 = vmatprep.subr.mxu0 0.0
    %2592 = vmatpush1.xpose.msra.mxu0 0.0
    %2593 = vmatprep.subr.mxu0 0.0
    %2594 = vmatpush1.xpose.msra.mxu0 0.0
    %2595 = vmatprep.subr.mxu0 0.0
    %2596 = vmatpush1.xpose.msra.mxu0 0.0
    %2597 = vmatprep.subr.mxu0 0.0
    %2598 = vmatpush1.xpose.msra.mxu0 0.0
    %2599 = vmatprep.subr.mxu0 0.0
    %2600 = vmatpush1.xpose.msra.mxu0 0.0
    %2601 = vmatprep.subr.mxu0 0.0
    %2602 = vmatpush1.xpose.msra.mxu0 0.0
    %2603 = vmatprep.subr.mxu0 0.0
    %2604 = vmatpush1.xpose.msra.mxu0 0.0
    %2605 = vmatprep.subr.mxu0 0.0
    %2606 = vmatpush1.xpose.msra.mxu0 0.0
    %2607 = vmatprep.subr.mxu0 0.0
    %2608 = vmatpush1.xpose.msra.mxu0 0.0
    %2609 = vmatprep.subr.mxu0 0.0
    %2610 = vmatpush1.xpose.msra.mxu0 0.0
    %2611 = vmatprep.subr.mxu0 0.0
    %2612 = vmatpush1.xpose.msra.mxu0 0.0
    %2613 = vmatprep.subr.mxu0 0.0
    %2614 = vmatpush1.xpose.msra.mxu0 0.0
    %2615 = vmatprep.subr.mxu0 0.0
    %2616 = vmatpush1.xpose.msra.mxu0 0.0
    %2617 = vmatprep.subr.mxu0 0.0
    %2618 = vmatpush1.xpose.msra.mxu0 0.0
    %2619 = vmatprep.subr.mxu0 0.0
    %2620 = vmatpush1.xpose.msra.mxu0 0.0
    %2621 = vmatprep.subr.mxu0 0.0
    %2622 = vmatpush1.xpose.msra.mxu0 0.0
    %2623 = vmatprep.subr.mxu0 0.0
    %2624 = vmatpush1.xpose.msra.mxu0 0.0
    %2625 = vmatprep.subr.mxu0 0.0
    %2626 = vmatpush1.xpose.msra.mxu0 0.0
    %2627 = vmatprep.subr.mxu0 0.0
    %2628 = vmatpush1.xpose.msra.mxu0 0.0
    %2629 = vmatprep.subr.mxu0 0.0
    %2630 = vmatpush1.xpose.msra.mxu0 0.0
    %2631 = vmatprep.mubr.f32.mxu0 0.0
    %v2632 = vand.u32 %v2482, 4294901760
    %2633 = vmatmul.mubr.f32.gmra.mrb[0].mxu0 %v2632
    %v2634 = vpop.f32.mrb[0].mxu0
    %v2635 = vadd.f32 %v2559, %v2634
    %v2636 = vpop.f32.mrb[0].mxu0
    %2637 = vdwg.mxu0
    %2638 = vmatprep.subr.mxu0 0.0
    %v2639 = vand.u32 %v2484, 4294901760
    %v2640 = vsub.f32 %v2484, %v2639
    %2641 = vmatpush1.xpose.msra.mxu0 %v2640
    %2642 = vmatprep.subr.mxu0 0.0
    %2643 = vmatpush1.xpose.msra.mxu0 0.0
    %2644 = vmatprep.subr.mxu0 0.0
    %2645 = vmatpush1.xpose.msra.mxu0 0.0
    %2646 = vmatprep.subr.mxu0 0.0
    %2647 = vmatpush1.xpose.msra.mxu0 0.0
    %2648 = vmatprep.subr.mxu0 0.0
    %2649 = vmatpush1.xpose.msra.mxu0 0.0
    %2650 = vmatprep.subr.mxu0 0.0
    %2651 = vmatpush1.xpose.msra.mxu0 0.0
    %2652 = vmatprep.subr.mxu0 0.0
    %2653 = vmatpush1.xpose.msra.mxu0 0.0
    %2654 = vmatprep.subr.mxu0 0.0
    %2655 = vmatpush1.xpose.msra.mxu0 0.0
    %2656 = vmatprep.subr.mxu0 0.0
    %2657 = vmatpush1.xpose.msra.mxu0 0.0
    %2658 = vmatprep.subr.mxu0 0.0
    %2659 = vmatpush1.xpose.msra.mxu0 0.0
    %2660 = vmatprep.subr.mxu0 0.0
    %2661 = vmatpush1.xpose.msra.mxu0 0.0
    %2662 = vmatprep.subr.mxu0 0.0
    %2663 = vmatpush1.xpose.msra.mxu0 0.0
    %2664 = vmatprep.subr.mxu0 0.0
    %2665 = vmatpush1.xpose.msra.mxu0 0.0
    %2666 = vmatprep.subr.mxu0 0.0
    %2667 = vmatpush1.xpose.msra.mxu0 0.0
    %2668 = vmatprep.subr.mxu0 0.0
    %2669 = vmatpush1.xpose.msra.mxu0 0.0
    %2670 = vmatprep.subr.mxu0 0.0
    %2671 = vmatpush1.xpose.msra.mxu0 0.0
    %2672 = vmatprep.subr.mxu0 0.0
    %2673 = vmatpush1.xpose.msra.mxu0 0.0
    %2674 = vmatprep.subr.mxu0 0.0
    %2675 = vmatpush1.xpose.msra.mxu0 0.0
    %2676 = vmatprep.subr.mxu0 0.0
    %2677 = vmatpush1.xpose.msra.mxu0 0.0
    %2678 = vmatprep.subr.mxu0 0.0
    %2679 = vmatpush1.xpose.msra.mxu0 0.0
    %2680 = vmatprep.subr.mxu0 0.0
    %2681 = vmatpush1.xpose.msra.mxu0 0.0
    %2682 = vmatprep.subr.mxu0 0.0
    %2683 = vmatpush1.xpose.msra.mxu0 0.0
    %2684 = vmatprep.subr.mxu0 0.0
    %2685 = vmatpush1.xpose.msra.mxu0 0.0
    %2686 = vmatprep.subr.mxu0 0.0
    %2687 = vmatpush1.xpose.msra.mxu0 0.0
    %2688 = vmatprep.subr.mxu0 0.0
    %2689 = vmatpush1.xpose.msra.mxu0 0.0
    %2690 = vmatprep.subr.mxu0 0.0
    %2691 = vmatpush1.xpose.msra.mxu0 0.0
    %2692 = vmatprep.subr.mxu0 0.0
    %2693 = vmatpush1.xpose.msra.mxu0 0.0
    %2694 = vmatprep.subr.mxu0 0.0
    %2695 = vmatpush1.xpose.msra.mxu0 0.0
    %2696 = vmatprep.subr.mxu0 0.0
    %2697 = vmatpush1.xpose.msra.mxu0 0.0
    %2698 = vmatprep.subr.mxu0 0.0
    %2699 = vmatpush1.xpose.msra.mxu0 0.0
    %2700 = vmatprep.subr.mxu0 0.0
    %2701 = vmatpush1.xpose.msra.mxu0 0.0
    %2702 = vmatprep.subr.mxu0 0.0
    %2703 = vmatpush1.xpose.msra.mxu0 0.0
    %2704 = vmatprep.mubr.f32.mxu0 0.0
    %v2705 = vand.u32 %v2482, 4294901760
    %v2706 = vsub.f32 %v2482, %v2705
    %2707 = vmatmul.mubr.f32.gmra.mrb[0].mxu0 %v2706
    %v2708 = vpop.f32.mrb[0].mxu0
    %v2709 = vadd.f32 %v2635, %v2708
    %v2710 = vpop.f32.mrb[0].mxu0
    %2711 = vdwg.mxu0
    %2712 = vmatprep.subr.mxu0 0.0
    %v2713 = vand.u32 %v2484, 4294901760
    %2714 = vmatpush1.xpose.msra.mxu0 %v2713
    %2715 = vmatprep.subr.mxu0 0.0
    %2716 = vmatpush1.xpose.msra.mxu0 0.0
    %2717 = vmatprep.subr.mxu0 0.0
    %2718 = vmatpush1.xpose.msra.mxu0 0.0
    %2719 = vmatprep.subr.mxu0 0.0
    %2720 = vmatpush1.xpose.msra.mxu0 0.0
    %2721 = vmatprep.subr.mxu0 0.0
    %2722 = vmatpush1.xpose.msra.mxu0 0.0
    %2723 = vmatprep.subr.mxu0 0.0
    %2724 = vmatpush1.xpose.msra.mxu0 0.0
    %2725 = vmatprep.subr.mxu0 0.0
    %2726 = vmatpush1.xpose.msra.mxu0 0.0
    %2727 = vmatprep.subr.mxu0 0.0
    %2728 = vmatpush1.xpose.msra.mxu0 0.0
    %2729 = vmatprep.subr.mxu0 0.0
    %2730 = vmatpush1.xpose.msra.mxu0 0.0
    %2731 = vmatprep.subr.mxu0 0.0
    %2732 = vmatpush1.xpose.msra.mxu0 0.0
    %2733 = vmatprep.subr.mxu0 0.0
    %2734 = vmatpush1.xpose.msra.mxu0 0.0
    %2735 = vmatprep.subr.mxu0 0.0
    %2736 = vmatpush1.xpose.msra.mxu0 0.0
    %2737 = vmatprep.subr.mxu0 0.0
    %2738 = vmatpush1.xpose.msra.mxu0 0.0
    %2739 = vmatprep.subr.mxu0 0.0
    %2740 = vmatpush1.xpose.msra.mxu0 0.0
    %2741 = vmatprep.subr.mxu0 0.0
    %2742 = vmatpush1.xpose.msra.mxu0 0.0
    %2743 = vmatprep.subr.mxu0 0.0
    %2744 = vmatpush1.xpose.msra.mxu0 0.0
    %2745 = vmatprep.subr.mxu0 0.0
    %2746 = vmatpush1.xpose.msra.mxu0 0.0
    %2747 = vmatprep.subr.mxu0 0.0
    %2748 = vmatpush1.xpose.msra.mxu0 0.0
    %2749 = vmatprep.subr.mxu0 0.0
    %2750 = vmatpush1.xpose.msra.mxu0 0.0
    %2751 = vmatprep.subr.mxu0 0.0
    %2752 = vmatpush1.xpose.msra.mxu0 0.0
    %2753 = vmatprep.subr.mxu0 0.0
    %2754 = vmatpush1.xpose.msra.mxu0 0.0
    %2755 = vmatprep.subr.mxu0 0.0
    %2756 = vmatpush1.xpose.msra.mxu0 0.0
    %2757 = vmatprep.subr.mxu0 0.0
    %2758 = vmatpush1.xpose.msra.mxu0 0.0
    %2759 = vmatprep.subr.mxu0 0.0
    %2760 = vmatpush1.xpose.msra.mxu0 0.0
    %2761 = vmatprep.subr.mxu0 0.0
    %2762 = vmatpush1.xpose.msra.mxu0 0.0
    %2763 = vmatprep.subr.mxu0 0.0
    %2764 = vmatpush1.xpose.msra.mxu0 0.0
    %2765 = vmatprep.subr.mxu0 0.0
    %2766 = vmatpush1.xpose.msra.mxu0 0.0
    %2767 = vmatprep.subr.mxu0 0.0
    %2768 = vmatpush1.xpose.msra.mxu0 0.0
    %2769 = vmatprep.subr.mxu0 0.0
    %2770 = vmatpush1.xpose.msra.mxu0 0.0
    %2771 = vmatprep.subr.mxu0 0.0
    %2772 = vmatpush1.xpose.msra.mxu0 0.0
    %2773 = vmatprep.subr.mxu0 0.0
    %2774 = vmatpush1.xpose.msra.mxu0 0.0
    %2775 = vmatprep.subr.mxu0 0.0
    %2776 = vmatpush1.xpose.msra.mxu0 0.0
    %2777 = vmatprep.mubr.f32.mxu0 0.0
    %v2778 = vand.u32 %v2482, 4294901760
    %v2779 = vsub.f32 %v2482, %v2778
    %v2780 = vand.u32 %v2779, 4294901760
    %2781 = vmatmul.mubr.f32.gmra.mrb[0].mxu0 %v2780
    %v2782 = vpop.f32.mrb[0].mxu0
    %v2783 = vadd.f32 %v2709, %v2782
    %v2784 = vpop.f32.mrb[0].mxu0
    %2785 = vdwg.mxu0
    %2786 = vmatprep.subr.mxu0 0.0
    %v2787 = vand.u32 %v2484, 4294901760
    %v2788 = vsub.f32 %v2484, %v2787
    %v2789 = vand.u32 %v2788, 4294901760
    %2790 = vmatpush1.xpose.msra.mxu0 %v2789
    %2791 = vmatprep.subr.mxu0 0.0
    %2792 = vmatpush1.xpose.msra.mxu0 0.0
    %2793 = vmatprep.subr.mxu0 0.0
    %2794 = vmatpush1.xpose.msra.mxu0 0.0
    %2795 = vmatprep.subr.mxu0 0.0
    %2796 = vmatpush1.xpose.msra.mxu0 0.0
    %2797 = vmatprep.subr.mxu0 0.0
    %2798 = vmatpush1.xpose.msra.mxu0 0.0
    %2799 = vmatprep.subr.mxu0 0.0
    %2800 = vmatpush1.xpose.msra.mxu0 0.0
    %2801 = vmatprep.subr.mxu0 0.0
    %2802 = vmatpush1.xpose.msra.mxu0 0.0
    %2803 = vmatprep.subr.mxu0 0.0
    %2804 = vmatpush1.xpose.msra.mxu0 0.0
    %2805 = vmatprep.subr.mxu0 0.0
    %2806 = vmatpush1.xpose.msra.mxu0 0.0
    %2807 = vmatprep.subr.mxu0 0.0
    %2808 = vmatpush1.xpose.msra.mxu0 0.0
    %2809 = vmatprep.subr.mxu0 0.0
    %2810 = vmatpush1.xpose.msra.mxu0 0.0
    %2811 = vmatprep.subr.mxu0 0.0
    %2812 = vmatpush1.xpose.msra.mxu0 0.0
    %2813 = vmatprep.subr.mxu0 0.0
    %2814 = vmatpush1.xpose.msra.mxu0 0.0
    %2815 = vmatprep.subr.mxu0 0.0
    %2816 = vmatpush1.xpose.msra.mxu0 0.0
    %2817 = vmatprep.subr.mxu0 0.0
    %2818 = vmatpush1.xpose.msra.mxu0 0.0
    %2819 = vmatprep.subr.mxu0 0.0
    %2820 = vmatpush1.xpose.msra.mxu0 0.0
    %2821 = vmatprep.subr.mxu0 0.0
    %2822 = vmatpush1.xpose.msra.mxu0 0.0
    %2823 = vmatprep.subr.mxu0 0.0
    %2824 = vmatpush1.xpose.msra.mxu0 0.0
    %2825 = vmatprep.subr.mxu0 0.0
    %2826 = vmatpush1.xpose.msra.mxu0 0.0
    %2827 = vmatprep.subr.mxu0 0.0
    %2828 = vmatpush1.xpose.msra.mxu0 0.0
    %2829 = vmatprep.subr.mxu0 0.0
    %2830 = vmatpush1.xpose.msra.mxu0 0.0
    %2831 = vmatprep.subr.mxu0 0.0
    %2832 = vmatpush1.xpose.msra.mxu0 0.0
    %2833 = vmatprep.subr.mxu0 0.0
    %2834 = vmatpush1.xpose.msra.mxu0 0.0
    %2835 = vmatprep.subr.mxu0 0.0
    %2836 = vmatpush1.xpose.msra.mxu0 0.0
    %2837 = vmatprep.subr.mxu0 0.0
    %2838 = vmatpush1.xpose.msra.mxu0 0.0
    %2839 = vmatprep.subr.mxu0 0.0
    %2840 = vmatpush1.xpose.msra.mxu0 0.0
    %2841 = vmatprep.subr.mxu0 0.0
    %2842 = vmatpush1.xpose.msra.mxu0 0.0
    %2843 = vmatprep.subr.mxu0 0.0
    %2844 = vmatpush1.xpose.msra.mxu0 0.0
    %2845 = vmatprep.subr.mxu0 0.0
    %2846 = vmatpush1.xpose.msra.mxu0 0.0
    %2847 = vmatprep.subr.mxu0 0.0
    %2848 = vmatpush1.xpose.msra.mxu0 0.0
    %2849 = vmatprep.subr.mxu0 0.0
    %2850 = vmatpush1.xpose.msra.mxu0 0.0
    %2851 = vmatprep.subr.mxu0 0.0
    %2852 = vmatpush1.xpose.msra.mxu0 0.0
    %2853 = vmatprep.mubr.f32.mxu0 0.0
    %v2854 = vand.u32 %v2482, 4294901760
    %2855 = vmatmul.mubr.f32.gmra.mrb[0].mxu0 %v2854
    %v2856 = vpop.f32.mrb[0].mxu0
    %v2857 = vadd.f32 %v2783, %v2856
    %v2858 = vpop.f32.mrb[0].mxu0
    %2859 = vdwg.mxu0
    %2860 = vmatprep.subr.mxu0 0.0
    %v2861 = vand.u32 %v2484, 4294901760
    %2862 = vmatpush1.xpose.msra.mxu0 %v2861
    %2863 = vmatprep.subr.mxu0 0.0
    %2864 = vmatpush1.xpose.msra.mxu0 0.0
    %2865 = vmatprep.subr.mxu0 0.0
    %2866 = vmatpush1.xpose.msra.mxu0 0.0
    %2867 = vmatprep.subr.mxu0 0.0
    %2868 = vmatpush1.xpose.msra.mxu0 0.0
    %2869 = vmatprep.subr.mxu0 0.0
    %2870 = vmatpush1.xpose.msra.mxu0 0.0
    %2871 = vmatprep.subr.mxu0 0.0
    %2872 = vmatpush1.xpose.msra.mxu0 0.0
    %2873 = vmatprep.subr.mxu0 0.0
    %2874 = vmatpush1.xpose.msra.mxu0 0.0
    %2875 = vmatprep.subr.mxu0 0.0
    %2876 = vmatpush1.xpose.msra.mxu0 0.0
    %2877 = vmatprep.subr.mxu0 0.0
    %2878 = vmatpush1.xpose.msra.mxu0 0.0
    %2879 = vmatprep.subr.mxu0 0.0
    %2880 = vmatpush1.xpose.msra.mxu0 0.0
    %2881 = vmatprep.subr.mxu0 0.0
    %2882 = vmatpush1.xpose.msra.mxu0 0.0
    %2883 = vmatprep.subr.mxu0 0.0
    %2884 = vmatpush1.xpose.msra.mxu0 0.0
    %2885 = vmatprep.subr.mxu0 0.0
    %2886 = vmatpush1.xpose.msra.mxu0 0.0
    %2887 = vmatprep.subr.mxu0 0.0
    %2888 = vmatpush1.xpose.msra.mxu0 0.0
    %2889 = vmatprep.subr.mxu0 0.0
    %2890 = vmatpush1.xpose.msra.mxu0 0.0
    %2891 = vmatprep.subr.mxu0 0.0
    %2892 = vmatpush1.xpose.msra.mxu0 0.0
    %2893 = vmatprep.subr.mxu0 0.0
    %2894 = vmatpush1.xpose.msra.mxu0 0.0
    %2895 = vmatprep.subr.mxu0 0.0
    %2896 = vmatpush1.xpose.msra.mxu0 0.0
    %2897 = vmatprep.subr.mxu0 0.0
    %2898 = vmatpush1.xpose.msra.mxu0 0.0
    %2899 = vmatprep.subr.mxu0 0.0
    %2900 = vmatpush1.xpose.msra.mxu0 0.0
    %2901 = vmatprep.subr.mxu0 0.0
    %2902 = vmatpush1.xpose.msra.mxu0 0.0
    %2903 = vmatprep.subr.mxu0 0.0
    %2904 = vmatpush1.xpose.msra.mxu0 0.0
    %2905 = vmatprep.subr.mxu0 0.0
    %2906 = vmatpush1.xpose.msra.mxu0 0.0
    %2907 = vmatprep.subr.mxu0 0.0
    %2908 = vmatpush1.xpose.msra.mxu0 0.0
    %2909 = vmatprep.subr.mxu0 0.0
    %2910 = vmatpush1.xpose.msra.mxu0 0.0
    %2911 = vmatprep.subr.mxu0 0.0
    %2912 = vmatpush1.xpose.msra.mxu0 0.0
    %2913 = vmatprep.subr.mxu0 0.0
    %2914 = vmatpush1.xpose.msra.mxu0 0.0
    %2915 = vmatprep.subr.mxu0 0.0
    %2916 = vmatpush1.xpose.msra.mxu0 0.0
    %2917 = vmatprep.subr.mxu0 0.0
    %2918 = vmatpush1.xpose.msra.mxu0 0.0
    %2919 = vmatprep.subr.mxu0 0.0
    %2920 = vmatpush1.xpose.msra.mxu0 0.0
    %2921 = vmatprep.subr.mxu0 0.0
    %2922 = vmatpush1.xpose.msra.mxu0 0.0
    %2923 = vmatprep.subr.mxu0 0.0
    %2924 = vmatpush1.xpose.msra.mxu0 0.0
    %2925 = vmatprep.mubr.f32.mxu0 0.0
    %v2926 = vand.u32 %v2482, 4294901760
    %2927 = vmatmul.mubr.f32.gmra.mrb[0].mxu0 %v2926
    %v2928 = vpop.f32.mrb[0].mxu0
    %v2929 = vadd.f32 %v2857, %v2928
    %v2930 = vpop.f32.mrb[0].mxu0
    %2931 = vdwg.mxu0
    %2932 = vrot.lane.b32.xlu0 %v639, 112
    %v2933 = vpop.permute.xlu0 %2932
    %2934 = vrot.lane.b32.xlu0 %v639, 80
    %v2935 = vpop.permute.xlu0 %2934
    %v2936 = vsel %vm645, %v2933, 0
    %v2938 = vsel %vm645, %v2935, 0
    %2940 = vmatprep.subr.mxu0 0.0
    %v2941 = vand.u32 %v2938, 4294901760
    %2942 = vmatpush1.xpose.msra.mxu0 %v2941
    %2943 = vmatprep.subr.mxu0 0.0
    %2944 = vmatpush1.xpose.msra.mxu0 0.0
    %2945 = vmatprep.subr.mxu0 0.0
    %2946 = vmatpush1.xpose.msra.mxu0 0.0
    %2947 = vmatprep.subr.mxu0 0.0
    %2948 = vmatpush1.xpose.msra.mxu0 0.0
    %2949 = vmatprep.subr.mxu0 0.0
    %2950 = vmatpush1.xpose.msra.mxu0 0.0
    %2951 = vmatprep.subr.mxu0 0.0
    %2952 = vmatpush1.xpose.msra.mxu0 0.0
    %2953 = vmatprep.subr.mxu0 0.0
    %2954 = vmatpush1.xpose.msra.mxu0 0.0
    %2955 = vmatprep.subr.mxu0 0.0
    %2956 = vmatpush1.xpose.msra.mxu0 0.0
    %2957 = vmatprep.subr.mxu0 0.0
    %2958 = vmatpush1.xpose.msra.mxu0 0.0
    %2959 = vmatprep.subr.mxu0 0.0
    %2960 = vmatpush1.xpose.msra.mxu0 0.0
    %2961 = vmatprep.subr.mxu0 0.0
    %2962 = vmatpush1.xpose.msra.mxu0 0.0
    %2963 = vmatprep.subr.mxu0 0.0
    %2964 = vmatpush1.xpose.msra.mxu0 0.0
    %2965 = vmatprep.subr.mxu0 0.0
    %2966 = vmatpush1.xpose.msra.mxu0 0.0
    %2967 = vmatprep.subr.mxu0 0.0
    %2968 = vmatpush1.xpose.msra.mxu0 0.0
    %2969 = vmatprep.subr.mxu0 0.0
    %2970 = vmatpush1.xpose.msra.mxu0 0.0
    %2971 = vmatprep.subr.mxu0 0.0
    %2972 = vmatpush1.xpose.msra.mxu0 0.0
    %2973 = vmatprep.subr.mxu0 0.0
    %2974 = vmatpush1.xpose.msra.mxu0 0.0
    %2975 = vmatprep.subr.mxu0 0.0
    %2976 = vmatpush1.xpose.msra.mxu0 0.0
    %2977 = vmatprep.subr.mxu0 0.0
    %2978 = vmatpush1.xpose.msra.mxu0 0.0
    %2979 = vmatprep.subr.mxu0 0.0
    %2980 = vmatpush1.xpose.msra.mxu0 0.0
    %2981 = vmatprep.subr.mxu0 0.0
    %2982 = vmatpush1.xpose.msra.mxu0 0.0
    %2983 = vmatprep.subr.mxu0 0.0
    %2984 = vmatpush1.xpose.msra.mxu0 0.0
    %2985 = vmatprep.subr.mxu0 0.0
    %2986 = vmatpush1.xpose.msra.mxu0 0.0
    %2987 = vmatprep.subr.mxu0 0.0
    %2988 = vmatpush1.xpose.msra.mxu0 0.0
    %2989 = vmatprep.subr.mxu0 0.0
    %2990 = vmatpush1.xpose.msra.mxu0 0.0
    %2991 = vmatprep.subr.mxu0 0.0
    %2992 = vmatpush1.xpose.msra.mxu0 0.0
    %2993 = vmatprep.subr.mxu0 0.0
    %2994 = vmatpush1.xpose.msra.mxu0 0.0
    %2995 = vmatprep.subr.mxu0 0.0
    %2996 = vmatpush1.xpose.msra.mxu0 0.0
    %2997 = vmatprep.subr.mxu0 0.0
    %2998 = vmatpush1.xpose.msra.mxu0 0.0
    %2999 = vmatprep.subr.mxu0 0.0
    %3000 = vmatpush1.xpose.msra.mxu0 0.0
    %3001 = vmatprep.subr.mxu0 0.0
    %3002 = vmatpush1.xpose.msra.mxu0 0.0
    %3003 = vmatprep.subr.mxu0 0.0
    %3004 = vmatpush1.xpose.msra.mxu0 0.0
    %3005 = vmatprep.mubr.f32.mxu0 0.0
    %v3006 = vand.u32 %v2936, 4294901760
    %v3007 = vsub.f32 %v2936, %v3006
    %v3008 = vand.u32 %v3007, 4294901760
    %v3009 = vsub.f32 %v3007, %v3008
    %v3010 = vand.u32 %v3009, 4294901760
    %3011 = vmatmul.mubr.f32.gmra.mrb[0].mxu0 %v3010
    %v3012 = vpop.f32.mrb[0].mxu0
    %v3013 = vadd.f32 0.0, %v3012
    %v3014 = vpop.f32.mrb[0].mxu0
    %3015 = vdwg.mxu0
    %3016 = vmatprep.subr.mxu0 0.0
    %v3017 = vand.u32 %v2938, 4294901760
    %v3018 = vsub.f32 %v2938, %v3017
    %v3019 = vand.u32 %v3018, 4294901760
    %v3020 = vsub.f32 %v3018, %v3019
    %v3021 = vand.u32 %v3020, 4294901760
    %3022 = vmatpush1.xpose.msra.mxu0 %v3021
    %3023 = vmatprep.subr.mxu0 0.0
    %3024 = vmatpush1.xpose.msra.mxu0 0.0
    %3025 = vmatprep.subr.mxu0 0.0
    %3026 = vmatpush1.xpose.msra.mxu0 0.0
    %3027 = vmatprep.subr.mxu0 0.0
    %3028 = vmatpush1.xpose.msra.mxu0 0.0
    %3029 = vmatprep.subr.mxu0 0.0
    %3030 = vmatpush1.xpose.msra.mxu0 0.0
    %3031 = vmatprep.subr.mxu0 0.0
    %3032 = vmatpush1.xpose.msra.mxu0 0.0
    %3033 = vmatprep.subr.mxu0 0.0
    %3034 = vmatpush1.xpose.msra.mxu0 0.0
    %3035 = vmatprep.subr.mxu0 0.0
    %3036 = vmatpush1.xpose.msra.mxu0 0.0
    %3037 = vmatprep.subr.mxu0 0.0
    %3038 = vmatpush1.xpose.msra.mxu0 0.0
    %3039 = vmatprep.subr.mxu0 0.0
    %3040 = vmatpush1.xpose.msra.mxu0 0.0
    %3041 = vmatprep.subr.mxu0 0.0
    %3042 = vmatpush1.xpose.msra.mxu0 0.0
    %3043 = vmatprep.subr.mxu0 0.0
    %3044 = vmatpush1.xpose.msra.mxu0 0.0
    %3045 = vmatprep.subr.mxu0 0.0
    %3046 = vmatpush1.xpose.msra.mxu0 0.0
    %3047 = vmatprep.subr.mxu0 0.0
    %3048 = vmatpush1.xpose.msra.mxu0 0.0
    %3049 = vmatprep.subr.mxu0 0.0
    %3050 = vmatpush1.xpose.msra.mxu0 0.0
    %3051 = vmatprep.subr.mxu0 0.0
    %3052 = vmatpush1.xpose.msra.mxu0 0.0
    %3053 = vmatprep.subr.mxu0 0.0
    %3054 = vmatpush1.xpose.msra.mxu0 0.0
    %3055 = vmatprep.subr.mxu0 0.0
    %3056 = vmatpush1.xpose.msra.mxu0 0.0
    %3057 = vmatprep.subr.mxu0 0.0
    %3058 = vmatpush1.xpose.msra.mxu0 0.0
    %3059 = vmatprep.subr.mxu0 0.0
    %3060 = vmatpush1.xpose.msra.mxu0 0.0
    %3061 = vmatprep.subr.mxu0 0.0
    %3062 = vmatpush1.xpose.msra.mxu0 0.0
    %3063 = vmatprep.subr.mxu0 0.0
    %3064 = vmatpush1.xpose.msra.mxu0 0.0
    %3065 = vmatprep.subr.mxu0 0.0
    %3066 = vmatpush1.xpose.msra.mxu0 0.0
    %3067 = vmatprep.subr.mxu0 0.0
    %3068 = vmatpush1.xpose.msra.mxu0 0.0
    %3069 = vmatprep.subr.mxu0 0.0
    %3070 = vmatpush1.xpose.msra.mxu0 0.0
    %3071 = vmatprep.subr.mxu0 0.0
    %3072 = vmatpush1.xpose.msra.mxu0 0.0
    %3073 = vmatprep.subr.mxu0 0.0
    %3074 = vmatpush1.xpose.msra.mxu0 0.0
    %3075 = vmatprep.subr.mxu0 0.0
    %3076 = vmatpush1.xpose.msra.mxu0 0.0
    %3077 = vmatprep.subr.mxu0 0.0
    %3078 = vmatpush1.xpose.msra.mxu0 0.0
    %3079 = vmatprep.subr.mxu0 0.0
    %3080 = vmatpush1.xpose.msra.mxu0 0.0
    %3081 = vmatprep.subr.mxu0 0.0
    %3082 = vmatpush1.xpose.msra.mxu0 0.0
    %3083 = vmatprep.subr.mxu0 0.0
    %3084 = vmatpush1.xpose.msra.mxu0 0.0
    %3085 = vmatprep.mubr.f32.mxu0 0.0
    %v3086 = vand.u32 %v2936, 4294901760
    %3087 = vmatmul.mubr.f32.gmra.mrb[0].mxu0 %v3086
    %v3088 = vpop.f32.mrb[0].mxu0
    %v3089 = vadd.f32 %v3013, %v3088
    %v3090 = vpop.f32.mrb[0].mxu0
    %3091 = vdwg.mxu0
    %3092 = vmatprep.subr.mxu0 0.0
    %v3093 = vand.u32 %v2938, 4294901760
    %v3094 = vsub.f32 %v2938, %v3093
    %3095 = vmatpush1.xpose.msra.mxu0 %v3094
    %3096 = vmatprep.subr.mxu0 0.0
    %3097 = vmatpush1.xpose.msra.mxu0 0.0
    %3098 = vmatprep.subr.mxu0 0.0
    %3099 = vmatpush1.xpose.msra.mxu0 0.0
    %3100 = vmatprep.subr.mxu0 0.0
    %3101 = vmatpush1.xpose.msra.mxu0 0.0
    %3102 = vmatprep.subr.mxu0 0.0
    %3103 = vmatpush1.xpose.msra.mxu0 0.0
    %3104 = vmatprep.subr.mxu0 0.0
    %3105 = vmatpush1.xpose.msra.mxu0 0.0
    %3106 = vmatprep.subr.mxu0 0.0
    %3107 = vmatpush1.xpose.msra.mxu0 0.0
    %3108 = vmatprep.subr.mxu0 0.0
    %3109 = vmatpush1.xpose.msra.mxu0 0.0
    %3110 = vmatprep.subr.mxu0 0.0
    %3111 = vmatpush1.xpose.msra.mxu0 0.0
    %3112 = vmatprep.subr.mxu0 0.0
    %3113 = vmatpush1.xpose.msra.mxu0 0.0
    %3114 = vmatprep.subr.mxu0 0.0
    %3115 = vmatpush1.xpose.msra.mxu0 0.0
    %3116 = vmatprep.subr.mxu0 0.0
    %3117 = vmatpush1.xpose.msra.mxu0 0.0
    %3118 = vmatprep.subr.mxu0 0.0
    %3119 = vmatpush1.xpose.msra.mxu0 0.0
    %3120 = vmatprep.subr.mxu0 0.0
    %3121 = vmatpush1.xpose.msra.mxu0 0.0
    %3122 = vmatprep.subr.mxu0 0.0
    %3123 = vmatpush1.xpose.msra.mxu0 0.0
    %3124 = vmatprep.subr.mxu0 0.0
    %3125 = vmatpush1.xpose.msra.mxu0 0.0
    %3126 = vmatprep.subr.mxu0 0.0
    %3127 = vmatpush1.xpose.msra.mxu0 0.0
    %3128 = vmatprep.subr.mxu0 0.0
    %3129 = vmatpush1.xpose.msra.mxu0 0.0
    %3130 = vmatprep.subr.mxu0 0.0
    %3131 = vmatpush1.xpose.msra.mxu0 0.0
    %3132 = vmatprep.subr.mxu0 0.0
    %3133 = vmatpush1.xpose.msra.mxu0 0.0
    %3134 = vmatprep.subr.mxu0 0.0
    %3135 = vmatpush1.xpose.msra.mxu0 0.0
    %3136 = vmatprep.subr.mxu0 0.0
    %3137 = vmatpush1.xpose.msra.mxu0 0.0
    %3138 = vmatprep.subr.mxu0 0.0
    %3139 = vmatpush1.xpose.msra.mxu0 0.0
    %3140 = vmatprep.subr.mxu0 0.0
    %3141 = vmatpush1.xpose.msra.mxu0 0.0
    %3142 = vmatprep.subr.mxu0 0.0
    %3143 = vmatpush1.xpose.msra.mxu0 0.0
    %3144 = vmatprep.subr.mxu0 0.0
    %3145 = vmatpush1.xpose.msra.mxu0 0.0
    %3146 = vmatprep.subr.mxu0 0.0
    %3147 = vmatpush1.xpose.msra.mxu0 0.0
    %3148 = vmatprep.subr.mxu0 0.0
    %3149 = vmatpush1.xpose.msra.mxu0 0.0
    %3150 = vmatprep.subr.mxu0 0.0
    %3151 = vmatpush1.xpose.msra.mxu0 0.0
    %3152 = vmatprep.subr.mxu0 0.0
    %3153 = vmatpush1.xpose.msra.mxu0 0.0
    %3154 = vmatprep.subr.mxu0 0.0
    %3155 = vmatpush1.xpose.msra.mxu0 0.0
    %3156 = vmatprep.subr.mxu0 0.0
    %3157 = vmatpush1.xpose.msra.mxu0 0.0
    %3158 = vmatprep.mubr.f32.mxu0 0.0
    %v3159 = vand.u32 %v2936, 4294901760
    %v3160 = vsub.f32 %v2936, %v3159
    %3161 = vmatmul.mubr.f32.gmra.mrb[0].mxu0 %v3160
    %v3162 = vpop.f32.mrb[0].mxu0
    %v3163 = vadd.f32 %v3089, %v3162
    %v3164 = vpop.f32.mrb[0].mxu0
    %3165 = vdwg.mxu0
    %3166 = vmatprep.subr.mxu0 0.0
    %v3167 = vand.u32 %v2938, 4294901760
    %3168 = vmatpush1.xpose.msra.mxu0 %v3167
    %3169 = vmatprep.subr.mxu0 0.0
    %3170 = vmatpush1.xpose.msra.mxu0 0.0
    %3171 = vmatprep.subr.mxu0 0.0
    %3172 = vmatpush1.xpose.msra.mxu0 0.0
    %3173 = vmatprep.subr.mxu0 0.0
    %3174 = vmatpush1.xpose.msra.mxu0 0.0
    %3175 = vmatprep.subr.mxu0 0.0
    %3176 = vmatpush1.xpose.msra.mxu0 0.0
    %3177 = vmatprep.subr.mxu0 0.0
    %3178 = vmatpush1.xpose.msra.mxu0 0.0
    %3179 = vmatprep.subr.mxu0 0.0
    %3180 = vmatpush1.xpose.msra.mxu0 0.0
    %3181 = vmatprep.subr.mxu0 0.0
    %3182 = vmatpush1.xpose.msra.mxu0 0.0
    %3183 = vmatprep.subr.mxu0 0.0
    %3184 = vmatpush1.xpose.msra.mxu0 0.0
    %3185 = vmatprep.subr.mxu0 0.0
    %3186 = vmatpush1.xpose.msra.mxu0 0.0
    %3187 = vmatprep.subr.mxu0 0.0
    %3188 = vmatpush1.xpose.msra.mxu0 0.0
    %3189 = vmatprep.subr.mxu0 0.0
    %3190 = vmatpush1.xpose.msra.mxu0 0.0
    %3191 = vmatprep.subr.mxu0 0.0
    %3192 = vmatpush1.xpose.msra.mxu0 0.0
    %3193 = vmatprep.subr.mxu0 0.0
    %3194 = vmatpush1.xpose.msra.mxu0 0.0
    %3195 = vmatprep.subr.mxu0 0.0
    %3196 = vmatpush1.xpose.msra.mxu0 0.0
    %3197 = vmatprep.subr.mxu0 0.0
    %3198 = vmatpush1.xpose.msra.mxu0 0.0
    %3199 = vmatprep.subr.mxu0 0.0
    %3200 = vmatpush1.xpose.msra.mxu0 0.0
    %3201 = vmatprep.subr.mxu0 0.0
    %3202 = vmatpush1.xpose.msra.mxu0 0.0
    %3203 = vmatprep.subr.mxu0 0.0
    %3204 = vmatpush1.xpose.msra.mxu0 0.0
    %3205 = vmatprep.subr.mxu0 0.0
    %3206 = vmatpush1.xpose.msra.mxu0 0.0
    %3207 = vmatprep.subr.mxu0 0.0
    %3208 = vmatpush1.xpose.msra.mxu0 0.0
    %3209 = vmatprep.subr.mxu0 0.0
    %3210 = vmatpush1.xpose.msra.mxu0 0.0
    %3211 = vmatprep.subr.mxu0 0.0
    %3212 = vmatpush1.xpose.msra.mxu0 0.0
    %3213 = vmatprep.subr.mxu0 0.0
    %3214 = vmatpush1.xpose.msra.mxu0 0.0
    %3215 = vmatprep.subr.mxu0 0.0
    %3216 = vmatpush1.xpose.msra.mxu0 0.0
    %3217 = vmatprep.subr.mxu0 0.0
    %3218 = vmatpush1.xpose.msra.mxu0 0.0
    %3219 = vmatprep.subr.mxu0 0.0
    %3220 = vmatpush1.xpose.msra.mxu0 0.0
    %3221 = vmatprep.subr.mxu0 0.0
    %3222 = vmatpush1.xpose.msra.mxu0 0.0
    %3223 = vmatprep.subr.mxu0 0.0
    %3224 = vmatpush1.xpose.msra.mxu0 0.0
    %3225 = vmatprep.subr.mxu0 0.0
    %3226 = vmatpush1.xpose.msra.mxu0 0.0
    %3227 = vmatprep.subr.mxu0 0.0
    %3228 = vmatpush1.xpose.msra.mxu0 0.0
    %3229 = vmatprep.subr.mxu0 0.0
    %3230 = vmatpush1.xpose.msra.mxu0 0.0
    %3231 = vmatprep.mubr.f32.mxu0 0.0
    %v3232 = vand.u32 %v2936, 4294901760
    %v3233 = vsub.f32 %v2936, %v3232
    %v3234 = vand.u32 %v3233, 4294901760
    %3235 = vmatmul.mubr.f32.gmra.mrb[0].mxu0 %v3234
    %v3236 = vpop.f32.mrb[0].mxu0
    %v3237 = vadd.f32 %v3163, %v3236
    %v3238 = vpop.f32.mrb[0].mxu0
    %3239 = vdwg.mxu0
    %3240 = vmatprep.subr.mxu0 0.0
    %v3241 = vand.u32 %v2938, 4294901760
    %v3242 = vsub.f32 %v2938, %v3241
    %v3243 = vand.u32 %v3242, 4294901760
    %3244 = vmatpush1.xpose.msra.mxu0 %v3243
    %3245 = vmatprep.subr.mxu0 0.0
    %3246 = vmatpush1.xpose.msra.mxu0 0.0
    %3247 = vmatprep.subr.mxu0 0.0
    %3248 = vmatpush1.xpose.msra.mxu0 0.0
    %3249 = vmatprep.subr.mxu0 0.0
    %3250 = vmatpush1.xpose.msra.mxu0 0.0
    %3251 = vmatprep.subr.mxu0 0.0
    %3252 = vmatpush1.xpose.msra.mxu0 0.0
    %3253 = vmatprep.subr.mxu0 0.0
    %3254 = vmatpush1.xpose.msra.mxu0 0.0
    %3255 = vmatprep.subr.mxu0 0.0
    %3256 = vmatpush1.xpose.msra.mxu0 0.0
    %3257 = vmatprep.subr.mxu0 0.0
    %3258 = vmatpush1.xpose.msra.mxu0 0.0
    %3259 = vmatprep.subr.mxu0 0.0
    %3260 = vmatpush1.xpose.msra.mxu0 0.0
    %3261 = vmatprep.subr.mxu0 0.0
    %3262 = vmatpush1.xpose.msra.mxu0 0.0
    %3263 = vmatprep.subr.mxu0 0.0
    %3264 = vmatpush1.xpose.msra.mxu0 0.0
    %3265 = vmatprep.subr.mxu0 0.0
    %3266 = vmatpush1.xpose.msra.mxu0 0.0
    %3267 = vmatprep.subr.mxu0 0.0
    %3268 = vmatpush1.xpose.msra.mxu0 0.0
    %3269 = vmatprep.subr.mxu0 0.0
    %3270 = vmatpush1.xpose.msra.mxu0 0.0
    %3271 = vmatprep.subr.mxu0 0.0
    %3272 = vmatpush1.xpose.msra.mxu0 0.0
    %3273 = vmatprep.subr.mxu0 0.0
    %3274 = vmatpush1.xpose.msra.mxu0 0.0
    %3275 = vmatprep.subr.mxu0 0.0
    %3276 = vmatpush1.xpose.msra.mxu0 0.0
    %3277 = vmatprep.subr.mxu0 0.0
    %3278 = vmatpush1.xpose.msra.mxu0 0.0
    %3279 = vmatprep.subr.mxu0 0.0
    %3280 = vmatpush1.xpose.msra.mxu0 0.0
    %3281 = vmatprep.subr.mxu0 0.0
    %3282 = vmatpush1.xpose.msra.mxu0 0.0
    %3283 = vmatprep.subr.mxu0 0.0
    %3284 = vmatpush1.xpose.msra.mxu0 0.0
    %3285 = vmatprep.subr.mxu0 0.0
    %3286 = vmatpush1.xpose.msra.mxu0 0.0
    %3287 = vmatprep.subr.mxu0 0.0
    %3288 = vmatpush1.xpose.msra.mxu0 0.0
    %3289 = vmatprep.subr.mxu0 0.0
    %3290 = vmatpush1.xpose.msra.mxu0 0.0
    %3291 = vmatprep.subr.mxu0 0.0
    %3292 = vmatpush1.xpose.msra.mxu0 0.0
    %3293 = vmatprep.subr.mxu0 0.0
    %3294 = vmatpush1.xpose.msra.mxu0 0.0
    %3295 = vmatprep.subr.mxu0 0.0
    %3296 = vmatpush1.xpose.msra.mxu0 0.0
    %3297 = vmatprep.subr.mxu0 0.0
    %3298 = vmatpush1.xpose.msra.mxu0 0.0
    %3299 = vmatprep.subr.mxu0 0.0
    %3300 = vmatpush1.xpose.msra.mxu0 0.0
    %3301 = vmatprep.subr.mxu0 0.0
    %3302 = vmatpush1.xpose.msra.mxu0 0.0
    %3303 = vmatprep.subr.mxu0 0.0
    %3304 = vmatpush1.xpose.msra.mxu0 0.0
    %3305 = vmatprep.subr.mxu0 0.0
    %3306 = vmatpush1.xpose.msra.mxu0 0.0
    %3307 = vmatprep.mubr.f32.mxu0 0.0
    %v3308 = vand.u32 %v2936, 4294901760
    %3309 = vmatmul.mubr.f32.gmra.mrb[0].mxu0 %v3308
    %v3310 = vpop.f32.mrb[0].mxu0
    %v3311 = vadd.f32 %v3237, %v3310
    %v3312 = vpop.f32.mrb[0].mxu0
    %3313 = vdwg.mxu0
    %3314 = vmatprep.subr.mxu0 0.0
    %v3315 = vand.u32 %v2938, 4294901760
    %3316 = vmatpush1.xpose.msra.mxu0 %v3315
    %3317 = vmatprep.subr.mxu0 0.0
    %3318 = vmatpush1.xpose.msra.mxu0 0.0
    %3319 = vmatprep.subr.mxu0 0.0
    %3320 = vmatpush1.xpose.msra.mxu0 0.0
    %3321 = vmatprep.subr.mxu0 0.0
    %3322 = vmatpush1.xpose.msra.mxu0 0.0
    %3323 = vmatprep.subr.mxu0 0.0
    %3324 = vmatpush1.xpose.msra.mxu0 0.0
    %3325 = vmatprep.subr.mxu0 0.0
    %3326 = vmatpush1.xpose.msra.mxu0 0.0
    %3327 = vmatprep.subr.mxu0 0.0
    %3328 = vmatpush1.xpose.msra.mxu0 0.0
    %3329 = vmatprep.subr.mxu0 0.0
    %3330 = vmatpush1.xpose.msra.mxu0 0.0
    %3331 = vmatprep.subr.mxu0 0.0
    %3332 = vmatpush1.xpose.msra.mxu0 0.0
    %3333 = vmatprep.subr.mxu0 0.0
    %3334 = vmatpush1.xpose.msra.mxu0 0.0
    %3335 = vmatprep.subr.mxu0 0.0
    %3336 = vmatpush1.xpose.msra.mxu0 0.0
    %3337 = vmatprep.subr.mxu0 0.0
    %3338 = vmatpush1.xpose.msra.mxu0 0.0
    %3339 = vmatprep.subr.mxu0 0.0
    %3340 = vmatpush1.xpose.msra.mxu0 0.0
    %3341 = vmatprep.subr.mxu0 0.0
    %3342 = vmatpush1.xpose.msra.mxu0 0.0
    %3343 = vmatprep.subr.mxu0 0.0
    %3344 = vmatpush1.xpose.msra.mxu0 0.0
    %3345 = vmatprep.subr.mxu0 0.0
    %3346 = vmatpush1.xpose.msra.mxu0 0.0
    %3347 = vmatprep.subr.mxu0 0.0
    %3348 = vmatpush1.xpose.msra.mxu0 0.0
    %3349 = vmatprep.subr.mxu0 0.0
    %3350 = vmatpush1.xpose.msra.mxu0 0.0
    %3351 = vmatprep.subr.mxu0 0.0
    %3352 = vmatpush1.xpose.msra.mxu0 0.0
    %3353 = vmatprep.subr.mxu0 0.0
    %3354 = vmatpush1.xpose.msra.mxu0 0.0
    %3355 = vmatprep.subr.mxu0 0.0
    %3356 = vmatpush1.xpose.msra.mxu0 0.0
    %3357 = vmatprep.subr.mxu0 0.0
    %3358 = vmatpush1.xpose.msra.mxu0 0.0
    %3359 = vmatprep.subr.mxu0 0.0
    %3360 = vmatpush1.xpose.msra.mxu0 0.0
    %3361 = vmatprep.subr.mxu0 0.0
    %3362 = vmatpush1.xpose.msra.mxu0 0.0
    %3363 = vmatprep.subr.mxu0 0.0
    %3364 = vmatpush1.xpose.msra.mxu0 0.0
    %3365 = vmatprep.subr.mxu0 0.0
    %3366 = vmatpush1.xpose.msra.mxu0 0.0
    %3367 = vmatprep.subr.mxu0 0.0
    %3368 = vmatpush1.xpose.msra.mxu0 0.0
    %3369 = vmatprep.subr.mxu0 0.0
    %3370 = vmatpush1.xpose.msra.mxu0 0.0
    %3371 = vmatprep.subr.mxu0 0.0
    %3372 = vmatpush1.xpose.msra.mxu0 0.0
    %3373 = vmatprep.subr.mxu0 0.0
    %3374 = vmatpush1.xpose.msra.mxu0 0.0
    %3375 = vmatprep.subr.mxu0 0.0
    %3376 = vmatpush1.xpose.msra.mxu0 0.0
    %3377 = vmatprep.subr.mxu0 0.0
    %3378 = vmatpush1.xpose.msra.mxu0 0.0
    %3379 = vmatprep.mubr.f32.mxu0 0.0
    %v3380 = vand.u32 %v2936, 4294901760
    %3381 = vmatmul.mubr.f32.gmra.mrb[0].mxu0 %v3380
    %v3382 = vpop.f32.mrb[0].mxu0
    %v3383 = vadd.f32 %v3311, %v3382
    %v3384 = vpop.f32.mrb[0].mxu0
    %3385 = vdwg.mxu0
    %v3386 = vmul.f32 %v2929, 0.25
    %v3387 = vmul.f32 %v3383, 0.25
    %v3388 = vsel %vm1551, %v3386, -inf
    %3389 = vmax.xlane.f32.xlu0 %v3388
    %v3390 = vpop.xlane.xlu0 %3389
    %v3391 = vsel %vm1551, %v3387, -inf
    %3392 = vmax.xlane.f32.xlu0 %v3391
    %v3393 = vpop.xlane.xlu0 %3392
    %v3394 = vsub.f32 %v3386, %v3390
    %v3395 = vsub.f32 %v3387, %v3393
    %v3396 = vmul.f32 %v3394, 1.442695
    %v3397 = vpow.pop %v3396
    %v3398 = vmul.f32 %v3395, 1.442695
    %v3399 = vpow.pop %v3398
    %v3400 = vsel %vm1551, %v3397, 0.0
    %3401 = vadd.xlane.f32.xlu0 %v3400
    %v3402 = vpop.xlane.xlu0 %3401
    %v3403 = vsel %vm1551, %v3399, 0.0
    %3404 = vadd.xlane.f32.xlu0 %v3403
    %v3405 = vpop.xlane.xlu0 %3404
    %v3406 = vrcp.pop %v3402
    %v3407 = vmul.f32 %v3397, %v3406
    %v3408 = vrcp.pop %v3405
    %v3409 = vmul.f32 %v3399, %v3408
    %3410 = vrot.lane.b32.xlu0 %v633, 48
    %v3411 = vpop.permute.xlu0 %3410
    %v3414 = vsel %vm1551, %v3407, 0
    %3416 = vmatprep.subr.mxu0 0.0
    %v3417 = vand.u32 %v3411, 4294901760
    %3418 = vmatpush1.msra.mxu0 %v3417
    %3419 = vmatprep.subr.mxu0 0.0
    %3420 = vmatpush1.msra.mxu0 0.0
    %3421 = vmatprep.subr.mxu0 0.0
    %3422 = vmatpush1.msra.mxu0 0.0
    %3423 = vmatprep.subr.mxu0 0.0
    %3424 = vmatpush1.msra.mxu0 0.0
    %3425 = vmatprep.subr.mxu0 0.0
    %3426 = vmatpush1.msra.mxu0 0.0
    %3427 = vmatprep.subr.mxu0 0.0
    %3428 = vmatpush1.msra.mxu0 0.0
    %3429 = vmatprep.subr.mxu0 0.0
    %3430 = vmatpush1.msra.mxu0 0.0
    %3431 = vmatprep.subr.mxu0 0.0
    %3432 = vmatpush1.msra.mxu0 0.0
    %3433 = vmatprep.subr.mxu0 0.0
    %3434 = vmatpush1.msra.mxu0 0.0
    %3435 = vmatprep.subr.mxu0 0.0
    %3436 = vmatpush1.msra.mxu0 0.0
    %3437 = vmatprep.subr.mxu0 0.0
    %3438 = vmatpush1.msra.mxu0 0.0
    %3439 = vmatprep.subr.mxu0 0.0
    %3440 = vmatpush1.msra.mxu0 0.0
    %3441 = vmatprep.subr.mxu0 0.0
    %3442 = vmatpush1.msra.mxu0 0.0
    %3443 = vmatprep.subr.mxu0 0.0
    %3444 = vmatpush1.msra.mxu0 0.0
    %3445 = vmatprep.subr.mxu0 0.0
    %3446 = vmatpush1.msra.mxu0 0.0
    %3447 = vmatprep.subr.mxu0 0.0
    %3448 = vmatpush1.msra.mxu0 0.0
    %3449 = vmatprep.subr.mxu0 0.0
    %3450 = vmatpush1.msra.mxu0 0.0
    %3451 = vmatprep.subr.mxu0 0.0
    %3452 = vmatpush1.msra.mxu0 0.0
    %3453 = vmatprep.subr.mxu0 0.0
    %3454 = vmatpush1.msra.mxu0 0.0
    %3455 = vmatprep.subr.mxu0 0.0
    %3456 = vmatpush1.msra.mxu0 0.0
    %3457 = vmatprep.subr.mxu0 0.0
    %3458 = vmatpush1.msra.mxu0 0.0
    %3459 = vmatprep.subr.mxu0 0.0
    %3460 = vmatpush1.msra.mxu0 0.0
    %3461 = vmatprep.subr.mxu0 0.0
    %3462 = vmatpush1.msra.mxu0 0.0
    %3463 = vmatprep.subr.mxu0 0.0
    %3464 = vmatpush1.msra.mxu0 0.0
    %3465 = vmatprep.subr.mxu0 0.0
    %3466 = vmatpush1.msra.mxu0 0.0
    %3467 = vmatprep.subr.mxu0 0.0
    %3468 = vmatpush1.msra.mxu0 0.0
    %3469 = vmatprep.subr.mxu0 0.0
    %3470 = vmatpush1.msra.mxu0 0.0
    %3471 = vmatprep.subr.mxu0 0.0
    %3472 = vmatpush1.msra.mxu0 0.0
    %3473 = vmatprep.subr.mxu0 0.0
    %3474 = vmatpush1.msra.mxu0 0.0
    %3475 = vmatprep.subr.mxu0 0.0
    %3476 = vmatpush1.msra.mxu0 0.0
    %3477 = vmatprep.subr.mxu0 0.0
    %3478 = vmatpush1.msra.mxu0 0.0
    %3479 = vmatprep.subr.mxu0 0.0
    %3480 = vmatpush1.msra.mxu0 0.0
    %3481 = vmatprep.mubr.f32.mxu0 0.0
    %v3482 = vand.u32 %v3414, 4294901760
    %v3483 = vsub.f32 %v3414, %v3482
    %v3484 = vand.u32 %v3483, 4294901760
    %v3485 = vsub.f32 %v3483, %v3484
    %v3486 = vand.u32 %v3485, 4294901760
    %3487 = vmatmul.mubr.f32.gmra.mrb[0].mxu0 %v3486
    %v3488 = vpop.f32.mrb[0].mxu0
    %v3489 = vadd.f32 0.0, %v3488
    %v3490 = vpop.f32.mrb[0].mxu0
    %3491 = vdwg.mxu0
    %3492 = vmatprep.subr.mxu0 0.0
    %v3493 = vand.u32 %v3411, 4294901760
    %v3494 = vsub.f32 %v3411, %v3493
    %v3495 = vand.u32 %v3494, 4294901760
    %v3496 = vsub.f32 %v3494, %v3495
    %v3497 = vand.u32 %v3496, 4294901760
    %3498 = vmatpush1.msra.mxu0 %v3497
    %3499 = vmatprep.subr.mxu0 0.0
    %3500 = vmatpush1.msra.mxu0 0.0
    %3501 = vmatprep.subr.mxu0 0.0
    %3502 = vmatpush1.msra.mxu0 0.0
    %3503 = vmatprep.subr.mxu0 0.0
    %3504 = vmatpush1.msra.mxu0 0.0
    %3505 = vmatprep.subr.mxu0 0.0
    %3506 = vmatpush1.msra.mxu0 0.0
    %3507 = vmatprep.subr.mxu0 0.0
    %3508 = vmatpush1.msra.mxu0 0.0
    %3509 = vmatprep.subr.mxu0 0.0
    %3510 = vmatpush1.msra.mxu0 0.0
    %3511 = vmatprep.subr.mxu0 0.0
    %3512 = vmatpush1.msra.mxu0 0.0
    %3513 = vmatprep.subr.mxu0 0.0
    %3514 = vmatpush1.msra.mxu0 0.0
    %3515 = vmatprep.subr.mxu0 0.0
    %3516 = vmatpush1.msra.mxu0 0.0
    %3517 = vmatprep.subr.mxu0 0.0
    %3518 = vmatpush1.msra.mxu0 0.0
    %3519 = vmatprep.subr.mxu0 0.0
    %3520 = vmatpush1.msra.mxu0 0.0
    %3521 = vmatprep.subr.mxu0 0.0
    %3522 = vmatpush1.msra.mxu0 0.0
    %3523 = vmatprep.subr.mxu0 0.0
    %3524 = vmatpush1.msra.mxu0 0.0
    %3525 = vmatprep.subr.mxu0 0.0
    %3526 = vmatpush1.msra.mxu0 0.0
    %3527 = vmatprep.subr.mxu0 0.0
    %3528 = vmatpush1.msra.mxu0 0.0
    %3529 = vmatprep.subr.mxu0 0.0
    %3530 = vmatpush1.msra.mxu0 0.0
    %3531 = vmatprep.subr.mxu0 0.0
    %3532 = vmatpush1.msra.mxu0 0.0
    %3533 = vmatprep.subr.mxu0 0.0
    %3534 = vmatpush1.msra.mxu0 0.0
    %3535 = vmatprep.subr.mxu0 0.0
    %3536 = vmatpush1.msra.mxu0 0.0
    %3537 = vmatprep.subr.mxu0 0.0
    %3538 = vmatpush1.msra.mxu0 0.0
    %3539 = vmatprep.subr.mxu0 0.0
    %3540 = vmatpush1.msra.mxu0 0.0
    %3541 = vmatprep.subr.mxu0 0.0
    %3542 = vmatpush1.msra.mxu0 0.0
    %3543 = vmatprep.subr.mxu0 0.0
    %3544 = vmatpush1.msra.mxu0 0.0
    %3545 = vmatprep.subr.mxu0 0.0
    %3546 = vmatpush1.msra.mxu0 0.0
    %3547 = vmatprep.subr.mxu0 0.0
    %3548 = vmatpush1.msra.mxu0 0.0
    %3549 = vmatprep.subr.mxu0 0.0
    %3550 = vmatpush1.msra.mxu0 0.0
    %3551 = vmatprep.subr.mxu0 0.0
    %3552 = vmatpush1.msra.mxu0 0.0
    %3553 = vmatprep.subr.mxu0 0.0
    %3554 = vmatpush1.msra.mxu0 0.0
    %3555 = vmatprep.subr.mxu0 0.0
    %3556 = vmatpush1.msra.mxu0 0.0
    %3557 = vmatprep.subr.mxu0 0.0
    %3558 = vmatpush1.msra.mxu0 0.0
    %3559 = vmatprep.subr.mxu0 0.0
    %3560 = vmatpush1.msra.mxu0 0.0
    %3561 = vmatprep.mubr.f32.mxu0 0.0
    %v3562 = vand.u32 %v3414, 4294901760
    %3563 = vmatmul.mubr.f32.gmra.mrb[0].mxu0 %v3562
    %v3564 = vpop.f32.mrb[0].mxu0
    %v3565 = vadd.f32 %v3489, %v3564
    %v3566 = vpop.f32.mrb[0].mxu0
    %3567 = vdwg.mxu0
    %3568 = vmatprep.subr.mxu0 0.0
    %v3569 = vand.u32 %v3411, 4294901760
    %v3570 = vsub.f32 %v3411, %v3569
    %3571 = vmatpush1.msra.mxu0 %v3570
    %3572 = vmatprep.subr.mxu0 0.0
    %3573 = vmatpush1.msra.mxu0 0.0
    %3574 = vmatprep.subr.mxu0 0.0
    %3575 = vmatpush1.msra.mxu0 0.0
    %3576 = vmatprep.subr.mxu0 0.0
    %3577 = vmatpush1.msra.mxu0 0.0
    %3578 = vmatprep.subr.mxu0 0.0
    %3579 = vmatpush1.msra.mxu0 0.0
    %3580 = vmatprep.subr.mxu0 0.0
    %3581 = vmatpush1.msra.mxu0 0.0
    %3582 = vmatprep.subr.mxu0 0.0
    %3583 = vmatpush1.msra.mxu0 0.0
    %3584 = vmatprep.subr.mxu0 0.0
    %3585 = vmatpush1.msra.mxu0 0.0
    %3586 = vmatprep.subr.mxu0 0.0
    %3587 = vmatpush1.msra.mxu0 0.0
    %3588 = vmatprep.subr.mxu0 0.0
    %3589 = vmatpush1.msra.mxu0 0.0
    %3590 = vmatprep.subr.mxu0 0.0
    %3591 = vmatpush1.msra.mxu0 0.0
    %3592 = vmatprep.subr.mxu0 0.0
    %3593 = vmatpush1.msra.mxu0 0.0
    %3594 = vmatprep.subr.mxu0 0.0
    %3595 = vmatpush1.msra.mxu0 0.0
    %3596 = vmatprep.subr.mxu0 0.0
    %3597 = vmatpush1.msra.mxu0 0.0
    %3598 = vmatprep.subr.mxu0 0.0
    %3599 = vmatpush1.msra.mxu0 0.0
    %3600 = vmatprep.subr.mxu0 0.0
    %3601 = vmatpush1.msra.mxu0 0.0
    %3602 = vmatprep.subr.mxu0 0.0
    %3603 = vmatpush1.msra.mxu0 0.0
    %3604 = vmatprep.subr.mxu0 0.0
    %3605 = vmatpush1.msra.mxu0 0.0
    %3606 = vmatprep.subr.mxu0 0.0
    %3607 = vmatpush1.msra.mxu0 0.0
    %3608 = vmatprep.subr.mxu0 0.0
    %3609 = vmatpush1.msra.mxu0 0.0
    %3610 = vmatprep.subr.mxu0 0.0
    %3611 = vmatpush1.msra.mxu0 0.0
    %3612 = vmatprep.subr.mxu0 0.0
    %3613 = vmatpush1.msra.mxu0 0.0
    %3614 = vmatprep.subr.mxu0 0.0
    %3615 = vmatpush1.msra.mxu0 0.0
    %3616 = vmatprep.subr.mxu0 0.0
    %3617 = vmatpush1.msra.mxu0 0.0
    %3618 = vmatprep.subr.mxu0 0.0
    %3619 = vmatpush1.msra.mxu0 0.0
    %3620 = vmatprep.subr.mxu0 0.0
    %3621 = vmatpush1.msra.mxu0 0.0
    %3622 = vmatprep.subr.mxu0 0.0
    %3623 = vmatpush1.msra.mxu0 0.0
    %3624 = vmatprep.subr.mxu0 0.0
    %3625 = vmatpush1.msra.mxu0 0.0
    %3626 = vmatprep.subr.mxu0 0.0
    %3627 = vmatpush1.msra.mxu0 0.0
    %3628 = vmatprep.subr.mxu0 0.0
    %3629 = vmatpush1.msra.mxu0 0.0
    %3630 = vmatprep.subr.mxu0 0.0
    %3631 = vmatpush1.msra.mxu0 0.0
    %3632 = vmatprep.subr.mxu0 0.0
    %3633 = vmatpush1.msra.mxu0 0.0
    %3634 = vmatprep.mubr.f32.mxu0 0.0
    %v3635 = vand.u32 %v3414, 4294901760
    %v3636 = vsub.f32 %v3414, %v3635
    %3637 = vmatmul.mubr.f32.gmra.mrb[0].mxu0 %v3636
    %v3638 = vpop.f32.mrb[0].mxu0
    %v3639 = vadd.f32 %v3565, %v3638
    %v3640 = vpop.f32.mrb[0].mxu0
    %3641 = vdwg.mxu0
    %3642 = vmatprep.subr.mxu0 0.0
    %v3643 = vand.u32 %v3411, 4294901760
    %3644 = vmatpush1.msra.mxu0 %v3643
    %3645 = vmatprep.subr.mxu0 0.0
    %3646 = vmatpush1.msra.mxu0 0.0
    %3647 = vmatprep.subr.mxu0 0.0
    %3648 = vmatpush1.msra.mxu0 0.0
    %3649 = vmatprep.subr.mxu0 0.0
    %3650 = vmatpush1.msra.mxu0 0.0
    %3651 = vmatprep.subr.mxu0 0.0
    %3652 = vmatpush1.msra.mxu0 0.0
    %3653 = vmatprep.subr.mxu0 0.0
    %3654 = vmatpush1.msra.mxu0 0.0
    %3655 = vmatprep.subr.mxu0 0.0
    %3656 = vmatpush1.msra.mxu0 0.0
    %3657 = vmatprep.subr.mxu0 0.0
    %3658 = vmatpush1.msra.mxu0 0.0
    %3659 = vmatprep.subr.mxu0 0.0
    %3660 = vmatpush1.msra.mxu0 0.0
    %3661 = vmatprep.subr.mxu0 0.0
    %3662 = vmatpush1.msra.mxu0 0.0
    %3663 = vmatprep.subr.mxu0 0.0
    %3664 = vmatpush1.msra.mxu0 0.0
    %3665 = vmatprep.subr.mxu0 0.0
    %3666 = vmatpush1.msra.mxu0 0.0
    %3667 = vmatprep.subr.mxu0 0.0
    %3668 = vmatpush1.msra.mxu0 0.0
    %3669 = vmatprep.subr.mxu0 0.0
    %3670 = vmatpush1.msra.mxu0 0.0
    %3671 = vmatprep.subr.mxu0 0.0
    %3672 = vmatpush1.msra.mxu0 0.0
    %3673 = vmatprep.subr.mxu0 0.0
    %3674 = vmatpush1.msra.mxu0 0.0
    %3675 = vmatprep.subr.mxu0 0.0
    %3676 = vmatpush1.msra.mxu0 0.0
    %3677 = vmatprep.subr.mxu0 0.0
    %3678 = vmatpush1.msra.mxu0 0.0
    %3679 = vmatprep.subr.mxu0 0.0
    %3680 = vmatpush1.msra.mxu0 0.0
    %3681 = vmatprep.subr.mxu0 0.0
    %3682 = vmatpush1.msra.mxu0 0.0
    %3683 = vmatprep.subr.mxu0 0.0
    %3684 = vmatpush1.msra.mxu0 0.0
    %3685 = vmatprep.subr.mxu0 0.0
    %3686 = vmatpush1.msra.mxu0 0.0
    %3687 = vmatprep.subr.mxu0 0.0
    %3688 = vmatpush1.msra.mxu0 0.0
    %3689 = vmatprep.subr.mxu0 0.0
    %3690 = vmatpush1.msra.mxu0 0.0
    %3691 = vmatprep.subr.mxu0 0.0
    %3692 = vmatpush1.msra.mxu0 0.0
    %3693 = vmatprep.subr.mxu0 0.0
    %3694 = vmatpush1.msra.mxu0 0.0
    %3695 = vmatprep.subr.mxu0 0.0
    %3696 = vmatpush1.msra.mxu0 0.0
    %3697 = vmatprep.subr.mxu0 0.0
    %3698 = vmatpush1.msra.mxu0 0.0
    %3699 = vmatprep.subr.mxu0 0.0
    %3700 = vmatpush1.msra.mxu0 0.0
    %3701 = vmatprep.subr.mxu0 0.0
    %3702 = vmatpush1.msra.mxu0 0.0
    %3703 = vmatprep.subr.mxu0 0.0
    %3704 = vmatpush1.msra.mxu0 0.0
    %3705 = vmatprep.subr.mxu0 0.0
    %3706 = vmatpush1.msra.mxu0 0.0
    %3707 = vmatprep.mubr.f32.mxu0 0.0
    %v3708 = vand.u32 %v3414, 4294901760
    %v3709 = vsub.f32 %v3414, %v3708
    %v3710 = vand.u32 %v3709, 4294901760
    %3711 = vmatmul.mubr.f32.gmra.mrb[0].mxu0 %v3710
    %v3712 = vpop.f32.mrb[0].mxu0
    %v3713 = vadd.f32 %v3639, %v3712
    %v3714 = vpop.f32.mrb[0].mxu0
    %3715 = vdwg.mxu0
    %3716 = vmatprep.subr.mxu0 0.0
    %v3717 = vand.u32 %v3411, 4294901760
    %v3718 = vsub.f32 %v3411, %v3717
    %v3719 = vand.u32 %v3718, 4294901760
    %3720 = vmatpush1.msra.mxu0 %v3719
    %3721 = vmatprep.subr.mxu0 0.0
    %3722 = vmatpush1.msra.mxu0 0.0
    %3723 = vmatprep.subr.mxu0 0.0
    %3724 = vmatpush1.msra.mxu0 0.0
    %3725 = vmatprep.subr.mxu0 0.0
    %3726 = vmatpush1.msra.mxu0 0.0
    %3727 = vmatprep.subr.mxu0 0.0
    %3728 = vmatpush1.msra.mxu0 0.0
    %3729 = vmatprep.subr.mxu0 0.0
    %3730 = vmatpush1.msra.mxu0 0.0
    %3731 = vmatprep.subr.mxu0 0.0
    %3732 = vmatpush1.msra.mxu0 0.0
    %3733 = vmatprep.subr.mxu0 0.0
    %3734 = vmatpush1.msra.mxu0 0.0
    %3735 = vmatprep.subr.mxu0 0.0
    %3736 = vmatpush1.msra.mxu0 0.0
    %3737 = vmatprep.subr.mxu0 0.0
    %3738 = vmatpush1.msra.mxu0 0.0
    %3739 = vmatprep.subr.mxu0 0.0
    %3740 = vmatpush1.msra.mxu0 0.0
    %3741 = vmatprep.subr.mxu0 0.0
    %3742 = vmatpush1.msra.mxu0 0.0
    %3743 = vmatprep.subr.mxu0 0.0
    %3744 = vmatpush1.msra.mxu0 0.0
    %3745 = vmatprep.subr.mxu0 0.0
    %3746 = vmatpush1.msra.mxu0 0.0
    %3747 = vmatprep.subr.mxu0 0.0
    %3748 = vmatpush1.msra.mxu0 0.0
    %3749 = vmatprep.subr.mxu0 0.0
    %3750 = vmatpush1.msra.mxu0 0.0
    %3751 = vmatprep.subr.mxu0 0.0
    %3752 = vmatpush1.msra.mxu0 0.0
    %3753 = vmatprep.subr.mxu0 0.0
    %3754 = vmatpush1.msra.mxu0 0.0
    %3755 = vmatprep.subr.mxu0 0.0
    %3756 = vmatpush1.msra.mxu0 0.0
    %3757 = vmatprep.subr.mxu0 0.0
    %3758 = vmatpush1.msra.mxu0 0.0
    %3759 = vmatprep.subr.mxu0 0.0
    %3760 = vmatpush1.msra.mxu0 0.0
    %3761 = vmatprep.subr.mxu0 0.0
    %3762 = vmatpush1.msra.mxu0 0.0
    %3763 = vmatprep.subr.mxu0 0.0
    %3764 = vmatpush1.msra.mxu0 0.0
    %3765 = vmatprep.subr.mxu0 0.0
    %3766 = vmatpush1.msra.mxu0 0.0
    %3767 = vmatprep.subr.mxu0 0.0
    %3768 = vmatpush1.msra.mxu0 0.0
    %3769 = vmatprep.subr.mxu0 0.0
    %3770 = vmatpush1.msra.mxu0 0.0
    %3771 = vmatprep.subr.mxu0 0.0
    %3772 = vmatpush1.msra.mxu0 0.0
    %3773 = vmatprep.subr.mxu0 0.0
    %3774 = vmatpush1.msra.mxu0 0.0
    %3775 = vmatprep.subr.mxu0 0.0
    %3776 = vmatpush1.msra.mxu0 0.0
    %3777 = vmatprep.subr.mxu0 0.0
    %3778 = vmatpush1.msra.mxu0 0.0
    %3779 = vmatprep.subr.mxu0 0.0
    %3780 = vmatpush1.msra.mxu0 0.0
    %3781 = vmatprep.subr.mxu0 0.0
    %3782 = vmatpush1.msra.mxu0 0.0
    %3783 = vmatprep.mubr.f32.mxu0 0.0
    %v3784 = vand.u32 %v3414, 4294901760
    %3785 = vmatmul.mubr.f32.gmra.mrb[0].mxu0 %v3784
    %v3786 = vpop.f32.mrb[0].mxu0
    %v3787 = vadd.f32 %v3713, %v3786
    %v3788 = vpop.f32.mrb[0].mxu0
    %3789 = vdwg.mxu0
    %3790 = vmatprep.subr.mxu0 0.0
    %v3791 = vand.u32 %v3411, 4294901760
    %3792 = vmatpush1.msra.mxu0 %v3791
    %3793 = vmatprep.subr.mxu0 0.0
    %3794 = vmatpush1.msra.mxu0 0.0
    %3795 = vmatprep.subr.mxu0 0.0
    %3796 = vmatpush1.msra.mxu0 0.0
    %3797 = vmatprep.subr.mxu0 0.0
    %3798 = vmatpush1.msra.mxu0 0.0
    %3799 = vmatprep.subr.mxu0 0.0
    %3800 = vmatpush1.msra.mxu0 0.0
    %3801 = vmatprep.subr.mxu0 0.0
    %3802 = vmatpush1.msra.mxu0 0.0
    %3803 = vmatprep.subr.mxu0 0.0
    %3804 = vmatpush1.msra.mxu0 0.0
    %3805 = vmatprep.subr.mxu0 0.0
    %3806 = vmatpush1.msra.mxu0 0.0
    %3807 = vmatprep.subr.mxu0 0.0
    %3808 = vmatpush1.msra.mxu0 0.0
    %3809 = vmatprep.subr.mxu0 0.0
    %3810 = vmatpush1.msra.mxu0 0.0
    %3811 = vmatprep.subr.mxu0 0.0
    %3812 = vmatpush1.msra.mxu0 0.0
    %3813 = vmatprep.subr.mxu0 0.0
    %3814 = vmatpush1.msra.mxu0 0.0
    %3815 = vmatprep.subr.mxu0 0.0
    %3816 = vmatpush1.msra.mxu0 0.0
    %3817 = vmatprep.subr.mxu0 0.0
    %3818 = vmatpush1.msra.mxu0 0.0
    %3819 = vmatprep.subr.mxu0 0.0
    %3820 = vmatpush1.msra.mxu0 0.0
    %3821 = vmatprep.subr.mxu0 0.0
    %3822 = vmatpush1.msra.mxu0 0.0
    %3823 = vmatprep.subr.mxu0 0.0
    %3824 = vmatpush1.msra.mxu0 0.0
    %3825 = vmatprep.subr.mxu0 0.0
    %3826 = vmatpush1.msra.mxu0 0.0
    %3827 = vmatprep.subr.mxu0 0.0
    %3828 = vmatpush1.msra.mxu0 0.0
    %3829 = vmatprep.subr.mxu0 0.0
    %3830 = vmatpush1.msra.mxu0 0.0
    %3831 = vmatprep.subr.mxu0 0.0
    %3832 = vmatpush1.msra.mxu0 0.0
    %3833 = vmatprep.subr.mxu0 0.0
    %3834 = vmatpush1.msra.mxu0 0.0
    %3835 = vmatprep.subr.mxu0 0.0
    %3836 = vmatpush1.msra.mxu0 0.0
    %3837 = vmatprep.subr.mxu0 0.0
    %3838 = vmatpush1.msra.mxu0 0.0
    %3839 = vmatprep.subr.mxu0 0.0
    %3840 = vmatpush1.msra.mxu0 0.0
    %3841 = vmatprep.subr.mxu0 0.0
    %3842 = vmatpush1.msra.mxu0 0.0
    %3843 = vmatprep.subr.mxu0 0.0
    %3844 = vmatpush1.msra.mxu0 0.0
    %3845 = vmatprep.subr.mxu0 0.0
    %3846 = vmatpush1.msra.mxu0 0.0
    %3847 = vmatprep.subr.mxu0 0.0
    %3848 = vmatpush1.msra.mxu0 0.0
    %3849 = vmatprep.subr.mxu0 0.0
    %3850 = vmatpush1.msra.mxu0 0.0
    %3851 = vmatprep.subr.mxu0 0.0
    %3852 = vmatpush1.msra.mxu0 0.0
    %3853 = vmatprep.subr.mxu0 0.0
    %3854 = vmatpush1.msra.mxu0 0.0
    %3855 = vmatprep.mubr.f32.mxu0 0.0
    %v3856 = vand.u32 %v3414, 4294901760
    %3857 = vmatmul.mubr.f32.gmra.mrb[0].mxu0 %v3856
    %v3858 = vpop.f32.mrb[0].mxu0
    %v3859 = vadd.f32 %v3787, %v3858
    %v3860 = vpop.f32.mrb[0].mxu0
    %3861 = vdwg.mxu0
    %3862 = vrot.lane.b32.xlu0 %v639, 48
    %v3863 = vpop.permute.xlu0 %3862
    %v3866 = vsel %vm1551, %v3409, 0
    %3868 = vmatprep.subr.mxu0 0.0
    %v3869 = vand.u32 %v3863, 4294901760
    %3870 = vmatpush1.msra.mxu0 %v3869
    %3871 = vmatprep.subr.mxu0 0.0
    %3872 = vmatpush1.msra.mxu0 0.0
    %3873 = vmatprep.subr.mxu0 0.0
    %3874 = vmatpush1.msra.mxu0 0.0
    %3875 = vmatprep.subr.mxu0 0.0
    %3876 = vmatpush1.msra.mxu0 0.0
    %3877 = vmatprep.subr.mxu0 0.0
    %3878 = vmatpush1.msra.mxu0 0.0
    %3879 = vmatprep.subr.mxu0 0.0
    %3880 = vmatpush1.msra.mxu0 0.0
    %3881 = vmatprep.subr.mxu0 0.0
    %3882 = vmatpush1.msra.mxu0 0.0
    %3883 = vmatprep.subr.mxu0 0.0
    %3884 = vmatpush1.msra.mxu0 0.0
    %3885 = vmatprep.subr.mxu0 0.0
    %3886 = vmatpush1.msra.mxu0 0.0
    %3887 = vmatprep.subr.mxu0 0.0
    %3888 = vmatpush1.msra.mxu0 0.0
    %3889 = vmatprep.subr.mxu0 0.0
    %3890 = vmatpush1.msra.mxu0 0.0
    %3891 = vmatprep.subr.mxu0 0.0
    %3892 = vmatpush1.msra.mxu0 0.0
    %3893 = vmatprep.subr.mxu0 0.0
    %3894 = vmatpush1.msra.mxu0 0.0
    %3895 = vmatprep.subr.mxu0 0.0
    %3896 = vmatpush1.msra.mxu0 0.0
    %3897 = vmatprep.subr.mxu0 0.0
    %3898 = vmatpush1.msra.mxu0 0.0
    %3899 = vmatprep.subr.mxu0 0.0
    %3900 = vmatpush1.msra.mxu0 0.0
    %3901 = vmatprep.subr.mxu0 0.0
    %3902 = vmatpush1.msra.mxu0 0.0
    %3903 = vmatprep.subr.mxu0 0.0
    %3904 = vmatpush1.msra.mxu0 0.0
    %3905 = vmatprep.subr.mxu0 0.0
    %3906 = vmatpush1.msra.mxu0 0.0
    %3907 = vmatprep.subr.mxu0 0.0
    %3908 = vmatpush1.msra.mxu0 0.0
    %3909 = vmatprep.subr.mxu0 0.0
    %3910 = vmatpush1.msra.mxu0 0.0
    %3911 = vmatprep.subr.mxu0 0.0
    %3912 = vmatpush1.msra.mxu0 0.0
    %3913 = vmatprep.subr.mxu0 0.0
    %3914 = vmatpush1.msra.mxu0 0.0
    %3915 = vmatprep.subr.mxu0 0.0
    %3916 = vmatpush1.msra.mxu0 0.0
    %3917 = vmatprep.subr.mxu0 0.0
    %3918 = vmatpush1.msra.mxu0 0.0
    %3919 = vmatprep.subr.mxu0 0.0
    %3920 = vmatpush1.msra.mxu0 0.0
    %3921 = vmatprep.subr.mxu0 0.0
    %3922 = vmatpush1.msra.mxu0 0.0
    %3923 = vmatprep.subr.mxu0 0.0
    %3924 = vmatpush1.msra.mxu0 0.0
    %3925 = vmatprep.subr.mxu0 0.0
    %3926 = vmatpush1.msra.mxu0 0.0
    %3927 = vmatprep.subr.mxu0 0.0
    %3928 = vmatpush1.msra.mxu0 0.0
    %3929 = vmatprep.subr.mxu0 0.0
    %3930 = vmatpush1.msra.mxu0 0.0
    %3931 = vmatprep.subr.mxu0 0.0
    %3932 = vmatpush1.msra.mxu0 0.0
    %3933 = vmatprep.mubr.f32.mxu0 0.0
    %v3934 = vand.u32 %v3866, 4294901760
    %v3935 = vsub.f32 %v3866, %v3934
    %v3936 = vand.u32 %v3935, 4294901760
    %v3937 = vsub.f32 %v3935, %v3936
    %v3938 = vand.u32 %v3937, 4294901760
    %3939 = vmatmul.mubr.f32.gmra.mrb[0].mxu0 %v3938
    %v3940 = vpop.f32.mrb[0].mxu0
    %v3941 = vadd.f32 0.0, %v3940
    %v3942 = vpop.f32.mrb[0].mxu0
    %3943 = vdwg.mxu0
    %3944 = vmatprep.subr.mxu0 0.0
    %v3945 = vand.u32 %v3863, 4294901760
    %v3946 = vsub.f32 %v3863, %v3945
    %v3947 = vand.u32 %v3946, 4294901760
    %v3948 = vsub.f32 %v3946, %v3947
    %v3949 = vand.u32 %v3948, 4294901760
    %3950 = vmatpush1.msra.mxu0 %v3949
    %3951 = vmatprep.subr.mxu0 0.0
    %3952 = vmatpush1.msra.mxu0 0.0
    %3953 = vmatprep.subr.mxu0 0.0
    %3954 = vmatpush1.msra.mxu0 0.0
    %3955 = vmatprep.subr.mxu0 0.0
    %3956 = vmatpush1.msra.mxu0 0.0
    %3957 = vmatprep.subr.mxu0 0.0
    %3958 = vmatpush1.msra.mxu0 0.0
    %3959 = vmatprep.subr.mxu0 0.0
    %3960 = vmatpush1.msra.mxu0 0.0
    %3961 = vmatprep.subr.mxu0 0.0
    %3962 = vmatpush1.msra.mxu0 0.0
    %3963 = vmatprep.subr.mxu0 0.0
    %3964 = vmatpush1.msra.mxu0 0.0
    %3965 = vmatprep.subr.mxu0 0.0
    %3966 = vmatpush1.msra.mxu0 0.0
    %3967 = vmatprep.subr.mxu0 0.0
    %3968 = vmatpush1.msra.mxu0 0.0
    %3969 = vmatprep.subr.mxu0 0.0
    %3970 = vmatpush1.msra.mxu0 0.0
    %3971 = vmatprep.subr.mxu0 0.0
    %3972 = vmatpush1.msra.mxu0 0.0
    %3973 = vmatprep.subr.mxu0 0.0
    %3974 = vmatpush1.msra.mxu0 0.0
    %3975 = vmatprep.subr.mxu0 0.0
    %3976 = vmatpush1.msra.mxu0 0.0
    %3977 = vmatprep.subr.mxu0 0.0
    %3978 = vmatpush1.msra.mxu0 0.0
    %3979 = vmatprep.subr.mxu0 0.0
    %3980 = vmatpush1.msra.mxu0 0.0
    %3981 = vmatprep.subr.mxu0 0.0
    %3982 = vmatpush1.msra.mxu0 0.0
    %3983 = vmatprep.subr.mxu0 0.0
    %3984 = vmatpush1.msra.mxu0 0.0
    %3985 = vmatprep.subr.mxu0 0.0
    %3986 = vmatpush1.msra.mxu0 0.0
    %3987 = vmatprep.subr.mxu0 0.0
    %3988 = vmatpush1.msra.mxu0 0.0
    %3989 = vmatprep.subr.mxu0 0.0
    %3990 = vmatpush1.msra.mxu0 0.0
    %3991 = vmatprep.subr.mxu0 0.0
    %3992 = vmatpush1.msra.mxu0 0.0
    %3993 = vmatprep.subr.mxu0 0.0
    %3994 = vmatpush1.msra.mxu0 0.0
    %3995 = vmatprep.subr.mxu0 0.0
    %3996 = vmatpush1.msra.mxu0 0.0
    %3997 = vmatprep.subr.mxu0 0.0
    %3998 = vmatpush1.msra.mxu0 0.0
    %3999 = vmatprep.subr.mxu0 0.0
    %4000 = vmatpush1.msra.mxu0 0.0
    %4001 = vmatprep.subr.mxu0 0.0
    %4002 = vmatpush1.msra.mxu0 0.0
    %4003 = vmatprep.subr.mxu0 0.0
    %4004 = vmatpush1.msra.mxu0 0.0
    %4005 = vmatprep.subr.mxu0 0.0
    %4006 = vmatpush1.msra.mxu0 0.0
    %4007 = vmatprep.subr.mxu0 0.0
    %4008 = vmatpush1.msra.mxu0 0.0
    %4009 = vmatprep.subr.mxu0 0.0
    %4010 = vmatpush1.msra.mxu0 0.0
    %4011 = vmatprep.subr.mxu0 0.0
    %4012 = vmatpush1.msra.mxu0 0.0
    %4013 = vmatprep.mubr.f32.mxu0 0.0
    %v4014 = vand.u32 %v3866, 4294901760
    %4015 = vmatmul.mubr.f32.gmra.mrb[0].mxu0 %v4014
    %v4016 = vpop.f32.mrb[0].mxu0
    %v4017 = vadd.f32 %v3941, %v4016
    %v4018 = vpop.f32.mrb[0].mxu0
    %4019 = vdwg.mxu0
    %4020 = vmatprep.subr.mxu0 0.0
    %v4021 = vand.u32 %v3863, 4294901760
    %v4022 = vsub.f32 %v3863, %v4021
    %4023 = vmatpush1.msra.mxu0 %v4022
    %4024 = vmatprep.subr.mxu0 0.0
    %4025 = vmatpush1.msra.mxu0 0.0
    %4026 = vmatprep.subr.mxu0 0.0
    %4027 = vmatpush1.msra.mxu0 0.0
    %4028 = vmatprep.subr.mxu0 0.0
    %4029 = vmatpush1.msra.mxu0 0.0
    %4030 = vmatprep.subr.mxu0 0.0
    %4031 = vmatpush1.msra.mxu0 0.0
    %4032 = vmatprep.subr.mxu0 0.0
    %4033 = vmatpush1.msra.mxu0 0.0
    %4034 = vmatprep.subr.mxu0 0.0
    %4035 = vmatpush1.msra.mxu0 0.0
    %4036 = vmatprep.subr.mxu0 0.0
    %4037 = vmatpush1.msra.mxu0 0.0
    %4038 = vmatprep.subr.mxu0 0.0
    %4039 = vmatpush1.msra.mxu0 0.0
    %4040 = vmatprep.subr.mxu0 0.0
    %4041 = vmatpush1.msra.mxu0 0.0
    %4042 = vmatprep.subr.mxu0 0.0
    %4043 = vmatpush1.msra.mxu0 0.0
    %4044 = vmatprep.subr.mxu0 0.0
    %4045 = vmatpush1.msra.mxu0 0.0
    %4046 = vmatprep.subr.mxu0 0.0
    %4047 = vmatpush1.msra.mxu0 0.0
    %4048 = vmatprep.subr.mxu0 0.0
    %4049 = vmatpush1.msra.mxu0 0.0
    %4050 = vmatprep.subr.mxu0 0.0
    %4051 = vmatpush1.msra.mxu0 0.0
    %4052 = vmatprep.subr.mxu0 0.0
    %4053 = vmatpush1.msra.mxu0 0.0
    %4054 = vmatprep.subr.mxu0 0.0
    %4055 = vmatpush1.msra.mxu0 0.0
    %4056 = vmatprep.subr.mxu0 0.0
    %4057 = vmatpush1.msra.mxu0 0.0
    %4058 = vmatprep.subr.mxu0 0.0
    %4059 = vmatpush1.msra.mxu0 0.0
    %4060 = vmatprep.subr.mxu0 0.0
    %4061 = vmatpush1.msra.mxu0 0.0
    %4062 = vmatprep.subr.mxu0 0.0
    %4063 = vmatpush1.msra.mxu0 0.0
    %4064 = vmatprep.subr.mxu0 0.0
    %4065 = vmatpush1.msra.mxu0 0.0
    %4066 = vmatprep.subr.mxu0 0.0
    %4067 = vmatpush1.msra.mxu0 0.0
    %4068 = vmatprep.subr.mxu0 0.0
    %4069 = vmatpush1.msra.mxu0 0.0
    %4070 = vmatprep.subr.mxu0 0.0
    %4071 = vmatpush1.msra.mxu0 0.0
    %4072 = vmatprep.subr.mxu0 0.0
    %4073 = vmatpush1.msra.mxu0 0.0
    %4074 = vmatprep.subr.mxu0 0.0
    %4075 = vmatpush1.msra.mxu0 0.0
    %4076 = vmatprep.subr.mxu0 0.0
    %4077 = vmatpush1.msra.mxu0 0.0
    %4078 = vmatprep.subr.mxu0 0.0
    %4079 = vmatpush1.msra.mxu0 0.0
    %4080 = vmatprep.subr.mxu0 0.0
    %4081 = vmatpush1.msra.mxu0 0.0
    %4082 = vmatprep.subr.mxu0 0.0
    %4083 = vmatpush1.msra.mxu0 0.0
    %4084 = vmatprep.subr.mxu0 0.0
    %4085 = vmatpush1.msra.mxu0 0.0
    %4086 = vmatprep.mubr.f32.mxu0 0.0
    %v4087 = vand.u32 %v3866, 4294901760
    %v4088 = vsub.f32 %v3866, %v4087
    %4089 = vmatmul.mubr.f32.gmra.mrb[0].mxu0 %v4088
    %v4090 = vpop.f32.mrb[0].mxu0
    %v4091 = vadd.f32 %v4017, %v4090
    %v4092 = vpop.f32.mrb[0].mxu0
    %4093 = vdwg.mxu0
    %4094 = vmatprep.subr.mxu0 0.0
    %v4095 = vand.u32 %v3863, 4294901760
    %4096 = vmatpush1.msra.mxu0 %v4095
    %4097 = vmatprep.subr.mxu0 0.0
    %4098 = vmatpush1.msra.mxu0 0.0
    %4099 = vmatprep.subr.mxu0 0.0
    %4100 = vmatpush1.msra.mxu0 0.0
    %4101 = vmatprep.subr.mxu0 0.0
    %4102 = vmatpush1.msra.mxu0 0.0
    %4103 = vmatprep.subr.mxu0 0.0
    %4104 = vmatpush1.msra.mxu0 0.0
    %4105 = vmatprep.subr.mxu0 0.0
    %4106 = vmatpush1.msra.mxu0 0.0
    %4107 = vmatprep.subr.mxu0 0.0
    %4108 = vmatpush1.msra.mxu0 0.0
    %4109 = vmatprep.subr.mxu0 0.0
    %4110 = vmatpush1.msra.mxu0 0.0
    %4111 = vmatprep.subr.mxu0 0.0
    %4112 = vmatpush1.msra.mxu0 0.0
    %4113 = vmatprep.subr.mxu0 0.0
    %4114 = vmatpush1.msra.mxu0 0.0
    %4115 = vmatprep.subr.mxu0 0.0
    %4116 = vmatpush1.msra.mxu0 0.0
    %4117 = vmatprep.subr.mxu0 0.0
    %4118 = vmatpush1.msra.mxu0 0.0
    %4119 = vmatprep.subr.mxu0 0.0
    %4120 = vmatpush1.msra.mxu0 0.0
    %4121 = vmatprep.subr.mxu0 0.0
    %4122 = vmatpush1.msra.mxu0 0.0
    %4123 = vmatprep.subr.mxu0 0.0
    %4124 = vmatpush1.msra.mxu0 0.0
    %4125 = vmatprep.subr.mxu0 0.0
    %4126 = vmatpush1.msra.mxu0 0.0
    %4127 = vmatprep.subr.mxu0 0.0
    %4128 = vmatpush1.msra.mxu0 0.0
    %4129 = vmatprep.subr.mxu0 0.0
    %4130 = vmatpush1.msra.mxu0 0.0
    %4131 = vmatprep.subr.mxu0 0.0
    %4132 = vmatpush1.msra.mxu0 0.0
    %4133 = vmatprep.subr.mxu0 0.0
    %4134 = vmatpush1.msra.mxu0 0.0
    %4135 = vmatprep.subr.mxu0 0.0
    %4136 = vmatpush1.msra.mxu0 0.0
    %4137 = vmatprep.subr.mxu0 0.0
    %4138 = vmatpush1.msra.mxu0 0.0
    %4139 = vmatprep.subr.mxu0 0.0
    %4140 = vmatpush1.msra.mxu0 0.0
    %4141 = vmatprep.subr.mxu0 0.0
    %4142 = vmatpush1.msra.mxu0 0.0
    %4143 = vmatprep.subr.mxu0 0.0
    %4144 = vmatpush1.msra.mxu0 0.0
    %4145 = vmatprep.subr.mxu0 0.0
    %4146 = vmatpush1.msra.mxu0 0.0
    %4147 = vmatprep.subr.mxu0 0.0
    %4148 = vmatpush1.msra.mxu0 0.0
    %4149 = vmatprep.subr.mxu0 0.0
    %4150 = vmatpush1.msra.mxu0 0.0
    %4151 = vmatprep.subr.mxu0 0.0
    %4152 = vmatpush1.msra.mxu0 0.0
    %4153 = vmatprep.subr.mxu0 0.0
    %4154 = vmatpush1.msra.mxu0 0.0
    %4155 = vmatprep.subr.mxu0 0.0
    %4156 = vmatpush1.msra.mxu0 0.0
    %4157 = vmatprep.subr.mxu0 0.0
    %4158 = vmatpush1.msra.mxu0 0.0
    %4159 = vmatprep.mubr.f32.mxu0 0.0
    %v4160 = vand.u32 %v3866, 4294901760
    %v4161 = vsub.f32 %v3866, %v4160
    %v4162 = vand.u32 %v4161, 4294901760
    %4163 = vmatmul.mubr.f32.gmra.mrb[0].mxu0 %v4162
    %v4164 = vpop.f32.mrb[0].mxu0
    %v4165 = vadd.f32 %v4091, %v4164
    %v4166 = vpop.f32.mrb[0].mxu0
    %4167 = vdwg.mxu0
    %4168 = vmatprep.subr.mxu0 0.0
    %v4169 = vand.u32 %v3863, 4294901760
    %v4170 = vsub.f32 %v3863, %v4169
    %v4171 = vand.u32 %v4170, 4294901760
    %4172 = vmatpush1.msra.mxu0 %v4171
    %4173 = vmatprep.subr.mxu0 0.0
    %4174 = vmatpush1.msra.mxu0 0.0
    %4175 = vmatprep.subr.mxu0 0.0
    %4176 = vmatpush1.msra.mxu0 0.0
    %4177 = vmatprep.subr.mxu0 0.0
    %4178 = vmatpush1.msra.mxu0 0.0
    %4179 = vmatprep.subr.mxu0 0.0
    %4180 = vmatpush1.msra.mxu0 0.0
    %4181 = vmatprep.subr.mxu0 0.0
    %4182 = vmatpush1.msra.mxu0 0.0
    %4183 = vmatprep.subr.mxu0 0.0
    %4184 = vmatpush1.msra.mxu0 0.0
    %4185 = vmatprep.subr.mxu0 0.0
    %4186 = vmatpush1.msra.mxu0 0.0
    %4187 = vmatprep.subr.mxu0 0.0
    %4188 = vmatpush1.msra.mxu0 0.0
    %4189 = vmatprep.subr.mxu0 0.0
    %4190 = vmatpush1.msra.mxu0 0.0
    %4191 = vmatprep.subr.mxu0 0.0
    %4192 = vmatpush1.msra.mxu0 0.0
    %4193 = vmatprep.subr.mxu0 0.0
    %4194 = vmatpush1.msra.mxu0 0.0
    %4195 = vmatprep.subr.mxu0 0.0
    %4196 = vmatpush1.msra.mxu0 0.0
    %4197 = vmatprep.subr.mxu0 0.0
    %4198 = vmatpush1.msra.mxu0 0.0
    %4199 = vmatprep.subr.mxu0 0.0
    %4200 = vmatpush1.msra.mxu0 0.0
    %4201 = vmatprep.subr.mxu0 0.0
    %4202 = vmatpush1.msra.mxu0 0.0
    %4203 = vmatprep.subr.mxu0 0.0
    %4204 = vmatpush1.msra.mxu0 0.0
    %4205 = vmatprep.subr.mxu0 0.0
    %4206 = vmatpush1.msra.mxu0 0.0
    %4207 = vmatprep.subr.mxu0 0.0
    %4208 = vmatpush1.msra.mxu0 0.0
    %4209 = vmatprep.subr.mxu0 0.0
    %4210 = vmatpush1.msra.mxu0 0.0
    %4211 = vmatprep.subr.mxu0 0.0
    %4212 = vmatpush1.msra.mxu0 0.0
    %4213 = vmatprep.subr.mxu0 0.0
    %4214 = vmatpush1.msra.mxu0 0.0
    %4215 = vmatprep.subr.mxu0 0.0
    %4216 = vmatpush1.msra.mxu0 0.0
    %4217 = vmatprep.subr.mxu0 0.0
    %4218 = vmatpush1.msra.mxu0 0.0
    %4219 = vmatprep.subr.mxu0 0.0
    %4220 = vmatpush1.msra.mxu0 0.0
    %4221 = vmatprep.subr.mxu0 0.0
    %4222 = vmatpush1.msra.mxu0 0.0
    %4223 = vmatprep.subr.mxu0 0.0
    %4224 = vmatpush1.msra.mxu0 0.0
    %4225 = vmatprep.subr.mxu0 0.0
    %4226 = vmatpush1.msra.mxu0 0.0
    %4227 = vmatprep.subr.mxu0 0.0
    %4228 = vmatpush1.msra.mxu0 0.0
    %4229 = vmatprep.subr.mxu0 0.0
    %4230 = vmatpush1.msra.mxu0 0.0
    %4231 = vmatprep.subr.mxu0 0.0
    %4232 = vmatpush1.msra.mxu0 0.0
    %4233 = vmatprep.subr.mxu0 0.0
    %4234 = vmatpush1.msra.mxu0 0.0
    %4235 = vmatprep.mubr.f32.mxu0 0.0
    %v4236 = vand.u32 %v3866, 4294901760
    %4237 = vmatmul.mubr.f32.gmra.mrb[0].mxu0 %v4236
    %v4238 = vpop.f32.mrb[0].mxu0
    %v4239 = vadd.f32 %v4165, %v4238
    %v4240 = vpop.f32.mrb[0].mxu0
    %4241 = vdwg.mxu0
    %4242 = vmatprep.subr.mxu0 0.0
    %v4243 = vand.u32 %v3863, 4294901760
    %4244 = vmatpush1.msra.mxu0 %v4243
    %4245 = vmatprep.subr.mxu0 0.0
    %4246 = vmatpush1.msra.mxu0 0.0
    %4247 = vmatprep.subr.mxu0 0.0
    %4248 = vmatpush1.msra.mxu0 0.0
    %4249 = vmatprep.subr.mxu0 0.0
    %4250 = vmatpush1.msra.mxu0 0.0
    %4251 = vmatprep.subr.mxu0 0.0
    %4252 = vmatpush1.msra.mxu0 0.0
    %4253 = vmatprep.subr.mxu0 0.0
    %4254 = vmatpush1.msra.mxu0 0.0
    %4255 = vmatprep.subr.mxu0 0.0
    %4256 = vmatpush1.msra.mxu0 0.0
    %4257 = vmatprep.subr.mxu0 0.0
    %4258 = vmatpush1.msra.mxu0 0.0
    %4259 = vmatprep.subr.mxu0 0.0
    %4260 = vmatpush1.msra.mxu0 0.0
    %4261 = vmatprep.subr.mxu0 0.0
    %4262 = vmatpush1.msra.mxu0 0.0
    %4263 = vmatprep.subr.mxu0 0.0
    %4264 = vmatpush1.msra.mxu0 0.0
    %4265 = vmatprep.subr.mxu0 0.0
    %4266 = vmatpush1.msra.mxu0 0.0
    %4267 = vmatprep.subr.mxu0 0.0
    %4268 = vmatpush1.msra.mxu0 0.0
    %4269 = vmatprep.subr.mxu0 0.0
    %4270 = vmatpush1.msra.mxu0 0.0
    %4271 = vmatprep.subr.mxu0 0.0
    %4272 = vmatpush1.msra.mxu0 0.0
    %4273 = vmatprep.subr.mxu0 0.0
    %4274 = vmatpush1.msra.mxu0 0.0
    %4275 = vmatprep.subr.mxu0 0.0
    %4276 = vmatpush1.msra.mxu0 0.0
    %4277 = vmatprep.subr.mxu0 0.0
    %4278 = vmatpush1.msra.mxu0 0.0
    %4279 = vmatprep.subr.mxu0 0.0
    %4280 = vmatpush1.msra.mxu0 0.0
    %4281 = vmatprep.subr.mxu0 0.0
    %4282 = vmatpush1.msra.mxu0 0.0
    %4283 = vmatprep.subr.mxu0 0.0
    %4284 = vmatpush1.msra.mxu0 0.0
    %4285 = vmatprep.subr.mxu0 0.0
    %4286 = vmatpush1.msra.mxu0 0.0
    %4287 = vmatprep.subr.mxu0 0.0
    %4288 = vmatpush1.msra.mxu0 0.0
    %4289 = vmatprep.subr.mxu0 0.0
    %4290 = vmatpush1.msra.mxu0 0.0
    %4291 = vmatprep.subr.mxu0 0.0
    %4292 = vmatpush1.msra.mxu0 0.0
    %4293 = vmatprep.subr.mxu0 0.0
    %4294 = vmatpush1.msra.mxu0 0.0
    %4295 = vmatprep.subr.mxu0 0.0
    %4296 = vmatpush1.msra.mxu0 0.0
    %4297 = vmatprep.subr.mxu0 0.0
    %4298 = vmatpush1.msra.mxu0 0.0
    %4299 = vmatprep.subr.mxu0 0.0
    %4300 = vmatpush1.msra.mxu0 0.0
    %4301 = vmatprep.subr.mxu0 0.0
    %4302 = vmatpush1.msra.mxu0 0.0
    %4303 = vmatprep.subr.mxu0 0.0
    %4304 = vmatpush1.msra.mxu0 0.0
    %4305 = vmatprep.subr.mxu0 0.0
    %4306 = vmatpush1.msra.mxu0 0.0
    %4307 = vmatprep.mubr.f32.mxu0 0.0
    %v4308 = vand.u32 %v3866, 4294901760
    %4309 = vmatmul.mubr.f32.gmra.mrb[0].mxu0 %v4308
    %v4310 = vpop.f32.mrb[0].mxu0
    %v4311 = vadd.f32 %v4239, %v4310
    %v4312 = vpop.f32.mrb[0].mxu0
    %4313 = vdwg.mxu0
    %4316 = vrot.lane.b32.xlu0 %v3859, 16
    %v4317 = vpop.permute.xlu0 %4316
    %4318 = vrot.lane.b32.xlu0 %v4311, 16
    %v4319 = vpop.permute.xlu0 %4318
    %v4322 = vsel %vm645, %v2023, %v4317
    %v4323 = vsel %vm645, %v2475, %v4319
    %v4324 = vld [vmem:[%s2] sm:$0xff]
    %v4325 = vld [vmem:[%s2 + $0x8] sm:$0xff]
    %v4326 = vld [vmem:[%s2 + $0x10] sm:$0xff]
    %v4327 = vld [vmem:[%s2 + $0x18] sm:$0xff]
    %v4329 = vsel %vm64, %v4322, 0
    %v4332 = vsel %vm64, %v4323, 0
    %4334 = vmatprep.subr.mxu0 0.0
    %v4335 = vand.u32 %v4324, 4294901760
    %4336 = vmatpush1.msra.mxu0 %v4335
    %4337 = vmatprep.subr.mxu0 0.0
    %v4338 = vand.u32 %v4325, 4294901760
    %4339 = vmatpush1.msra.mxu0 %v4338
    %4340 = vmatprep.subr.mxu0 0.0
    %v4341 = vand.u32 %v4326, 4294901760
    %4342 = vmatpush1.msra.mxu0 %v4341
    %4343 = vmatprep.subr.mxu0 0.0
    %v4344 = vand.u32 %v4327, 4294901760
    %4345 = vmatpush1.msra.mxu0 %v4344
    %4346 = vmatprep.subr.mxu0 0.0
    %4347 = vmatpush1.msra.mxu0 0.0
    %4348 = vmatprep.subr.mxu0 0.0
    %4349 = vmatpush1.msra.mxu0 0.0
    %4350 = vmatprep.subr.mxu0 0.0
    %4351 = vmatpush1.msra.mxu0 0.0
    %4352 = vmatprep.subr.mxu0 0.0
    %4353 = vmatpush1.msra.mxu0 0.0
    %4354 = vmatprep.subr.mxu0 0.0
    %4355 = vmatpush1.msra.mxu0 0.0
    %4356 = vmatprep.subr.mxu0 0.0
    %4357 = vmatpush1.msra.mxu0 0.0
    %4358 = vmatprep.subr.mxu0 0.0
    %4359 = vmatpush1.msra.mxu0 0.0
    %4360 = vmatprep.subr.mxu0 0.0
    %4361 = vmatpush1.msra.mxu0 0.0
    %4362 = vmatprep.subr.mxu0 0.0
    %4363 = vmatpush1.msra.mxu0 0.0
    %4364 = vmatprep.subr.mxu0 0.0
    %4365 = vmatpush1.msra.mxu0 0.0
    %4366 = vmatprep.subr.mxu0 0.0
    %4367 = vmatpush1.msra.mxu0 0.0
    %4368 = vmatprep.subr.mxu0 0.0
    %4369 = vmatpush1.msra.mxu0 0.0
    %4370 = vmatprep.subr.mxu0 0.0
    %4371 = vmatpush1.msra.mxu0 0.0
    %4372 = vmatprep.subr.mxu0 0.0
    %4373 = vmatpush1.msra.mxu0 0.0
    %4374 = vmatprep.subr.mxu0 0.0
    %4375 = vmatpush1.msra.mxu0 0.0
    %4376 = vmatprep.subr.mxu0 0.0
    %4377 = vmatpush1.msra.mxu0 0.0
    %4378 = vmatprep.subr.mxu0 0.0
    %4379 = vmatpush1.msra.mxu0 0.0
    %4380 = vmatprep.subr.mxu0 0.0
    %4381 = vmatpush1.msra.mxu0 0.0
    %4382 = vmatprep.subr.mxu0 0.0
    %4383 = vmatpush1.msra.mxu0 0.0
    %4384 = vmatprep.subr.mxu0 0.0
    %4385 = vmatpush1.msra.mxu0 0.0
    %4386 = vmatprep.subr.mxu0 0.0
    %4387 = vmatpush1.msra.mxu0 0.0
    %4388 = vmatprep.subr.mxu0 0.0
    %4389 = vmatpush1.msra.mxu0 0.0
    %4390 = vmatprep.subr.mxu0 0.0
    %4391 = vmatpush1.msra.mxu0 0.0
    %4392 = vmatprep.subr.mxu0 0.0
    %4393 = vmatpush1.msra.mxu0 0.0
    %4394 = vmatprep.subr.mxu0 0.0
    %4395 = vmatpush1.msra.mxu0 0.0
    %4396 = vmatprep.subr.mxu0 0.0
    %4397 = vmatpush1.msra.mxu0 0.0
    %4398 = vmatprep.subr.mxu0 0.0
    %4399 = vmatpush1.msra.mxu0 0.0
    %4400 = vmatprep.subr.mxu0 0.0
    %4401 = vmatpush1.msra.mxu0 0.0
    %4402 = vmatprep.mubr.f32.mxu0 0.0
    %v4403 = vand.u32 %v4329, 4294901760
    %v4404 = vsub.f32 %v4329, %v4403
    %v4405 = vand.u32 %v4404, 4294901760
    %v4406 = vsub.f32 %v4404, %v4405
    %v4407 = vand.u32 %v4406, 4294901760
    %4408 = vmatmul.mubr.f32.gmra.mrb[0].mxu0 %v4407
    %v4409 = vpop.f32.mrb[0].mxu0
    %v4410 = vadd.f32 0.0, %v4409
    %v4411 = vpop.f32.mrb[0].mxu0
    %4412 = vmatprep.mubr.f32.mxu0 0.0
    %v4413 = vand.u32 %v4332, 4294901760
    %v4414 = vsub.f32 %v4332, %v4413
    %v4415 = vand.u32 %v4414, 4294901760
    %v4416 = vsub.f32 %v4414, %v4415
    %v4417 = vand.u32 %v4416, 4294901760
    %4418 = vmatmul.mubr.f32.gmra.mrb[0].mxu0 %v4417
    %v4419 = vpop.f32.mrb[0].mxu0
    %v4420 = vadd.f32 0.0, %v4419
    %v4421 = vpop.f32.mrb[0].mxu0
    %4422 = vdwg.mxu0
    %4423 = vmatprep.subr.mxu0 0.0
    %v4424 = vand.u32 %v4324, 4294901760
    %v4425 = vsub.f32 %v4324, %v4424
    %v4426 = vand.u32 %v4425, 4294901760
    %v4427 = vsub.f32 %v4425, %v4426
    %v4428 = vand.u32 %v4427, 4294901760
    %4429 = vmatpush1.msra.mxu0 %v4428
    %4430 = vmatprep.subr.mxu0 0.0
    %v4431 = vand.u32 %v4325, 4294901760
    %v4432 = vsub.f32 %v4325, %v4431
    %v4433 = vand.u32 %v4432, 4294901760
    %v4434 = vsub.f32 %v4432, %v4433
    %v4435 = vand.u32 %v4434, 4294901760
    %4436 = vmatpush1.msra.mxu0 %v4435
    %4437 = vmatprep.subr.mxu0 0.0
    %v4438 = vand.u32 %v4326, 4294901760
    %v4439 = vsub.f32 %v4326, %v4438
    %v4440 = vand.u32 %v4439, 4294901760
    %v4441 = vsub.f32 %v4439, %v4440
    %v4442 = vand.u32 %v4441, 4294901760
    %4443 = vmatpush1.msra.mxu0 %v4442
    %4444 = vmatprep.subr.mxu0 0.0
    %v4445 = vand.u32 %v4327, 4294901760
    %v4446 = vsub.f32 %v4327, %v4445
    %v4447 = vand.u32 %v4446, 4294901760
    %v4448 = vsub.f32 %v4446, %v4447
    %v4449 = vand.u32 %v4448, 4294901760
    %4450 = vmatpush1.msra.mxu0 %v4449
    %4451 = vmatprep.subr.mxu0 0.0
    %4452 = vmatpush1.msra.mxu0 0.0
    %4453 = vmatprep.subr.mxu0 0.0
    %4454 = vmatpush1.msra.mxu0 0.0
    %4455 = vmatprep.subr.mxu0 0.0
    %4456 = vmatpush1.msra.mxu0 0.0
    %4457 = vmatprep.subr.mxu0 0.0
    %4458 = vmatpush1.msra.mxu0 0.0
    %4459 = vmatprep.subr.mxu0 0.0
    %4460 = vmatpush1.msra.mxu0 0.0
    %4461 = vmatprep.subr.mxu0 0.0
    %4462 = vmatpush1.msra.mxu0 0.0
    %4463 = vmatprep.subr.mxu0 0.0
    %4464 = vmatpush1.msra.mxu0 0.0
    %4465 = vmatprep.subr.mxu0 0.0
    %4466 = vmatpush1.msra.mxu0 0.0
    %4467 = vmatprep.subr.mxu0 0.0
    %4468 = vmatpush1.msra.mxu0 0.0
    %4469 = vmatprep.subr.mxu0 0.0
    %4470 = vmatpush1.msra.mxu0 0.0
    %4471 = vmatprep.subr.mxu0 0.0
    %4472 = vmatpush1.msra.mxu0 0.0
    %4473 = vmatprep.subr.mxu0 0.0
    %4474 = vmatpush1.msra.mxu0 0.0
    %4475 = vmatprep.subr.mxu0 0.0
    %4476 = vmatpush1.msra.mxu0 0.0
    %4477 = vmatprep.subr.mxu0 0.0
    %4478 = vmatpush1.msra.mxu0 0.0
    %4479 = vmatprep.subr.mxu0 0.0
    %4480 = vmatpush1.msra.mxu0 0.0
    %4481 = vmatprep.subr.mxu0 0.0
    %4482 = vmatpush1.msra.mxu0 0.0
    %4483 = vmatprep.subr.mxu0 0.0
    %4484 = vmatpush1.msra.mxu0 0.0
    %4485 = vmatprep.subr.mxu0 0.0
    %4486 = vmatpush1.msra.mxu0 0.0
    %4487 = vmatprep.subr.mxu0 0.0
    %4488 = vmatpush1.msra.mxu0 0.0
    %4489 = vmatprep.subr.mxu0 0.0
    %4490 = vmatpush1.msra.mxu0 0.0
    %4491 = vmatprep.subr.mxu0 0.0
    %4492 = vmatpush1.msra.mxu0 0.0
    %4493 = vmatprep.subr.mxu0 0.0
    %4494 = vmatpush1.msra.mxu0 0.0
    %4495 = vmatprep.subr.mxu0 0.0
    %4496 = vmatpush1.msra.mxu0 0.0
    %4497 = vmatprep.subr.mxu0 0.0
    %4498 = vmatpush1.msra.mxu0 0.0
    %4499 = vmatprep.subr.mxu0 0.0
    %4500 = vmatpush1.msra.mxu0 0.0
    %4501 = vmatprep.subr.mxu0 0.0
    %4502 = vmatpush1.msra.mxu0 0.0
    %4503 = vmatprep.subr.mxu0 0.0
    %4504 = vmatpush1.msra.mxu0 0.0
    %4505 = vmatprep.subr.mxu0 0.0
    %4506 = vmatpush1.msra.mxu0 0.0
    %4507 = vmatprep.mubr.f32.mxu0 0.0
    %v4508 = vand.u32 %v4329, 4294901760
    %4509 = vmatmul.mubr.f32.gmra.mrb[0].mxu0 %v4508
    %v4510 = vpop.f32.mrb[0].mxu0
    %v4511 = vadd.f32 %v4410, %v4510
    %v4512 = vpop.f32.mrb[0].mxu0
    %4513 = vmatprep.mubr.f32.mxu0 0.0
    %v4514 = vand.u32 %v4332, 4294901760
    %4515 = vmatmul.mubr.f32.gmra.mrb[0].mxu0 %v4514
    %v4516 = vpop.f32.mrb[0].mxu0
    %v4517 = vadd.f32 %v4420, %v4516
    %v4518 = vpop.f32.mrb[0].mxu0
    %4519 = vdwg.mxu0
    %4520 = vmatprep.subr.mxu0 0.0
    %v4521 = vand.u32 %v4324, 4294901760
    %v4522 = vsub.f32 %v4324, %v4521
    %4523 = vmatpush1.msra.mxu0 %v4522
    %4524 = vmatprep.subr.mxu0 0.0
    %v4525 = vand.u32 %v4325, 4294901760
    %v4526 = vsub.f32 %v4325, %v4525
    %4527 = vmatpush1.msra.mxu0 %v4526
    %4528 = vmatprep.subr.mxu0 0.0
    %v4529 = vand.u32 %v4326, 4294901760
    %v4530 = vsub.f32 %v4326, %v4529
    %4531 = vmatpush1.msra.mxu0 %v4530
    %4532 = vmatprep.subr.mxu0 0.0
    %v4533 = vand.u32 %v4327, 4294901760
    %v4534 = vsub.f32 %v4327, %v4533
    %4535 = vmatpush1.msra.mxu0 %v4534
    %4536 = vmatprep.subr.mxu0 0.0
    %4537 = vmatpush1.msra.mxu0 0.0
    %4538 = vmatprep.subr.mxu0 0.0
    %4539 = vmatpush1.msra.mxu0 0.0
    %4540 = vmatprep.subr.mxu0 0.0
    %4541 = vmatpush1.msra.mxu0 0.0
    %4542 = vmatprep.subr.mxu0 0.0
    %4543 = vmatpush1.msra.mxu0 0.0
    %4544 = vmatprep.subr.mxu0 0.0
    %4545 = vmatpush1.msra.mxu0 0.0
    %4546 = vmatprep.subr.mxu0 0.0
    %4547 = vmatpush1.msra.mxu0 0.0
    %4548 = vmatprep.subr.mxu0 0.0
    %4549 = vmatpush1.msra.mxu0 0.0
    %4550 = vmatprep.subr.mxu0 0.0
    %4551 = vmatpush1.msra.mxu0 0.0
    %4552 = vmatprep.subr.mxu0 0.0
    %4553 = vmatpush1.msra.mxu0 0.0
    %4554 = vmatprep.subr.mxu0 0.0
    %4555 = vmatpush1.msra.mxu0 0.0
    %4556 = vmatprep.subr.mxu0 0.0
    %4557 = vmatpush1.msra.mxu0 0.0
    %4558 = vmatprep.subr.mxu0 0.0
    %4559 = vmatpush1.msra.mxu0 0.0
    %4560 = vmatprep.subr.mxu0 0.0
    %4561 = vmatpush1.msra.mxu0 0.0
    %4562 = vmatprep.subr.mxu0 0.0
    %4563 = vmatpush1.msra.mxu0 0.0
    %4564 = vmatprep.subr.mxu0 0.0
    %4565 = vmatpush1.msra.mxu0 0.0
    %4566 = vmatprep.subr.mxu0 0.0
    %4567 = vmatpush1.msra.mxu0 0.0
    %4568 = vmatprep.subr.mxu0 0.0
    %4569 = vmatpush1.msra.mxu0 0.0
    %4570 = vmatprep.subr.mxu0 0.0
    %4571 = vmatpush1.msra.mxu0 0.0
    %4572 = vmatprep.subr.mxu0 0.0
    %4573 = vmatpush1.msra.mxu0 0.0
    %4574 = vmatprep.subr.mxu0 0.0
    %4575 = vmatpush1.msra.mxu0 0.0
    %4576 = vmatprep.subr.mxu0 0.0
    %4577 = vmatpush1.msra.mxu0 0.0
    %4578 = vmatprep.subr.mxu0 0.0
    %4579 = vmatpush1.msra.mxu0 0.0
    %4580 = vmatprep.subr.mxu0 0.0
    %4581 = vmatpush1.msra.mxu0 0.0
    %4582 = vmatprep.subr.mxu0 0.0
    %4583 = vmatpush1.msra.mxu0 0.0
    %4584 = vmatprep.subr.mxu0 0.0
    %4585 = vmatpush1.msra.mxu0 0.0
    %4586 = vmatprep.subr.mxu0 0.0
    %4587 = vmatpush1.msra.mxu0 0.0
    %4588 = vmatprep.subr.mxu0 0.0
    %4589 = vmatpush1.msra.mxu0 0.0
    %4590 = vmatprep.subr.mxu0 0.0
    %4591 = vmatpush1.msra.mxu0 0.0
    %4592 = vmatprep.mubr.f32.mxu0 0.0
    %v4593 = vand.u32 %v4329, 4294901760
    %v4594 = vsub.f32 %v4329, %v4593
    %4595 = vmatmul.mubr.f32.gmra.mrb[0].mxu0 %v4594
    %v4596 = vpop.f32.mrb[0].mxu0
    %v4597 = vadd.f32 %v4511, %v4596
    %v4598 = vpop.f32.mrb[0].mxu0
    %4599 = vmatprep.mubr.f32.mxu0 0.0
    %v4600 = vand.u32 %v4332, 4294901760
    %v4601 = vsub.f32 %v4332, %v4600
    %4602 = vmatmul.mubr.f32.gmra.mrb[0].mxu0 %v4601
    %v4603 = vpop.f32.mrb[0].mxu0
    %v4604 = vadd.f32 %v4517, %v4603
    %v4605 = vpop.f32.mrb[0].mxu0
    %4606 = vdwg.mxu0
    %4607 = vmatprep.subr.mxu0 0.0
    %v4608 = vand.u32 %v4324, 4294901760
    %4609 = vmatpush1.msra.mxu0 %v4608
    %4610 = vmatprep.subr.mxu0 0.0
    %v4611 = vand.u32 %v4325, 4294901760
    %4612 = vmatpush1.msra.mxu0 %v4611
    %4613 = vmatprep.subr.mxu0 0.0
    %v4614 = vand.u32 %v4326, 4294901760
    %4615 = vmatpush1.msra.mxu0 %v4614
    %4616 = vmatprep.subr.mxu0 0.0
    %v4617 = vand.u32 %v4327, 4294901760
    %4618 = vmatpush1.msra.mxu0 %v4617
    %4619 = vmatprep.subr.mxu0 0.0
    %4620 = vmatpush1.msra.mxu0 0.0
    %4621 = vmatprep.subr.mxu0 0.0
    %4622 = vmatpush1.msra.mxu0 0.0
    %4623 = vmatprep.subr.mxu0 0.0
    %4624 = vmatpush1.msra.mxu0 0.0
    %4625 = vmatprep.subr.mxu0 0.0
    %4626 = vmatpush1.msra.mxu0 0.0
    %4627 = vmatprep.subr.mxu0 0.0
    %4628 = vmatpush1.msra.mxu0 0.0
    %4629 = vmatprep.subr.mxu0 0.0
    %4630 = vmatpush1.msra.mxu0 0.0
    %4631 = vmatprep.subr.mxu0 0.0
    %4632 = vmatpush1.msra.mxu0 0.0
    %4633 = vmatprep.subr.mxu0 0.0
    %4634 = vmatpush1.msra.mxu0 0.0
    %4635 = vmatprep.subr.mxu0 0.0
    %4636 = vmatpush1.msra.mxu0 0.0
    %4637 = vmatprep.subr.mxu0 0.0
    %4638 = vmatpush1.msra.mxu0 0.0
    %4639 = vmatprep.subr.mxu0 0.0
    %4640 = vmatpush1.msra.mxu0 0.0
    %4641 = vmatprep.subr.mxu0 0.0
    %4642 = vmatpush1.msra.mxu0 0.0
    %4643 = vmatprep.subr.mxu0 0.0
    %4644 = vmatpush1.msra.mxu0 0.0
    %4645 = vmatprep.subr.mxu0 0.0
    %4646 = vmatpush1.msra.mxu0 0.0
    %4647 = vmatprep.subr.mxu0 0.0
    %4648 = vmatpush1.msra.mxu0 0.0
    %4649 = vmatprep.subr.mxu0 0.0
    %4650 = vmatpush1.msra.mxu0 0.0
    %4651 = vmatprep.subr.mxu0 0.0
    %4652 = vmatpush1.msra.mxu0 0.0
    %4653 = vmatprep.subr.mxu0 0.0
    %4654 = vmatpush1.msra.mxu0 0.0
    %4655 = vmatprep.subr.mxu0 0.0
    %4656 = vmatpush1.msra.mxu0 0.0
    %4657 = vmatprep.subr.mxu0 0.0
    %4658 = vmatpush1.msra.mxu0 0.0
    %4659 = vmatprep.subr.mxu0 0.0
    %4660 = vmatpush1.msra.mxu0 0.0
    %4661 = vmatprep.subr.mxu0 0.0
    %4662 = vmatpush1.msra.mxu0 0.0
    %4663 = vmatprep.subr.mxu0 0.0
    %4664 = vmatpush1.msra.mxu0 0.0
    %4665 = vmatprep.subr.mxu0 0.0
    %4666 = vmatpush1.msra.mxu0 0.0
    %4667 = vmatprep.subr.mxu0 0.0
    %4668 = vmatpush1.msra.mxu0 0.0
    %4669 = vmatprep.subr.mxu0 0.0
    %4670 = vmatpush1.msra.mxu0 0.0
    %4671 = vmatprep.subr.mxu0 0.0
    %4672 = vmatpush1.msra.mxu0 0.0
    %4673 = vmatprep.subr.mxu0 0.0
    %4674 = vmatpush1.msra.mxu0 0.0
    %4675 = vmatprep.mubr.f32.mxu0 0.0
    %v4676 = vand.u32 %v4329, 4294901760
    %v4677 = vsub.f32 %v4329, %v4676
    %v4678 = vand.u32 %v4677, 4294901760
    %4679 = vmatmul.mubr.f32.gmra.mrb[0].mxu0 %v4678
    %v4680 = vpop.f32.mrb[0].mxu0
    %v4681 = vadd.f32 %v4597, %v4680
    %v4682 = vpop.f32.mrb[0].mxu0
    %4683 = vmatprep.mubr.f32.mxu0 0.0
    %v4684 = vand.u32 %v4332, 4294901760
    %v4685 = vsub.f32 %v4332, %v4684
    %v4686 = vand.u32 %v4685, 4294901760
    %4687 = vmatmul.mubr.f32.gmra.mrb[0].mxu0 %v4686
    %v4688 = vpop.f32.mrb[0].mxu0
    %v4689 = vadd.f32 %v4604, %v4688
    %v4690 = vpop.f32.mrb[0].mxu0
    %4691 = vdwg.mxu0
    %4692 = vmatprep.subr.mxu0 0.0
    %v4693 = vand.u32 %v4324, 4294901760
    %v4694 = vsub.f32 %v4324, %v4693
    %v4695 = vand.u32 %v4694, 4294901760
    %4696 = vmatpush1.msra.mxu0 %v4695
    %4697 = vmatprep.subr.mxu0 0.0
    %v4698 = vand.u32 %v4325, 4294901760
    %v4699 = vsub.f32 %v4325, %v4698
    %v4700 = vand.u32 %v4699, 4294901760
    %4701 = vmatpush1.msra.mxu0 %v4700
    %4702 = vmatprep.subr.mxu0 0.0
    %v4703 = vand.u32 %v4326, 4294901760
    %v4704 = vsub.f32 %v4326, %v4703
    %v4705 = vand.u32 %v4704, 4294901760
    %4706 = vmatpush1.msra.mxu0 %v4705
    %4707 = vmatprep.subr.mxu0 0.0
    %v4708 = vand.u32 %v4327, 4294901760
    %v4709 = vsub.f32 %v4327, %v4708
    %v4710 = vand.u32 %v4709, 4294901760
    %4711 = vmatpush1.msra.mxu0 %v4710
    %4712 = vmatprep.subr.mxu0 0.0
    %4713 = vmatpush1.msra.mxu0 0.0
    %4714 = vmatprep.subr.mxu0 0.0
    %4715 = vmatpush1.msra.mxu0 0.0
    %4716 = vmatprep.subr.mxu0 0.0
    %4717 = vmatpush1.msra.mxu0 0.0
    %4718 = vmatprep.subr.mxu0 0.0
    %4719 = vmatpush1.msra.mxu0 0.0
    %4720 = vmatprep.subr.mxu0 0.0
    %4721 = vmatpush1.msra.mxu0 0.0
    %4722 = vmatprep.subr.mxu0 0.0
    %4723 = vmatpush1.msra.mxu0 0.0
    %4724 = vmatprep.subr.mxu0 0.0
    %4725 = vmatpush1.msra.mxu0 0.0
    %4726 = vmatprep.subr.mxu0 0.0
    %4727 = vmatpush1.msra.mxu0 0.0
    %4728 = vmatprep.subr.mxu0 0.0
    %4729 = vmatpush1.msra.mxu0 0.0
    %4730 = vmatprep.subr.mxu0 0.0
    %4731 = vmatpush1.msra.mxu0 0.0
    %4732 = vmatprep.subr.mxu0 0.0
    %4733 = vmatpush1.msra.mxu0 0.0
    %4734 = vmatprep.subr.mxu0 0.0
    %4735 = vmatpush1.msra.mxu0 0.0
    %4736 = vmatprep.subr.mxu0 0.0
    %4737 = vmatpush1.msra.mxu0 0.0
    %4738 = vmatprep.subr.mxu0 0.0
    %4739 = vmatpush1.msra.mxu0 0.0
    %4740 = vmatprep.subr.mxu0 0.0
    %4741 = vmatpush1.msra.mxu0 0.0
    %4742 = vmatprep.subr.mxu0 0.0
    %4743 = vmatpush1.msra.mxu0 0.0
    %4744 = vmatprep.subr.mxu0 0.0
    %4745 = vmatpush1.msra.mxu0 0.0
    %4746 = vmatprep.subr.mxu0 0.0
    %4747 = vmatpush1.msra.mxu0 0.0
    %4748 = vmatprep.subr.mxu0 0.0
    %4749 = vmatpush1.msra.mxu0 0.0
    %4750 = vmatprep.subr.mxu0 0.0
    %4751 = vmatpush1.msra.mxu0 0.0
    %4752 = vmatprep.subr.mxu0 0.0
    %4753 = vmatpush1.msra.mxu0 0.0
    %4754 = vmatprep.subr.mxu0 0.0
    %4755 = vmatpush1.msra.mxu0 0.0
    %4756 = vmatprep.subr.mxu0 0.0
    %4757 = vmatpush1.msra.mxu0 0.0
    %4758 = vmatprep.subr.mxu0 0.0
    %4759 = vmatpush1.msra.mxu0 0.0
    %4760 = vmatprep.subr.mxu0 0.0
    %4761 = vmatpush1.msra.mxu0 0.0
    %4762 = vmatprep.subr.mxu0 0.0
    %4763 = vmatpush1.msra.mxu0 0.0
    %4764 = vmatprep.subr.mxu0 0.0
    %4765 = vmatpush1.msra.mxu0 0.0
    %4766 = vmatprep.subr.mxu0 0.0
    %4767 = vmatpush1.msra.mxu0 0.0
    %4768 = vmatprep.mubr.f32.mxu0 0.0
    %v4769 = vand.u32 %v4329, 4294901760
    %4770 = vmatmul.mubr.f32.gmra.mrb[0].mxu0 %v4769
    %v4771 = vpop.f32.mrb[0].mxu0
    %v4772 = vadd.f32 %v4681, %v4771
    %v4773 = vpop.f32.mrb[0].mxu0
    %4774 = vmatprep.mubr.f32.mxu0 0.0
    %v4775 = vand.u32 %v4332, 4294901760
    %4776 = vmatmul.mubr.f32.gmra.mrb[0].mxu0 %v4775
    %v4777 = vpop.f32.mrb[0].mxu0
    %v4778 = vadd.f32 %v4689, %v4777
    %v4779 = vpop.f32.mrb[0].mxu0
    %4780 = vdwg.mxu0
    %4781 = vmatprep.subr.mxu0 0.0
    %v4782 = vand.u32 %v4324, 4294901760
    %4783 = vmatpush1.msra.mxu0 %v4782
    %4784 = vmatprep.subr.mxu0 0.0
    %v4785 = vand.u32 %v4325, 4294901760
    %4786 = vmatpush1.msra.mxu0 %v4785
    %4787 = vmatprep.subr.mxu0 0.0
    %v4788 = vand.u32 %v4326, 4294901760
    %4789 = vmatpush1.msra.mxu0 %v4788
    %4790 = vmatprep.subr.mxu0 0.0
    %v4791 = vand.u32 %v4327, 4294901760
    %4792 = vmatpush1.msra.mxu0 %v4791
    %4793 = vmatprep.subr.mxu0 0.0
    %4794 = vmatpush1.msra.mxu0 0.0
    %4795 = vmatprep.subr.mxu0 0.0
    %4796 = vmatpush1.msra.mxu0 0.0
    %4797 = vmatprep.subr.mxu0 0.0
    %4798 = vmatpush1.msra.mxu0 0.0
    %4799 = vmatprep.subr.mxu0 0.0
    %4800 = vmatpush1.msra.mxu0 0.0
    %4801 = vmatprep.subr.mxu0 0.0
    %4802 = vmatpush1.msra.mxu0 0.0
    %4803 = vmatprep.subr.mxu0 0.0
    %4804 = vmatpush1.msra.mxu0 0.0
    %4805 = vmatprep.subr.mxu0 0.0
    %4806 = vmatpush1.msra.mxu0 0.0
    %4807 = vmatprep.subr.mxu0 0.0
    %4808 = vmatpush1.msra.mxu0 0.0
    %4809 = vmatprep.subr.mxu0 0.0
    %4810 = vmatpush1.msra.mxu0 0.0
    %4811 = vmatprep.subr.mxu0 0.0
    %4812 = vmatpush1.msra.mxu0 0.0
    %4813 = vmatprep.subr.mxu0 0.0
    %4814 = vmatpush1.msra.mxu0 0.0
    %4815 = vmatprep.subr.mxu0 0.0
    %4816 = vmatpush1.msra.mxu0 0.0
    %4817 = vmatprep.subr.mxu0 0.0
    %4818 = vmatpush1.msra.mxu0 0.0
    %4819 = vmatprep.subr.mxu0 0.0
    %4820 = vmatpush1.msra.mxu0 0.0
    %4821 = vmatprep.subr.mxu0 0.0
    %4822 = vmatpush1.msra.mxu0 0.0
    %4823 = vmatprep.subr.mxu0 0.0
    %4824 = vmatpush1.msra.mxu0 0.0
    %4825 = vmatprep.subr.mxu0 0.0
    %4826 = vmatpush1.msra.mxu0 0.0
    %4827 = vmatprep.subr.mxu0 0.0
    %4828 = vmatpush1.msra.mxu0 0.0
    %4829 = vmatprep.subr.mxu0 0.0
    %4830 = vmatpush1.msra.mxu0 0.0
    %4831 = vmatprep.subr.mxu0 0.0
    %4832 = vmatpush1.msra.mxu0 0.0
    %4833 = vmatprep.subr.mxu0 0.0
    %4834 = vmatpush1.msra.mxu0 0.0
    %4835 = vmatprep.subr.mxu0 0.0
    %4836 = vmatpush1.msra.mxu0 0.0
    %4837 = vmatprep.subr.mxu0 0.0
    %4838 = vmatpush1.msra.mxu0 0.0
    %4839 = vmatprep.subr.mxu0 0.0
    %4840 = vmatpush1.msra.mxu0 0.0
    %4841 = vmatprep.subr.mxu0 0.0
    %4842 = vmatpush1.msra.mxu0 0.0
    %4843 = vmatprep.subr.mxu0 0.0
    %4844 = vmatpush1.msra.mxu0 0.0
    %4845 = vmatprep.subr.mxu0 0.0
    %4846 = vmatpush1.msra.mxu0 0.0
    %4847 = vmatprep.subr.mxu0 0.0
    %4848 = vmatpush1.msra.mxu0 0.0
    %4849 = vmatprep.mubr.f32.mxu0 0.0
    %v4850 = vand.u32 %v4329, 4294901760
    %4851 = vmatmul.mubr.f32.gmra.mrb[0].mxu0 %v4850
    %v4852 = vpop.f32.mrb[0].mxu0
    %v4853 = vadd.f32 %v4772, %v4852
    %v4854 = vpop.f32.mrb[0].mxu0
    %4855 = vmatprep.mubr.f32.mxu0 0.0
    %v4856 = vand.u32 %v4332, 4294901760
    %4857 = vmatmul.mubr.f32.gmra.mrb[0].mxu0 %v4856
    %v4858 = vpop.f32.mrb[0].mxu0
    %v4859 = vadd.f32 %v4778, %v4858
    %v4860 = vpop.f32.mrb[0].mxu0
    %4861 = vdwg.mxu0
    %v4862 = vadd.f32 %v55, %v4853
    %v4863 = vadd.f32 %v56, %v4859
    %v4864 = vlaneseq
    %v4865 = vshrl.u32 %v4864, 7
    %v4866 = vsub.s32 0, %v4865
    %v4867 = vrot.slane %v61, %v4866
    %v4868 = vadd.f32 %v4862, %v4867
    %v4869 = vadd.f32 %v4863, %v4867
    %v4870 = vsel %vm64, %v4868, 0.0
    %4871 = vadd.xlane.f32.xlu0 %v4870
    %v4872 = vpop.xlane.xlu0 %4871
    %v4873 = vsel %vm64, %v4869, 0.0
    %4874 = vadd.xlane.f32.xlu0 %v4873
    %v4875 = vpop.xlane.xlu0 %4874
    %v4876 = vmul.f32 %v4872, %v71
    %v4877 = vmul.f32 %v4875, %v71
    %v4878 = vsub.f32 %v4868, %v4876
    %v4879 = vsub.f32 %v4869, %v4877
    %v4880 = vmul.f32 %v4878, %v4878
    %v4881 = vmul.f32 %v4879, %v4879
    %v4882 = vsel %vm64, %v4880, 0.0
    %4883 = vadd.xlane.f32.xlu0 %v4882
    %v4884 = vpop.xlane.xlu0 %4883
    %v4885 = vsel %vm64, %v4881, 0.0
    %4886 = vadd.xlane.f32.xlu0 %v4885
    %v4887 = vpop.xlane.xlu0 %4886
    %v4888 = vmul.f32 %v4884, %v71
    %v4889 = vmul.f32 %v4887, %v71
    %v4890 = vadd.f32 %v4888, 1e-05
    %v4891 = vadd.f32 %v4889, 1e-05
    %v4892 = vrsqrt.pop %v4890
    %v4893 = vrsqrt.pop %v4891
    %v4894 = vmul.f32 %v4878, %v4892
    %v4895 = vmul.f32 %v4879, %v4893
    %v4896 = vlaneseq
    %v4897 = vshrl.u32 %v4896, 7
    %v4898 = vsub.s32 0, %v4897
    %v4899 = vrot.slane %v59, %v4898
    %v4900 = vmul.f32 %v4894, %v4899
    %v4901 = vmul.f32 %v4895, %v4899
    %v4902 = vlaneseq
    %v4903 = vshrl.u32 %v4902, 7
    %v4904 = vsub.s32 0, %v4903
    %v4905 = vrot.slane %v60, %v4904
    %v4906 = vadd.f32 %v4900, %v4905
    %v4907 = vadd.f32 %v4901, %v4905
    %v4908 = vld [vmem:[%s3] sm:$0xff]
    %v4909 = vld [vmem:[%s3 + $0x8] sm:$0xff]
    %v4910 = vld [vmem:[%s3 + $0x10] sm:$0xff]
    %v4911 = vld [vmem:[%s3 + $0x18] sm:$0xff]
    %v4912 = vlaneseq
    %v4913 = vshrl.u32 %v4912, 7
    %v4914 = vsub.s32 0, %v4913
    %v4915 = vrot.slane %v63, %v4914
    %v4917 = vsel %vm64, %v4906, 0
    %v4920 = vsel %vm64, %v4907, 0
    %4922 = vmatprep.subr.mxu0 0.0
    %v4923 = vand.u32 %v4908, 4294901760
    %4924 = vmatpush1.msra.mxu0 %v4923
    %4925 = vmatprep.subr.mxu0 0.0
    %v4926 = vand.u32 %v4909, 4294901760
    %4927 = vmatpush1.msra.mxu0 %v4926
    %4928 = vmatprep.subr.mxu0 0.0
    %v4929 = vand.u32 %v4910, 4294901760
    %4930 = vmatpush1.msra.mxu0 %v4929
    %4931 = vmatprep.subr.mxu0 0.0
    %v4932 = vand.u32 %v4911, 4294901760
    %4933 = vmatpush1.msra.mxu0 %v4932
    %4934 = vmatprep.subr.mxu0 0.0
    %4935 = vmatpush1.msra.mxu0 0.0
    %4936 = vmatprep.subr.mxu0 0.0
    %4937 = vmatpush1.msra.mxu0 0.0
    %4938 = vmatprep.subr.mxu0 0.0
    %4939 = vmatpush1.msra.mxu0 0.0
    %4940 = vmatprep.subr.mxu0 0.0
    %4941 = vmatpush1.msra.mxu0 0.0
    %4942 = vmatprep.subr.mxu0 0.0
    %4943 = vmatpush1.msra.mxu0 0.0
    %4944 = vmatprep.subr.mxu0 0.0
    %4945 = vmatpush1.msra.mxu0 0.0
    %4946 = vmatprep.subr.mxu0 0.0
    %4947 = vmatpush1.msra.mxu0 0.0
    %4948 = vmatprep.subr.mxu0 0.0
    %4949 = vmatpush1.msra.mxu0 0.0
    %4950 = vmatprep.subr.mxu0 0.0
    %4951 = vmatpush1.msra.mxu0 0.0
    %4952 = vmatprep.subr.mxu0 0.0
    %4953 = vmatpush1.msra.mxu0 0.0
    %4954 = vmatprep.subr.mxu0 0.0
    %4955 = vmatpush1.msra.mxu0 0.0
    %4956 = vmatprep.subr.mxu0 0.0
    %4957 = vmatpush1.msra.mxu0 0.0
    %4958 = vmatprep.subr.mxu0 0.0
    %4959 = vmatpush1.msra.mxu0 0.0
    %4960 = vmatprep.subr.mxu0 0.0
    %4961 = vmatpush1.msra.mxu0 0.0
    %4962 = vmatprep.subr.mxu0 0.0
    %4963 = vmatpush1.msra.mxu0 0.0
    %4964 = vmatprep.subr.mxu0 0.0
    %4965 = vmatpush1.msra.mxu0 0.0
    %4966 = vmatprep.subr.mxu0 0.0
    %4967 = vmatpush1.msra.mxu0 0.0
    %4968 = vmatprep.subr.mxu0 0.0
    %4969 = vmatpush1.msra.mxu0 0.0
    %4970 = vmatprep.subr.mxu0 0.0
    %4971 = vmatpush1.msra.mxu0 0.0
    %4972 = vmatprep.subr.mxu0 0.0
    %4973 = vmatpush1.msra.mxu0 0.0
    %4974 = vmatprep.subr.mxu0 0.0
    %4975 = vmatpush1.msra.mxu0 0.0
    %4976 = vmatprep.subr.mxu0 0.0
    %4977 = vmatpush1.msra.mxu0 0.0
    %4978 = vmatprep.subr.mxu0 0.0
    %4979 = vmatpush1.msra.mxu0 0.0
    %4980 = vmatprep.subr.mxu0 0.0
    %4981 = vmatpush1.msra.mxu0 0.0
    %4982 = vmatprep.subr.mxu0 0.0
    %4983 = vmatpush1.msra.mxu0 0.0
    %4984 = vmatprep.subr.mxu0 0.0
    %4985 = vmatpush1.msra.mxu0 0.0
    %4986 = vmatprep.subr.mxu0 0.0
    %4987 = vmatpush1.msra.mxu0 0.0
    %4988 = vmatprep.subr.mxu0 0.0
    %4989 = vmatpush1.msra.mxu0 0.0
    %4990 = vmatprep.mubr.f32.mxu0 0.0
    %v4991 = vand.u32 %v4917, 4294901760
    %v4992 = vsub.f32 %v4917, %v4991
    %v4993 = vand.u32 %v4992, 4294901760
    %v4994 = vsub.f32 %v4992, %v4993
    %v4995 = vand.u32 %v4994, 4294901760
    %4996 = vmatmul.mubr.f32.gmra.mrb[0].mxu0 %v4995
    %v4997 = vpop.f32.mrb[0].mxu0
    %v4998 = vadd.f32 %v4915, %v4997
    %v4999 = vpop.f32.mrb[0].mxu0
    %5000 = vmatprep.mubr.f32.mxu0 0.0
    %v5001 = vand.u32 %v4920, 4294901760
    %v5002 = vsub.f32 %v4920, %v5001
    %v5003 = vand.u32 %v5002, 4294901760
    %v5004 = vsub.f32 %v5002, %v5003
    %v5005 = vand.u32 %v5004, 4294901760
    %5006 = vmatmul.mubr.f32.gmra.mrb[0].mxu0 %v5005
    %v5007 = vpop.f32.mrb[0].mxu0
    %v5008 = vadd.f32 %v4915, %v5007
    %v5009 = vpop.f32.mrb[0].mxu0
    %5010 = vdwg.mxu0
    %5011 = vmatprep.subr.mxu0 0.0
    %v5012 = vand.u32 %v4908, 4294901760
    %v5013 = vsub.f32 %v4908, %v5012
    %v5014 = vand.u32 %v5013, 4294901760
    %v5015 = vsub.f32 %v5013, %v5014
    %v5016 = vand.u32 %v5015, 4294901760
    %5017 = vmatpush1.msra.mxu0 %v5016
    %5018 = vmatprep.subr.mxu0 0.0
    %v5019 = vand.u32 %v4909, 4294901760
    %v5020 = vsub.f32 %v4909, %v5019
    %v5021 = vand.u32 %v5020, 4294901760
    %v5022 = vsub.f32 %v5020, %v5021
    %v5023 = vand.u32 %v5022, 4294901760
    %5024 = vmatpush1.msra.mxu0 %v5023
    %5025 = vmatprep.subr.mxu0 0.0
    %v5026 = vand.u32 %v4910, 4294901760
    %v5027 = vsub.f32 %v4910, %v5026
    %v5028 = vand.u32 %v5027, 4294901760
    %v5029 = vsub.f32 %v5027, %v5028
    %v5030 = vand.u32 %v5029, 4294901760
    %5031 = vmatpush1.msra.mxu0 %v5030
    %5032 = vmatprep.subr.mxu0 0.0
    %v5033 = vand.u32 %v4911, 4294901760
    %v5034 = vsub.f32 %v4911, %v5033
    %v5035 = vand.u32 %v5034, 4294901760
    %v5036 = vsub.f32 %v5034, %v5035
    %v5037 = vand.u32 %v5036, 4294901760
    %5038 = vmatpush1.msra.mxu0 %v5037
    %5039 = vmatprep.subr.mxu0 0.0
    %5040 = vmatpush1.msra.mxu0 0.0
    %5041 = vmatprep.subr.mxu0 0.0
    %5042 = vmatpush1.msra.mxu0 0.0
    %5043 = vmatprep.subr.mxu0 0.0
    %5044 = vmatpush1.msra.mxu0 0.0
    %5045 = vmatprep.subr.mxu0 0.0
    %5046 = vmatpush1.msra.mxu0 0.0
    %5047 = vmatprep.subr.mxu0 0.0
    %5048 = vmatpush1.msra.mxu0 0.0
    %5049 = vmatprep.subr.mxu0 0.0
    %5050 = vmatpush1.msra.mxu0 0.0
    %5051 = vmatprep.subr.mxu0 0.0
    %5052 = vmatpush1.msra.mxu0 0.0
    %5053 = vmatprep.subr.mxu0 0.0
    %5054 = vmatpush1.msra.mxu0 0.0
    %5055 = vmatprep.subr.mxu0 0.0
    %5056 = vmatpush1.msra.mxu0 0.0
    %5057 = vmatprep.subr.mxu0 0.0
    %5058 = vmatpush1.msra.mxu0 0.0
    %5059 = vmatprep.subr.mxu0 0.0
    %5060 = vmatpush1.msra.mxu0 0.0
    %5061 = vmatprep.subr.mxu0 0.0
    %5062 = vmatpush1.msra.mxu0 0.0
    %5063 = vmatprep.subr.mxu0 0.0
    %5064 = vmatpush1.msra.mxu0 0.0
    %5065 = vmatprep.subr.mxu0 0.0
    %5066 = vmatpush1.msra.mxu0 0.0
    %5067 = vmatprep.subr.mxu0 0.0
    %5068 = vmatpush1.msra.mxu0 0.0
    %5069 = vmatprep.subr.mxu0 0.0
    %5070 = vmatpush1.msra.mxu0 0.0
    %5071 = vmatprep.subr.mxu0 0.0
    %5072 = vmatpush1.msra.mxu0 0.0
    %5073 = vmatprep.subr.mxu0 0.0
    %5074 = vmatpush1.msra.mxu0 0.0
    %5075 = vmatprep.subr.mxu0 0.0
    %5076 = vmatpush1.msra.mxu0 0.0
    %5077 = vmatprep.subr.mxu0 0.0
    %5078 = vmatpush1.msra.mxu0 0.0
    %5079 = vmatprep.subr.mxu0 0.0
    %5080 = vmatpush1.msra.mxu0 0.0
    %5081 = vmatprep.subr.mxu0 0.0
    %5082 = vmatpush1.msra.mxu0 0.0
    %5083 = vmatprep.subr.mxu0 0.0
    %5084 = vmatpush1.msra.mxu0 0.0
    %5085 = vmatprep.subr.mxu0 0.0
    %5086 = vmatpush1.msra.mxu0 0.0
    %5087 = vmatprep.subr.mxu0 0.0
    %5088 = vmatpush1.msra.mxu0 0.0
    %5089 = vmatprep.subr.mxu0 0.0
    %5090 = vmatpush1.msra.mxu0 0.0
    %5091 = vmatprep.subr.mxu0 0.0
    %5092 = vmatpush1.msra.mxu0 0.0
    %5093 = vmatprep.subr.mxu0 0.0
    %5094 = vmatpush1.msra.mxu0 0.0
    %5095 = vmatprep.mubr.f32.mxu0 0.0
    %v5096 = vand.u32 %v4917, 4294901760
    %5097 = vmatmul.mubr.f32.gmra.mrb[0].mxu0 %v5096
    %v5098 = vpop.f32.mrb[0].mxu0
    %v5099 = vadd.f32 %v4998, %v5098
    %v5100 = vpop.f32.mrb[0].mxu0
    %5101 = vmatprep.mubr.f32.mxu0 0.0
    %v5102 = vand.u32 %v4920, 4294901760
    %5103 = vmatmul.mubr.f32.gmra.mrb[0].mxu0 %v5102
    %v5104 = vpop.f32.mrb[0].mxu0
    %v5105 = vadd.f32 %v5008, %v5104
    %v5106 = vpop.f32.mrb[0].mxu0
    %5107 = vdwg.mxu0
    %5108 = vmatprep.subr.mxu0 0.0
    %v5109 = vand.u32 %v4908, 4294901760
    %v5110 = vsub.f32 %v4908, %v5109
    %5111 = vmatpush1.msra.mxu0 %v5110
    %5112 = vmatprep.subr.mxu0 0.0
    %v5113 = vand.u32 %v4909, 4294901760
    %v5114 = vsub.f32 %v4909, %v5113
    %5115 = vmatpush1.msra.mxu0 %v5114
    %5116 = vmatprep.subr.mxu0 0.0
    %v5117 = vand.u32 %v4910, 4294901760
    %v5118 = vsub.f32 %v4910, %v5117
    %5119 = vmatpush1.msra.mxu0 %v5118
    %5120 = vmatprep.subr.mxu0 0.0
    %v5121 = vand.u32 %v4911, 4294901760
    %v5122 = vsub.f32 %v4911, %v5121
    %5123 = vmatpush1.msra.mxu0 %v5122
    %5124 = vmatprep.subr.mxu0 0.0
    %5125 = vmatpush1.msra.mxu0 0.0
    %5126 = vmatprep.subr.mxu0 0.0
    %5127 = vmatpush1.msra.mxu0 0.0
    %5128 = vmatprep.subr.mxu0 0.0
    %5129 = vmatpush1.msra.mxu0 0.0
    %5130 = vmatprep.subr.mxu0 0.0
    %5131 = vmatpush1.msra.mxu0 0.0
    %5132 = vmatprep.subr.mxu0 0.0
    %5133 = vmatpush1.msra.mxu0 0.0
    %5134 = vmatprep.subr.mxu0 0.0
    %5135 = vmatpush1.msra.mxu0 0.0
    %5136 = vmatprep.subr.mxu0 0.0
    %5137 = vmatpush1.msra.mxu0 0.0
    %5138 = vmatprep.subr.mxu0 0.0
    %5139 = vmatpush1.msra.mxu0 0.0
    %5140 = vmatprep.subr.mxu0 0.0
    %5141 = vmatpush1.msra.mxu0 0.0
    %5142 = vmatprep.subr.mxu0 0.0
    %5143 = vmatpush1.msra.mxu0 0.0
    %5144 = vmatprep.subr.mxu0 0.0
    %5145 = vmatpush1.msra.mxu0 0.0
    %5146 = vmatprep.subr.mxu0 0.0
    %5147 = vmatpush1.msra.mxu0 0.0
    %5148 = vmatprep.subr.mxu0 0.0
    %5149 = vmatpush1.msra.mxu0 0.0
    %5150 = vmatprep.subr.mxu0 0.0
    %5151 = vmatpush1.msra.mxu0 0.0
    %5152 = vmatprep.subr.mxu0 0.0
    %5153 = vmatpush1.msra.mxu0 0.0
    %5154 = vmatprep.subr.mxu0 0.0
    %5155 = vmatpush1.msra.mxu0 0.0
    %5156 = vmatprep.subr.mxu0 0.0
    %5157 = vmatpush1.msra.mxu0 0.0
    %5158 = vmatprep.subr.mxu0 0.0
    %5159 = vmatpush1.msra.mxu0 0.0
    %5160 = vmatprep.subr.mxu0 0.0
    %5161 = vmatpush1.msra.mxu0 0.0
    %5162 = vmatprep.subr.mxu0 0.0
    %5163 = vmatpush1.msra.mxu0 0.0
    %5164 = vmatprep.subr.mxu0 0.0
    %5165 = vmatpush1.msra.mxu0 0.0
    %5166 = vmatprep.subr.mxu0 0.0
    %5167 = vmatpush1.msra.mxu0 0.0
    %5168 = vmatprep.subr.mxu0 0.0
    %5169 = vmatpush1.msra.mxu0 0.0
    %5170 = vmatprep.subr.mxu0 0.0
    %5171 = vmatpush1.msra.mxu0 0.0
    %5172 = vmatprep.subr.mxu0 0.0
    %5173 = vmatpush1.msra.mxu0 0.0
    %5174 = vmatprep.subr.mxu0 0.0
    %5175 = vmatpush1.msra.mxu0 0.0
    %5176 = vmatprep.subr.mxu0 0.0
    %5177 = vmatpush1.msra.mxu0 0.0
    %5178 = vmatprep.subr.mxu0 0.0
    %5179 = vmatpush1.msra.mxu0 0.0
    %5180 = vmatprep.mubr.f32.mxu0 0.0
    %v5181 = vand.u32 %v4917, 4294901760
    %v5182 = vsub.f32 %v4917, %v5181
    %5183 = vmatmul.mubr.f32.gmra.mrb[0].mxu0 %v5182
    %v5184 = vpop.f32.mrb[0].mxu0
    %v5185 = vadd.f32 %v5099, %v5184
    %v5186 = vpop.f32.mrb[0].mxu0
    %5187 = vmatprep.mubr.f32.mxu0 0.0
    %v5188 = vand.u32 %v4920, 4294901760
    %v5189 = vsub.f32 %v4920, %v5188
    %5190 = vmatmul.mubr.f32.gmra.mrb[0].mxu0 %v5189
    %v5191 = vpop.f32.mrb[0].mxu0
    %v5192 = vadd.f32 %v5105, %v5191
    %v5193 = vpop.f32.mrb[0].mxu0
    %5194 = vdwg.mxu0
    %5195 = vmatprep.subr.mxu0 0.0
    %v5196 = vand.u32 %v4908, 4294901760
    %5197 = vmatpush1.msra.mxu0 %v5196
    %5198 = vmatprep.subr.mxu0 0.0
    %v5199 = vand.u32 %v4909, 4294901760
    %5200 = vmatpush1.msra.mxu0 %v5199
    %5201 = vmatprep.subr.mxu0 0.0
    %v5202 = vand.u32 %v4910, 4294901760
    %5203 = vmatpush1.msra.mxu0 %v5202
    %5204 = vmatprep.subr.mxu0 0.0
    %v5205 = vand.u32 %v4911, 4294901760
    %5206 = vmatpush1.msra.mxu0 %v5205
    %5207 = vmatprep.subr.mxu0 0.0
    %5208 = vmatpush1.msra.mxu0 0.0
    %5209 = vmatprep.subr.mxu0 0.0
    %5210 = vmatpush1.msra.mxu0 0.0
    %5211 = vmatprep.subr.mxu0 0.0
    %5212 = vmatpush1.msra.mxu0 0.0
    %5213 = vmatprep.subr.mxu0 0.0
    %5214 = vmatpush1.msra.mxu0 0.0
    %5215 = vmatprep.subr.mxu0 0.0
    %5216 = vmatpush1.msra.mxu0 0.0
    %5217 = vmatprep.subr.mxu0 0.0
    %5218 = vmatpush1.msra.mxu0 0.0
    %5219 = vmatprep.subr.mxu0 0.0
    %5220 = vmatpush1.msra.mxu0 0.0
    %5221 = vmatprep.subr.mxu0 0.0
    %5222 = vmatpush1.msra.mxu0 0.0
    %5223 = vmatprep.subr.mxu0 0.0
    %5224 = vmatpush1.msra.mxu0 0.0
    %5225 = vmatprep.subr.mxu0 0.0
    %5226 = vmatpush1.msra.mxu0 0.0
    %5227 = vmatprep.subr.mxu0 0.0
    %5228 = vmatpush1.msra.mxu0 0.0
    %5229 = vmatprep.subr.mxu0 0.0
    %5230 = vmatpush1.msra.mxu0 0.0
    %5231 = vmatprep.subr.mxu0 0.0
    %5232 = vmatpush1.msra.mxu0 0.0
    %5233 = vmatprep.subr.mxu0 0.0
    %5234 = vmatpush1.msra.mxu0 0.0
    %5235 = vmatprep.subr.mxu0 0.0
    %5236 = vmatpush1.msra.mxu0 0.0
    %5237 = vmatprep.subr.mxu0 0.0
    %5238 = vmatpush1.msra.mxu0 0.0
    %5239 = vmatprep.subr.mxu0 0.0
    %5240 = vmatpush1.msra.mxu0 0.0
    %5241 = vmatprep.subr.mxu0 0.0
    %5242 = vmatpush1.msra.mxu0 0.0
    %5243 = vmatprep.subr.mxu0 0.0
    %5244 = vmatpush1.msra.mxu0 0.0
    %5245 = vmatprep.subr.mxu0 0.0
    %5246 = vmatpush1.msra.mxu0 0.0
    %5247 = vmatprep.subr.mxu0 0.0
    %5248 = vmatpush1.msra.mxu0 0.0
    %5249 = vmatprep.subr.mxu0 0.0
    %5250 = vmatpush1.msra.mxu0 0.0
    %5251 = vmatprep.subr.mxu0 0.0
    %5252 = vmatpush1.msra.mxu0 0.0
    %5253 = vmatprep.subr.mxu0 0.0
    %5254 = vmatpush1.msra.mxu0 0.0
    %5255 = vmatprep.subr.mxu0 0.0
    %5256 = vmatpush1.msra.mxu0 0.0
    %5257 = vmatprep.subr.mxu0 0.0
    %5258 = vmatpush1.msra.mxu0 0.0
    %5259 = vmatprep.subr.mxu0 0.0
    %5260 = vmatpush1.msra.mxu0 0.0
    %5261 = vmatprep.subr.mxu0 0.0
    %5262 = vmatpush1.msra.mxu0 0.0
    %5263 = vmatprep.mubr.f32.mxu0 0.0
    %v5264 = vand.u32 %v4917, 4294901760
    %v5265 = vsub.f32 %v4917, %v5264
    %v5266 = vand.u32 %v5265, 4294901760
    %5267 = vmatmul.mubr.f32.gmra.mrb[0].mxu0 %v5266
    %v5268 = vpop.f32.mrb[0].mxu0
    %v5269 = vadd.f32 %v5185, %v5268
    %v5270 = vpop.f32.mrb[0].mxu0
    %5271 = vmatprep.mubr.f32.mxu0 0.0
    %v5272 = vand.u32 %v4920, 4294901760
    %v5273 = vsub.f32 %v4920, %v5272
    %v5274 = vand.u32 %v5273, 4294901760
    %5275 = vmatmul.mubr.f32.gmra.mrb[0].mxu0 %v5274
    %v5276 = vpop.f32.mrb[0].mxu0
    %v5277 = vadd.f32 %v5192, %v5276
    %v5278 = vpop.f32.mrb[0].mxu0
    %5279 = vdwg.mxu0
    %5280 = vmatprep.subr.mxu0 0.0
    %v5281 = vand.u32 %v4908, 4294901760
    %v5282 = vsub.f32 %v4908, %v5281
    %v5283 = vand.u32 %v5282, 4294901760
    %5284 = vmatpush1.msra.mxu0 %v5283
    %5285 = vmatprep.subr.mxu0 0.0
    %v5286 = vand.u32 %v4909, 4294901760
    %v5287 = vsub.f32 %v4909, %v5286
    %v5288 = vand.u32 %v5287, 4294901760
    %5289 = vmatpush1.msra.mxu0 %v5288
    %5290 = vmatprep.subr.mxu0 0.0
    %v5291 = vand.u32 %v4910, 4294901760
    %v5292 = vsub.f32 %v4910, %v5291
    %v5293 = vand.u32 %v5292, 4294901760
    %5294 = vmatpush1.msra.mxu0 %v5293
    %5295 = vmatprep.subr.mxu0 0.0
    %v5296 = vand.u32 %v4911, 4294901760
    %v5297 = vsub.f32 %v4911, %v5296
    %v5298 = vand.u32 %v5297, 4294901760
    %5299 = vmatpush1.msra.mxu0 %v5298
    %5300 = vmatprep.subr.mxu0 0.0
    %5301 = vmatpush1.msra.mxu0 0.0
    %5302 = vmatprep.subr.mxu0 0.0
    %5303 = vmatpush1.msra.mxu0 0.0
    %5304 = vmatprep.subr.mxu0 0.0
    %5305 = vmatpush1.msra.mxu0 0.0
    %5306 = vmatprep.subr.mxu0 0.0
    %5307 = vmatpush1.msra.mxu0 0.0
    %5308 = vmatprep.subr.mxu0 0.0
    %5309 = vmatpush1.msra.mxu0 0.0
    %5310 = vmatprep.subr.mxu0 0.0
    %5311 = vmatpush1.msra.mxu0 0.0
    %5312 = vmatprep.subr.mxu0 0.0
    %5313 = vmatpush1.msra.mxu0 0.0
    %5314 = vmatprep.subr.mxu0 0.0
    %5315 = vmatpush1.msra.mxu0 0.0
    %5316 = vmatprep.subr.mxu0 0.0
    %5317 = vmatpush1.msra.mxu0 0.0
    %5318 = vmatprep.subr.mxu0 0.0
    %5319 = vmatpush1.msra.mxu0 0.0
    %5320 = vmatprep.subr.mxu0 0.0
    %5321 = vmatpush1.msra.mxu0 0.0
    %5322 = vmatprep.subr.mxu0 0.0
    %5323 = vmatpush1.msra.mxu0 0.0
    %5324 = vmatprep.subr.mxu0 0.0
    %5325 = vmatpush1.msra.mxu0 0.0
    %5326 = vmatprep.subr.mxu0 0.0
    %5327 = vmatpush1.msra.mxu0 0.0
    %5328 = vmatprep.subr.mxu0 0.0
    %5329 = vmatpush1.msra.mxu0 0.0
    %5330 = vmatprep.subr.mxu0 0.0
    %5331 = vmatpush1.msra.mxu0 0.0
    %5332 = vmatprep.subr.mxu0 0.0
    %5333 = vmatpush1.msra.mxu0 0.0
    %5334 = vmatprep.subr.mxu0 0.0
    %5335 = vmatpush1.msra.mxu0 0.0
    %5336 = vmatprep.subr.mxu0 0.0
    %5337 = vmatpush1.msra.mxu0 0.0
    %5338 = vmatprep.subr.mxu0 0.0
    %5339 = vmatpush1.msra.mxu0 0.0
    %5340 = vmatprep.subr.mxu0 0.0
    %5341 = vmatpush1.msra.mxu0 0.0
    %5342 = vmatprep.subr.mxu0 0.0
    %5343 = vmatpush1.msra.mxu0 0.0
    %5344 = vmatprep.subr.mxu0 0.0
    %5345 = vmatpush1.msra.mxu0 0.0
    %5346 = vmatprep.subr.mxu0 0.0
    %5347 = vmatpush1.msra.mxu0 0.0
    %5348 = vmatprep.subr.mxu0 0.0
    %5349 = vmatpush1.msra.mxu0 0.0
    %5350 = vmatprep.subr.mxu0 0.0
    %5351 = vmatpush1.msra.mxu0 0.0
    %5352 = vmatprep.subr.mxu0 0.0
    %5353 = vmatpush1.msra.mxu0 0.0
    %5354 = vmatprep.subr.mxu0 0.0
    %5355 = vmatpush1.msra.mxu0 0.0
    %5356 = vmatprep.mubr.f32.mxu0 0.0
    %v5357 = vand.u32 %v4917, 4294901760
    %5358 = vmatmul.mubr.f32.gmra.mrb[0].mxu0 %v5357
    %v5359 = vpop.f32.mrb[0].mxu0
    %v5360 = vadd.f32 %v5269, %v5359
    %v5361 = vpop.f32.mrb[0].mxu0
    %5362 = vmatprep.mubr.f32.mxu0 0.0
    %v5363 = vand.u32 %v4920, 4294901760
    %5364 = vmatmul.mubr.f32.gmra.mrb[0].mxu0 %v5363
    %v5365 = vpop.f32.mrb[0].mxu0
    %v5366 = vadd.f32 %v5277, %v5365
    %v5367 = vpop.f32.mrb[0].mxu0
    %5368 = vdwg.mxu0
    %5369 = vmatprep.subr.mxu0 0.0
    %v5370 = vand.u32 %v4908, 4294901760
    %5371 = vmatpush1.msra.mxu0 %v5370
    %5372 = vmatprep.subr.mxu0 0.0
    %v5373 = vand.u32 %v4909, 4294901760
    %5374 = vmatpush1.msra.mxu0 %v5373
    %5375 = vmatprep.subr.mxu0 0.0
    %v5376 = vand.u32 %v4910, 4294901760
    %5377 = vmatpush1.msra.mxu0 %v5376
    %5378 = vmatprep.subr.mxu0 0.0
    %v5379 = vand.u32 %v4911, 4294901760
    %5380 = vmatpush1.msra.mxu0 %v5379
    %5381 = vmatprep.subr.mxu0 0.0
    %5382 = vmatpush1.msra.mxu0 0.0
    %5383 = vmatprep.subr.mxu0 0.0
    %5384 = vmatpush1.msra.mxu0 0.0
    %5385 = vmatprep.subr.mxu0 0.0
    %5386 = vmatpush1.msra.mxu0 0.0
    %5387 = vmatprep.subr.mxu0 0.0
    %5388 = vmatpush1.msra.mxu0 0.0
    %5389 = vmatprep.subr.mxu0 0.0
    %5390 = vmatpush1.msra.mxu0 0.0
    %5391 = vmatprep.subr.mxu0 0.0
    %5392 = vmatpush1.msra.mxu0 0.0
    %5393 = vmatprep.subr.mxu0 0.0
    %5394 = vmatpush1.msra.mxu0 0.0
    %5395 = vmatprep.subr.mxu0 0.0
    %5396 = vmatpush1.msra.mxu0 0.0
    %5397 = vmatprep.subr.mxu0 0.0
    %5398 = vmatpush1.msra.mxu0 0.0
    %5399 = vmatprep.subr.mxu0 0.0
    %5400 = vmatpush1.msra.mxu0 0.0
    %5401 = vmatprep.subr.mxu0 0.0
    %5402 = vmatpush1.msra.mxu0 0.0
    %5403 = vmatprep.subr.mxu0 0.0
    %5404 = vmatpush1.msra.mxu0 0.0
    %5405 = vmatprep.subr.mxu0 0.0
    %5406 = vmatpush1.msra.mxu0 0.0
    %5407 = vmatprep.subr.mxu0 0.0
    %5408 = vmatpush1.msra.mxu0 0.0
    %5409 = vmatprep.subr.mxu0 0.0
    %5410 = vmatpush1.msra.mxu0 0.0
    %5411 = vmatprep.subr.mxu0 0.0
    %5412 = vmatpush1.msra.mxu0 0.0
    %5413 = vmatprep.subr.mxu0 0.0
    %5414 = vmatpush1.msra.mxu0 0.0
    %5415 = vmatprep.subr.mxu0 0.0
    %5416 = vmatpush1.msra.mxu0 0.0
    %5417 = vmatprep.subr.mxu0 0.0
    %5418 = vmatpush1.msra.mxu0 0.0
    %5419 = vmatprep.subr.mxu0 0.0
    %5420 = vmatpush1.msra.mxu0 0.0
    %5421 = vmatprep.subr.mxu0 0.0
    %5422 = vmatpush1.msra.mxu0 0.0
    %5423 = vmatprep.subr.mxu0 0.0
    %5424 = vmatpush1.msra.mxu0 0.0
    %5425 = vmatprep.subr.mxu0 0.0
    %5426 = vmatpush1.msra.mxu0 0.0
    %5427 = vmatprep.subr.mxu0 0.0
    %5428 = vmatpush1.msra.mxu0 0.0
    %5429 = vmatprep.subr.mxu0 0.0
    %5430 = vmatpush1.msra.mxu0 0.0
    %5431 = vmatprep.subr.mxu0 0.0
    %5432 = vmatpush1.msra.mxu0 0.0
    %5433 = vmatprep.subr.mxu0 0.0
    %5434 = vmatpush1.msra.mxu0 0.0
    %5435 = vmatprep.subr.mxu0 0.0
    %5436 = vmatpush1.msra.mxu0 0.0
    %5437 = vmatprep.mubr.f32.mxu0 0.0
    %v5438 = vand.u32 %v4917, 4294901760
    %5439 = vmatmul.mubr.f32.gmra.mrb[0].mxu0 %v5438
    %v5440 = vpop.f32.mrb[0].mxu0
    %v5441 = vadd.f32 %v5360, %v5440
    %v5442 = vpop.f32.mrb[0].mxu0
    %5443 = vmatprep.mubr.f32.mxu0 0.0
    %v5444 = vand.u32 %v4920, 4294901760
    %5445 = vmatmul.mubr.f32.gmra.mrb[0].mxu0 %v5444
    %v5446 = vpop.f32.mrb[0].mxu0
    %v5447 = vadd.f32 %v5366, %v5446
    %v5448 = vpop.f32.mrb[0].mxu0
    %5449 = vdwg.mxu0
    %v5450 = vmul.f32 %v5441, 0.5
    %v5451 = vmul.f32 %v5447, 0.5
    %v5452 = vmul.f32 %v5441, 0.044715
    %v5453 = vmul.f32 %v5447, 0.044715
    %v5454 = vmul.f32 %v5452, %v5441
    %v5455 = vmul.f32 %v5453, %v5447
    %v5456 = vmul.f32 %v5454, %v5441
    %v5457 = vmul.f32 %v5455, %v5447
    %v5458 = vadd.f32 %v5441, %v5456
    %v5459 = vadd.f32 %v5447, %v5457
    %v5460 = vmul.f32 %v5458, 0.7978846
    %v5461 = vmul.f32 %v5459, 0.7978846
    %v5462 = vtanh.pop %v5460
    %v5463 = vtanh.pop %v5461
    %v5464 = vadd.f32 %v5462, 1.0
    %v5465 = vadd.f32 %v5463, 1.0
    %v5466 = vmul.f32 %v5450, %v5464
    %v5467 = vmul.f32 %v5451, %v5465
    %v5468 = vld [vmem:[%s4] sm:$0xff]
    %v5469 = vld [vmem:[%s4 + $0x8] sm:$0xff]
    %v5470 = vld [vmem:[%s4 + $0x10] sm:$0xff]
    %v5471 = vld [vmem:[%s4 + $0x18] sm:$0xff]
    %v5472 = vld [vmem:[%s4 + $0x20] sm:$0xff]
    %v5473 = vld [vmem:[%s4 + $0x28] sm:$0xff]
    %v5474 = vld [vmem:[%s4 + $0x30] sm:$0xff]
    %v5475 = vld [vmem:[%s4 + $0x38] sm:$0xff]
    %vm5476 = vcmask 523264
    %v5478 = vsel %vm5476, %v5466, 0
    %v5481 = vsel %vm5476, %v5467, 0
    %5483 = vmatprep.subr.mxu0 0.0
    %v5484 = vand.u32 %v5468, 4294901760
    %5485 = vmatpush1.msra.mxu0 %v5484
    %5486 = vmatprep.subr.mxu0 0.0
    %v5487 = vand.u32 %v5469, 4294901760
    %5488 = vmatpush1.msra.mxu0 %v5487
    %5489 = vmatprep.subr.mxu0 0.0
    %v5490 = vand.u32 %v5470, 4294901760
    %5491 = vmatpush1.msra.mxu0 %v5490
    %5492 = vmatprep.subr.mxu0 0.0
    %v5493 = vand.u32 %v5471, 4294901760
    %5494 = vmatpush1.msra.mxu0 %v5493
    %5495 = vmatprep.subr.mxu0 0.0
    %v5496 = vand.u32 %v5472, 4294901760
    %5497 = vmatpush1.msra.mxu0 %v5496
    %5498 = vmatprep.subr.mxu0 0.0
    %v5499 = vand.u32 %v5473, 4294901760
    %5500 = vmatpush1.msra.mxu0 %v5499
    %5501 = vmatprep.subr.mxu0 0.0
    %v5502 = vand.u32 %v5474, 4294901760
    %5503 = vmatpush1.msra.mxu0 %v5502
    %5504 = vmatprep.subr.mxu0 0.0
    %v5505 = vand.u32 %v5475, 4294901760
    %5506 = vmatpush1.msra.mxu0 %v5505
    %5507 = vmatprep.subr.mxu0 0.0
    %5508 = vmatpush1.msra.mxu0 0.0
    %5509 = vmatprep.subr.mxu0 0.0
    %5510 = vmatpush1.msra.mxu0 0.0
    %5511 = vmatprep.subr.mxu0 0.0
    %5512 = vmatpush1.msra.mxu0 0.0
    %5513 = vmatprep.subr.mxu0 0.0
    %5514 = vmatpush1.msra.mxu0 0.0
    %5515 = vmatprep.subr.mxu0 0.0
    %5516 = vmatpush1.msra.mxu0 0.0
    %5517 = vmatprep.subr.mxu0 0.0
    %5518 = vmatpush1.msra.mxu0 0.0
    %5519 = vmatprep.subr.mxu0 0.0
    %5520 = vmatpush1.msra.mxu0 0.0
    %5521 = vmatprep.subr.mxu0 0.0
    %5522 = vmatpush1.msra.mxu0 0.0
    %5523 = vmatprep.subr.mxu0 0.0
    %5524 = vmatpush1.msra.mxu0 0.0
    %5525 = vmatprep.subr.mxu0 0.0
    %5526 = vmatpush1.msra.mxu0 0.0
    %5527 = vmatprep.subr.mxu0 0.0
    %5528 = vmatpush1.msra.mxu0 0.0
    %5529 = vmatprep.subr.mxu0 0.0
    %5530 = vmatpush1.msra.mxu0 0.0
    %5531 = vmatprep.subr.mxu0 0.0
    %5532 = vmatpush1.msra.mxu0 0.0
    %5533 = vmatprep.subr.mxu0 0.0
    %5534 = vmatpush1.msra.mxu0 0.0
    %5535 = vmatprep.subr.mxu0 0.0
    %5536 = vmatpush1.msra.mxu0 0.0
    %5537 = vmatprep.subr.mxu0 0.0
    %5538 = vmatpush1.msra.mxu0 0.0
    %5539 = vmatprep.subr.mxu0 0.0
    %5540 = vmatpush1.msra.mxu0 0.0
    %5541 = vmatprep.subr.mxu0 0.0
    %5542 = vmatpush1.msra.mxu0 0.0
    %5543 = vmatprep.subr.mxu0 0.0
    %5544 = vmatpush1.msra.mxu0 0.0
    %5545 = vmatprep.subr.mxu0 0.0
    %5546 = vmatpush1.msra.mxu0 0.0
    %5547 = vmatprep.subr.mxu0 0.0
    %5548 = vmatpush1.msra.mxu0 0.0
    %5549 = vmatprep.subr.mxu0 0.0
    %5550 = vmatpush1.msra.mxu0 0.0
    %5551 = vmatprep.subr.mxu0 0.0
    %5552 = vmatpush1.msra.mxu0 0.0
    %5553 = vmatprep.subr.mxu0 0.0
    %5554 = vmatpush1.msra.mxu0 0.0
    %5555 = vmatprep.mubr.f32.mxu0 0.0
    %v5556 = vand.u32 %v5478, 4294901760
    %v5557 = vsub.f32 %v5478, %v5556
    %v5558 = vand.u32 %v5557, 4294901760
    %v5559 = vsub.f32 %v5557, %v5558
    %v5560 = vand.u32 %v5559, 4294901760
    %5561 = vmatmul.mubr.f32.gmra.mrb[0].mxu0 %v5560
    %v5562 = vpop.f32.mrb[0].mxu0
    %v5563 = vadd.f32 0.0, %v5562
    %v5564 = vpop.f32.mrb[0].mxu0
    %5565 = vmatprep.mubr.f32.mxu0 0.0
    %v5566 = vand.u32 %v5481, 4294901760
    %v5567 = vsub.f32 %v5481, %v5566
    %v5568 = vand.u32 %v5567, 4294901760
    %v5569 = vsub.f32 %v5567, %v5568
    %v5570 = vand.u32 %v5569, 4294901760
    %5571 = vmatmul.mubr.f32.gmra.mrb[0].mxu0 %v5570
    %v5572 = vpop.f32.mrb[0].mxu0
    %v5573 = vadd.f32 0.0, %v5572
    %v5574 = vpop.f32.mrb[0].mxu0
    %5575 = vdwg.mxu0
    %5576 = vmatprep.subr.mxu0 0.0
    %v5577 = vand.u32 %v5468, 4294901760
    %v5578 = vsub.f32 %v5468, %v5577
    %v5579 = vand.u32 %v5578, 4294901760
    %v5580 = vsub.f32 %v5578, %v5579
    %v5581 = vand.u32 %v5580, 4294901760
    %5582 = vmatpush1.msra.mxu0 %v5581
    %5583 = vmatprep.subr.mxu0 0.0
    %v5584 = vand.u32 %v5469, 4294901760
    %v5585 = vsub.f32 %v5469, %v5584
    %v5586 = vand.u32 %v5585, 4294901760
    %v5587 = vsub.f32 %v5585, %v5586
    %v5588 = vand.u32 %v5587, 4294901760
    %5589 = vmatpush1.msra.mxu0 %v5588
    %5590 = vmatprep.subr.mxu0 0.0
    %v5591 = vand.u32 %v5470, 4294901760
    %v5592 = vsub.f32 %v5470, %v5591
    %v5593 = vand.u32 %v5592, 4294901760
    %v5594 = vsub.f32 %v5592, %v5593
    %v5595 = vand.u32 %v5594, 4294901760
    %5596 = vmatpush1.msra.mxu0 %v5595
    %5597 = vmatprep.subr.mxu0 0.0
    %v5598 = vand.u32 %v5471, 4294901760
    %v5599 = vsub.f32 %v5471, %v5598
    %v5600 = vand.u32 %v5599, 4294901760
    %v5601 = vsub.f32 %v5599, %v5600
    %v5602 = vand.u32 %v5601, 4294901760
    %5603 = vmatpush1.msra.mxu0 %v5602
    %5604 = vmatprep.subr.mxu0 0.0
    %v5605 = vand.u32 %v5472, 4294901760
    %v5606 = vsub.f32 %v5472, %v5605
    %v5607 = vand.u32 %v5606, 4294901760
    %v5608 = vsub.f32 %v5606, %v5607
    %v5609 = vand.u32 %v5608, 4294901760
    %5610 = vmatpush1.msra.mxu0 %v5609
    %5611 = vmatprep.subr.mxu0 0.0
    %v5612 = vand.u32 %v5473, 4294901760
    %v5613 = vsub.f32 %v5473, %v5612
    %v5614 = vand.u32 %v5613, 4294901760
    %v5615 = vsub.f32 %v5613, %v5614
    %v5616 = vand.u32 %v5615, 4294901760
    %5617 = vmatpush1.msra.mxu0 %v5616
    %5618 = vmatprep.subr.mxu0 0.0
    %v5619 = vand.u32 %v5474, 4294901760
    %v5620 = vsub.f32 %v5474, %v5619
    %v5621 = vand.u32 %v5620, 4294901760
    %v5622 = vsub.f32 %v5620, %v5621
    %v5623 = vand.u32 %v5622, 4294901760
    %5624 = vmatpush1.msra.mxu0 %v5623
    %5625 = vmatprep.subr.mxu0 0.0
    %v5626 = vand.u32 %v5475, 4294901760
    %v5627 = vsub.f32 %v5475, %v5626
    %v5628 = vand.u32 %v5627, 4294901760
    %v5629 = vsub.f32 %v5627, %v5628
    %v5630 = vand.u32 %v5629, 4294901760
    %5631 = vmatpush1.msra.mxu0 %v5630
    %5632 = vmatprep.subr.mxu0 0.0
    %5633 = vmatpush1.msra.mxu0 0.0
    %5634 = vmatprep.subr.mxu0 0.0
    %5635 = vmatpush1.msra.mxu0 0.0
    %5636 = vmatprep.subr.mxu0 0.0
    %5637 = vmatpush1.msra.mxu0 0.0
    %5638 = vmatprep.subr.mxu0 0.0
    %5639 = vmatpush1.msra.mxu0 0.0
    %5640 = vmatprep.subr.mxu0 0.0
    %5641 = vmatpush1.msra.mxu0 0.0
    %5642 = vmatprep.subr.mxu0 0.0
    %5643 = vmatpush1.msra.mxu0 0.0
    %5644 = vmatprep.subr.mxu0 0.0
    %5645 = vmatpush1.msra.mxu0 0.0
    %5646 = vmatprep.subr.mxu0 0.0
    %5647 = vmatpush1.msra.mxu0 0.0
    %5648 = vmatprep.subr.mxu0 0.0
    %5649 = vmatpush1.msra.mxu0 0.0
    %5650 = vmatprep.subr.mxu0 0.0
    %5651 = vmatpush1.msra.mxu0 0.0
    %5652 = vmatprep.subr.mxu0 0.0
    %5653 = vmatpush1.msra.mxu0 0.0
    %5654 = vmatprep.subr.mxu0 0.0
    %5655 = vmatpush1.msra.mxu0 0.0
    %5656 = vmatprep.subr.mxu0 0.0
    %5657 = vmatpush1.msra.mxu0 0.0
    %5658 = vmatprep.subr.mxu0 0.0
    %5659 = vmatpush1.msra.mxu0 0.0
    %5660 = vmatprep.subr.mxu0 0.0
    %5661 = vmatpush1.msra.mxu0 0.0
    %5662 = vmatprep.subr.mxu0 0.0
    %5663 = vmatpush1.msra.mxu0 0.0
    %5664 = vmatprep.subr.mxu0 0.0
    %5665 = vmatpush1.msra.mxu0 0.0
    %5666 = vmatprep.subr.mxu0 0.0
    %5667 = vmatpush1.msra.mxu0 0.0
    %5668 = vmatprep.subr.mxu0 0.0
    %5669 = vmatpush1.msra.mxu0 0.0
    %5670 = vmatprep.subr.mxu0 0.0
    %5671 = vmatpush1.msra.mxu0 0.0
    %5672 = vmatprep.subr.mxu0 0.0
    %5673 = vmatpush1.msra.mxu0 0.0
    %5674 = vmatprep.subr.mxu0 0.0
    %5675 = vmatpush1.msra.mxu0 0.0
    %5676 = vmatprep.subr.mxu0 0.0
    %5677 = vmatpush1.msra.mxu0 0.0
    %5678 = vmatprep.subr.mxu0 0.0
    %5679 = vmatpush1.msra.mxu0 0.0
    %5680 = vmatprep.mubr.f32.mxu0 0.0
    %v5681 = vand.u32 %v5478, 4294901760
    %5682 = vmatmul.mubr.f32.gmra.mrb[0].mxu0 %v5681
    %v5683 = vpop.f32.mrb[0].mxu0
    %v5684 = vadd.f32 %v5563, %v5683
    %v5685 = vpop.f32.mrb[0].mxu0
    %5686 = vmatprep.mubr.f32.mxu0 0.0
    %v5687 = vand.u32 %v5481, 4294901760
    %5688 = vmatmul.mubr.f32.gmra.mrb[0].mxu0 %v5687
    %v5689 = vpop.f32.mrb[0].mxu0
    %v5690 = vadd.f32 %v5573, %v5689
    %v5691 = vpop.f32.mrb[0].mxu0
    %5692 = vdwg.mxu0
    %5693 = vmatprep.subr.mxu0 0.0
    %v5694 = vand.u32 %v5468, 4294901760
    %v5695 = vsub.f32 %v5468, %v5694
    %5696 = vmatpush1.msra.mxu0 %v5695
    %5697 = vmatprep.subr.mxu0 0.0
    %v5698 = vand.u32 %v5469, 4294901760
    %v5699 = vsub.f32 %v5469, %v5698
    %5700 = vmatpush1.msra.mxu0 %v5699
    %5701 = vmatprep.subr.mxu0 0.0
    %v5702 = vand.u32 %v5470, 4294901760
    %v5703 = vsub.f32 %v5470, %v5702
    %5704 = vmatpush1.msra.mxu0 %v5703
    %5705 = vmatprep.subr.mxu0 0.0
    %v5706 = vand.u32 %v5471, 4294901760
    %v5707 = vsub.f32 %v5471, %v5706
    %5708 = vmatpush1.msra.mxu0 %v5707
    %5709 = vmatprep.subr.mxu0 0.0
    %v5710 = vand.u32 %v5472, 4294901760
    %v5711 = vsub.f32 %v5472, %v5710
    %5712 = vmatpush1.msra.mxu0 %v5711
    %5713 = vmatprep.subr.mxu0 0.0
    %v5714 = vand.u32 %v5473, 4294901760
    %v5715 = vsub.f32 %v5473, %v5714
    %5716 = vmatpush1.msra.mxu0 %v5715
    %5717 = vmatprep.subr.mxu0 0.0
    %v5718 = vand.u32 %v5474, 4294901760
    %v5719 = vsub.f32 %v5474, %v5718
    %5720 = vmatpush1.msra.mxu0 %v5719
    %5721 = vmatprep.subr.mxu0 0.0
    %v5722 = vand.u32 %v5475, 4294901760
    %v5723 = vsub.f32 %v5475, %v5722
    %5724 = vmatpush1.msra.mxu0 %v5723
    %5725 = vmatprep.subr.mxu0 0.0
    %5726 = vmatpush1.msra.mxu0 0.0
    %5727 = vmatprep.subr.mxu0 0.0
    %5728 = vmatpush1.msra.mxu0 0.0
    %5729 = vmatprep.subr.mxu0 0.0
    %5730 = vmatpush1.msra.mxu0 0.0
    %5731 = vmatprep.subr.mxu0 0.0
    %5732 = vmatpush1.msra.mxu0 0.0
    %5733 = vmatprep.subr.mxu0 0.0
    %5734 = vmatpush1.msra.mxu0 0.0
    %5735 = vmatprep.subr.mxu0 0.0
    %5736 = vmatpush1.msra.mxu0 0.0
    %5737 = vmatprep.subr.mxu0 0.0
    %5738 = vmatpush1.msra.mxu0 0.0
    %5739 = vmatprep.subr.mxu0 0.0
    %5740 = vmatpush1.msra.mxu0 0.0
    %5741 = vmatprep.subr.mxu0 0.0
    %5742 = vmatpush1.msra.mxu0 0.0
    %5743 = vmatprep.subr.mxu0 0.0
    %5744 = vmatpush1.msra.mxu0 0.0
    %5745 = vmatprep.subr.mxu0 0.0
    %5746 = vmatpush1.msra.mxu0 0.0
    %5747 = vmatprep.subr.mxu0 0.0
    %5748 = vmatpush1.msra.mxu0 0.0
    %5749 = vmatprep.subr.mxu0 0.0
    %5750 = vmatpush1.msra.mxu0 0.0
    %5751 = vmatprep.subr.mxu0 0.0
    %5752 = vmatpush1.msra.mxu0 0.0
    %5753 = vmatprep.subr.mxu0 0.0
    %5754 = vmatpush1.msra.mxu0 0.0
    %5755 = vmatprep.subr.mxu0 0.0
    %5756 = vmatpush1.msra.mxu0 0.0
    %5757 = vmatprep.subr.mxu0 0.0
    %5758 = vmatpush1.msra.mxu0 0.0
    %5759 = vmatprep.subr.mxu0 0.0
    %5760 = vmatpush1.msra.mxu0 0.0
    %5761 = vmatprep.subr.mxu0 0.0
    %5762 = vmatpush1.msra.mxu0 0.0
    %5763 = vmatprep.subr.mxu0 0.0
    %5764 = vmatpush1.msra.mxu0 0.0
    %5765 = vmatprep.subr.mxu0 0.0
    %5766 = vmatpush1.msra.mxu0 0.0
    %5767 = vmatprep.subr.mxu0 0.0
    %5768 = vmatpush1.msra.mxu0 0.0
    %5769 = vmatprep.subr.mxu0 0.0
    %5770 = vmatpush1.msra.mxu0 0.0
    %5771 = vmatprep.subr.mxu0 0.0
    %5772 = vmatpush1.msra.mxu0 0.0
    %5773 = vmatprep.mubr.f32.mxu0 0.0
    %v5774 = vand.u32 %v5478, 4294901760
    %v5775 = vsub.f32 %v5478, %v5774
    %5776 = vmatmul.mubr.f32.gmra.mrb[0].mxu0 %v5775
    %v5777 = vpop.f32.mrb[0].mxu0
    %v5778 = vadd.f32 %v5684, %v5777
    %v5779 = vpop.f32.mrb[0].mxu0
    %5780 = vmatprep.mubr.f32.mxu0 0.0
    %v5781 = vand.u32 %v5481, 4294901760
    %v5782 = vsub.f32 %v5481, %v5781
    %5783 = vmatmul.mubr.f32.gmra.mrb[0].mxu0 %v5782
    %v5784 = vpop.f32.mrb[0].mxu0
    %v5785 = vadd.f32 %v5690, %v5784
    %v5786 = vpop.f32.mrb[0].mxu0
    %5787 = vdwg.mxu0
    %5788 = vmatprep.subr.mxu0 0.0
    %v5789 = vand.u32 %v5468, 4294901760
    %5790 = vmatpush1.msra.mxu0 %v5789
    %5791 = vmatprep.subr.mxu0 0.0
    %v5792 = vand.u32 %v5469, 4294901760
    %5793 = vmatpush1.msra.mxu0 %v5792
    %5794 = vmatprep.subr.mxu0 0.0
    %v5795 = vand.u32 %v5470, 4294901760
    %5796 = vmatpush1.msra.mxu0 %v5795
    %5797 = vmatprep.subr.mxu0 0.0
    %v5798 = vand.u32 %v5471, 4294901760
    %5799 = vmatpush1.msra.mxu0 %v5798
    %5800 = vmatprep.subr.mxu0 0.0
    %v5801 = vand.u32 %v5472, 4294901760
    %5802 = vmatpush1.msra.mxu0 %v5801
    %5803 = vmatprep.subr.mxu0 0.0
    %v5804 = vand.u32 %v5473, 4294901760
    %5805 = vmatpush1.msra.mxu0 %v5804
    %5806 = vmatprep.subr.mxu0 0.0
    %v5807 = vand.u32 %v5474, 4294901760
    %5808 = vmatpush1.msra.mxu0 %v5807
    %5809 = vmatprep.subr.mxu0 0.0
    %v5810 = vand.u32 %v5475, 4294901760
    %5811 = vmatpush1.msra.mxu0 %v5810
    %5812 = vmatprep.subr.mxu0 0.0
    %5813 = vmatpush1.msra.mxu0 0.0
    %5814 = vmatprep.subr.mxu0 0.0
    %5815 = vmatpush1.msra.mxu0 0.0
    %5816 = vmatprep.subr.mxu0 0.0
    %5817 = vmatpush1.msra.mxu0 0.0
    %5818 = vmatprep.subr.mxu0 0.0
    %5819 = vmatpush1.msra.mxu0 0.0
    %5820 = vmatprep.subr.mxu0 0.0
    %5821 = vmatpush1.msra.mxu0 0.0
    %5822 = vmatprep.subr.mxu0 0.0
    %5823 = vmatpush1.msra.mxu0 0.0
    %5824 = vmatprep.subr.mxu0 0.0
    %5825 = vmatpush1.msra.mxu0 0.0
    %5826 = vmatprep.subr.mxu0 0.0
    %5827 = vmatpush1.msra.mxu0 0.0
    %5828 = vmatprep.subr.mxu0 0.0
    %5829 = vmatpush1.msra.mxu0 0.0
    %5830 = vmatprep.subr.mxu0 0.0
    %5831 = vmatpush1.msra.mxu0 0.0
    %5832 = vmatprep.subr.mxu0 0.0
    %5833 = vmatpush1.msra.mxu0 0.0
    %5834 = vmatprep.subr.mxu0 0.0
    %5835 = vmatpush1.msra.mxu0 0.0
    %5836 = vmatprep.subr.mxu0 0.0
    %5837 = vmatpush1.msra.mxu0 0.0
    %5838 = vmatprep.subr.mxu0 0.0
    %5839 = vmatpush1.msra.mxu0 0.0
    %5840 = vmatprep.subr.mxu0 0.0
    %5841 = vmatpush1.msra.mxu0 0.0
    %5842 = vmatprep.subr.mxu0 0.0
    %5843 = vmatpush1.msra.mxu0 0.0
    %5844 = vmatprep.subr.mxu0 0.0
    %5845 = vmatpush1.msra.mxu0 0.0
    %5846 = vmatprep.subr.mxu0 0.0
    %5847 = vmatpush1.msra.mxu0 0.0
    %5848 = vmatprep.subr.mxu0 0.0
    %5849 = vmatpush1.msra.mxu0 0.0
    %5850 = vmatprep.subr.mxu0 0.0
    %5851 = vmatpush1.msra.mxu0 0.0
    %5852 = vmatprep.subr.mxu0 0.0
    %5853 = vmatpush1.msra.mxu0 0.0
    %5854 = vmatprep.subr.mxu0 0.0
    %5855 = vmatpush1.msra.mxu0 0.0
    %5856 = vmatprep.subr.mxu0 0.0
    %5857 = vmatpush1.msra.mxu0 0.0
    %5858 = vmatprep.subr.mxu0 0.0
    %5859 = vmatpush1.msra.mxu0 0.0
    %5860 = vmatprep.mubr.f32.mxu0 0.0
    %v5861 = vand.u32 %v5478, 4294901760
    %v5862 = vsub.f32 %v5478, %v5861
    %v5863 = vand.u32 %v5862, 4294901760
    %5864 = vmatmul.mubr.f32.gmra.mrb[0].mxu0 %v5863
    %v5865 = vpop.f32.mrb[0].mxu0
    %v5866 = vadd.f32 %v5778, %v5865
    %v5867 = vpop.f32.mrb[0].mxu0
    %5868 = vmatprep.mubr.f32.mxu0 0.0
    %v5869 = vand.u32 %v5481, 4294901760
    %v5870 = vsub.f32 %v5481, %v5869
    %v5871 = vand.u32 %v5870, 4294901760
    %5872 = vmatmul.mubr.f32.gmra.mrb[0].mxu0 %v5871
    %v5873 = vpop.f32.mrb[0].mxu0
    %v5874 = vadd.f32 %v5785, %v5873
    %v5875 = vpop.f32.mrb[0].mxu0
    %5876 = vdwg.mxu0
    %5877 = vmatprep.subr.mxu0 0.0
    %v5878 = vand.u32 %v5468, 4294901760
    %v5879 = vsub.f32 %v5468, %v5878
    %v5880 = vand.u32 %v5879, 4294901760
    %5881 = vmatpush1.msra.mxu0 %v5880
    %5882 = vmatprep.subr.mxu0 0.0
    %v5883 = vand.u32 %v5469, 4294901760
    %v5884 = vsub.f32 %v5469, %v5883
    %v5885 = vand.u32 %v5884, 4294901760
    %5886 = vmatpush1.msra.mxu0 %v5885
    %5887 = vmatprep.subr.mxu0 0.0
    %v5888 = vand.u32 %v5470, 4294901760
    %v5889 = vsub.f32 %v5470, %v5888
    %v5890 = vand.u32 %v5889, 4294901760
    %5891 = vmatpush1.msra.mxu0 %v5890
    %5892 = vmatprep.subr.mxu0 0.0
    %v5893 = vand.u32 %v5471, 4294901760
    %v5894 = vsub.f32 %v5471, %v5893
    %v5895 = vand.u32 %v5894, 4294901760
    %5896 = vmatpush1.msra.mxu0 %v5895
    %5897 = vmatprep.subr.mxu0 0.0
    %v5898 = vand.u32 %v5472, 4294901760
    %v5899 = vsub.f32 %v5472, %v5898
    %v5900 = vand.u32 %v5899, 4294901760
    %5901 = vmatpush1.msra.mxu0 %v5900
    %5902 = vmatprep.subr.mxu0 0.0
    %v5903 = vand.u32 %v5473, 4294901760
    %v5904 = vsub.f32 %v5473, %v5903
    %v5905 = vand.u32 %v5904, 4294901760
    %5906 = vmatpush1.msra.mxu0 %v5905
    %5907 = vmatprep.subr.mxu0 0.0
    %v5908 = vand.u32 %v5474, 4294901760
    %v5909 = vsub.f32 %v5474, %v5908
    %v5910 = vand.u32 %v5909, 4294901760
    %5911 = vmatpush1.msra.mxu0 %v5910
    %5912 = vmatprep.subr.mxu0 0.0
    %v5913 = vand.u32 %v5475, 4294901760
    %v5914 = vsub.f32 %v5475, %v5913
    %v5915 = vand.u32 %v5914, 4294901760
    %5916 = vmatpush1.msra.mxu0 %v5915
    %5917 = vmatprep.subr.mxu0 0.0
    %5918 = vmatpush1.msra.mxu0 0.0
    %5919 = vmatprep.subr.mxu0 0.0
    %5920 = vmatpush1.msra.mxu0 0.0
    %5921 = vmatprep.subr.mxu0 0.0
    %5922 = vmatpush1.msra.mxu0 0.0
    %5923 = vmatprep.subr.mxu0 0.0
    %5924 = vmatpush1.msra.mxu0 0.0
    %5925 = vmatprep.subr.mxu0 0.0
    %5926 = vmatpush1.msra.mxu0 0.0
    %5927 = vmatprep.subr.mxu0 0.0
    %5928 = vmatpush1.msra.mxu0 0.0
    %5929 = vmatprep.subr.mxu0 0.0
    %5930 = vmatpush1.msra.mxu0 0.0
    %5931 = vmatprep.subr.mxu0 0.0
    %5932 = vmatpush1.msra.mxu0 0.0
    %5933 = vmatprep.subr.mxu0 0.0
    %5934 = vmatpush1.msra.mxu0 0.0
    %5935 = vmatprep.subr.mxu0 0.0
    %5936 = vmatpush1.msra.mxu0 0.0
    %5937 = vmatprep.subr.mxu0 0.0
    %5938 = vmatpush1.msra.mxu0 0.0
    %5939 = vmatprep.subr.mxu0 0.0
    %5940 = vmatpush1.msra.mxu0 0.0
    %5941 = vmatprep.subr.mxu0 0.0
    %5942 = vmatpush1.msra.mxu0 0.0
    %5943 = vmatprep.subr.mxu0 0.0
    %5944 = vmatpush1.msra.mxu0 0.0
    %5945 = vmatprep.subr.mxu0 0.0
    %5946 = vmatpush1.msra.mxu0 0.0
    %5947 = vmatprep.subr.mxu0 0.0
    %5948 = vmatpush1.msra.mxu0 0.0
    %5949 = vmatprep.subr.mxu0 0.0
    %5950 = vmatpush1.msra.mxu0 0.0
    %5951 = vmatprep.subr.mxu0 0.0
    %5952 = vmatpush1.msra.mxu0 0.0
    %5953 = vmatprep.subr.mxu0 0.0
    %5954 = vmatpush1.msra.mxu0 0.0
    %5955 = vmatprep.subr.mxu0 0.0
    %5956 = vmatpush1.msra.mxu0 0.0
    %5957 = vmatprep.subr.mxu0 0.0
    %5958 = vmatpush1.msra.mxu0 0.0
    %5959 = vmatprep.subr.mxu0 0.0
    %5960 = vmatpush1.msra.mxu0 0.0
    %5961 = vmatprep.subr.mxu0 0.0
    %5962 = vmatpush1.msra.mxu0 0.0
    %5963 = vmatprep.subr.mxu0 0.0
    %5964 = vmatpush1.msra.mxu0 0.0
    %5965 = vmatprep.mubr.f32.mxu0 0.0
    %v5966 = vand.u32 %v5478, 4294901760
    %5967 = vmatmul.mubr.f32.gmra.mrb[0].mxu0 %v5966
    %v5968 = vpop.f32.mrb[0].mxu0
    %v5969 = vadd.f32 %v5866, %v5968
    %v5970 = vpop.f32.mrb[0].mxu0
    %5971 = vmatprep.mubr.f32.mxu0 0.0
    %v5972 = vand.u32 %v5481, 4294901760
    %5973 = vmatmul.mubr.f32.gmra.mrb[0].mxu0 %v5972
    %v5974 = vpop.f32.mrb[0].mxu0
    %v5975 = vadd.f32 %v5874, %v5974
    %v5976 = vpop.f32.mrb[0].mxu0
    %5977 = vdwg.mxu0
    %5978 = vmatprep.subr.mxu0 0.0
    %v5979 = vand.u32 %v5468, 4294901760
    %5980 = vmatpush1.msra.mxu0 %v5979
    %5981 = vmatprep.subr.mxu0 0.0
    %v5982 = vand.u32 %v5469, 4294901760
    %5983 = vmatpush1.msra.mxu0 %v5982
    %5984 = vmatprep.subr.mxu0 0.0
    %v5985 = vand.u32 %v5470, 4294901760
    %5986 = vmatpush1.msra.mxu0 %v5985
    %5987 = vmatprep.subr.mxu0 0.0
    %v5988 = vand.u32 %v5471, 4294901760
    %5989 = vmatpush1.msra.mxu0 %v5988
    %5990 = vmatprep.subr.mxu0 0.0
    %v5991 = vand.u32 %v5472, 4294901760
    %5992 = vmatpush1.msra.mxu0 %v5991
    %5993 = vmatprep.subr.mxu0 0.0
    %v5994 = vand.u32 %v5473, 4294901760
    %5995 = vmatpush1.msra.mxu0 %v5994
    %5996 = vmatprep.subr.mxu0 0.0
    %v5997 = vand.u32 %v5474, 4294901760
    %5998 = vmatpush1.msra.mxu0 %v5997
    %5999 = vmatprep.subr.mxu0 0.0
    %v6000 = vand.u32 %v5475, 4294901760
    %6001 = vmatpush1.msra.mxu0 %v6000
    %6002 = vmatprep.subr.mxu0 0.0
    %6003 = vmatpush1.msra.mxu0 0.0
    %6004 = vmatprep.subr.mxu0 0.0
    %6005 = vmatpush1.msra.mxu0 0.0
    %6006 = vmatprep.subr.mxu0 0.0
    %6007 = vmatpush1.msra.mxu0 0.0
    %6008 = vmatprep.subr.mxu0 0.0
    %6009 = vmatpush1.msra.mxu0 0.0
    %6010 = vmatprep.subr.mxu0 0.0
    %6011 = vmatpush1.msra.mxu0 0.0
    %6012 = vmatprep.subr.mxu0 0.0
    %6013 = vmatpush1.msra.mxu0 0.0
    %6014 = vmatprep.subr.mxu0 0.0
    %6015 = vmatpush1.msra.mxu0 0.0
    %6016 = vmatprep.subr.mxu0 0.0
    %6017 = vmatpush1.msra.mxu0 0.0
    %6018 = vmatprep.subr.mxu0 0.0
    %6019 = vmatpush1.msra.mxu0 0.0
    %6020 = vmatprep.subr.mxu0 0.0
    %6021 = vmatpush1.msra.mxu0 0.0
    %6022 = vmatprep.subr.mxu0 0.0
    %6023 = vmatpush1.msra.mxu0 0.0
    %6024 = vmatprep.subr.mxu0 0.0
    %6025 = vmatpush1.msra.mxu0 0.0
    %6026 = vmatprep.subr.mxu0 0.0
    %6027 = vmatpush1.msra.mxu0 0.0
    %6028 = vmatprep.subr.mxu0 0.0
    %6029 = vmatpush1.msra.mxu0 0.0
    %6030 = vmatprep.subr.mxu0 0.0
    %6031 = vmatpush1.msra.mxu0 0.0
    %6032 = vmatprep.subr.mxu0 0.0
    %6033 = vmatpush1.msra.mxu0 0.0
    %6034 = vmatprep.subr.mxu0 0.0
    %6035 = vmatpush1.msra.mxu0 0.0
    %6036 = vmatprep.subr.mxu0 0.0
    %6037 = vmatpush1.msra.mxu0 0.0
    %6038 = vmatprep.subr.mxu0 0.0
    %6039 = vmatpush1.msra.mxu0 0.0
    %6040 = vmatprep.subr.mxu0 0.0
    %6041 = vmatpush1.msra.mxu0 0.0
    %6042 = vmatprep.subr.mxu0 0.0
    %6043 = vmatpush1.msra.mxu0 0.0
    %6044 = vmatprep.subr.mxu0 0.0
    %6045 = vmatpush1.msra.mxu0 0.0
    %6046 = vmatprep.subr.mxu0 0.0
    %6047 = vmatpush1.msra.mxu0 0.0
    %6048 = vmatprep.subr.mxu0 0.0
    %6049 = vmatpush1.msra.mxu0 0.0
    %6050 = vmatprep.mubr.f32.mxu0 0.0
    %v6051 = vand.u32 %v5478, 4294901760
    %6052 = vmatmul.mubr.f32.gmra.mrb[0].mxu0 %v6051
    %v6053 = vpop.f32.mrb[0].mxu0
    %v6054 = vadd.f32 %v5969, %v6053
    %v6055 = vpop.f32.mrb[0].mxu0
    %6056 = vmatprep.mubr.f32.mxu0 0.0
    %v6057 = vand.u32 %v5481, 4294901760
    %6058 = vmatmul.mubr.f32.gmra.mrb[0].mxu0 %v6057
    %v6059 = vpop.f32.mrb[0].mxu0
    %v6060 = vadd.f32 %v5975, %v6059
    %v6061 = vpop.f32.mrb[0].mxu0
    %6062 = vdwg.mxu0
    %v6063 = vadd.f32 %v4868, %v6054
    %v6064 = vadd.f32 %v4869, %v6060
    %v6065 = vlaneseq
    %v6066 = vshrl.u32 %v6065, 7
    %v6067 = vsub.s32 0, %v6066
    %v6068 = vrot.slane %v62, %v6067
    %v6069 = vadd.f32 %v6063, %v6068
    %v6070 = vadd.f32 %v6064, %v6068
    %v6071 = vld [vmem:[#allocation5 + $0x6] sm:$0x1]
    %v6072 = vld [vmem:[#allocation5 + $0x7] sm:$0x1]
    %v6073 = vld [vmem:[#allocation5 + $0x8] sm:$0x1]
    %v6074 = vld [vmem:[#allocation5 + $0x9] sm:$0x1]
    %v6075 = vld [vmem:[#allocation5 + $0xa] sm:$0x1]
    %v6076 = vld [vmem:[#allocation5 + $0xb] sm:$0x1]
    %v6077 = vld [vmem:[%s6 + $0x1] sm:$0x1]
    %v6078 = vsel %vm64, %v6069, 0.0
    %6079 = vadd.xlane.f32.xlu0 %v6078
    %v6080 = vpop.xlane.xlu0 %6079
    %v6081 = vsel %vm64, %v6070, 0.0
    %6082 = vadd.xlane.f32.xlu0 %v6081
    %v6083 = vpop.xlane.xlu0 %6082
    %v6084 = vmul.f32 %v6080, %v71
    %v6085 = vmul.f32 %v6083, %v71
    %v6086 = vsub.f32 %v6069, %v6084
    %v6087 = vsub.f32 %v6070, %v6085
    %v6088 = vmul.f32 %v6086, %v6086
    %v6089 = vmul.f32 %v6087, %v6087
    %v6090 = vsel %vm64, %v6088, 0.0
    %6091 = vadd.xlane.f32.xlu0 %v6090
    %v6092 = vpop.xlane.xlu0 %6091
    %v6093 = vsel %vm64, %v6089, 0.0
    %6094 = vadd.xlane.f32.xlu0 %v6093
    %v6095 = vpop.xlane.xlu0 %6094
    %v6096 = vmul.f32 %v6092, %v71
    %v6097 = vmul.f32 %v6095, %v71
    %v6098 = vadd.f32 %v6096, 1e-05
    %v6099 = vadd.f32 %v6097, 1e-05
    %v6100 = vrsqrt.pop %v6098
    %v6101 = vrsqrt.pop %v6099
    %v6102 = vmul.f32 %v6086, %v6100
    %v6103 = vmul.f32 %v6087, %v6101
    %v6104 = vlaneseq
    %v6105 = vshrl.u32 %v6104, 7
    %v6106 = vsub.s32 0, %v6105
    %v6107 = vrot.slane %v6071, %v6106
    %v6108 = vmul.f32 %v6102, %v6107
    %v6109 = vmul.f32 %v6103, %v6107
    %v6110 = vlaneseq
    %v6111 = vshrl.u32 %v6110, 7
    %v6112 = vsub.s32 0, %v6111
    %v6113 = vrot.slane %v6072, %v6112
    %v6114 = vadd.f32 %v6108, %v6113
    %v6115 = vadd.f32 %v6109, %v6113
    %s6116 = scalar_lea.vmem %s1, 32
    %v6117 = vld [vmem:[%s6116] sm:$0xff]
    %v6118 = vld [vmem:[%s6116 + $0x8] sm:$0xff]
    %v6119 = vld [vmem:[%s6116 + $0x10] sm:$0xff]
    %v6120 = vld [vmem:[%s6116 + $0x18] sm:$0xff]
    %v6122 = vsel %vm64, %v6114, 0
    %v6125 = vsel %vm64, %v6115, 0
    %6127 = vmatprep.subr.mxu0 0.0
    %v6128 = vand.u32 %v6117, 4294901760
    %6129 = vmatpush1.msra.mxu0 %v6128
    %6130 = vmatprep.subr.mxu0 0.0
    %v6131 = vand.u32 %v6118, 4294901760
    %6132 = vmatpush1.msra.mxu0 %v6131
    %6133 = vmatprep.subr.mxu0 0.0
    %v6134 = vand.u32 %v6119, 4294901760
    %6135 = vmatpush1.msra.mxu0 %v6134
    %6136 = vmatprep.subr.mxu0 0.0
    %v6137 = vand.u32 %v6120, 4294901760
    %6138 = vmatpush1.msra.mxu0 %v6137
    %6139 = vmatprep.subr.mxu0 0.0
    %6140 = vmatpush1.msra.mxu0 0.0
    %6141 = vmatprep.subr.mxu0 0.0
    %6142 = vmatpush1.msra.mxu0 0.0
    %6143 = vmatprep.subr.mxu0 0.0
    %6144 = vmatpush1.msra.mxu0 0.0
    %6145 = vmatprep.subr.mxu0 0.0
    %6146 = vmatpush1.msra.mxu0 0.0
    %6147 = vmatprep.subr.mxu0 0.0
    %6148 = vmatpush1.msra.mxu0 0.0
    %6149 = vmatprep.subr.mxu0 0.0
    %6150 = vmatpush1.msra.mxu0 0.0
    %6151 = vmatprep.subr.mxu0 0.0
    %6152 = vmatpush1.msra.mxu0 0.0
    %6153 = vmatprep.subr.mxu0 0.0
    %6154 = vmatpush1.msra.mxu0 0.0
    %6155 = vmatprep.subr.mxu0 0.0
    %6156 = vmatpush1.msra.mxu0 0.0
    %6157 = vmatprep.subr.mxu0 0.0
    %6158 = vmatpush1.msra.mxu0 0.0
    %6159 = vmatprep.subr.mxu0 0.0
    %6160 = vmatpush1.msra.mxu0 0.0
    %6161 = vmatprep.subr.mxu0 0.0
    %6162 = vmatpush1.msra.mxu0 0.0
    %6163 = vmatprep.subr.mxu0 0.0
    %6164 = vmatpush1.msra.mxu0 0.0
    %6165 = vmatprep.subr.mxu0 0.0
    %6166 = vmatpush1.msra.mxu0 0.0
    %6167 = vmatprep.subr.mxu0 0.0
    %6168 = vmatpush1.msra.mxu0 0.0
    %6169 = vmatprep.subr.mxu0 0.0
    %6170 = vmatpush1.msra.mxu0 0.0
    %6171 = vmatprep.subr.mxu0 0.0
    %6172 = vmatpush1.msra.mxu0 0.0
    %6173 = vmatprep.subr.mxu0 0.0
    %6174 = vmatpush1.msra.mxu0 0.0
    %6175 = vmatprep.subr.mxu0 0.0
    %6176 = vmatpush1.msra.mxu0 0.0
    %6177 = vmatprep.subr.mxu0 0.0
    %6178 = vmatpush1.msra.mxu0 0.0
    %6179 = vmatprep.subr.mxu0 0.0
    %6180 = vmatpush1.msra.mxu0 0.0
    %6181 = vmatprep.subr.mxu0 0.0
    %6182 = vmatpush1.msra.mxu0 0.0
    %6183 = vmatprep.subr.mxu0 0.0
    %6184 = vmatpush1.msra.mxu0 0.0
    %6185 = vmatprep.subr.mxu0 0.0
    %6186 = vmatpush1.msra.mxu0 0.0
    %6187 = vmatprep.subr.mxu0 0.0
    %6188 = vmatpush1.msra.mxu0 0.0
    %6189 = vmatprep.subr.mxu0 0.0
    %6190 = vmatpush1.msra.mxu0 0.0
    %6191 = vmatprep.subr.mxu0 0.0
    %6192 = vmatpush1.msra.mxu0 0.0
    %6193 = vmatprep.subr.mxu0 0.0
    %6194 = vmatpush1.msra.mxu0 0.0
    %6195 = vmatprep.mubr.f32.mxu0 0.0
    %v6196 = vand.u32 %v6122, 4294901760
    %v6197 = vsub.f32 %v6122, %v6196
    %v6198 = vand.u32 %v6197, 4294901760
    %v6199 = vsub.f32 %v6197, %v6198
    %v6200 = vand.u32 %v6199, 4294901760
    %6201 = vmatmul.mubr.f32.gmra.mrb[0].mxu0 %v6200
    %v6202 = vpop.f32.mrb[0].mxu0
    %v6203 = vadd.f32 0.0, %v6202
    %v6204 = vpop.f32.mrb[0].mxu0
    %6205 = vmatprep.mubr.f32.mxu0 0.0
    %v6206 = vand.u32 %v6125, 4294901760
    %v6207 = vsub.f32 %v6125, %v6206
    %v6208 = vand.u32 %v6207, 4294901760
    %v6209 = vsub.f32 %v6207, %v6208
    %v6210 = vand.u32 %v6209, 4294901760
    %6211 = vmatmul.mubr.f32.gmra.mrb[0].mxu0 %v6210
    %v6212 = vpop.f32.mrb[0].mxu0
    %v6213 = vadd.f32 0.0, %v6212
    %v6214 = vpop.f32.mrb[0].mxu0
    %6215 = vdwg.mxu0
    %6216 = vmatprep.subr.mxu0 0.0
    %v6217 = vand.u32 %v6117, 4294901760
    %v6218 = vsub.f32 %v6117, %v6217
    %v6219 = vand.u32 %v6218, 4294901760
    %v6220 = vsub.f32 %v6218, %v6219
    %v6221 = vand.u32 %v6220, 4294901760
    %6222 = vmatpush1.msra.mxu0 %v6221
    %6223 = vmatprep.subr.mxu0 0.0
    %v6224 = vand.u32 %v6118, 4294901760
    %v6225 = vsub.f32 %v6118, %v6224
    %v6226 = vand.u32 %v6225, 4294901760
    %v6227 = vsub.f32 %v6225, %v6226
    %v6228 = vand.u32 %v6227, 4294901760
    %6229 = vmatpush1.msra.mxu0 %v6228
    %6230 = vmatprep.subr.mxu0 0.0
    %v6231 = vand.u32 %v6119, 4294901760
    %v6232 = vsub.f32 %v6119, %v6231
    %v6233 = vand.u32 %v6232, 4294901760
    %v6234 = vsub.f32 %v6232, %v6233
    %v6235 = vand.u32 %v6234, 4294901760
    %6236 = vmatpush1.msra.mxu0 %v6235
    %6237 = vmatprep.subr.mxu0 0.0
    %v6238 = vand.u32 %v6120, 4294901760
    %v6239 = vsub.f32 %v6120, %v6238
    %v6240 = vand.u32 %v6239, 4294901760
    %v6241 = vsub.f32 %v6239, %v6240
    %v6242 = vand.u32 %v6241, 4294901760
    %6243 = vmatpush1.msra.mxu0 %v6242
    %6244 = vmatprep.subr.mxu0 0.0
    %6245 = vmatpush1.msra.mxu0 0.0
    %6246 = vmatprep.subr.mxu0 0.0
    %6247 = vmatpush1.msra.mxu0 0.0
    %6248 = vmatprep.subr.mxu0 0.0
    %6249 = vmatpush1.msra.mxu0 0.0
    %6250 = vmatprep.subr.mxu0 0.0
    %6251 = vmatpush1.msra.mxu0 0.0
    %6252 = vmatprep.subr.mxu0 0.0
    %6253 = vmatpush1.msra.mxu0 0.0
    %6254 = vmatprep.subr.mxu0 0.0
    %6255 = vmatpush1.msra.mxu0 0.0
    %6256 = vmatprep.subr.mxu0 0.0
    %6257 = vmatpush1.msra.mxu0 0.0
    %6258 = vmatprep.subr.mxu0 0.0
    %6259 = vmatpush1.msra.mxu0 0.0
    %6260 = vmatprep.subr.mxu0 0.0
    %6261 = vmatpush1.msra.mxu0 0.0
    %6262 = vmatprep.subr.mxu0 0.0
    %6263 = vmatpush1.msra.mxu0 0.0
    %6264 = vmatprep.subr.mxu0 0.0
    %6265 = vmatpush1.msra.mxu0 0.0
    %6266 = vmatprep.subr.mxu0 0.0
    %6267 = vmatpush1.msra.mxu0 0.0
    %6268 = vmatprep.subr.mxu0 0.0
    %6269 = vmatpush1.msra.mxu0 0.0
    %6270 = vmatprep.subr.mxu0 0.0
    %6271 = vmatpush1.msra.mxu0 0.0
    %6272 = vmatprep.subr.mxu0 0.0
    %6273 = vmatpush1.msra.mxu0 0.0
    %6274 = vmatprep.subr.mxu0 0.0
    %6275 = vmatpush1.msra.mxu0 0.0
    %6276 = vmatprep.subr.mxu0 0.0
    %6277 = vmatpush1.msra.mxu0 0.0
    %6278 = vmatprep.subr.mxu0 0.0
    %6279 = vmatpush1.msra.mxu0 0.0
    %6280 = vmatprep.subr.mxu0 0.0
    %6281 = vmatpush1.msra.mxu0 0.0
    %6282 = vmatprep.subr.mxu0 0.0
    %6283 = vmatpush1.msra.mxu0 0.0
    %6284 = vmatprep.subr.mxu0 0.0
    %6285 = vmatpush1.msra.mxu0 0.0
    %6286 = vmatprep.subr.mxu0 0.0
    %6287 = vmatpush1.msra.mxu0 0.0
    %6288 = vmatprep.subr.mxu0 0.0
    %6289 = vmatpush1.msra.mxu0 0.0
    %6290 = vmatprep.subr.mxu0 0.0
    %6291 = vmatpush1.msra.mxu0 0.0
    %6292 = vmatprep.subr.mxu0 0.0
    %6293 = vmatpush1.msra.mxu0 0.0
    %6294 = vmatprep.subr.mxu0 0.0
    %6295 = vmatpush1.msra.mxu0 0.0
    %6296 = vmatprep.subr.mxu0 0.0
    %6297 = vmatpush1.msra.mxu0 0.0
    %6298 = vmatprep.subr.mxu0 0.0
    %6299 = vmatpush1.msra.mxu0 0.0
    %6300 = vmatprep.mubr.f32.mxu0 0.0
    %v6301 = vand.u32 %v6122, 4294901760
    %6302 = vmatmul.mubr.f32.gmra.mrb[0].mxu0 %v6301
    %v6303 = vpop.f32.mrb[0].mxu0
    %v6304 = vadd.f32 %v6203, %v6303
    %v6305 = vpop.f32.mrb[0].mxu0
    %6306 = vmatprep.mubr.f32.mxu0 0.0
    %v6307 = vand.u32 %v6125, 4294901760
    %6308 = vmatmul.mubr.f32.gmra.mrb[0].mxu0 %v6307
    %v6309 = vpop.f32.mrb[0].mxu0
    %v6310 = vadd.f32 %v6213, %v6309
    %v6311 = vpop.f32.mrb[0].mxu0
    %6312 = vdwg.mxu0
    %6313 = vmatprep.subr.mxu0 0.0
    %v6314 = vand.u32 %v6117, 4294901760
    %v6315 = vsub.f32 %v6117, %v6314
    %6316 = vmatpush1.msra.mxu0 %v6315
    %6317 = vmatprep.subr.mxu0 0.0
    %v6318 = vand.u32 %v6118, 4294901760
    %v6319 = vsub.f32 %v6118, %v6318
    %6320 = vmatpush1.msra.mxu0 %v6319
    %6321 = vmatprep.subr.mxu0 0.0
    %v6322 = vand.u32 %v6119, 4294901760
    %v6323 = vsub.f32 %v6119, %v6322
    %6324 = vmatpush1.msra.mxu0 %v6323
    %6325 = vmatprep.subr.mxu0 0.0
    %v6326 = vand.u32 %v6120, 4294901760
    %v6327 = vsub.f32 %v6120, %v6326
    %6328 = vmatpush1.msra.mxu0 %v6327
    %6329 = vmatprep.subr.mxu0 0.0
    %6330 = vmatpush1.msra.mxu0 0.0
    %6331 = vmatprep.subr.mxu0 0.0
    %6332 = vmatpush1.msra.mxu0 0.0
    %6333 = vmatprep.subr.mxu0 0.0
    %6334 = vmatpush1.msra.mxu0 0.0
    %6335 = vmatprep.subr.mxu0 0.0
    %6336 = vmatpush1.msra.mxu0 0.0
    %6337 = vmatprep.subr.mxu0 0.0
    %6338 = vmatpush1.msra.mxu0 0.0
    %6339 = vmatprep.subr.mxu0 0.0
    %6340 = vmatpush1.msra.mxu0 0.0
    %6341 = vmatprep.subr.mxu0 0.0
    %6342 = vmatpush1.msra.mxu0 0.0
    %6343 = vmatprep.subr.mxu0 0.0
    %6344 = vmatpush1.msra.mxu0 0.0
    %6345 = vmatprep.subr.mxu0 0.0
    %6346 = vmatpush1.msra.mxu0 0.0
    %6347 = vmatprep.subr.mxu0 0.0
    %6348 = vmatpush1.msra.mxu0 0.0
    %6349 = vmatprep.subr.mxu0 0.0
    %6350 = vmatpush1.msra.mxu0 0.0
    %6351 = vmatprep.subr.mxu0 0.0
    %6352 = vmatpush1.msra.mxu0 0.0
    %6353 = vmatprep.subr.mxu0 0.0
    %6354 = vmatpush1.msra.mxu0 0.0
    %6355 = vmatprep.subr.mxu0 0.0
    %6356 = vmatpush1.msra.mxu0 0.0
    %6357 = vmatprep.subr.mxu0 0.0
    %6358 = vmatpush1.msra.mxu0 0.0
    %6359 = vmatprep.subr.mxu0 0.0
    %6360 = vmatpush1.msra.mxu0 0.0
    %6361 = vmatprep.subr.mxu0 0.0
    %6362 = vmatpush1.msra.mxu0 0.0
    %6363 = vmatprep.subr.mxu0 0.0
    %6364 = vmatpush1.msra.mxu0 0.0
    %6365 = vmatprep.subr.mxu0 0.0
    %6366 = vmatpush1.msra.mxu0 0.0
    %6367 = vmatprep.subr.mxu0 0.0
    %6368 = vmatpush1.msra.mxu0 0.0
    %6369 = vmatprep.subr.mxu0 0.0
    %6370 = vmatpush1.msra.mxu0 0.0
    %6371 = vmatprep.subr.mxu0 0.0
    %6372 = vmatpush1.msra.mxu0 0.0
    %6373 = vmatprep.subr.mxu0 0.0
    %6374 = vmatpush1.msra.mxu0 0.0
    %6375 = vmatprep.subr.mxu0 0.0
    %6376 = vmatpush1.msra.mxu0 0.0
    %6377 = vmatprep.subr.mxu0 0.0
    %6378 = vmatpush1.msra.mxu0 0.0
    %6379 = vmatprep.subr.mxu0 0.0
    %6380 = vmatpush1.msra.mxu0 0.0
    %6381 = vmatprep.subr.mxu0 0.0
    %6382 = vmatpush1.msra.mxu0 0.0
    %6383 = vmatprep.subr.mxu0 0.0
    %6384 = vmatpush1.msra.mxu0 0.0
    %6385 = vmatprep.mubr.f32.mxu0 0.0
    %v6386 = vand.u32 %v6122, 4294901760
    %v6387 = vsub.f32 %v6122, %v6386
    %6388 = vmatmul.mubr.f32.gmra.mrb[0].mxu0 %v6387
    %v6389 = vpop.f32.mrb[0].mxu0
    %v6390 = vadd.f32 %v6304, %v6389
    %v6391 = vpop.f32.mrb[0].mxu0
    %6392 = vmatprep.mubr.f32.mxu0 0.0
    %v6393 = vand.u32 %v6125, 4294901760
    %v6394 = vsub.f32 %v6125, %v6393
    %6395 = vmatmul.mubr.f32.gmra.mrb[0].mxu0 %v6394
    %v6396 = vpop.f32.mrb[0].mxu0
    %v6397 = vadd.f32 %v6310, %v6396
    %v6398 = vpop.f32.mrb[0].mxu0
    %6399 = vdwg.mxu0
    %6400 = vmatprep.subr.mxu0 0.0
    %v6401 = vand.u32 %v6117, 4294901760
    %6402 = vmatpush1.msra.mxu0 %v6401
    %6403 = vmatprep.subr.mxu0 0.0
    %v6404 = vand.u32 %v6118, 4294901760
    %6405 = vmatpush1.msra.mxu0 %v6404
    %6406 = vmatprep.subr.mxu0 0.0
    %v6407 = vand.u32 %v6119, 4294901760
    %6408 = vmatpush1.msra.mxu0 %v6407
    %6409 = vmatprep.subr.mxu0 0.0
    %v6410 = vand.u32 %v6120, 4294901760
    %6411 = vmatpush1.msra.mxu0 %v6410
    %6412 = vmatprep.subr.mxu0 0.0
    %6413 = vmatpush1.msra.mxu0 0.0
    %6414 = vmatprep.subr.mxu0 0.0
    %6415 = vmatpush1.msra.mxu0 0.0
    %6416 = vmatprep.subr.mxu0 0.0
    %6417 = vmatpush1.msra.mxu0 0.0
    %6418 = vmatprep.subr.mxu0 0.0
    %6419 = vmatpush1.msra.mxu0 0.0
    %6420 = vmatprep.subr.mxu0 0.0
    %6421 = vmatpush1.msra.mxu0 0.0
    %6422 = vmatprep.subr.mxu0 0.0
    %6423 = vmatpush1.msra.mxu0 0.0
    %6424 = vmatprep.subr.mxu0 0.0
    %6425 = vmatpush1.msra.mxu0 0.0
    %6426 = vmatprep.subr.mxu0 0.0
    %6427 = vmatpush1.msra.mxu0 0.0
    %6428 = vmatprep.subr.mxu0 0.0
    %6429 = vmatpush1.msra.mxu0 0.0
    %6430 = vmatprep.subr.mxu0 0.0
    %6431 = vmatpush1.msra.mxu0 0.0
    %6432 = vmatprep.subr.mxu0 0.0
    %6433 = vmatpush1.msra.mxu0 0.0
    %6434 = vmatprep.subr.mxu0 0.0
    %6435 = vmatpush1.msra.mxu0 0.0
    %6436 = vmatprep.subr.mxu0 0.0
    %6437 = vmatpush1.msra.mxu0 0.0
    %6438 = vmatprep.subr.mxu0 0.0
    %6439 = vmatpush1.msra.mxu0 0.0
    %6440 = vmatprep.subr.mxu0 0.0
    %6441 = vmatpush1.msra.mxu0 0.0
    %6442 = vmatprep.subr.mxu0 0.0
    %6443 = vmatpush1.msra.mxu0 0.0
    %6444 = vmatprep.subr.mxu0 0.0
    %6445 = vmatpush1.msra.mxu0 0.0
    %6446 = vmatprep.subr.mxu0 0.0
    %6447 = vmatpush1.msra.mxu0 0.0
    %6448 = vmatprep.subr.mxu0 0.0
    %6449 = vmatpush1.msra.mxu0 0.0
    %6450 = vmatprep.subr.mxu0 0.0
    %6451 = vmatpush1.msra.mxu0 0.0
    %6452 = vmatprep.subr.mxu0 0.0
    %6453 = vmatpush1.msra.mxu0 0.0
    %6454 = vmatprep.subr.mxu0 0.0
    %6455 = vmatpush1.msra.mxu0 0.0
    %6456 = vmatprep.subr.mxu0 0.0
    %6457 = vmatpush1.msra.mxu0 0.0
    %6458 = vmatprep.subr.mxu0 0.0
    %6459 = vmatpush1.msra.mxu0 0.0
    %6460 = vmatprep.subr.mxu0 0.0
    %6461 = vmatpush1.msra.mxu0 0.0
    %6462 = vmatprep.subr.mxu0 0.0
    %6463 = vmatpush1.msra.mxu0 0.0
    %6464 = vmatprep.subr.mxu0 0.0
    %6465 = vmatpush1.msra.mxu0 0.0
    %6466 = vmatprep.subr.mxu0 0.0
    %6467 = vmatpush1.msra.mxu0 0.0
    %6468 = vmatprep.mubr.f32.mxu0 0.0
    %v6469 = vand.u32 %v6122, 4294901760
    %v6470 = vsub.f32 %v6122, %v6469
    %v6471 = vand.u32 %v6470, 4294901760
    %6472 = vmatmul.mubr.f32.gmra.mrb[0].mxu0 %v6471
    %v6473 = vpop.f32.mrb[0].mxu0
    %v6474 = vadd.f32 %v6390, %v6473
    %v6475 = vpop.f32.mrb[0].mxu0
    %6476 = vmatprep.mubr.f32.mxu0 0.0
    %v6477 = vand.u32 %v6125, 4294901760
    %v6478 = vsub.f32 %v6125, %v6477
    %v6479 = vand.u32 %v6478, 4294901760
    %6480 = vmatmul.mubr.f32.gmra.mrb[0].mxu0 %v6479
    %v6481 = vpop.f32.mrb[0].mxu0
    %v6482 = vadd.f32 %v6397, %v6481
    %v6483 = vpop.f32.mrb[0].mxu0
    %6484 = vdwg.mxu0
    %6485 = vmatprep.subr.mxu0 0.0
    %v6486 = vand.u32 %v6117, 4294901760
    %v6487 = vsub.f32 %v6117, %v6486
    %v6488 = vand.u32 %v6487, 4294901760
    %6489 = vmatpush1.msra.mxu0 %v6488
    %6490 = vmatprep.subr.mxu0 0.0
    %v6491 = vand.u32 %v6118, 4294901760
    %v6492 = vsub.f32 %v6118, %v6491
    %v6493 = vand.u32 %v6492, 4294901760
    %6494 = vmatpush1.msra.mxu0 %v6493
    %6495 = vmatprep.subr.mxu0 0.0
    %v6496 = vand.u32 %v6119, 4294901760
    %v6497 = vsub.f32 %v6119, %v6496
    %v6498 = vand.u32 %v6497, 4294901760
    %6499 = vmatpush1.msra.mxu0 %v6498
    %6500 = vmatprep.subr.mxu0 0.0
    %v6501 = vand.u32 %v6120, 4294901760
    %v6502 = vsub.f32 %v6120, %v6501
    %v6503 = vand.u32 %v6502, 4294901760
    %6504 = vmatpush1.msra.mxu0 %v6503
    %6505 = vmatprep.subr.mxu0 0.0
    %6506 = vmatpush1.msra.mxu0 0.0
    %6507 = vmatprep.subr.mxu0 0.0
    %6508 = vmatpush1.msra.mxu0 0.0
    %6509 = vmatprep.subr.mxu0 0.0
    %6510 = vmatpush1.msra.mxu0 0.0
    %6511 = vmatprep.subr.mxu0 0.0
    %6512 = vmatpush1.msra.mxu0 0.0
    %6513 = vmatprep.subr.mxu0 0.0
    %6514 = vmatpush1.msra.mxu0 0.0
    %6515 = vmatprep.subr.mxu0 0.0
    %6516 = vmatpush1.msra.mxu0 0.0
    %6517 = vmatprep.subr.mxu0 0.0
    %6518 = vmatpush1.msra.mxu0 0.0
    %6519 = vmatprep.subr.mxu0 0.0
    %6520 = vmatpush1.msra.mxu0 0.0
    %6521 = vmatprep.subr.mxu0 0.0
    %6522 = vmatpush1.msra.mxu0 0.0
    %6523 = vmatprep.subr.mxu0 0.0
    %6524 = vmatpush1.msra.mxu0 0.0
    %6525 = vmatprep.subr.mxu0 0.0
    %6526 = vmatpush1.msra.mxu0 0.0
    %6527 = vmatprep.subr.mxu0 0.0
    %6528 = vmatpush1.msra.mxu0 0.0
    %6529 = vmatprep.subr.mxu0 0.0
    %6530 = vmatpush1.msra.mxu0 0.0
    %6531 = vmatprep.subr.mxu0 0.0
    %6532 = vmatpush1.msra.mxu0 0.0
    %6533 = vmatprep.subr.mxu0 0.0
    %6534 = vmatpush1.msra.mxu0 0.0
    %6535 = vmatprep.subr.mxu0 0.0
    %6536 = vmatpush1.msra.mxu0 0.0
    %6537 = vmatprep.subr.mxu0 0.0
    %6538 = vmatpush1.msra.mxu0 0.0
    %6539 = vmatprep.subr.mxu0 0.0
    %6540 = vmatpush1.msra.mxu0 0.0
    %6541 = vmatprep.subr.mxu0 0.0
    %6542 = vmatpush1.msra.mxu0 0.0
    %6543 = vmatprep.subr.mxu0 0.0
    %6544 = vmatpush1.msra.mxu0 0.0
    %6545 = vmatprep.subr.mxu0 0.0
    %6546 = vmatpush1.msra.mxu0 0.0
    %6547 = vmatprep.subr.mxu0 0.0
    %6548 = vmatpush1.msra.mxu0 0.0
    %6549 = vmatprep.subr.mxu0 0.0
    %6550 = vmatpush1.msra.mxu0 0.0
    %6551 = vmatprep.subr.mxu0 0.0
    %6552 = vmatpush1.msra.mxu0 0.0
    %6553 = vmatprep.subr.mxu0 0.0
    %6554 = vmatpush1.msra.mxu0 0.0
    %6555 = vmatprep.subr.mxu0 0.0
    %6556 = vmatpush1.msra.mxu0 0.0
    %6557 = vmatprep.subr.mxu0 0.0
    %6558 = vmatpush1.msra.mxu0 0.0
    %6559 = vmatprep.subr.mxu0 0.0
    %6560 = vmatpush1.msra.mxu0 0.0
    %6561 = vmatprep.mubr.f32.mxu0 0.0
    %v6562 = vand.u32 %v6122, 4294901760
    %6563 = vmatmul.mubr.f32.gmra.mrb[0].mxu0 %v6562
    %v6564 = vpop.f32.mrb[0].mxu0
    %v6565 = vadd.f32 %v6474, %v6564
    %v6566 = vpop.f32.mrb[0].mxu0
    %6567 = vmatprep.mubr.f32.mxu0 0.0
    %v6568 = vand.u32 %v6125, 4294901760
    %6569 = vmatmul.mubr.f32.gmra.mrb[0].mxu0 %v6568
    %v6570 = vpop.f32.mrb[0].mxu0
    %v6571 = vadd.f32 %v6482, %v6570
    %v6572 = vpop.f32.mrb[0].mxu0
    %6573 = vdwg.mxu0
    %6574 = vmatprep.subr.mxu0 0.0
    %v6575 = vand.u32 %v6117, 4294901760
    %6576 = vmatpush1.msra.mxu0 %v6575
    %6577 = vmatprep.subr.mxu0 0.0
    %v6578 = vand.u32 %v6118, 4294901760
    %6579 = vmatpush1.msra.mxu0 %v6578
    %6580 = vmatprep.subr.mxu0 0.0
    %v6581 = vand.u32 %v6119, 4294901760
    %6582 = vmatpush1.msra.mxu0 %v6581
    %6583 = vmatprep.subr.mxu0 0.0
    %v6584 = vand.u32 %v6120, 4294901760
    %6585 = vmatpush1.msra.mxu0 %v6584
    %6586 = vmatprep.subr.mxu0 0.0
    %6587 = vmatpush1.msra.mxu0 0.0
    %6588 = vmatprep.subr.mxu0 0.0
    %6589 = vmatpush1.msra.mxu0 0.0
    %6590 = vmatprep.subr.mxu0 0.0
    %6591 = vmatpush1.msra.mxu0 0.0
    %6592 = vmatprep.subr.mxu0 0.0
    %6593 = vmatpush1.msra.mxu0 0.0
    %6594 = vmatprep.subr.mxu0 0.0
    %6595 = vmatpush1.msra.mxu0 0.0
    %6596 = vmatprep.subr.mxu0 0.0
    %6597 = vmatpush1.msra.mxu0 0.0
    %6598 = vmatprep.subr.mxu0 0.0
    %6599 = vmatpush1.msra.mxu0 0.0
    %6600 = vmatprep.subr.mxu0 0.0
    %6601 = vmatpush1.msra.mxu0 0.0
    %6602 = vmatprep.subr.mxu0 0.0
    %6603 = vmatpush1.msra.mxu0 0.0
    %6604 = vmatprep.subr.mxu0 0.0
    %6605 = vmatpush1.msra.mxu0 0.0
    %6606 = vmatprep.subr.mxu0 0.0
    %6607 = vmatpush1.msra.mxu0 0.0
    %6608 = vmatprep.subr.mxu0 0.0
    %6609 = vmatpush1.msra.mxu0 0.0
    %6610 = vmatprep.subr.mxu0 0.0
    %6611 = vmatpush1.msra.mxu0 0.0
    %6612 = vmatprep.subr.mxu0 0.0
    %6613 = vmatpush1.msra.mxu0 0.0
    %6614 = vmatprep.subr.mxu0 0.0
    %6615 = vmatpush1.msra.mxu0 0.0
    %6616 = vmatprep.subr.mxu0 0.0
    %6617 = vmatpush1.msra.mxu0 0.0
    %6618 = vmatprep.subr.mxu0 0.0
    %6619 = vmatpush1.msra.mxu0 0.0
    %6620 = vmatprep.subr.mxu0 0.0
    %6621 = vmatpush1.msra.mxu0 0.0
    %6622 = vmatprep.subr.mxu0 0.0
    %6623 = vmatpush1.msra.mxu0 0.0
    %6624 = vmatprep.subr.mxu0 0.0
    %6625 = vmatpush1.msra.mxu0 0.0
    %6626 = vmatprep.subr.mxu0 0.0
    %6627 = vmatpush1.msra.mxu0 0.0
    %6628 = vmatprep.subr.mxu0 0.0
    %6629 = vmatpush1.msra.mxu0 0.0
    %6630 = vmatprep.subr.mxu0 0.0
    %6631 = vmatpush1.msra.mxu0 0.0
    %6632 = vmatprep.subr.mxu0 0.0
    %6633 = vmatpush1.msra.mxu0 0.0
    %6634 = vmatprep.subr.mxu0 0.0
    %6635 = vmatpush1.msra.mxu0 0.0
    %6636 = vmatprep.subr.mxu0 0.0
    %6637 = vmatpush1.msra.mxu0 0.0
    %6638 = vmatprep.subr.mxu0 0.0
    %6639 = vmatpush1.msra.mxu0 0.0
    %6640 = vmatprep.subr.mxu0 0.0
    %6641 = vmatpush1.msra.mxu0 0.0
    %6642 = vmatprep.mubr.f32.mxu0 0.0
    %v6643 = vand.u32 %v6122, 4294901760
    %6644 = vmatmul.mubr.f32.gmra.mrb[0].mxu0 %v6643
    %v6645 = vpop.f32.mrb[0].mxu0
    %v6646 = vadd.f32 %v6565, %v6645
    %v6647 = vpop.f32.mrb[0].mxu0
    %6648 = vmatprep.mubr.f32.mxu0 0.0
    %v6649 = vand.u32 %v6125, 4294901760
    %6650 = vmatmul.mubr.f32.gmra.mrb[0].mxu0 %v6649
    %v6651 = vpop.f32.mrb[0].mxu0
    %v6652 = vadd.f32 %v6571, %v6651
    %v6653 = vpop.f32.mrb[0].mxu0
    %6654 = vdwg.mxu0
    %6656 = vrot.lane.b32.xlu0 %v6646, 96
    %v6657 = vpop.permute.xlu0 %6656
    %v6658 = vsel %vm645, %v6646, 0
    %v6660 = vsel %vm645, %v6657, 0
    %6662 = vmatprep.subr.mxu0 0.0
    %v6663 = vand.u32 %v6660, 4294901760
    %6664 = vmatpush1.xpose.msra.mxu0 %v6663
    %6665 = vmatprep.subr.mxu0 0.0
    %6666 = vmatpush1.xpose.msra.mxu0 0.0
    %6667 = vmatprep.subr.mxu0 0.0
    %6668 = vmatpush1.xpose.msra.mxu0 0.0
    %6669 = vmatprep.subr.mxu0 0.0
    %6670 = vmatpush1.xpose.msra.mxu0 0.0
    %6671 = vmatprep.subr.mxu0 0.0
    %6672 = vmatpush1.xpose.msra.mxu0 0.0
    %6673 = vmatprep.subr.mxu0 0.0
    %6674 = vmatpush1.xpose.msra.mxu0 0.0
    %6675 = vmatprep.subr.mxu0 0.0
    %6676 = vmatpush1.xpose.msra.mxu0 0.0
    %6677 = vmatprep.subr.mxu0 0.0
    %6678 = vmatpush1.xpose.msra.mxu0 0.0
    %6679 = vmatprep.subr.mxu0 0.0
    %6680 = vmatpush1.xpose.msra.mxu0 0.0
    %6681 = vmatprep.subr.mxu0 0.0
    %6682 = vmatpush1.xpose.msra.mxu0 0.0
    %6683 = vmatprep.subr.mxu0 0.0
    %6684 = vmatpush1.xpose.msra.mxu0 0.0
    %6685 = vmatprep.subr.mxu0 0.0
    %6686 = vmatpush1.xpose.msra.mxu0 0.0
    %6687 = vmatprep.subr.mxu0 0.0
    %6688 = vmatpush1.xpose.msra.mxu0 0.0
    %6689 = vmatprep.subr.mxu0 0.0
    %6690 = vmatpush1.xpose.msra.mxu0 0.0
    %6691 = vmatprep.subr.mxu0 0.0
    %6692 = vmatpush1.xpose.msra.mxu0 0.0
    %6693 = vmatprep.subr.mxu0 0.0
    %6694 = vmatpush1.xpose.msra.mxu0 0.0
    %6695 = vmatprep.subr.mxu0 0.0
    %6696 = vmatpush1.xpose.msra.mxu0 0.0
    %6697 = vmatprep.subr.mxu0 0.0
    %6698 = vmatpush1.xpose.msra.mxu0 0.0
    %6699 = vmatprep.subr.mxu0 0.0
    %6700 = vmatpush1.xpose.msra.mxu0 0.0
    %6701 = vmatprep.subr.mxu0 0.0
    %6702 = vmatpush1.xpose.msra.mxu0 0.0
    %6703 = vmatprep.subr.mxu0 0.0
    %6704 = vmatpush1.xpose.msra.mxu0 0.0
    %6705 = vmatprep.subr.mxu0 0.0
    %6706 = vmatpush1.xpose.msra.mxu0 0.0
    %6707 = vmatprep.subr.mxu0 0.0
    %6708 = vmatpush1.xpose.msra.mxu0 0.0
    %6709 = vmatprep.subr.mxu0 0.0
    %6710 = vmatpush1.xpose.msra.mxu0 0.0
    %6711 = vmatprep.subr.mxu0 0.0
    %6712 = vmatpush1.xpose.msra.mxu0 0.0
    %6713 = vmatprep.subr.mxu0 0.0
    %6714 = vmatpush1.xpose.msra.mxu0 0.0
    %6715 = vmatprep.subr.mxu0 0.0
    %6716 = vmatpush1.xpose.msra.mxu0 0.0
    %6717 = vmatprep.subr.mxu0 0.0
    %6718 = vmatpush1.xpose.msra.mxu0 0.0
    %6719 = vmatprep.subr.mxu0 0.0
    %6720 = vmatpush1.xpose.msra.mxu0 0.0
    %6721 = vmatprep.subr.mxu0 0.0
    %6722 = vmatpush1.xpose.msra.mxu0 0.0
    %6723 = vmatprep.subr.mxu0 0.0
    %6724 = vmatpush1.xpose.msra.mxu0 0.0
    %6725 = vmatprep.subr.mxu0 0.0
    %6726 = vmatpush1.xpose.msra.mxu0 0.0
    %6727 = vmatprep.mubr.f32.mxu0 0.0
    %v6728 = vand.u32 %v6658, 4294901760
    %v6729 = vsub.f32 %v6658, %v6728
    %v6730 = vand.u32 %v6729, 4294901760
    %v6731 = vsub.f32 %v6729, %v6730
    %v6732 = vand.u32 %v6731, 4294901760
    %6733 = vmatmul.mubr.f32.gmra.mrb[0].mxu0 %v6732
    %v6734 = vpop.f32.mrb[0].mxu0
    %v6735 = vadd.f32 0.0, %v6734
    %v6736 = vpop.f32.mrb[0].mxu0
    %6737 = vdwg.mxu0
    %6738 = vmatprep.subr.mxu0 0.0
    %v6739 = vand.u32 %v6660, 4294901760
    %v6740 = vsub.f32 %v6660, %v6739
    %v6741 = vand.u32 %v6740, 4294901760
    %v6742 = vsub.f32 %v6740, %v6741
    %v6743 = vand.u32 %v6742, 4294901760
    %6744 = vmatpush1.xpose.msra.mxu0 %v6743
    %6745 = vmatprep.subr.mxu0 0.0
    %6746 = vmatpush1.xpose.msra.mxu0 0.0
    %6747 = vmatprep.subr.mxu0 0.0
    %6748 = vmatpush1.xpose.msra.mxu0 0.0
    %6749 = vmatprep.subr.mxu0 0.0
    %6750 = vmatpush1.xpose.msra.mxu0 0.0
    %6751 = vmatprep.subr.mxu0 0.0
    %6752 = vmatpush1.xpose.msra.mxu0 0.0
    %6753 = vmatprep.subr.mxu0 0.0
    %6754 = vmatpush1.xpose.msra.mxu0 0.0
    %6755 = vmatprep.subr.mxu0 0.0
    %6756 = vmatpush1.xpose.msra.mxu0 0.0
    %6757 = vmatprep.subr.mxu0 0.0
    %6758 = vmatpush1.xpose.msra.mxu0 0.0
    %6759 = vmatprep.subr.mxu0 0.0
    %6760 = vmatpush1.xpose.msra.mxu0 0.0
    %6761 = vmatprep.subr.mxu0 0.0
    %6762 = vmatpush1.xpose.msra.mxu0 0.0
    %6763 = vmatprep.subr.mxu0 0.0
    %6764 = vmatpush1.xpose.msra.mxu0 0.0
    %6765 = vmatprep.subr.mxu0 0.0
    %6766 = vmatpush1.xpose.msra.mxu0 0.0
    %6767 = vmatprep.subr.mxu0 0.0
    %6768 = vmatpush1.xpose.msra.mxu0 0.0
    %6769 = vmatprep.subr.mxu0 0.0
    %6770 = vmatpush1.xpose.msra.mxu0 0.0
    %6771 = vmatprep.subr.mxu0 0.0
    %6772 = vmatpush1.xpose.msra.mxu0 0.0
    %6773 = vmatprep.subr.mxu0 0.0
    %6774 = vmatpush1.xpose.msra.mxu0 0.0
    %6775 = vmatprep.subr.mxu0 0.0
    %6776 = vmatpush1.xpose.msra.mxu0 0.0
    %6777 = vmatprep.subr.mxu0 0.0
    %6778 = vmatpush1.xpose.msra.mxu0 0.0
    %6779 = vmatprep.subr.mxu0 0.0
    %6780 = vmatpush1.xpose.msra.mxu0 0.0
    %6781 = vmatprep.subr.mxu0 0.0
    %6782 = vmatpush1.xpose.msra.mxu0 0.0
    %6783 = vmatprep.subr.mxu0 0.0
    %6784 = vmatpush1.xpose.msra.mxu0 0.0
    %6785 = vmatprep.subr.mxu0 0.0
    %6786 = vmatpush1.xpose.msra.mxu0 0.0
    %6787 = vmatprep.subr.mxu0 0.0
    %6788 = vmatpush1.xpose.msra.mxu0 0.0
    %6789 = vmatprep.subr.mxu0 0.0
    %6790 = vmatpush1.xpose.msra.mxu0 0.0
    %6791 = vmatprep.subr.mxu0 0.0
    %6792 = vmatpush1.xpose.msra.mxu0 0.0
    %6793 = vmatprep.subr.mxu0 0.0
    %6794 = vmatpush1.xpose.msra.mxu0 0.0
    %6795 = vmatprep.subr.mxu0 0.0
    %6796 = vmatpush1.xpose.msra.mxu0 0.0
    %6797 = vmatprep.subr.mxu0 0.0
    %6798 = vmatpush1.xpose.msra.mxu0 0.0
    %6799 = vmatprep.subr.mxu0 0.0
    %6800 = vmatpush1.xpose.msra.mxu0 0.0
    %6801 = vmatprep.subr.mxu0 0.0
    %6802 = vmatpush1.xpose.msra.mxu0 0.0
    %6803 = vmatprep.subr.mxu0 0.0
    %6804 = vmatpush1.xpose.msra.mxu0 0.0
    %6805 = vmatprep.subr.mxu0 0.0
    %6806 = vmatpush1.xpose.msra.mxu0 0.0
    %6807 = vmatprep.mubr.f32.mxu0 0.0
    %v6808 = vand.u32 %v6658, 4294901760
    %6809 = vmatmul.mubr.f32.gmra.mrb[0].mxu0 %v6808
    %v6810 = vpop.f32.mrb[0].mxu0
    %v6811 = vadd.f32 %v6735, %v6810
    %v6812 = vpop.f32.mrb[0].mxu0
    %6813 = vdwg.mxu0
    %6814 = vmatprep.subr.mxu0 0.0
    %v6815 = vand.u32 %v6660, 4294901760
    %v6816 = vsub.f32 %v6660, %v6815
    %6817 = vmatpush1.xpose.msra.mxu0 %v6816
    %6818 = vmatprep.subr.mxu0 0.0
    %6819 = vmatpush1.xpose.msra.mxu0 0.0
    %6820 = vmatprep.subr.mxu0 0.0
    %6821 = vmatpush1.xpose.msra.mxu0 0.0
    %6822 = vmatprep.subr.mxu0 0.0
    %6823 = vmatpush1.xpose.msra.mxu0 0.0
    %6824 = vmatprep.subr.mxu0 0.0
    %6825 = vmatpush1.xpose.msra.mxu0 0.0
    %6826 = vmatprep.subr.mxu0 0.0
    %6827 = vmatpush1.xpose.msra.mxu0 0.0
    %6828 = vmatprep.subr.mxu0 0.0
    %6829 = vmatpush1.xpose.msra.mxu0 0.0
    %6830 = vmatprep.subr.mxu0 0.0
    %6831 = vmatpush1.xpose.msra.mxu0 0.0
    %6832 = vmatprep.subr.mxu0 0.0
    %6833 = vmatpush1.xpose.msra.mxu0 0.0
    %6834 = vmatprep.subr.mxu0 0.0
    %6835 = vmatpush1.xpose.msra.mxu0 0.0
    %6836 = vmatprep.subr.mxu0 0.0
    %6837 = vmatpush1.xpose.msra.mxu0 0.0
    %6838 = vmatprep.subr.mxu0 0.0
    %6839 = vmatpush1.xpose.msra.mxu0 0.0
    %6840 = vmatprep.subr.mxu0 0.0
    %6841 = vmatpush1.xpose.msra.mxu0 0.0
    %6842 = vmatprep.subr.mxu0 0.0
    %6843 = vmatpush1.xpose.msra.mxu0 0.0
    %6844 = vmatprep.subr.mxu0 0.0
    %6845 = vmatpush1.xpose.msra.mxu0 0.0
    %6846 = vmatprep.subr.mxu0 0.0
    %6847 = vmatpush1.xpose.msra.mxu0 0.0
    %6848 = vmatprep.subr.mxu0 0.0
    %6849 = vmatpush1.xpose.msra.mxu0 0.0
    %6850 = vmatprep.subr.mxu0 0.0
    %6851 = vmatpush1.xpose.msra.mxu0 0.0
    %6852 = vmatprep.subr.mxu0 0.0
    %6853 = vmatpush1.xpose.msra.mxu0 0.0
    %6854 = vmatprep.subr.mxu0 0.0
    %6855 = vmatpush1.xpose.msra.mxu0 0.0
    %6856 = vmatprep.subr.mxu0 0.0
    %6857 = vmatpush1.xpose.msra.mxu0 0.0
    %6858 = vmatprep.subr.mxu0 0.0
    %6859 = vmatpush1.xpose.msra.mxu0 0.0
    %6860 = vmatprep.subr.mxu0 0.0
    %6861 = vmatpush1.xpose.msra.mxu0 0.0
    %6862 = vmatprep.subr.mxu0 0.0
    %6863 = vmatpush1.xpose.msra.mxu0 0.0
    %6864 = vmatprep.subr.mxu0 0.0
    %6865 = vmatpush1.xpose.msra.mxu0 0.0
    %6866 = vmatprep.subr.mxu0 0.0
    %6867 = vmatpush1.xpose.msra.mxu0 0.0
    %6868 = vmatprep.subr.mxu0 0.0
    %6869 = vmatpush1.xpose.msra.mxu0 0.0
    %6870 = vmatprep.subr.mxu0 0.0
    %6871 = vmatpush1.xpose.msra.mxu0 0.0
    %6872 = vmatprep.subr.mxu0 0.0
    %6873 = vmatpush1.xpose.msra.mxu0 0.0
    %6874 = vmatprep.subr.mxu0 0.0
    %6875 = vmatpush1.xpose.msra.mxu0 0.0
    %6876 = vmatprep.subr.mxu0 0.0
    %6877 = vmatpush1.xpose.msra.mxu0 0.0
    %6878 = vmatprep.subr.mxu0 0.0
    %6879 = vmatpush1.xpose.msra.mxu0 0.0
    %6880 = vmatprep.mubr.f32.mxu0 0.0
    %v6881 = vand.u32 %v6658, 4294901760
    %v6882 = vsub.f32 %v6658, %v6881
    %6883 = vmatmul.mubr.f32.gmra.mrb[0].mxu0 %v6882
    %v6884 = vpop.f32.mrb[0].mxu0
    %v6885 = vadd.f32 %v6811, %v6884
    %v6886 = vpop.f32.mrb[0].mxu0
    %6887 = vdwg.mxu0
    %6888 = vmatprep.subr.mxu0 0.0
    %v6889 = vand.u32 %v6660, 4294901760
    %6890 = vmatpush1.xpose.msra.mxu0 %v6889
    %6891 = vmatprep.subr.mxu0 0.0
    %6892 = vmatpush1.xpose.msra.mxu0 0.0
    %6893 = vmatprep.subr.mxu0 0.0
    %6894 = vmatpush1.xpose.msra.mxu0 0.0
    %6895 = vmatprep.subr.mxu0 0.0
    %6896 = vmatpush1.xpose.msra.mxu0 0.0
    %6897 = vmatprep.subr.mxu0 0.0
    %6898 = vmatpush1.xpose.msra.mxu0 0.0
    %6899 = vmatprep.subr.mxu0 0.0
    %6900 = vmatpush1.xpose.msra.mxu0 0.0
    %6901 = vmatprep.subr.mxu0 0.0
    %6902 = vmatpush1.xpose.msra.mxu0 0.0
    %6903 = vmatprep.subr.mxu0 0.0
    %6904 = vmatpush1.xpose.msra.mxu0 0.0
    %6905 = vmatprep.subr.mxu0 0.0
    %6906 = vmatpush1.xpose.msra.mxu0 0.0
    %6907 = vmatprep.subr.mxu0 0.0
    %6908 = vmatpush1.xpose.msra.mxu0 0.0
    %6909 = vmatprep.subr.mxu0 0.0
    %6910 = vmatpush1.xpose.msra.mxu0 0.0
    %6911 = vmatprep.subr.mxu0 0.0
    %6912 = vmatpush1.xpose.msra.mxu0 0.0
    %6913 = vmatprep.subr.mxu0 0.0
    %6914 = vmatpush1.xpose.msra.mxu0 0.0
    %6915 = vmatprep.subr.mxu0 0.0
    %6916 = vmatpush1.xpose.msra.mxu0 0.0
    %6917 = vmatprep.subr.mxu0 0.0
    %6918 = vmatpush1.xpose.msra.mxu0 0.0
    %6919 = vmatprep.subr.mxu0 0.0
    %6920 = vmatpush1.xpose.msra.mxu0 0.0
    %6921 = vmatprep.subr.mxu0 0.0
    %6922 = vmatpush1.xpose.msra.mxu0 0.0
    %6923 = vmatprep.subr.mxu0 0.0
    %6924 = vmatpush1.xpose.msra.mxu0 0.0
    %6925 = vmatprep.subr.mxu0 0.0
    %6926 = vmatpush1.xpose.msra.mxu0 0.0
    %6927 = vmatprep.subr.mxu0 0.0
    %6928 = vmatpush1.xpose.msra.mxu0 0.0
    %6929 = vmatprep.subr.mxu0 0.0
    %6930 = vmatpush1.xpose.msra.mxu0 0.0
    %6931 = vmatprep.subr.mxu0 0.0
    %6932 = vmatpush1.xpose.msra.mxu0 0.0
    %6933 = vmatprep.subr.mxu0 0.0
    %6934 = vmatpush1.xpose.msra.mxu0 0.0
    %6935 = vmatprep.subr.mxu0 0.0
    %6936 = vmatpush1.xpose.msra.mxu0 0.0
    %6937 = vmatprep.subr.mxu0 0.0
    %6938 = vmatpush1.xpose.msra.mxu0 0.0
    %6939 = vmatprep.subr.mxu0 0.0
    %6940 = vmatpush1.xpose.msra.mxu0 0.0
    %6941 = vmatprep.subr.mxu0 0.0
    %6942 = vmatpush1.xpose.msra.mxu0 0.0
    %6943 = vmatprep.subr.mxu0 0.0
    %6944 = vmatpush1.xpose.msra.mxu0 0.0
    %6945 = vmatprep.subr.mxu0 0.0
    %6946 = vmatpush1.xpose.msra.mxu0 0.0
    %6947 = vmatprep.subr.mxu0 0.0
    %6948 = vmatpush1.xpose.msra.mxu0 0.0
    %6949 = vmatprep.subr.mxu0 0.0
    %6950 = vmatpush1.xpose.msra.mxu0 0.0
    %6951 = vmatprep.subr.mxu0 0.0
    %6952 = vmatpush1.xpose.msra.mxu0 0.0
    %6953 = vmatprep.mubr.f32.mxu0 0.0
    %v6954 = vand.u32 %v6658, 4294901760
    %v6955 = vsub.f32 %v6658, %v6954
    %v6956 = vand.u32 %v6955, 4294901760
    %6957 = vmatmul.mubr.f32.gmra.mrb[0].mxu0 %v6956
    %v6958 = vpop.f32.mrb[0].mxu0
    %v6959 = vadd.f32 %v6885, %v6958
    %v6960 = vpop.f32.mrb[0].mxu0
    %6961 = vdwg.mxu0
    %6962 = vmatprep.subr.mxu0 0.0
    %v6963 = vand.u32 %v6660, 4294901760
    %v6964 = vsub.f32 %v6660, %v6963
    %v6965 = vand.u32 %v6964, 4294901760
    %6966 = vmatpush1.xpose.msra.mxu0 %v6965
    %6967 = vmatprep.subr.mxu0 0.0
    %6968 = vmatpush1.xpose.msra.mxu0 0.0
    %6969 = vmatprep.subr.mxu0 0.0
    %6970 = vmatpush1.xpose.msra.mxu0 0.0
    %6971 = vmatprep.subr.mxu0 0.0
    %6972 = vmatpush1.xpose.msra.mxu0 0.0
    %6973 = vmatprep.subr.mxu0 0.0
    %6974 = vmatpush1.xpose.msra.mxu0 0.0
    %6975 = vmatprep.subr.mxu0 0.0
    %6976 = vmatpush1.xpose.msra.mxu0 0.0
    %6977 = vmatprep.subr.mxu0 0.0
    %6978 = vmatpush1.xpose.msra.mxu0 0.0
    %6979 = vmatprep.subr.mxu0 0.0
    %6980 = vmatpush1.xpose.msra.mxu0 0.0
    %6981 = vmatprep.subr.mxu0 0.0
    %6982 = vmatpush1.xpose.msra.mxu0 0.0
    %6983 = vmatprep.subr.mxu0 0.0
    %6984 = vmatpush1.xpose.msra.mxu0 0.0
    %6985 = vmatprep.subr.mxu0 0.0
    %6986 = vmatpush1.xpose.msra.mxu0 0.0
    %6987 = vmatprep.subr.mxu0 0.0
    %6988 = vmatpush1.xpose.msra.mxu0 0.0
    %6989 = vmatprep.subr.mxu0 0.0
    %6990 = vmatpush1.xpose.msra.mxu0 0.0
    %6991 = vmatprep.subr.mxu0 0.0
    %6992 = vmatpush1.xpose.msra.mxu0 0.0
    %6993 = vmatprep.subr.mxu0 0.0
    %6994 = vmatpush1.xpose.msra.mxu0 0.0
    %6995 = vmatprep.subr.mxu0 0.0
    %6996 = vmatpush1.xpose.msra.mxu0 0.0
    %6997 = vmatprep.subr.mxu0 0.0
    %6998 = vmatpush1.xpose.msra.mxu0 0.0
    %6999 = vmatprep.subr.mxu0 0.0
    %7000 = vmatpush1.xpose.msra.mxu0 0.0
    %7001 = vmatprep.subr.mxu0 0.0
    %7002 = vmatpush1.xpose.msra.mxu0 0.0
    %7003 = vmatprep.subr.mxu0 0.0
    %7004 = vmatpush1.xpose.msra.mxu0 0.0
    %7005 = vmatprep.subr.mxu0 0.0
    %7006 = vmatpush1.xpose.msra.mxu0 0.0
    %7007 = vmatprep.subr.mxu0 0.0
    %7008 = vmatpush1.xpose.msra.mxu0 0.0
    %7009 = vmatprep.subr.mxu0 0.0
    %7010 = vmatpush1.xpose.msra.mxu0 0.0
    %7011 = vmatprep.subr.mxu0 0.0
    %7012 = vmatpush1.xpose.msra.mxu0 0.0
    %7013 = vmatprep.subr.mxu0 0.0
    %7014 = vmatpush1.xpose.msra.mxu0 0.0
    %7015 = vmatprep.subr.mxu0 0.0
    %7016 = vmatpush1.xpose.msra.mxu0 0.0
    %7017 = vmatprep.subr.mxu0 0.0
    %7018 = vmatpush1.xpose.msra.mxu0 0.0
    %7019 = vmatprep.subr.mxu0 0.0
    %7020 = vmatpush1.xpose.msra.mxu0 0.0
    %7021 = vmatprep.subr.mxu0 0.0
    %7022 = vmatpush1.xpose.msra.mxu0 0.0
    %7023 = vmatprep.subr.mxu0 0.0
    %7024 = vmatpush1.xpose.msra.mxu0 0.0
    %7025 = vmatprep.subr.mxu0 0.0
    %7026 = vmatpush1.xpose.msra.mxu0 0.0
    %7027 = vmatprep.subr.mxu0 0.0
    %7028 = vmatpush1.xpose.msra.mxu0 0.0
    %7029 = vmatprep.mubr.f32.mxu0 0.0
    %v7030 = vand.u32 %v6658, 4294901760
    %7031 = vmatmul.mubr.f32.gmra.mrb[0].mxu0 %v7030
    %v7032 = vpop.f32.mrb[0].mxu0
    %v7033 = vadd.f32 %v6959, %v7032
    %v7034 = vpop.f32.mrb[0].mxu0
    %7035 = vdwg.mxu0
    %7036 = vmatprep.subr.mxu0 0.0
    %v7037 = vand.u32 %v6660, 4294901760
    %7038 = vmatpush1.xpose.msra.mxu0 %v7037
    %7039 = vmatprep.subr.mxu0 0.0
    %7040 = vmatpush1.xpose.msra.mxu0 0.0
    %7041 = vmatprep.subr.mxu0 0.0
    %7042 = vmatpush1.xpose.msra.mxu0 0.0
    %7043 = vmatprep.subr.mxu0 0.0
    %7044 = vmatpush1.xpose.msra.mxu0 0.0
    %7045 = vmatprep.subr.mxu0 0.0
    %7046 = vmatpush1.xpose.msra.mxu0 0.0
    %7047 = vmatprep.subr.mxu0 0.0
    %7048 = vmatpush1.xpose.msra.mxu0 0.0
    %7049 = vmatprep.subr.mxu0 0.0
    %7050 = vmatpush1.xpose.msra.mxu0 0.0
    %7051 = vmatprep.subr.mxu0 0.0
    %7052 = vmatpush1.xpose.msra.mxu0 0.0
    %7053 = vmatprep.subr.mxu0 0.0
    %7054 = vmatpush1.xpose.msra.mxu0 0.0
    %7055 = vmatprep.subr.mxu0 0.0
    %7056 = vmatpush1.xpose.msra.mxu0 0.0
    %7057 = vmatprep.subr.mxu0 0.0
    %7058 = vmatpush1.xpose.msra.mxu0 0.0
    %7059 = vmatprep.subr.mxu0 0.0
    %7060 = vmatpush1.xpose.msra.mxu0 0.0
    %7061 = vmatprep.subr.mxu0 0.0
    %7062 = vmatpush1.xpose.msra.mxu0 0.0
    %7063 = vmatprep.subr.mxu0 0.0
    %7064 = vmatpush1.xpose.msra.mxu0 0.0
    %7065 = vmatprep.subr.mxu0 0.0
    %7066 = vmatpush1.xpose.msra.mxu0 0.0
    %7067 = vmatprep.subr.mxu0 0.0
    %7068 = vmatpush1.xpose.msra.mxu0 0.0
    %7069 = vmatprep.subr.mxu0 0.0
    %7070 = vmatpush1.xpose.msra.mxu0 0.0
    %7071 = vmatprep.subr.mxu0 0.0
    %7072 = vmatpush1.xpose.msra.mxu0 0.0
    %7073 = vmatprep.subr.mxu0 0.0
    %7074 = vmatpush1.xpose.msra.mxu0 0.0
    %7075 = vmatprep.subr.mxu0 0.0
    %7076 = vmatpush1.xpose.msra.mxu0 0.0
    %7077 = vmatprep.subr.mxu0 0.0
    %7078 = vmatpush1.xpose.msra.mxu0 0.0
    %7079 = vmatprep.subr.mxu0 0.0
    %7080 = vmatpush1.xpose.msra.mxu0 0.0
    %7081 = vmatprep.subr.mxu0 0.0
    %7082 = vmatpush1.xpose.msra.mxu0 0.0
    %7083 = vmatprep.subr.mxu0 0.0
    %7084 = vmatpush1.xpose.msra.mxu0 0.0
    %7085 = vmatprep.subr.mxu0 0.0
    %7086 = vmatpush1.xpose.msra.mxu0 0.0
    %7087 = vmatprep.subr.mxu0 0.0
    %7088 = vmatpush1.xpose.msra.mxu0 0.0
    %7089 = vmatprep.subr.mxu0 0.0
    %7090 = vmatpush1.xpose.msra.mxu0 0.0
    %7091 = vmatprep.subr.mxu0 0.0
    %7092 = vmatpush1.xpose.msra.mxu0 0.0
    %7093 = vmatprep.subr.mxu0 0.0
    %7094 = vmatpush1.xpose.msra.mxu0 0.0
    %7095 = vmatprep.subr.mxu0 0.0
    %7096 = vmatpush1.xpose.msra.mxu0 0.0
    %7097 = vmatprep.subr.mxu0 0.0
    %7098 = vmatpush1.xpose.msra.mxu0 0.0
    %7099 = vmatprep.subr.mxu0 0.0
    %7100 = vmatpush1.xpose.msra.mxu0 0.0
    %7101 = vmatprep.mubr.f32.mxu0 0.0
    %v7102 = vand.u32 %v6658, 4294901760
    %7103 = vmatmul.mubr.f32.gmra.mrb[0].mxu0 %v7102
    %v7104 = vpop.f32.mrb[0].mxu0
    %v7105 = vadd.f32 %v7033, %v7104
    %v7106 = vpop.f32.mrb[0].mxu0
    %7107 = vdwg.mxu0
    %7109 = vrot.lane.b32.xlu0 %v6652, 96
    %v7110 = vpop.permute.xlu0 %7109
    %v7111 = vsel %vm645, %v6652, 0
    %v7113 = vsel %vm645, %v7110, 0
    %7115 = vmatprep.subr.mxu0 0.0
    %v7116 = vand.u32 %v7113, 4294901760
    %7117 = vmatpush1.xpose.msra.mxu0 %v7116
    %7118 = vmatprep.subr.mxu0 0.0
    %7119 = vmatpush1.xpose.msra.mxu0 0.0
    %7120 = vmatprep.subr.mxu0 0.0
    %7121 = vmatpush1.xpose.msra.mxu0 0.0
    %7122 = vmatprep.subr.mxu0 0.0
    %7123 = vmatpush1.xpose.msra.mxu0 0.0
    %7124 = vmatprep.subr.mxu0 0.0
    %7125 = vmatpush1.xpose.msra.mxu0 0.0
    %7126 = vmatprep.subr.mxu0 0.0
    %7127 = vmatpush1.xpose.msra.mxu0 0.0
    %7128 = vmatprep.subr.mxu0 0.0
    %7129 = vmatpush1.xpose.msra.mxu0 0.0
    %7130 = vmatprep.subr.mxu0 0.0
    %7131 = vmatpush1.xpose.msra.mxu0 0.0
    %7132 = vmatprep.subr.mxu0 0.0
    %7133 = vmatpush1.xpose.msra.mxu0 0.0
    %7134 = vmatprep.subr.mxu0 0.0
    %7135 = vmatpush1.xpose.msra.mxu0 0.0
    %7136 = vmatprep.subr.mxu0 0.0
    %7137 = vmatpush1.xpose.msra.mxu0 0.0
    %7138 = vmatprep.subr.mxu0 0.0
    %7139 = vmatpush1.xpose.msra.mxu0 0.0
    %7140 = vmatprep.subr.mxu0 0.0
    %7141 = vmatpush1.xpose.msra.mxu0 0.0
    %7142 = vmatprep.subr.mxu0 0.0
    %7143 = vmatpush1.xpose.msra.mxu0 0.0
    %7144 = vmatprep.subr.mxu0 0.0
    %7145 = vmatpush1.xpose.msra.mxu0 0.0
    %7146 = vmatprep.subr.mxu0 0.0
    %7147 = vmatpush1.xpose.msra.mxu0 0.0
    %7148 = vmatprep.subr.mxu0 0.0
    %7149 = vmatpush1.xpose.msra.mxu0 0.0
    %7150 = vmatprep.subr.mxu0 0.0
    %7151 = vmatpush1.xpose.msra.mxu0 0.0
    %7152 = vmatprep.subr.mxu0 0.0
    %7153 = vmatpush1.xpose.msra.mxu0 0.0
    %7154 = vmatprep.subr.mxu0 0.0
    %7155 = vmatpush1.xpose.msra.mxu0 0.0
    %7156 = vmatprep.subr.mxu0 0.0
    %7157 = vmatpush1.xpose.msra.mxu0 0.0
    %7158 = vmatprep.subr.mxu0 0.0
    %7159 = vmatpush1.xpose.msra.mxu0 0.0
    %7160 = vmatprep.subr.mxu0 0.0
    %7161 = vmatpush1.xpose.msra.mxu0 0.0
    %7162 = vmatprep.subr.mxu0 0.0
    %7163 = vmatpush1.xpose.msra.mxu0 0.0
    %7164 = vmatprep.subr.mxu0 0.0
    %7165 = vmatpush1.xpose.msra.mxu0 0.0
    %7166 = vmatprep.subr.mxu0 0.0
    %7167 = vmatpush1.xpose.msra.mxu0 0.0
    %7168 = vmatprep.subr.mxu0 0.0
    %7169 = vmatpush1.xpose.msra.mxu0 0.0
    %7170 = vmatprep.subr.mxu0 0.0
    %7171 = vmatpush1.xpose.msra.mxu0 0.0
    %7172 = vmatprep.subr.mxu0 0.0
    %7173 = vmatpush1.xpose.msra.mxu0 0.0
    %7174 = vmatprep.subr.mxu0 0.0
    %7175 = vmatpush1.xpose.msra.mxu0 0.0
    %7176 = vmatprep.subr.mxu0 0.0
    %7177 = vmatpush1.xpose.msra.mxu0 0.0
    %7178 = vmatprep.subr.mxu0 0.0
    %7179 = vmatpush1.xpose.msra.mxu0 0.0
    %7180 = vmatprep.mubr.f32.mxu0 0.0
    %v7181 = vand.u32 %v7111, 4294901760
    %v7182 = vsub.f32 %v7111, %v7181
    %v7183 = vand.u32 %v7182, 4294901760
    %v7184 = vsub.f32 %v7182, %v7183
    %v7185 = vand.u32 %v7184, 4294901760
    %7186 = vmatmul.mubr.f32.gmra.mrb[0].mxu0 %v7185
    %v7187 = vpop.f32.mrb[0].mxu0
    %v7188 = vadd.f32 0.0, %v7187
    %v7189 = vpop.f32.mrb[0].mxu0
    %7190 = vdwg.mxu0
    %7191 = vmatprep.subr.mxu0 0.0
    %v7192 = vand.u32 %v7113, 4294901760
    %v7193 = vsub.f32 %v7113, %v7192
    %v7194 = vand.u32 %v7193, 4294901760
    %v7195 = vsub.f32 %v7193, %v7194
    %v7196 = vand.u32 %v7195, 4294901760
    %7197 = vmatpush1.xpose.msra.mxu0 %v7196
    %7198 = vmatprep.subr.mxu0 0.0
    %7199 = vmatpush1.xpose.msra.mxu0 0.0
    %7200 = vmatprep.subr.mxu0 0.0
    %7201 = vmatpush1.xpose.msra.mxu0 0.0
    %7202 = vmatprep.subr.mxu0 0.0
    %7203 = vmatpush1.xpose.msra.mxu0 0.0
    %7204 = vmatprep.subr.mxu0 0.0
    %7205 = vmatpush1.xpose.msra.mxu0 0.0
    %7206 = vmatprep.subr.mxu0 0.0
    %7207 = vmatpush1.xpose.msra.mxu0 0.0
    %7208 = vmatprep.subr.mxu0 0.0
    %7209 = vmatpush1.xpose.msra.mxu0 0.0
    %7210 = vmatprep.subr.mxu0 0.0
    %7211 = vmatpush1.xpose.msra.mxu0 0.0
    %7212 = vmatprep.subr.mxu0 0.0
    %7213 = vmatpush1.xpose.msra.mxu0 0.0
    %7214 = vmatprep.subr.mxu0 0.0
    %7215 = vmatpush1.xpose.msra.mxu0 0.0
    %7216 = vmatprep.subr.mxu0 0.0
    %7217 = vmatpush1.xpose.msra.mxu0 0.0
    %7218 = vmatprep.subr.mxu0 0.0
    %7219 = vmatpush1.xpose.msra.mxu0 0.0
    %7220 = vmatprep.subr.mxu0 0.0
    %7221 = vmatpush1.xpose.msra.mxu0 0.0
    %7222 = vmatprep.subr.mxu0 0.0
    %7223 = vmatpush1.xpose.msra.mxu0 0.0
    %7224 = vmatprep.subr.mxu0 0.0
    %7225 = vmatpush1.xpose.msra.mxu0 0.0
    %7226 = vmatprep.subr.mxu0 0.0
    %7227 = vmatpush1.xpose.msra.mxu0 0.0
    %7228 = vmatprep.subr.mxu0 0.0
    %7229 = vmatpush1.xpose.msra.mxu0 0.0
    %7230 = vmatprep.subr.mxu0 0.0
    %7231 = vmatpush1.xpose.msra.mxu0 0.0
    %7232 = vmatprep.subr.mxu0 0.0
    %7233 = vmatpush1.xpose.msra.mxu0 0.0
    %7234 = vmatprep.subr.mxu0 0.0
    %7235 = vmatpush1.xpose.msra.mxu0 0.0
    %7236 = vmatprep.subr.mxu0 0.0
    %7237 = vmatpush1.xpose.msra.mxu0 0.0
    %7238 = vmatprep.subr.mxu0 0.0
    %7239 = vmatpush1.xpose.msra.mxu0 0.0
    %7240 = vmatprep.subr.mxu0 0.0
    %7241 = vmatpush1.xpose.msra.mxu0 0.0
    %7242 = vmatprep.subr.mxu0 0.0
    %7243 = vmatpush1.xpose.msra.mxu0 0.0
    %7244 = vmatprep.subr.mxu0 0.0
    %7245 = vmatpush1.xpose.msra.mxu0 0.0
    %7246 = vmatprep.subr.mxu0 0.0
    %7247 = vmatpush1.xpose.msra.mxu0 0.0
    %7248 = vmatprep.subr.mxu0 0.0
    %7249 = vmatpush1.xpose.msra.mxu0 0.0
    %7250 = vmatprep.subr.mxu0 0.0
    %7251 = vmatpush1.xpose.msra.mxu0 0.0
    %7252 = vmatprep.subr.mxu0 0.0
    %7253 = vmatpush1.xpose.msra.mxu0 0.0
    %7254 = vmatprep.subr.mxu0 0.0
    %7255 = vmatpush1.xpose.msra.mxu0 0.0
    %7256 = vmatprep.subr.mxu0 0.0
    %7257 = vmatpush1.xpose.msra.mxu0 0.0
    %7258 = vmatprep.subr.mxu0 0.0
    %7259 = vmatpush1.xpose.msra.mxu0 0.0
    %7260 = vmatprep.mubr.f32.mxu0 0.0
    %v7261 = vand.u32 %v7111, 4294901760
    %7262 = vmatmul.mubr.f32.gmra.mrb[0].mxu0 %v7261
    %v7263 = vpop.f32.mrb[0].mxu0
    %v7264 = vadd.f32 %v7188, %v7263
    %v7265 = vpop.f32.mrb[0].mxu0
    %7266 = vdwg.mxu0
    %7267 = vmatprep.subr.mxu0 0.0
    %v7268 = vand.u32 %v7113, 4294901760
    %v7269 = vsub.f32 %v7113, %v7268
    %7270 = vmatpush1.xpose.msra.mxu0 %v7269
    %7271 = vmatprep.subr.mxu0 0.0
    %7272 = vmatpush1.xpose.msra.mxu0 0.0
    %7273 = vmatprep.subr.mxu0 0.0
    %7274 = vmatpush1.xpose.msra.mxu0 0.0
    %7275 = vmatprep.subr.mxu0 0.0
    %7276 = vmatpush1.xpose.msra.mxu0 0.0
    %7277 = vmatprep.subr.mxu0 0.0
    %7278 = vmatpush1.xpose.msra.mxu0 0.0
    %7279 = vmatprep.subr.mxu0 0.0
    %7280 = vmatpush1.xpose.msra.mxu0 0.0
    %7281 = vmatprep.subr.mxu0 0.0
    %7282 = vmatpush1.xpose.msra.mxu0 0.0
    %7283 = vmatprep.subr.mxu0 0.0
    %7284 = vmatpush1.xpose.msra.mxu0 0.0
    %7285 = vmatprep.subr.mxu0 0.0
    %7286 = vmatpush1.xpose.msra.mxu0 0.0
    %7287 = vmatprep.subr.mxu0 0.0
    %7288 = vmatpush1.xpose.msra.mxu0 0.0
    %7289 = vmatprep.subr.mxu0 0.0
    %7290 = vmatpush1.xpose.msra.mxu0 0.0
    %7291 = vmatprep.subr.mxu0 0.0
    %7292 = vmatpush1.xpose.msra.mxu0 0.0
    %7293 = vmatprep.subr.mxu0 0.0
    %7294 = vmatpush1.xpose.msra.mxu0 0.0
    %7295 = vmatprep.subr.mxu0 0.0
    %7296 = vmatpush1.xpose.msra.mxu0 0.0
    %7297 = vmatprep.subr.mxu0 0.0
    %7298 = vmatpush1.xpose.msra.mxu0 0.0
    %7299 = vmatprep.subr.mxu0 0.0
    %7300 = vmatpush1.xpose.msra.mxu0 0.0
    %7301 = vmatprep.subr.mxu0 0.0
    %7302 = vmatpush1.xpose.msra.mxu0 0.0
    %7303 = vmatprep.subr.mxu0 0.0
    %7304 = vmatpush1.xpose.msra.mxu0 0.0
    %7305 = vmatprep.subr.mxu0 0.0
    %7306 = vmatpush1.xpose.msra.mxu0 0.0
    %7307 = vmatprep.subr.mxu0 0.0
    %7308 = vmatpush1.xpose.msra.mxu0 0.0
    %7309 = vmatprep.subr.mxu0 0.0
    %7310 = vmatpush1.xpose.msra.mxu0 0.0
    %7311 = vmatprep.subr.mxu0 0.0
    %7312 = vmatpush1.xpose.msra.mxu0 0.0
    %7313 = vmatprep.subr.mxu0 0.0
    %7314 = vmatpush1.xpose.msra.mxu0 0.0
    %7315 = vmatprep.subr.mxu0 0.0
    %7316 = vmatpush1.xpose.msra.mxu0 0.0
    %7317 = vmatprep.subr.mxu0 0.0
    %7318 = vmatpush1.xpose.msra.mxu0 0.0
    %7319 = vmatprep.subr.mxu0 0.0
    %7320 = vmatpush1.xpose.msra.mxu0 0.0
    %7321 = vmatprep.subr.mxu0 0.0
    %7322 = vmatpush1.xpose.msra.mxu0 0.0
    %7323 = vmatprep.subr.mxu0 0.0
    %7324 = vmatpush1.xpose.msra.mxu0 0.0
    %7325 = vmatprep.subr.mxu0 0.0
    %7326 = vmatpush1.xpose.msra.mxu0 0.0
    %7327 = vmatprep.subr.mxu0 0.0
    %7328 = vmatpush1.xpose.msra.mxu0 0.0
    %7329 = vmatprep.subr.mxu0 0.0
    %7330 = vmatpush1.xpose.msra.mxu0 0.0
    %7331 = vmatprep.subr.mxu0 0.0
    %7332 = vmatpush1.xpose.msra.mxu0 0.0
    %7333 = vmatprep.mubr.f32.mxu0 0.0
    %v7334 = vand.u32 %v7111, 4294901760
    %v7335 = vsub.f32 %v7111, %v7334
    %7336 = vmatmul.mubr.f32.gmra.mrb[0].mxu0 %v7335
    %v7337 = vpop.f32.mrb[0].mxu0
    %v7338 = vadd.f32 %v7264, %v7337
    %v7339 = vpop.f32.mrb[0].mxu0
    %7340 = vdwg.mxu0
    %7341 = vmatprep.subr.mxu0 0.0
    %v7342 = vand.u32 %v7113, 4294901760
    %7343 = vmatpush1.xpose.msra.mxu0 %v7342
    %7344 = vmatprep.subr.mxu0 0.0
    %7345 = vmatpush1.xpose.msra.mxu0 0.0
    %7346 = vmatprep.subr.mxu0 0.0
    %7347 = vmatpush1.xpose.msra.mxu0 0.0
    %7348 = vmatprep.subr.mxu0 0.0
    %7349 = vmatpush1.xpose.msra.mxu0 0.0
    %7350 = vmatprep.subr.mxu0 0.0
    %7351 = vmatpush1.xpose.msra.mxu0 0.0
    %7352 = vmatprep.subr.mxu0 0.0
    %7353 = vmatpush1.xpose.msra.mxu0 0.0
    %7354 = vmatprep.subr.mxu0 0.0
    %7355 = vmatpush1.xpose.msra.mxu0 0.0
    %7356 = vmatprep.subr.mxu0 0.0
    %7357 = vmatpush1.xpose.msra.mxu0 0.0
    %7358 = vmatprep.subr.mxu0 0.0
    %7359 = vmatpush1.xpose.msra.mxu0 0.0
    %7360 = vmatprep.subr.mxu0 0.0
    %7361 = vmatpush1.xpose.msra.mxu0 0.0
    %7362 = vmatprep.subr.mxu0 0.0
    %7363 = vmatpush1.xpose.msra.mxu0 0.0
    %7364 = vmatprep.subr.mxu0 0.0
    %7365 = vmatpush1.xpose.msra.mxu0 0.0
    %7366 = vmatprep.subr.mxu0 0.0
    %7367 = vmatpush1.xpose.msra.mxu0 0.0
    %7368 = vmatprep.subr.mxu0 0.0
    %7369 = vmatpush1.xpose.msra.mxu0 0.0
    %7370 = vmatprep.subr.mxu0 0.0
    %7371 = vmatpush1.xpose.msra.mxu0 0.0
    %7372 = vmatprep.subr.mxu0 0.0
    %7373 = vmatpush1.xpose.msra.mxu0 0.0
    %7374 = vmatprep.subr.mxu0 0.0
    %7375 = vmatpush1.xpose.msra.mxu0 0.0
    %7376 = vmatprep.subr.mxu0 0.0
    %7377 = vmatpush1.xpose.msra.mxu0 0.0
    %7378 = vmatprep.subr.mxu0 0.0
    %7379 = vmatpush1.xpose.msra.mxu0 0.0
    %7380 = vmatprep.subr.mxu0 0.0
    %7381 = vmatpush1.xpose.msra.mxu0 0.0
    %7382 = vmatprep.subr.mxu0 0.0
    %7383 = vmatpush1.xpose.msra.mxu0 0.0
    %7384 = vmatprep.subr.mxu0 0.0
    %7385 = vmatpush1.xpose.msra.mxu0 0.0
    %7386 = vmatprep.subr.mxu0 0.0
    %7387 = vmatpush1.xpose.msra.mxu0 0.0
    %7388 = vmatprep.subr.mxu0 0.0
    %7389 = vmatpush1.xpose.msra.mxu0 0.0
    %7390 = vmatprep.subr.mxu0 0.0
    %7391 = vmatpush1.xpose.msra.mxu0 0.0
    %7392 = vmatprep.subr.mxu0 0.0
    %7393 = vmatpush1.xpose.msra.mxu0 0.0
    %7394 = vmatprep.subr.mxu0 0.0
    %7395 = vmatpush1.xpose.msra.mxu0 0.0
    %7396 = vmatprep.subr.mxu0 0.0
    %7397 = vmatpush1.xpose.msra.mxu0 0.0
    %7398 = vmatprep.subr.mxu0 0.0
    %7399 = vmatpush1.xpose.msra.mxu0 0.0
    %7400 = vmatprep.subr.mxu0 0.0
    %7401 = vmatpush1.xpose.msra.mxu0 0.0
    %7402 = vmatprep.subr.mxu0 0.0
    %7403 = vmatpush1.xpose.msra.mxu0 0.0
    %7404 = vmatprep.subr.mxu0 0.0
    %7405 = vmatpush1.xpose.msra.mxu0 0.0
    %7406 = vmatprep.mubr.f32.mxu0 0.0
    %v7407 = vand.u32 %v7111, 4294901760
    %v7408 = vsub.f32 %v7111, %v7407
    %v7409 = vand.u32 %v7408, 4294901760
    %7410 = vmatmul.mubr.f32.gmra.mrb[0].mxu0 %v7409
    %v7411 = vpop.f32.mrb[0].mxu0
    %v7412 = vadd.f32 %v7338, %v7411
    %v7413 = vpop.f32.mrb[0].mxu0
    %7414 = vdwg.mxu0
    %7415 = vmatprep.subr.mxu0 0.0
    %v7416 = vand.u32 %v7113, 4294901760
    %v7417 = vsub.f32 %v7113, %v7416
    %v7418 = vand.u32 %v7417, 4294901760
    %7419 = vmatpush1.xpose.msra.mxu0 %v7418
    %7420 = vmatprep.subr.mxu0 0.0
    %7421 = vmatpush1.xpose.msra.mxu0 0.0
    %7422 = vmatprep.subr.mxu0 0.0
    %7423 = vmatpush1.xpose.msra.mxu0 0.0
    %7424 = vmatprep.subr.mxu0 0.0
    %7425 = vmatpush1.xpose.msra.mxu0 0.0
    %7426 = vmatprep.subr.mxu0 0.0
    %7427 = vmatpush1.xpose.msra.mxu0 0.0
    %7428 = vmatprep.subr.mxu0 0.0
    %7429 = vmatpush1.xpose.msra.mxu0 0.0
    %7430 = vmatprep.subr.mxu0 0.0
    %7431 = vmatpush1.xpose.msra.mxu0 0.0
    %7432 = vmatprep.subr.mxu0 0.0
    %7433 = vmatpush1.xpose.msra.mxu0 0.0
    %7434 = vmatprep.subr.mxu0 0.0
    %7435 = vmatpush1.xpose.msra.mxu0 0.0
    %7436 = vmatprep.subr.mxu0 0.0
    %7437 = vmatpush1.xpose.msra.mxu0 0.0
    %7438 = vmatprep.subr.mxu0 0.0
    %7439 = vmatpush1.xpose.msra.mxu0 0.0
    %7440 = vmatprep.subr.mxu0 0.0
    %7441 = vmatpush1.xpose.msra.mxu0 0.0
    %7442 = vmatprep.subr.mxu0 0.0
    %7443 = vmatpush1.xpose.msra.mxu0 0.0
    %7444 = vmatprep.subr.mxu0 0.0
    %7445 = vmatpush1.xpose.msra.mxu0 0.0
    %7446 = vmatprep.subr.mxu0 0.0
    %7447 = vmatpush1.xpose.msra.mxu0 0.0
    %7448 = vmatprep.subr.mxu0 0.0
    %7449 = vmatpush1.xpose.msra.mxu0 0.0
    %7450 = vmatprep.subr.mxu0 0.0
    %7451 = vmatpush1.xpose.msra.mxu0 0.0
    %7452 = vmatprep.subr.mxu0 0.0
    %7453 = vmatpush1.xpose.msra.mxu0 0.0
    %7454 = vmatprep.subr.mxu0 0.0
    %7455 = vmatpush1.xpose.msra.mxu0 0.0
    %7456 = vmatprep.subr.mxu0 0.0
    %7457 = vmatpush1.xpose.msra.mxu0 0.0
    %7458 = vmatprep.subr.mxu0 0.0
    %7459 = vmatpush1.xpose.msra.mxu0 0.0
    %7460 = vmatprep.subr.mxu0 0.0
    %7461 = vmatpush1.xpose.msra.mxu0 0.0
    %7462 = vmatprep.subr.mxu0 0.0
    %7463 = vmatpush1.xpose.msra.mxu0 0.0
    %7464 = vmatprep.subr.mxu0 0.0
    %7465 = vmatpush1.xpose.msra.mxu0 0.0
    %7466 = vmatprep.subr.mxu0 0.0
    %7467 = vmatpush1.xpose.msra.mxu0 0.0
    %7468 = vmatprep.subr.mxu0 0.0
    %7469 = vmatpush1.xpose.msra.mxu0 0.0
    %7470 = vmatprep.subr.mxu0 0.0
    %7471 = vmatpush1.xpose.msra.mxu0 0.0
    %7472 = vmatprep.subr.mxu0 0.0
    %7473 = vmatpush1.xpose.msra.mxu0 0.0
    %7474 = vmatprep.subr.mxu0 0.0
    %7475 = vmatpush1.xpose.msra.mxu0 0.0
    %7476 = vmatprep.subr.mxu0 0.0
    %7477 = vmatpush1.xpose.msra.mxu0 0.0
    %7478 = vmatprep.subr.mxu0 0.0
    %7479 = vmatpush1.xpose.msra.mxu0 0.0
    %7480 = vmatprep.subr.mxu0 0.0
    %7481 = vmatpush1.xpose.msra.mxu0 0.0
    %7482 = vmatprep.mubr.f32.mxu0 0.0
    %v7483 = vand.u32 %v7111, 4294901760
    %7484 = vmatmul.mubr.f32.gmra.mrb[0].mxu0 %v7483
    %v7485 = vpop.f32.mrb[0].mxu0
    %v7486 = vadd.f32 %v7412, %v7485
    %v7487 = vpop.f32.mrb[0].mxu0
    %7488 = vdwg.mxu0
    %7489 = vmatprep.subr.mxu0 0.0
    %v7490 = vand.u32 %v7113, 4294901760
    %7491 = vmatpush1.xpose.msra.mxu0 %v7490
    %7492 = vmatprep.subr.mxu0 0.0
    %7493 = vmatpush1.xpose.msra.mxu0 0.0
    %7494 = vmatprep.subr.mxu0 0.0
    %7495 = vmatpush1.xpose.msra.mxu0 0.0
    %7496 = vmatprep.subr.mxu0 0.0
    %7497 = vmatpush1.xpose.msra.mxu0 0.0
    %7498 = vmatprep.subr.mxu0 0.0
    %7499 = vmatpush1.xpose.msra.mxu0 0.0
    %7500 = vmatprep.subr.mxu0 0.0
    %7501 = vmatpush1.xpose.msra.mxu0 0.0
    %7502 = vmatprep.subr.mxu0 0.0
    %7503 = vmatpush1.xpose.msra.mxu0 0.0
    %7504 = vmatprep.subr.mxu0 0.0
    %7505 = vmatpush1.xpose.msra.mxu0 0.0
    %7506 = vmatprep.subr.mxu0 0.0
    %7507 = vmatpush1.xpose.msra.mxu0 0.0
    %7508 = vmatprep.subr.mxu0 0.0
    %7509 = vmatpush1.xpose.msra.mxu0 0.0
    %7510 = vmatprep.subr.mxu0 0.0
    %7511 = vmatpush1.xpose.msra.mxu0 0.0
    %7512 = vmatprep.subr.mxu0 0.0
    %7513 = vmatpush1.xpose.msra.mxu0 0.0
    %7514 = vmatprep.subr.mxu0 0.0
    %7515 = vmatpush1.xpose.msra.mxu0 0.0
    %7516 = vmatprep.subr.mxu0 0.0
    %7517 = vmatpush1.xpose.msra.mxu0 0.0
    %7518 = vmatprep.subr.mxu0 0.0
    %7519 = vmatpush1.xpose.msra.mxu0 0.0
    %7520 = vmatprep.subr.mxu0 0.0
    %7521 = vmatpush1.xpose.msra.mxu0 0.0
    %7522 = vmatprep.subr.mxu0 0.0
    %7523 = vmatpush1.xpose.msra.mxu0 0.0
    %7524 = vmatprep.subr.mxu0 0.0
    %7525 = vmatpush1.xpose.msra.mxu0 0.0
    %7526 = vmatprep.subr.mxu0 0.0
    %7527 = vmatpush1.xpose.msra.mxu0 0.0
    %7528 = vmatprep.subr.mxu0 0.0
    %7529 = vmatpush1.xpose.msra.mxu0 0.0
    %7530 = vmatprep.subr.mxu0 0.0
    %7531 = vmatpush1.xpose.msra.mxu0 0.0
    %7532 = vmatprep.subr.mxu0 0.0
    %7533 = vmatpush1.xpose.msra.mxu0 0.0
    %7534 = vmatprep.subr.mxu0 0.0
    %7535 = vmatpush1.xpose.msra.mxu0 0.0
    %7536 = vmatprep.subr.mxu0 0.0
    %7537 = vmatpush1.xpose.msra.mxu0 0.0
    %7538 = vmatprep.subr.mxu0 0.0
    %7539 = vmatpush1.xpose.msra.mxu0 0.0
    %7540 = vmatprep.subr.mxu0 0.0
    %7541 = vmatpush1.xpose.msra.mxu0 0.0
    %7542 = vmatprep.subr.mxu0 0.0
    %7543 = vmatpush1.xpose.msra.mxu0 0.0
    %7544 = vmatprep.subr.mxu0 0.0
    %7545 = vmatpush1.xpose.msra.mxu0 0.0
    %7546 = vmatprep.subr.mxu0 0.0
    %7547 = vmatpush1.xpose.msra.mxu0 0.0
    %7548 = vmatprep.subr.mxu0 0.0
    %7549 = vmatpush1.xpose.msra.mxu0 0.0
    %7550 = vmatprep.subr.mxu0 0.0
    %7551 = vmatpush1.xpose.msra.mxu0 0.0
    %7552 = vmatprep.subr.mxu0 0.0
    %7553 = vmatpush1.xpose.msra.mxu0 0.0
    %7554 = vmatprep.mubr.f32.mxu0 0.0
    %v7555 = vand.u32 %v7111, 4294901760
    %7556 = vmatmul.mubr.f32.gmra.mrb[0].mxu0 %v7555
    %v7557 = vpop.f32.mrb[0].mxu0
    %v7558 = vadd.f32 %v7486, %v7557
    %v7559 = vpop.f32.mrb[0].mxu0
    %7560 = vdwg.mxu0
    %v7561 = vmul.f32 %v7105, 0.25
    %v7562 = vmul.f32 %v7558, 0.25
    %v7563 = vsel %vm1551, %v7561, -inf
    %7564 = vmax.xlane.f32.xlu0 %v7563
    %v7565 = vpop.xlane.xlu0 %7564
    %v7566 = vsel %vm1551, %v7562, -inf
    %7567 = vmax.xlane.f32.xlu0 %v7566
    %v7568 = vpop.xlane.xlu0 %7567
    %v7569 = vsub.f32 %v7561, %v7565
    %v7570 = vsub.f32 %v7562, %v7568
    %v7571 = vmul.f32 %v7569, 1.442695
    %v7572 = vpow.pop %v7571
    %v7573 = vmul.f32 %v7570, 1.442695
    %v7574 = vpow.pop %v7573
    %v7575 = vsel %vm1551, %v7572, 0.0
    %7576 = vadd.xlane.f32.xlu0 %v7575
    %v7577 = vpop.xlane.xlu0 %7576
    %v7578 = vsel %vm1551, %v7574, 0.0
    %7579 = vadd.xlane.f32.xlu0 %v7578
    %v7580 = vpop.xlane.xlu0 %7579
    %v7581 = vrcp.pop %v7577
    %v7582 = vmul.f32 %v7572, %v7581
    %v7583 = vrcp.pop %v7580
    %v7584 = vmul.f32 %v7574, %v7583
    %7585 = vrot.lane.b32.xlu0 %v6646, 64
    %v7586 = vpop.permute.xlu0 %7585
    %v7589 = vsel %vm1551, %v7582, 0
    %7591 = vmatprep.subr.mxu0 0.0
    %v7592 = vand.u32 %v7586, 4294901760
    %7593 = vmatpush1.msra.mxu0 %v7592
    %7594 = vmatprep.subr.mxu0 0.0
    %7595 = vmatpush1.msra.mxu0 0.0
    %7596 = vmatprep.subr.mxu0 0.0
    %7597 = vmatpush1.msra.mxu0 0.0
    %7598 = vmatprep.subr.mxu0 0.0
    %7599 = vmatpush1.msra.mxu0 0.0
    %7600 = vmatprep.subr.mxu0 0.0
    %7601 = vmatpush1.msra.mxu0 0.0
    %7602 = vmatprep.subr.mxu0 0.0
    %7603 = vmatpush1.msra.mxu0 0.0
    %7604 = vmatprep.subr.mxu0 0.0
    %7605 = vmatpush1.msra.mxu0 0.0
    %7606 = vmatprep.subr.mxu0 0.0
    %7607 = vmatpush1.msra.mxu0 0.0
    %7608 = vmatprep.subr.mxu0 0.0
    %7609 = vmatpush1.msra.mxu0 0.0
    %7610 = vmatprep.subr.mxu0 0.0
    %7611 = vmatpush1.msra.mxu0 0.0
    %7612 = vmatprep.subr.mxu0 0.0
    %7613 = vmatpush1.msra.mxu0 0.0
    %7614 = vmatprep.subr.mxu0 0.0
    %7615 = vmatpush1.msra.mxu0 0.0
    %7616 = vmatprep.subr.mxu0 0.0
    %7617 = vmatpush1.msra.mxu0 0.0
    %7618 = vmatprep.subr.mxu0 0.0
    %7619 = vmatpush1.msra.mxu0 0.0
    %7620 = vmatprep.subr.mxu0 0.0
    %7621 = vmatpush1.msra.mxu0 0.0
    %7622 = vmatprep.subr.mxu0 0.0
    %7623 = vmatpush1.msra.mxu0 0.0
    %7624 = vmatprep.subr.mxu0 0.0
    %7625 = vmatpush1.msra.mxu0 0.0
    %7626 = vmatprep.subr.mxu0 0.0
    %7627 = vmatpush1.msra.mxu0 0.0
    %7628 = vmatprep.subr.mxu0 0.0
    %7629 = vmatpush1.msra.mxu0 0.0
    %7630 = vmatprep.subr.mxu0 0.0
    %7631 = vmatpush1.msra.mxu0 0.0
    %7632 = vmatprep.subr.mxu0 0.0
    %7633 = vmatpush1.msra.mxu0 0.0
    %7634 = vmatprep.subr.mxu0 0.0
    %7635 = vmatpush1.msra.mxu0 0.0
    %7636 = vmatprep.subr.mxu0 0.0
    %7637 = vmatpush1.msra.mxu0 0.0
    %7638 = vmatprep.subr.mxu0 0.0
    %7639 = vmatpush1.msra.mxu0 0.0
    %7640 = vmatprep.subr.mxu0 0.0
    %7641 = vmatpush1.msra.mxu0 0.0
    %7642 = vmatprep.subr.mxu0 0.0
    %7643 = vmatpush1.msra.mxu0 0.0
    %7644 = vmatprep.subr.mxu0 0.0
    %7645 = vmatpush1.msra.mxu0 0.0
    %7646 = vmatprep.subr.mxu0 0.0
    %7647 = vmatpush1.msra.mxu0 0.0
    %7648 = vmatprep.subr.mxu0 0.0
    %7649 = vmatpush1.msra.mxu0 0.0
    %7650 = vmatprep.subr.mxu0 0.0
    %7651 = vmatpush1.msra.mxu0 0.0
    %7652 = vmatprep.subr.mxu0 0.0
    %7653 = vmatpush1.msra.mxu0 0.0
    %7654 = vmatprep.subr.mxu0 0.0
    %7655 = vmatpush1.msra.mxu0 0.0
    %7656 = vmatprep.mubr.f32.mxu0 0.0
    %v7657 = vand.u32 %v7589, 4294901760
    %v7658 = vsub.f32 %v7589, %v7657
    %v7659 = vand.u32 %v7658, 4294901760
    %v7660 = vsub.f32 %v7658, %v7659
    %v7661 = vand.u32 %v7660, 4294901760
    %7662 = vmatmul.mubr.f32.gmra.mrb[0].mxu0 %v7661
    %v7663 = vpop.f32.mrb[0].mxu0
    %v7664 = vadd.f32 0.0, %v7663
    %v7665 = vpop.f32.mrb[0].mxu0
    %7666 = vdwg.mxu0
    %7667 = vmatprep.subr.mxu0 0.0
    %v7668 = vand.u32 %v7586, 4294901760
    %v7669 = vsub.f32 %v7586, %v7668
    %v7670 = vand.u32 %v7669, 4294901760
    %v7671 = vsub.f32 %v7669, %v7670
    %v7672 = vand.u32 %v7671, 4294901760
    %7673 = vmatpush1.msra.mxu0 %v7672
    %7674 = vmatprep.subr.mxu0 0.0
    %7675 = vmatpush1.msra.mxu0 0.0
    %7676 = vmatprep.subr.mxu0 0.0
    %7677 = vmatpush1.msra.mxu0 0.0
    %7678 = vmatprep.subr.mxu0 0.0
    %7679 = vmatpush1.msra.mxu0 0.0
    %7680 = vmatprep.subr.mxu0 0.0
    %7681 = vmatpush1.msra.mxu0 0.0
    %7682 = vmatprep.subr.mxu0 0.0
    %7683 = vmatpush1.msra.mxu0 0.0
    %7684 = vmatprep.subr.mxu0 0.0
    %7685 = vmatpush1.msra.mxu0 0.0
    %7686 = vmatprep.subr.mxu0 0.0
    %7687 = vmatpush1.msra.mxu0 0.0
    %7688 = vmatprep.subr.mxu0 0.0
    %7689 = vmatpush1.msra.mxu0 0.0
    %7690 = vmatprep.subr.mxu0 0.0
    %7691 = vmatpush1.msra.mxu0 0.0
    %7692 = vmatprep.subr.mxu0 0.0
    %7693 = vmatpush1.msra.mxu0 0.0
    %7694 = vmatprep.subr.mxu0 0.0
    %7695 = vmatpush1.msra.mxu0 0.0
    %7696 = vmatprep.subr.mxu0 0.0
    %7697 = vmatpush1.msra.mxu0 0.0
    %7698 = vmatprep.subr.mxu0 0.0
    %7699 = vmatpush1.msra.mxu0 0.0
    %7700 = vmatprep.subr.mxu0 0.0
    %7701 = vmatpush1.msra.mxu0 0.0
    %7702 = vmatprep.subr.mxu0 0.0
    %7703 = vmatpush1.msra.mxu0 0.0
    %7704 = vmatprep.subr.mxu0 0.0
    %7705 = vmatpush1.msra.mxu0 0.0
    %7706 = vmatprep.subr.mxu0 0.0
    %7707 = vmatpush1.msra.mxu0 0.0
    %7708 = vmatprep.subr.mxu0 0.0
    %7709 = vmatpush1.msra.mxu0 0.0
    %7710 = vmatprep.subr.mxu0 0.0
    %7711 = vmatpush1.msra.mxu0 0.0
    %7712 = vmatprep.subr.mxu0 0.0
    %7713 = vmatpush1.msra.mxu0 0.0
    %7714 = vmatprep.subr.mxu0 0.0
    %7715 = vmatpush1.msra.mxu0 0.0
    %7716 = vmatprep.subr.mxu0 0.0
    %7717 = vmatpush1.msra.mxu0 0.0
    %7718 = vmatprep.subr.mxu0 0.0
    %7719 = vmatpush1.msra.mxu0 0.0
    %7720 = vmatprep.subr.mxu0 0.0
    %7721 = vmatpush1.msra.mxu0 0.0
    %7722 = vmatprep.subr.mxu0 0.0
    %7723 = vmatpush1.msra.mxu0 0.0
    %7724 = vmatprep.subr.mxu0 0.0
    %7725 = vmatpush1.msra.mxu0 0.0
    %7726 = vmatprep.subr.mxu0 0.0
    %7727 = vmatpush1.msra.mxu0 0.0
    %7728 = vmatprep.subr.mxu0 0.0
    %7729 = vmatpush1.msra.mxu0 0.0
    %7730 = vmatprep.subr.mxu0 0.0
    %7731 = vmatpush1.msra.mxu0 0.0
    %7732 = vmatprep.subr.mxu0 0.0
    %7733 = vmatpush1.msra.mxu0 0.0
    %7734 = vmatprep.subr.mxu0 0.0
    %7735 = vmatpush1.msra.mxu0 0.0
    %7736 = vmatprep.mubr.f32.mxu0 0.0
    %v7737 = vand.u32 %v7589, 4294901760
    %7738 = vmatmul.mubr.f32.gmra.mrb[0].mxu0 %v7737
    %v7739 = vpop.f32.mrb[0].mxu0
    %v7740 = vadd.f32 %v7664, %v7739
    %v7741 = vpop.f32.mrb[0].mxu0
    %7742 = vdwg.mxu0
    %7743 = vmatprep.subr.mxu0 0.0
    %v7744 = vand.u32 %v7586, 4294901760
    %v7745 = vsub.f32 %v7586, %v7744
    %7746 = vmatpush1.msra.mxu0 %v7745
    %7747 = vmatprep.subr.mxu0 0.0
    %7748 = vmatpush1.msra.mxu0 0.0
    %7749 = vmatprep.subr.mxu0 0.0
    %7750 = vmatpush1.msra.mxu0 0.0
    %7751 = vmatprep.subr.mxu0 0.0
    %7752 = vmatpush1.msra.mxu0 0.0
    %7753 = vmatprep.subr.mxu0 0.0
    %7754 = vmatpush1.msra.mxu0 0.0
    %7755 = vmatprep.subr.mxu0 0.0
    %7756 = vmatpush1.msra.mxu0 0.0
    %7757 = vmatprep.subr.mxu0 0.0
    %7758 = vmatpush1.msra.mxu0 0.0
    %7759 = vmatprep.subr.mxu0 0.0
    %7760 = vmatpush1.msra.mxu0 0.0
    %7761 = vmatprep.subr.mxu0 0.0
    %7762 = vmatpush1.msra.mxu0 0.0
    %7763 = vmatprep.subr.mxu0 0.0
    %7764 = vmatpush1.msra.mxu0 0.0
    %7765 = vmatprep.subr.mxu0 0.0
    %7766 = vmatpush1.msra.mxu0 0.0
    %7767 = vmatprep.subr.mxu0 0.0
    %7768 = vmatpush1.msra.mxu0 0.0
    %7769 = vmatprep.subr.mxu0 0.0
    %7770 = vmatpush1.msra.mxu0 0.0
    %7771 = vmatprep.subr.mxu0 0.0
    %7772 = vmatpush1.msra.mxu0 0.0
    %7773 = vmatprep.subr.mxu0 0.0
    %7774 = vmatpush1.msra.mxu0 0.0
    %7775 = vmatprep.subr.mxu0 0.0
    %7776 = vmatpush1.msra.mxu0 0.0
    %7777 = vmatprep.subr.mxu0 0.0
    %7778 = vmatpush1.msra.mxu0 0.0
    %7779 = vmatprep.subr.mxu0 0.0
    %7780 = vmatpush1.msra.mxu0 0.0
    %7781 = vmatprep.subr.mxu0 0.0
    %7782 = vmatpush1.msra.mxu0 0.0
    %7783 = vmatprep.subr.mxu0 0.0
    %7784 = vmatpush1.msra.mxu0 0.0
    %7785 = vmatprep.subr.mxu0 0.0
    %7786 = vmatpush1.msra.mxu0 0.0
    %7787 = vmatprep.subr.mxu0 0.0
    %7788 = vmatpush1.msra.mxu0 0.0
    %7789 = vmatprep.subr.mxu0 0.0
    %7790 = vmatpush1.msra.mxu0 0.0
    %7791 = vmatprep.subr.mxu0 0.0
    %7792 = vmatpush1.msra.mxu0 0.0
    %7793 = vmatprep.subr.mxu0 0.0
    %7794 = vmatpush1.msra.mxu0 0.0
    %7795 = vmatprep.subr.mxu0 0.0
    %7796 = vmatpush1.msra.mxu0 0.0
    %7797 = vmatprep.subr.mxu0 0.0
    %7798 = vmatpush1.msra.mxu0 0.0
    %7799 = vmatprep.subr.mxu0 0.0
    %7800 = vmatpush1.msra.mxu0 0.0
    %7801 = vmatprep.subr.mxu0 0.0
    %7802 = vmatpush1.msra.mxu0 0.0
    %7803 = vmatprep.subr.mxu0 0.0
    %7804 = vmatpush1.msra.mxu0 0.0
    %7805 = vmatprep.subr.mxu0 0.0
    %7806 = vmatpush1.msra.mxu0 0.0
    %7807 = vmatprep.subr.mxu0 0.0
    %7808 = vmatpush1.msra.mxu0 0.0
    %7809 = vmatprep.mubr.f32.mxu0 0.0
    %v7810 = vand.u32 %v7589, 4294901760
    %v7811 = vsub.f32 %v7589, %v7810
    %7812 = vmatmul.mubr.f32.gmra.mrb[0].mxu0 %v7811
    %v7813 = vpop.f32.mrb[0].mxu0
    %v7814 = vadd.f32 %v7740, %v7813
    %v7815 = vpop.f32.mrb[0].mxu0
    %7816 = vdwg.mxu0
    %7817 = vmatprep.subr.mxu0 0.0
    %v7818 = vand.u32 %v7586, 4294901760
    %7819 = vmatpush1.msra.mxu0 %v7818
    %7820 = vmatprep.subr.mxu0 0.0
    %7821 = vmatpush1.msra.mxu0 0.0
    %7822 = vmatprep.subr.mxu0 0.0
    %7823 = vmatpush1.msra.mxu0 0.0
    %7824 = vmatprep.subr.mxu0 0.0
    %7825 = vmatpush1.msra.mxu0 0.0
    %7826 = vmatprep.subr.mxu0 0.0
    %7827 = vmatpush1.msra.mxu0 0.0
    %7828 = vmatprep.subr.mxu0 0.0
    %7829 = vmatpush1.msra.mxu0 0.0
    %7830 = vmatprep.subr.mxu0 0.0
    %7831 = vmatpush1.msra.mxu0 0.0
    %7832 = vmatprep.subr.mxu0 0.0
    %7833 = vmatpush1.msra.mxu0 0.0
    %7834 = vmatprep.subr.mxu0 0.0
    %7835 = vmatpush1.msra.mxu0 0.0
    %7836 = vmatprep.subr.mxu0 0.0
    %7837 = vmatpush1.msra.mxu0 0.0
    %7838 = vmatprep.subr.mxu0 0.0
    %7839 = vmatpush1.msra.mxu0 0.0
    %7840 = vmatprep.subr.mxu0 0.0
    %7841 = vmatpush1.msra.mxu0 0.0
    %7842 = vmatprep.subr.mxu0 0.0
    %7843 = vmatpush1.msra.mxu0 0.0
    %7844 = vmatprep.subr.mxu0 0.0
    %7845 = vmatpush1.msra.mxu0 0.0
    %7846 = vmatprep.subr.mxu0 0.0
    %7847 = vmatpush1.msra.mxu0 0.0
    %7848 = vmatprep.subr.mxu0 0.0
    %7849 = vmatpush1.msra.mxu0 0.0
    %7850 = vmatprep.subr.mxu0 0.0
    %7851 = vmatpush1.msra.mxu0 0.0
    %7852 = vmatprep.subr.mxu0 0.0
    %7853 = vmatpush1.msra.mxu0 0.0
    %7854 = vmatprep.subr.mxu0 0.0
    %7855 = vmatpush1.msra.mxu0 0.0
    %7856 = vmatprep.subr.mxu0 0.0
    %7857 = vmatpush1.msra.mxu0 0.0
    %7858 = vmatprep.subr.mxu0 0.0
    %7859 = vmatpush1.msra.mxu0 0.0
    %7860 = vmatprep.subr.mxu0 0.0
    %7861 = vmatpush1.msra.mxu0 0.0
    %7862 = vmatprep.subr.mxu0 0.0
    %7863 = vmatpush1.msra.mxu0 0.0
    %7864 = vmatprep.subr.mxu0 0.0
    %7865 = vmatpush1.msra.mxu0 0.0
    %7866 = vmatprep.subr.mxu0 0.0
    %7867 = vmatpush1.msra.mxu0 0.0
    %7868 = vmatprep.subr.mxu0 0.0
    %7869 = vmatpush1.msra.mxu0 0.0
    %7870 = vmatprep.subr.mxu0 0.0
    %7871 = vmatpush1.msra.mxu0 0.0
    %7872 = vmatprep.subr.mxu0 0.0
    %7873 = vmatpush1.msra.mxu0 0.0
    %7874 = vmatprep.subr.mxu0 0.0
    %7875 = vmatpush1.msra.mxu0 0.0
    %7876 = vmatprep.subr.mxu0 0.0
    %7877 = vmatpush1.msra.mxu0 0.0
    %7878 = vmatprep.subr.mxu0 0.0
    %7879 = vmatpush1.msra.mxu0 0.0
    %7880 = vmatprep.subr.mxu0 0.0
    %7881 = vmatpush1.msra.mxu0 0.0
    %7882 = vmatprep.mubr.f32.mxu0 0.0
    %v7883 = vand.u32 %v7589, 4294901760
    %v7884 = vsub.f32 %v7589, %v7883
    %v7885 = vand.u32 %v7884, 4294901760
    %7886 = vmatmul.mubr.f32.gmra.mrb[0].mxu0 %v7885
    %v7887 = vpop.f32.mrb[0].mxu0
    %v7888 = vadd.f32 %v7814, %v7887
    %v7889 = vpop.f32.mrb[0].mxu0
    %7890 = vdwg.mxu0
    %7891 = vmatprep.subr.mxu0 0.0
    %v7892 = vand.u32 %v7586, 4294901760
    %v7893 = vsub.f32 %v7586, %v7892
    %v7894 = vand.u32 %v7893, 4294901760
    %7895 = vmatpush1.msra.mxu0 %v7894
    %7896 = vmatprep.subr.mxu0 0.0
    %7897 = vmatpush1.msra.mxu0 0.0
    %7898 = vmatprep.subr.mxu0 0.0
    %7899 = vmatpush1.msra.mxu0 0.0
    %7900 = vmatprep.subr.mxu0 0.0
    %7901 = vmatpush1.msra.mxu0 0.0
    %7902 = vmatprep.subr.mxu0 0.0
    %7903 = vmatpush1.msra.mxu0 0.0
    %7904 = vmatprep.subr.mxu0 0.0
    %7905 = vmatpush1.msra.mxu0 0.0
    %7906 = vmatprep.subr.mxu0 0.0
    %7907 = vmatpush1.msra.mxu0 0.0
    %7908 = vmatprep.subr.mxu0 0.0
    %7909 = vmatpush1.msra.mxu0 0.0
    %7910 = vmatprep.subr.mxu0 0.0
    %7911 = vmatpush1.msra.mxu0 0.0
    %7912 = vmatprep.subr.mxu0 0.0
    %7913 = vmatpush1.msra.mxu0 0.0
    %7914 = vmatprep.subr.mxu0 0.0
    %7915 = vmatpush1.msra.mxu0 0.0
    %7916 = vmatprep.subr.mxu0 0.0
    %7917 = vmatpush1.msra.mxu0 0.0
    %7918 = vmatprep.subr.mxu0 0.0
    %7919 = vmatpush1.msra.mxu0 0.0
    %7920 = vmatprep.subr.mxu0 0.0
    %7921 = vmatpush1.msra.mxu0 0.0
    %7922 = vmatprep.subr.mxu0 0.0
    %7923 = vmatpush1.msra.mxu0 0.0
    %7924 = vmatprep.subr.mxu0 0.0
    %7925 = vmatpush1.msra.mxu0 0.0
    %7926 = vmatprep.subr.mxu0 0.0
    %7927 = vmatpush1.msra.mxu0 0.0
    %7928 = vmatprep.subr.mxu0 0.0
    %7929 = vmatpush1.msra.mxu0 0.0
    %7930 = vmatprep.subr.mxu0 0.0
    %7931 = vmatpush1.msra.mxu0 0.0
    %7932 = vmatprep.subr.mxu0 0.0
    %7933 = vmatpush1.msra.mxu0 0.0
    %7934 = vmatprep.subr.mxu0 0.0
    %7935 = vmatpush1.msra.mxu0 0.0
    %7936 = vmatprep.subr.mxu0 0.0
    %7937 = vmatpush1.msra.mxu0 0.0
    %7938 = vmatprep.subr.mxu0 0.0
    %7939 = vmatpush1.msra.mxu0 0.0
    %7940 = vmatprep.subr.mxu0 0.0
    %7941 = vmatpush1.msra.mxu0 0.0
    %7942 = vmatprep.subr.mxu0 0.0
    %7943 = vmatpush1.msra.mxu0 0.0
    %7944 = vmatprep.subr.mxu0 0.0
    %7945 = vmatpush1.msra.mxu0 0.0
    %7946 = vmatprep.subr.mxu0 0.0
    %7947 = vmatpush1.msra.mxu0 0.0
    %7948 = vmatprep.subr.mxu0 0.0
    %7949 = vmatpush1.msra.mxu0 0.0
    %7950 = vmatprep.subr.mxu0 0.0
    %7951 = vmatpush1.msra.mxu0 0.0
    %7952 = vmatprep.subr.mxu0 0.0
    %7953 = vmatpush1.msra.mxu0 0.0
    %7954 = vmatprep.subr.mxu0 0.0
    %7955 = vmatpush1.msra.mxu0 0.0
    %7956 = vmatprep.subr.mxu0 0.0
    %7957 = vmatpush1.msra.mxu0 0.0
    %7958 = vmatprep.mubr.f32.mxu0 0.0
    %v7959 = vand.u32 %v7589, 4294901760
    %7960 = vmatmul.mubr.f32.gmra.mrb[0].mxu0 %v7959
    %v7961 = vpop.f32.mrb[0].mxu0
    %v7962 = vadd.f32 %v7888, %v7961
    %v7963 = vpop.f32.mrb[0].mxu0
    %7964 = vdwg.mxu0
    %7965 = vmatprep.subr.mxu0 0.0
    %v7966 = vand.u32 %v7586, 4294901760
    %7967 = vmatpush1.msra.mxu0 %v7966
    %7968 = vmatprep.subr.mxu0 0.0
    %7969 = vmatpush1.msra.mxu0 0.0
    %7970 = vmatprep.subr.mxu0 0.0
    %7971 = vmatpush1.msra.mxu0 0.0
    %7972 = vmatprep.subr.mxu0 0.0
    %7973 = vmatpush1.msra.mxu0 0.0
    %7974 = vmatprep.subr.mxu0 0.0
    %7975 = vmatpush1.msra.mxu0 0.0
    %7976 = vmatprep.subr.mxu0 0.0
    %7977 = vmatpush1.msra.mxu0 0.0
    %7978 = vmatprep.subr.mxu0 0.0
    %7979 = vmatpush1.msra.mxu0 0.0
    %7980 = vmatprep.subr.mxu0 0.0
    %7981 = vmatpush1.msra.mxu0 0.0
    %7982 = vmatprep.subr.mxu0 0.0
    %7983 = vmatpush1.msra.mxu0 0.0
    %7984 = vmatprep.subr.mxu0 0.0
    %7985 = vmatpush1.msra.mxu0 0.0
    %7986 = vmatprep.subr.mxu0 0.0
    %7987 = vmatpush1.msra.mxu0 0.0
    %7988 = vmatprep.subr.mxu0 0.0
    %7989 = vmatpush1.msra.mxu0 0.0
    %7990 = vmatprep.subr.mxu0 0.0
    %7991 = vmatpush1.msra.mxu0 0.0
    %7992 = vmatprep.subr.mxu0 0.0
    %7993 = vmatpush1.msra.mxu0 0.0
    %7994 = vmatprep.subr.mxu0 0.0
    %7995 = vmatpush1.msra.mxu0 0.0
    %7996 = vmatprep.subr.mxu0 0.0
    %7997 = vmatpush1.msra.mxu0 0.0
    %7998 = vmatprep.subr.mxu0 0.0
    %7999 = vmatpush1.msra.mxu0 0.0
    %8000 = vmatprep.subr.mxu0 0.0
    %8001 = vmatpush1.msra.mxu0 0.0
    %8002 = vmatprep.subr.mxu0 0.0
    %8003 = vmatpush1.msra.mxu0 0.0
    %8004 = vmatprep.subr.mxu0 0.0
    %8005 = vmatpush1.msra.mxu0 0.0
    %8006 = vmatprep.subr.mxu0 0.0
    %8007 = vmatpush1.msra.mxu0 0.0
    %8008 = vmatprep.subr.mxu0 0.0
    %8009 = vmatpush1.msra.mxu0 0.0
    %8010 = vmatprep.subr.mxu0 0.0
    %8011 = vmatpush1.msra.mxu0 0.0
    %8012 = vmatprep.subr.mxu0 0.0
    %8013 = vmatpush1.msra.mxu0 0.0
    %8014 = vmatprep.subr.mxu0 0.0
    %8015 = vmatpush1.msra.mxu0 0.0
    %8016 = vmatprep.subr.mxu0 0.0
    %8017 = vmatpush1.msra.mxu0 0.0
    %8018 = vmatprep.subr.mxu0 0.0
    %8019 = vmatpush1.msra.mxu0 0.0
    %8020 = vmatprep.subr.mxu0 0.0
    %8021 = vmatpush1.msra.mxu0 0.0
    %8022 = vmatprep.subr.mxu0 0.0
    %8023 = vmatpush1.msra.mxu0 0.0
    %8024 = vmatprep.subr.mxu0 0.0
    %8025 = vmatpush1.msra.mxu0 0.0
    %8026 = vmatprep.subr.mxu0 0.0
    %8027 = vmatpush1.msra.mxu0 0.0
    %8028 = vmatprep.subr.mxu0 0.0
    %8029 = vmatpush1.msra.mxu0 0.0
    %8030 = vmatprep.mubr.f32.mxu0 0.0
    %v8031 = vand.u32 %v7589, 4294901760
    %8032 = vmatmul.mubr.f32.gmra.mrb[0].mxu0 %v8031
    %v8033 = vpop.f32.mrb[0].mxu0
    %v8034 = vadd.f32 %v7962, %v8033
    %v8035 = vpop.f32.mrb[0].mxu0
    %8036 = vdwg.mxu0
    %8037 = vrot.lane.b32.xlu0 %v6652, 64
    %v8038 = vpop.permute.xlu0 %8037
    %v8041 = vsel %vm1551, %v7584, 0
    %8043 = vmatprep.subr.mxu0 0.0
    %v8044 = vand.u32 %v8038, 4294901760
    %8045 = vmatpush1.msra.mxu0 %v8044
    %8046 = vmatprep.subr.mxu0 0.0
    %8047 = vmatpush1.msra.mxu0 0.0
    %8048 = vmatprep.subr.mxu0 0.0
    %8049 = vmatpush1.msra.mxu0 0.0
    %8050 = vmatprep.subr.mxu0 0.0
    %8051 = vmatpush1.msra.mxu0 0.0
    %8052 = vmatprep.subr.mxu0 0.0
    %8053 = vmatpush1.msra.mxu0 0.0
    %8054 = vmatprep.subr.mxu0 0.0
    %8055 = vmatpush1.msra.mxu0 0.0
    %8056 = vmatprep.subr.mxu0 0.0
    %8057 = vmatpush1.msra.mxu0 0.0
    %8058 = vmatprep.subr.mxu0 0.0
    %8059 = vmatpush1.msra.mxu0 0.0
    %8060 = vmatprep.subr.mxu0 0.0
    %8061 = vmatpush1.msra.mxu0 0.0
    %8062 = vmatprep.subr.mxu0 0.0
    %8063 = vmatpush1.msra.mxu0 0.0
    %8064 = vmatprep.subr.mxu0 0.0
    %8065 = vmatpush1.msra.mxu0 0.0
    %8066 = vmatprep.subr.mxu0 0.0
    %8067 = vmatpush1.msra.mxu0 0.0
    %8068 = vmatprep.subr.mxu0 0.0
    %8069 = vmatpush1.msra.mxu0 0.0
    %8070 = vmatprep.subr.mxu0 0.0
    %8071 = vmatpush1.msra.mxu0 0.0
    %8072 = vmatprep.subr.mxu0 0.0
    %8073 = vmatpush1.msra.mxu0 0.0
    %8074 = vmatprep.subr.mxu0 0.0
    %8075 = vmatpush1.msra.mxu0 0.0
    %8076 = vmatprep.subr.mxu0 0.0
    %8077 = vmatpush1.msra.mxu0 0.0
    %8078 = vmatprep.subr.mxu0 0.0
    %8079 = vmatpush1.msra.mxu0 0.0
    %8080 = vmatprep.subr.mxu0 0.0
    %8081 = vmatpush1.msra.mxu0 0.0
    %8082 = vmatprep.subr.mxu0 0.0
    %8083 = vmatpush1.msra.mxu0 0.0
    %8084 = vmatprep.subr.mxu0 0.0
    %8085 = vmatpush1.msra.mxu0 0.0
    %8086 = vmatprep.subr.mxu0 0.0
    %8087 = vmatpush1.msra.mxu0 0.0
    %8088 = vmatprep.subr.mxu0 0.0
    %8089 = vmatpush1.msra.mxu0 0.0
    %8090 = vmatprep.subr.mxu0 0.0
    %8091 = vmatpush1.msra.mxu0 0.0
    %8092 = vmatprep.subr.mxu0 0.0
    %8093 = vmatpush1.msra.mxu0 0.0
    %8094 = vmatprep.subr.mxu0 0.0
    %8095 = vmatpush1.msra.mxu0 0.0
    %8096 = vmatprep.subr.mxu0 0.0
    %8097 = vmatpush1.msra.mxu0 0.0
    %8098 = vmatprep.subr.mxu0 0.0
    %8099 = vmatpush1.msra.mxu0 0.0
    %8100 = vmatprep.subr.mxu0 0.0
    %8101 = vmatpush1.msra.mxu0 0.0
    %8102 = vmatprep.subr.mxu0 0.0
    %8103 = vmatpush1.msra.mxu0 0.0
    %8104 = vmatprep.subr.mxu0 0.0
    %8105 = vmatpush1.msra.mxu0 0.0
    %8106 = vmatprep.subr.mxu0 0.0
    %8107 = vmatpush1.msra.mxu0 0.0
    %8108 = vmatprep.mubr.f32.mxu0 0.0
    %v8109 = vand.u32 %v8041, 4294901760
    %v8110 = vsub.f32 %v8041, %v8109
    %v8111 = vand.u32 %v8110, 4294901760
    %v8112 = vsub.f32 %v8110, %v8111
    %v8113 = vand.u32 %v8112, 4294901760
    %8114 = vmatmul.mubr.f32.gmra.mrb[0].mxu0 %v8113
    %v8115 = vpop.f32.mrb[0].mxu0
    %v8116 = vadd.f32 0.0, %v8115
    %v8117 = vpop.f32.mrb[0].mxu0
    %8118 = vdwg.mxu0
    %8119 = vmatprep.subr.mxu0 0.0
    %v8120 = vand.u32 %v8038, 4294901760
    %v8121 = vsub.f32 %v8038, %v8120
    %v8122 = vand.u32 %v8121, 4294901760
    %v8123 = vsub.f32 %v8121, %v8122
    %v8124 = vand.u32 %v8123, 4294901760
    %8125 = vmatpush1.msra.mxu0 %v8124
    %8126 = vmatprep.subr.mxu0 0.0
    %8127 = vmatpush1.msra.mxu0 0.0
    %8128 = vmatprep.subr.mxu0 0.0
    %8129 = vmatpush1.msra.mxu0 0.0
    %8130 = vmatprep.subr.mxu0 0.0
    %8131 = vmatpush1.msra.mxu0 0.0
    %8132 = vmatprep.subr.mxu0 0.0
    %8133 = vmatpush1.msra.mxu0 0.0
    %8134 = vmatprep.subr.mxu0 0.0
    %8135 = vmatpush1.msra.mxu0 0.0
    %8136 = vmatprep.subr.mxu0 0.0
    %8137 = vmatpush1.msra.mxu0 0.0
    %8138 = vmatprep.subr.mxu0 0.0
    %8139 = vmatpush1.msra.mxu0 0.0
    %8140 = vmatprep.subr.mxu0 0.0
    %8141 = vmatpush1.msra.mxu0 0.0
    %8142 = vmatprep.subr.mxu0 0.0
    %8143 = vmatpush1.msra.mxu0 0.0
    %8144 = vmatprep.subr.mxu0 0.0
    %8145 = vmatpush1.msra.mxu0 0.0
    %8146 = vmatprep.subr.mxu0 0.0
    %8147 = vmatpush1.msra.mxu0 0.0
    %8148 = vmatprep.subr.mxu0 0.0
    %8149 = vmatpush1.msra.mxu0 0.0
    %8150 = vmatprep.subr.mxu0 0.0
    %8151 = vmatpush1.msra.mxu0 0.0
    %8152 = vmatprep.subr.mxu0 0.0
    %8153 = vmatpush1.msra.mxu0 0.0
    %8154 = vmatprep.subr.mxu0 0.0
    %8155 = vmatpush1.msra.mxu0 0.0
    %8156 = vmatprep.subr.mxu0 0.0
    %8157 = vmatpush1.msra.mxu0 0.0
    %8158 = vmatprep.subr.mxu0 0.0
    %8159 = vmatpush1.msra.mxu0 0.0
    %8160 = vmatprep.subr.mxu0 0.0
    %8161 = vmatpush1.msra.mxu0 0.0
    %8162 = vmatprep.subr.mxu0 0.0
    %8163 = vmatpush1.msra.mxu0 0.0
    %8164 = vmatprep.subr.mxu0 0.0
    %8165 = vmatpush1.msra.mxu0 0.0
    %8166 = vmatprep.subr.mxu0 0.0
    %8167 = vmatpush1.msra.mxu0 0.0
    %8168 = vmatprep.subr.mxu0 0.0
    %8169 = vmatpush1.msra.mxu0 0.0
    %8170 = vmatprep.subr.mxu0 0.0
    %8171 = vmatpush1.msra.mxu0 0.0
    %8172 = vmatprep.subr.mxu0 0.0
    %8173 = vmatpush1.msra.mxu0 0.0
    %8174 = vmatprep.subr.mxu0 0.0
    %8175 = vmatpush1.msra.mxu0 0.0
    %8176 = vmatprep.subr.mxu0 0.0
    %8177 = vmatpush1.msra.mxu0 0.0
    %8178 = vmatprep.subr.mxu0 0.0
    %8179 = vmatpush1.msra.mxu0 0.0
    %8180 = vmatprep.subr.mxu0 0.0
    %8181 = vmatpush1.msra.mxu0 0.0
    %8182 = vmatprep.subr.mxu0 0.0
    %8183 = vmatpush1.msra.mxu0 0.0
    %8184 = vmatprep.subr.mxu0 0.0
    %8185 = vmatpush1.msra.mxu0 0.0
    %8186 = vmatprep.subr.mxu0 0.0
    %8187 = vmatpush1.msra.mxu0 0.0
    %8188 = vmatprep.mubr.f32.mxu0 0.0
    %v8189 = vand.u32 %v8041, 4294901760
    %8190 = vmatmul.mubr.f32.gmra.mrb[0].mxu0 %v8189
    %v8191 = vpop.f32.mrb[0].mxu0
    %v8192 = vadd.f32 %v8116, %v8191
    %v8193 = vpop.f32.mrb[0].mxu0
    %8194 = vdwg.mxu0
    %8195 = vmatprep.subr.mxu0 0.0
    %v8196 = vand.u32 %v8038, 4294901760
    %v8197 = vsub.f32 %v8038, %v8196
    %8198 = vmatpush1.msra.mxu0 %v8197
    %8199 = vmatprep.subr.mxu0 0.0
    %8200 = vmatpush1.msra.mxu0 0.0
    %8201 = vmatprep.subr.mxu0 0.0
    %8202 = vmatpush1.msra.mxu0 0.0
    %8203 = vmatprep.subr.mxu0 0.0
    %8204 = vmatpush1.msra.mxu0 0.0
    %8205 = vmatprep.subr.mxu0 0.0
    %8206 = vmatpush1.msra.mxu0 0.0
    %8207 = vmatprep.subr.mxu0 0.0
    %8208 = vmatpush1.msra.mxu0 0.0
    %8209 = vmatprep.subr.mxu0 0.0
    %8210 = vmatpush1.msra.mxu0 0.0
    %8211 = vmatprep.subr.mxu0 0.0
    %8212 = vmatpush1.msra.mxu0 0.0
    %8213 = vmatprep.subr.mxu0 0.0
    %8214 = vmatpush1.msra.mxu0 0.0
    %8215 = vmatprep.subr.mxu0 0.0
    %8216 = vmatpush1.msra.mxu0 0.0
    %8217 = vmatprep.subr.mxu0 0.0
    %8218 = vmatpush1.msra.mxu0 0.0
    %8219 = vmatprep.subr.mxu0 0.0
    %8220 = vmatpush1.msra.mxu0 0.0
    %8221 = vmatprep.subr.mxu0 0.0
    %8222 = vmatpush1.msra.mxu0 0.0
    %8223 = vmatprep.subr.mxu0 0.0
    %8224 = vmatpush1.msra.mxu0 0.0
    %8225 = vmatprep.subr.mxu0 0.0
    %8226 = vmatpush1.msra.mxu0 0.0
    %8227 = vmatprep.subr.mxu0 0.0
    %8228 = vmatpush1.msra.mxu0 0.0
    %8229 = vmatprep.subr.mxu0 0.0
    %8230 = vmatpush1.msra.mxu0 0.0
    %8231 = vmatprep.subr.mxu0 0.0
    %8232 = vmatpush1.msra.mxu0 0.0
    %8233 = vmatprep.subr.mxu0 0.0
    %8234 = vmatpush1.msra.mxu0 0.0
    %8235 = vmatprep.subr.mxu0 0.0
    %8236 = vmatpush1.msra.mxu0 0.0
    %8237 = vmatprep.subr.mxu0 0.0
    %8238 = vmatpush1.msra.mxu0 0.0
    %8239 = vmatprep.subr.mxu0 0.0
    %8240 = vmatpush1.msra.mxu0 0.0
    %8241 = vmatprep.subr.mxu0 0.0
    %8242 = vmatpush1.msra.mxu0 0.0
    %8243 = vmatprep.subr.mxu0 0.0
    %8244 = vmatpush1.msra.mxu0 0.0
    %8245 = vmatprep.subr.mxu0 0.0
    %8246 = vmatpush1.msra.mxu0 0.0
    %8247 = vmatprep.subr.mxu0 0.0
    %8248 = vmatpush1.msra.mxu0 0.0
    %8249 = vmatprep.subr.mxu0 0.0
    %8250 = vmatpush1.msra.mxu0 0.0
    %8251 = vmatprep.subr.mxu0 0.0
    %8252 = vmatpush1.msra.mxu0 0.0
    %8253 = vmatprep.subr.mxu0 0.0
    %8254 = vmatpush1.msra.mxu0 0.0
    %8255 = vmatprep.subr.mxu0 0.0
    %8256 = vmatpush1.msra.mxu0 0.0
    %8257 = vmatprep.subr.mxu0 0.0
    %8258 = vmatpush1.msra.mxu0 0.0
    %8259 = vmatprep.subr.mxu0 0.0
    %8260 = vmatpush1.msra.mxu0 0.0
    %8261 = vmatprep.mubr.f32.mxu0 0.0
    %v8262 = vand.u32 %v8041, 4294901760
    %v8263 = vsub.f32 %v8041, %v8262
    %8264 = vmatmul.mubr.f32.gmra.mrb[0].mxu0 %v8263
    %v8265 = vpop.f32.mrb[0].mxu0
    %v8266 = vadd.f32 %v8192, %v8265
    %v8267 = vpop.f32.mrb[0].mxu0
    %8268 = vdwg.mxu0
    %8269 = vmatprep.subr.mxu0 0.0
    %v8270 = vand.u32 %v8038, 4294901760
    %8271 = vmatpush1.msra.mxu0 %v8270
    %8272 = vmatprep.subr.mxu0 0.0
    %8273 = vmatpush1.msra.mxu0 0.0
    %8274 = vmatprep.subr.mxu0 0.0
    %8275 = vmatpush1.msra.mxu0 0.0
    %8276 = vmatprep.subr.mxu0 0.0
    %8277 = vmatpush1.msra.mxu0 0.0
    %8278 = vmatprep.subr.mxu0 0.0
    %8279 = vmatpush1.msra.mxu0 0.0
    %8280 = vmatprep.subr.mxu0 0.0
    %8281 = vmatpush1.msra.mxu0 0.0
    %8282 = vmatprep.subr.mxu0 0.0
    %8283 = vmatpush1.msra.mxu0 0.0
    %8284 = vmatprep.subr.mxu0 0.0
    %8285 = vmatpush1.msra.mxu0 0.0
    %8286 = vmatprep.subr.mxu0 0.0
    %8287 = vmatpush1.msra.mxu0 0.0
    %8288 = vmatprep.subr.mxu0 0.0
    %8289 = vmatpush1.msra.mxu0 0.0
    %8290 = vmatprep.subr.mxu0 0.0
    %8291 = vmatpush1.msra.mxu0 0.0
    %8292 = vmatprep.subr.mxu0 0.0
    %8293 = vmatpush1.msra.mxu0 0.0
    %8294 = vmatprep.subr.mxu0 0.0
    %8295 = vmatpush1.msra.mxu0 0.0
    %8296 = vmatprep.subr.mxu0 0.0
    %8297 = vmatpush1.msra.mxu0 0.0
    %8298 = vmatprep.subr.mxu0 0.0
    %8299 = vmatpush1.msra.mxu0 0.0
    %8300 = vmatprep.subr.mxu0 0.0
    %8301 = vmatpush1.msra.mxu0 0.0
    %8302 = vmatprep.subr.mxu0 0.0
    %8303 = vmatpush1.msra.mxu0 0.0
    %8304 = vmatprep.subr.mxu0 0.0
    %8305 = vmatpush1.msra.mxu0 0.0
    %8306 = vmatprep.subr.mxu0 0.0
    %8307 = vmatpush1.msra.mxu0 0.0
    %8308 = vmatprep.subr.mxu0 0.0
    %8309 = vmatpush1.msra.mxu0 0.0
    %8310 = vmatprep.subr.mxu0 0.0
    %8311 = vmatpush1.msra.mxu0 0.0
    %8312 = vmatprep.subr.mxu0 0.0
    %8313 = vmatpush1.msra.mxu0 0.0
    %8314 = vmatprep.subr.mxu0 0.0
    %8315 = vmatpush1.msra.mxu0 0.0
    %8316 = vmatprep.subr.mxu0 0.0
    %8317 = vmatpush1.msra.mxu0 0.0
    %8318 = vmatprep.subr.mxu0 0.0
    %8319 = vmatpush1.msra.mxu0 0.0
    %8320 = vmatprep.subr.mxu0 0.0
    %8321 = vmatpush1.msra.mxu0 0.0
    %8322 = vmatprep.subr.mxu0 0.0
    %8323 = vmatpush1.msra.mxu0 0.0
    %8324 = vmatprep.subr.mxu0 0.0
    %8325 = vmatpush1.msra.mxu0 0.0
    %8326 = vmatprep.subr.mxu0 0.0
    %8327 = vmatpush1.msra.mxu0 0.0
    %8328 = vmatprep.subr.mxu0 0.0
    %8329 = vmatpush1.msra.mxu0 0.0
    %8330 = vmatprep.subr.mxu0 0.0
    %8331 = vmatpush1.msra.mxu0 0.0
    %8332 = vmatprep.subr.mxu0 0.0
    %8333 = vmatpush1.msra.mxu0 0.0
    %8334 = vmatprep.mubr.f32.mxu0 0.0
    %v8335 = vand.u32 %v8041, 4294901760
    %v8336 = vsub.f32 %v8041, %v8335
    %v8337 = vand.u32 %v8336, 4294901760
    %8338 = vmatmul.mubr.f32.gmra.mrb[0].mxu0 %v8337
    %v8339 = vpop.f32.mrb[0].mxu0
    %v8340 = vadd.f32 %v8266, %v8339
    %v8341 = vpop.f32.mrb[0].mxu0
    %8342 = vdwg.mxu0
    %8343 = vmatprep.subr.mxu0 0.0
    %v8344 = vand.u32 %v8038, 4294901760
    %v8345 = vsub.f32 %v8038, %v8344
    %v8346 = vand.u32 %v8345, 4294901760
    %8347 = vmatpush1.msra.mxu0 %v8346
    %8348 = vmatprep.subr.mxu0 0.0
    %8349 = vmatpush1.msra.mxu0 0.0
    %8350 = vmatprep.subr.mxu0 0.0
    %8351 = vmatpush1.msra.mxu0 0.0
    %8352 = vmatprep.subr.mxu0 0.0
    %8353 = vmatpush1.msra.mxu0 0.0
    %8354 = vmatprep.subr.mxu0 0.0
    %8355 = vmatpush1.msra.mxu0 0.0
    %8356 = vmatprep.subr.mxu0 0.0
    %8357 = vmatpush1.msra.mxu0 0.0
    %8358 = vmatprep.subr.mxu0 0.0
    %8359 = vmatpush1.msra.mxu0 0.0
    %8360 = vmatprep.subr.mxu0 0.0
    %8361 = vmatpush1.msra.mxu0 0.0
    %8362 = vmatprep.subr.mxu0 0.0
    %8363 = vmatpush1.msra.mxu0 0.0
    %8364 = vmatprep.subr.mxu0 0.0
    %8365 = vmatpush1.msra.mxu0 0.0
    %8366 = vmatprep.subr.mxu0 0.0
    %8367 = vmatpush1.msra.mxu0 0.0
    %8368 = vmatprep.subr.mxu0 0.0
    %8369 = vmatpush1.msra.mxu0 0.0
    %8370 = vmatprep.subr.mxu0 0.0
    %8371 = vmatpush1.msra.mxu0 0.0
    %8372 = vmatprep.subr.mxu0 0.0
    %8373 = vmatpush1.msra.mxu0 0.0
    %8374 = vmatprep.subr.mxu0 0.0
    %8375 = vmatpush1.msra.mxu0 0.0
    %8376 = vmatprep.subr.mxu0 0.0
    %8377 = vmatpush1.msra.mxu0 0.0
    %8378 = vmatprep.subr.mxu0 0.0
    %8379 = vmatpush1.msra.mxu0 0.0
    %8380 = vmatprep.subr.mxu0 0.0
    %8381 = vmatpush1.msra.mxu0 0.0
    %8382 = vmatprep.subr.mxu0 0.0
    %8383 = vmatpush1.msra.mxu0 0.0
    %8384 = vmatprep.subr.mxu0 0.0
    %8385 = vmatpush1.msra.mxu0 0.0
    %8386 = vmatprep.subr.mxu0 0.0
    %8387 = vmatpush1.msra.mxu0 0.0
    %8388 = vmatprep.subr.mxu0 0.0
    %8389 = vmatpush1.msra.mxu0 0.0
    %8390 = vmatprep.subr.mxu0 0.0
    %8391 = vmatpush1.msra.mxu0 0.0
    %8392 = vmatprep.subr.mxu0 0.0
    %8393 = vmatpush1.msra.mxu0 0.0
    %8394 = vmatprep.subr.mxu0 0.0
    %8395 = vmatpush1.msra.mxu0 0.0
    %8396 = vmatprep.subr.mxu0 0.0
    %8397 = vmatpush1.msra.mxu0 0.0
    %8398 = vmatprep.subr.mxu0 0.0
    %8399 = vmatpush1.msra.mxu0 0.0
    %8400 = vmatprep.subr.mxu0 0.0
    %8401 = vmatpush1.msra.mxu0 0.0
    %8402 = vmatprep.subr.mxu0 0.0
    %8403 = vmatpush1.msra.mxu0 0.0
    %8404 = vmatprep.subr.mxu0 0.0
    %8405 = vmatpush1.msra.mxu0 0.0
    %8406 = vmatprep.subr.mxu0 0.0
    %8407 = vmatpush1.msra.mxu0 0.0
    %8408 = vmatprep.subr.mxu0 0.0
    %8409 = vmatpush1.msra.mxu0 0.0
    %8410 = vmatprep.mubr.f32.mxu0 0.0
    %v8411 = vand.u32 %v8041, 4294901760
    %8412 = vmatmul.mubr.f32.gmra.mrb[0].mxu0 %v8411
    %v8413 = vpop.f32.mrb[0].mxu0
    %v8414 = vadd.f32 %v8340, %v8413
    %v8415 = vpop.f32.mrb[0].mxu0
    %8416 = vdwg.mxu0
    %8417 = vmatprep.subr.mxu0 0.0
    %v8418 = vand.u32 %v8038, 4294901760
    %8419 = vmatpush1.msra.mxu0 %v8418
    %8420 = vmatprep.subr.mxu0 0.0
    %8421 = vmatpush1.msra.mxu0 0.0
    %8422 = vmatprep.subr.mxu0 0.0
    %8423 = vmatpush1.msra.mxu0 0.0
    %8424 = vmatprep.subr.mxu0 0.0
    %8425 = vmatpush1.msra.mxu0 0.0
    %8426 = vmatprep.subr.mxu0 0.0
    %8427 = vmatpush1.msra.mxu0 0.0
    %8428 = vmatprep.subr.mxu0 0.0
    %8429 = vmatpush1.msra.mxu0 0.0
    %8430 = vmatprep.subr.mxu0 0.0
    %8431 = vmatpush1.msra.mxu0 0.0
    %8432 = vmatprep.subr.mxu0 0.0
    %8433 = vmatpush1.msra.mxu0 0.0
    %8434 = vmatprep.subr.mxu0 0.0
    %8435 = vmatpush1.msra.mxu0 0.0
    %8436 = vmatprep.subr.mxu0 0.0
    %8437 = vmatpush1.msra.mxu0 0.0
    %8438 = vmatprep.subr.mxu0 0.0
    %8439 = vmatpush1.msra.mxu0 0.0
    %8440 = vmatprep.subr.mxu0 0.0
    %8441 = vmatpush1.msra.mxu0 0.0
    %8442 = vmatprep.subr.mxu0 0.0
    %8443 = vmatpush1.msra.mxu0 0.0
    %8444 = vmatprep.subr.mxu0 0.0
    %8445 = vmatpush1.msra.mxu0 0.0
    %8446 = vmatprep.subr.mxu0 0.0
    %8447 = vmatpush1.msra.mxu0 0.0
    %8448 = vmatprep.subr.mxu0 0.0
    %8449 = vmatpush1.msra.mxu0 0.0
    %8450 = vmatprep.subr.mxu0 0.0
    %8451 = vmatpush1.msra.mxu0 0.0
    %8452 = vmatprep.subr.mxu0 0.0
    %8453 = vmatpush1.msra.mxu0 0.0
    %8454 = vmatprep.subr.mxu0 0.0
    %8455 = vmatpush1.msra.mxu0 0.0
    %8456 = vmatprep.subr.mxu0 0.0
    %8457 = vmatpush1.msra.mxu0 0.0
    %8458 = vmatprep.subr.mxu0 0.0
    %8459 = vmatpush1.msra.mxu0 0.0
    %8460 = vmatprep.subr.mxu0 0.0
    %8461 = vmatpush1.msra.mxu0 0.0
    %8462 = vmatprep.subr.mxu0 0.0
    %8463 = vmatpush1.msra.mxu0 0.0
    %8464 = vmatprep.subr.mxu0 0.0
    %8465 = vmatpush1.msra.mxu0 0.0
    %8466 = vmatprep.subr.mxu0 0.0
    %8467 = vmatpush1.msra.mxu0 0.0
    %8468 = vmatprep.subr.mxu0 0.0
    %8469 = vmatpush1.msra.mxu0 0.0
    %8470 = vmatprep.subr.mxu0 0.0
    %8471 = vmatpush1.msra.mxu0 0.0
    %8472 = vmatprep.subr.mxu0 0.0
    %8473 = vmatpush1.msra.mxu0 0.0
    %8474 = vmatprep.subr.mxu0 0.0
    %8475 = vmatpush1.msra.mxu0 0.0
    %8476 = vmatprep.subr.mxu0 0.0
    %8477 = vmatpush1.msra.mxu0 0.0
    %8478 = vmatprep.subr.mxu0 0.0
    %8479 = vmatpush1.msra.mxu0 0.0
    %8480 = vmatprep.subr.mxu0 0.0
    %8481 = vmatpush1.msra.mxu0 0.0
    %8482 = vmatprep.mubr.f32.mxu0 0.0
    %v8483 = vand.u32 %v8041, 4294901760
    %8484 = vmatmul.mubr.f32.gmra.mrb[0].mxu0 %v8483
    %v8485 = vpop.f32.mrb[0].mxu0
    %v8486 = vadd.f32 %v8414, %v8485
    %v8487 = vpop.f32.mrb[0].mxu0
    %8488 = vdwg.mxu0
    %8489 = vrot.lane.b32.xlu0 %v6646, 112
    %v8490 = vpop.permute.xlu0 %8489
    %8491 = vrot.lane.b32.xlu0 %v6646, 80
    %v8492 = vpop.permute.xlu0 %8491
    %v8493 = vsel %vm645, %v8490, 0
    %v8495 = vsel %vm645, %v8492, 0
    %8497 = vmatprep.subr.mxu0 0.0
    %v8498 = vand.u32 %v8495, 4294901760
    %8499 = vmatpush1.xpose.msra.mxu0 %v8498
    %8500 = vmatprep.subr.mxu0 0.0
    %8501 = vmatpush1.xpose.msra.mxu0 0.0
    %8502 = vmatprep.subr.mxu0 0.0
    %8503 = vmatpush1.xpose.msra.mxu0 0.0
    %8504 = vmatprep.subr.mxu0 0.0
    %8505 = vmatpush1.xpose.msra.mxu0 0.0
    %8506 = vmatprep.subr.mxu0 0.0
    %8507 = vmatpush1.xpose.msra.mxu0 0.0
    %8508 = vmatprep.subr.mxu0 0.0
    %8509 = vmatpush1.xpose.msra.mxu0 0.0
    %8510 = vmatprep.subr.mxu0 0.0
    %8511 = vmatpush1.xpose.msra.mxu0 0.0
    %8512 = vmatprep.subr.mxu0 0.0
    %8513 = vmatpush1.xpose.msra.mxu0 0.0
    %8514 = vmatprep.subr.mxu0 0.0
    %8515 = vmatpush1.xpose.msra.mxu0 0.0
    %8516 = vmatprep.subr.mxu0 0.0
    %8517 = vmatpush1.xpose.msra.mxu0 0.0
    %8518 = vmatprep.subr.mxu0 0.0
    %8519 = vmatpush1.xpose.msra.mxu0 0.0
    %8520 = vmatprep.subr.mxu0 0.0
    %8521 = vmatpush1.xpose.msra.mxu0 0.0
    %8522 = vmatprep.subr.mxu0 0.0
    %8523 = vmatpush1.xpose.msra.mxu0 0.0
    %8524 = vmatprep.subr.mxu0 0.0
    %8525 = vmatpush1.xpose.msra.mxu0 0.0
    %8526 = vmatprep.subr.mxu0 0.0
    %8527 = vmatpush1.xpose.msra.mxu0 0.0
    %8528 = vmatprep.subr.mxu0 0.0
    %8529 = vmatpush1.xpose.msra.mxu0 0.0
    %8530 = vmatprep.subr.mxu0 0.0
    %8531 = vmatpush1.xpose.msra.mxu0 0.0
    %8532 = vmatprep.subr.mxu0 0.0
    %8533 = vmatpush1.xpose.msra.mxu0 0.0
    %8534 = vmatprep.subr.mxu0 0.0
    %8535 = vmatpush1.xpose.msra.mxu0 0.0
    %8536 = vmatprep.subr.mxu0 0.0
    %8537 = vmatpush1.xpose.msra.mxu0 0.0
    %8538 = vmatprep.subr.mxu0 0.0
    %8539 = vmatpush1.xpose.msra.mxu0 0.0
    %8540 = vmatprep.subr.mxu0 0.0
    %8541 = vmatpush1.xpose.msra.mxu0 0.0
    %8542 = vmatprep.subr.mxu0 0.0
    %8543 = vmatpush1.xpose.msra.mxu0 0.0
    %8544 = vmatprep.subr.mxu0 0.0
    %8545 = vmatpush1.xpose.msra.mxu0 0.0
    %8546 = vmatprep.subr.mxu0 0.0
    %8547 = vmatpush1.xpose.msra.mxu0 0.0
    %8548 = vmatprep.subr.mxu0 0.0
    %8549 = vmatpush1.xpose.msra.mxu0 0.0
    %8550 = vmatprep.subr.mxu0 0.0
    %8551 = vmatpush1.xpose.msra.mxu0 0.0
    %8552 = vmatprep.subr.mxu0 0.0
    %8553 = vmatpush1.xpose.msra.mxu0 0.0
    %8554 = vmatprep.subr.mxu0 0.0
    %8555 = vmatpush1.xpose.msra.mxu0 0.0
    %8556 = vmatprep.subr.mxu0 0.0
    %8557 = vmatpush1.xpose.msra.mxu0 0.0
    %8558 = vmatprep.subr.mxu0 0.0
    %8559 = vmatpush1.xpose.msra.mxu0 0.0
    %8560 = vmatprep.subr.mxu0 0.0
    %8561 = vmatpush1.xpose.msra.mxu0 0.0
    %8562 = vmatprep.mubr.f32.mxu0 0.0
    %v8563 = vand.u32 %v8493, 4294901760
    %v8564 = vsub.f32 %v8493, %v8563
    %v8565 = vand.u32 %v8564, 4294901760
    %v8566 = vsub.f32 %v8564, %v8565
    %v8567 = vand.u32 %v8566, 4294901760
    %8568 = vmatmul.mubr.f32.gmra.mrb[0].mxu0 %v8567
    %v8569 = vpop.f32.mrb[0].mxu0
    %v8570 = vadd.f32 0.0, %v8569
    %v8571 = vpop.f32.mrb[0].mxu0
    %8572 = vdwg.mxu0
    %8573 = vmatprep.subr.mxu0 0.0
    %v8574 = vand.u32 %v8495, 4294901760
    %v8575 = vsub.f32 %v8495, %v8574
    %v8576 = vand.u32 %v8575, 4294901760
    %v8577 = vsub.f32 %v8575, %v8576
    %v8578 = vand.u32 %v8577, 4294901760
    %8579 = vmatpush1.xpose.msra.mxu0 %v8578
    %8580 = vmatprep.subr.mxu0 0.0
    %8581 = vmatpush1.xpose.msra.mxu0 0.0
    %8582 = vmatprep.subr.mxu0 0.0
    %8583 = vmatpush1.xpose.msra.mxu0 0.0
    %8584 = vmatprep.subr.mxu0 0.0
    %8585 = vmatpush1.xpose.msra.mxu0 0.0
    %8586 = vmatprep.subr.mxu0 0.0
    %8587 = vmatpush1.xpose.msra.mxu0 0.0
    %8588 = vmatprep.subr.mxu0 0.0
    %8589 = vmatpush1.xpose.msra.mxu0 0.0
    %8590 = vmatprep.subr.mxu0 0.0
    %8591 = vmatpush1.xpose.msra.mxu0 0.0
    %8592 = vmatprep.subr.mxu0 0.0
    %8593 = vmatpush1.xpose.msra.mxu0 0.0
    %8594 = vmatprep.subr.mxu0 0.0
    %8595 = vmatpush1.xpose.msra.mxu0 0.0
    %8596 = vmatprep.subr.mxu0 0.0
    %8597 = vmatpush1.xpose.msra.mxu0 0.0
    %8598 = vmatprep.subr.mxu0 0.0
    %8599 = vmatpush1.xpose.msra.mxu0 0.0
    %8600 = vmatprep.subr.mxu0 0.0
    %8601 = vmatpush1.xpose.msra.mxu0 0.0
    %8602 = vmatprep.subr.mxu0 0.0
    %8603 = vmatpush1.xpose.msra.mxu0 0.0
    %8604 = vmatprep.subr.mxu0 0.0
    %8605 = vmatpush1.xpose.msra.mxu0 0.0
    %8606 = vmatprep.subr.mxu0 0.0
    %8607 = vmatpush1.xpose.msra.mxu0 0.0
    %8608 = vmatprep.subr.mxu0 0.0
    %8609 = vmatpush1.xpose.msra.mxu0 0.0
    %8610 = vmatprep.subr.mxu0 0.0
    %8611 = vmatpush1.xpose.msra.mxu0 0.0
    %8612 = vmatprep.subr.mxu0 0.0
    %8613 = vmatpush1.xpose.msra.mxu0 0.0
    %8614 = vmatprep.subr.mxu0 0.0
    %8615 = vmatpush1.xpose.msra.mxu0 0.0
    %8616 = vmatprep.subr.mxu0 0.0
    %8617 = vmatpush1.xpose.msra.mxu0 0.0
    %8618 = vmatprep.subr.mxu0 0.0
    %8619 = vmatpush1.xpose.msra.mxu0 0.0
    %8620 = vmatprep.subr.mxu0 0.0
    %8621 = vmatpush1.xpose.msra.mxu0 0.0
    %8622 = vmatprep.subr.mxu0 0.0
    %8623 = vmatpush1.xpose.msra.mxu0 0.0
    %8624 = vmatprep.subr.mxu0 0.0
    %8625 = vmatpush1.xpose.msra.mxu0 0.0
    %8626 = vmatprep.subr.mxu0 0.0
    %8627 = vmatpush1.xpose.msra.mxu0 0.0
    %8628 = vmatprep.subr.mxu0 0.0
    %8629 = vmatpush1.xpose.msra.mxu0 0.0
    %8630 = vmatprep.subr.mxu0 0.0
    %8631 = vmatpush1.xpose.msra.mxu0 0.0
    %8632 = vmatprep.subr.mxu0 0.0
    %8633 = vmatpush1.xpose.msra.mxu0 0.0
    %8634 = vmatprep.subr.mxu0 0.0
    %8635 = vmatpush1.xpose.msra.mxu0 0.0
    %8636 = vmatprep.subr.mxu0 0.0
    %8637 = vmatpush1.xpose.msra.mxu0 0.0
    %8638 = vmatprep.subr.mxu0 0.0
    %8639 = vmatpush1.xpose.msra.mxu0 0.0
    %8640 = vmatprep.subr.mxu0 0.0
    %8641 = vmatpush1.xpose.msra.mxu0 0.0
    %8642 = vmatprep.mubr.f32.mxu0 0.0
    %v8643 = vand.u32 %v8493, 4294901760
    %8644 = vmatmul.mubr.f32.gmra.mrb[0].mxu0 %v8643
    %v8645 = vpop.f32.mrb[0].mxu0
    %v8646 = vadd.f32 %v8570, %v8645
    %v8647 = vpop.f32.mrb[0].mxu0
    %8648 = vdwg.mxu0
    %8649 = vmatprep.subr.mxu0 0.0
    %v8650 = vand.u32 %v8495, 4294901760
    %v8651 = vsub.f32 %v8495, %v8650
    %8652 = vmatpush1.xpose.msra.mxu0 %v8651
    %8653 = vmatprep.subr.mxu0 0.0
    %8654 = vmatpush1.xpose.msra.mxu0 0.0
    %8655 = vmatprep.subr.mxu0 0.0
    %8656 = vmatpush1.xpose.msra.mxu0 0.0
    %8657 = vmatprep.subr.mxu0 0.0
    %8658 = vmatpush1.xpose.msra.mxu0 0.0
    %8659 = vmatprep.subr.mxu0 0.0
    %8660 = vmatpush1.xpose.msra.mxu0 0.0
    %8661 = vmatprep.subr.mxu0 0.0
    %8662 = vmatpush1.xpose.msra.mxu0 0.0
    %8663 = vmatprep.subr.mxu0 0.0
    %8664 = vmatpush1.xpose.msra.mxu0 0.0
    %8665 = vmatprep.subr.mxu0 0.0
    %8666 = vmatpush1.xpose.msra.mxu0 0.0
    %8667 = vmatprep.subr.mxu0 0.0
    %8668 = vmatpush1.xpose.msra.mxu0 0.0
    %8669 = vmatprep.subr.mxu0 0.0
    %8670 = vmatpush1.xpose.msra.mxu0 0.0
    %8671 = vmatprep.subr.mxu0 0.0
    %8672 = vmatpush1.xpose.msra.mxu0 0.0
    %8673 = vmatprep.subr.mxu0 0.0
    %8674 = vmatpush1.xpose.msra.mxu0 0.0
    %8675 = vmatprep.subr.mxu0 0.0
    %8676 = vmatpush1.xpose.msra.mxu0 0.0
    %8677 = vmatprep.subr.mxu0 0.0
    %8678 = vmatpush1.xpose.msra.mxu0 0.0
    %8679 = vmatprep.subr.mxu0 0.0
    %8680 = vmatpush1.xpose.msra.mxu0 0.0
    %8681 = vmatprep.subr.mxu0 0.0
    %8682 = vmatpush1.xpose.msra.mxu0 0.0
    %8683 = vmatprep.subr.mxu0 0.0
    %8684 = vmatpush1.xpose.msra.mxu0 0.0
    %8685 = vmatprep.subr.mxu0 0.0
    %8686 = vmatpush1.xpose.msra.mxu0 0.0
    %8687 = vmatprep.subr.mxu0 0.0
    %8688 = vmatpush1.xpose.msra.mxu0 0.0
    %8689 = vmatprep.subr.mxu0 0.0
    %8690 = vmatpush1.xpose.msra.mxu0 0.0
    %8691 = vmatprep.subr.mxu0 0.0
    %8692 = vmatpush1.xpose.msra.mxu0 0.0
    %8693 = vmatprep.subr.mxu0 0.0
    %8694 = vmatpush1.xpose.msra.mxu0 0.0
    %8695 = vmatprep.subr.mxu0 0.0
    %8696 = vmatpush1.xpose.msra.mxu0 0.0
    %8697 = vmatprep.subr.mxu0 0.0
    %8698 = vmatpush1.xpose.msra.mxu0 0.0
    %8699 = vmatprep.subr.mxu0 0.0
    %8700 = vmatpush1.xpose.msra.mxu0 0.0
    %8701 = vmatprep.subr.mxu0 0.0
    %8702 = vmatpush1.xpose.msra.mxu0 0.0
    %8703 = vmatprep.subr.mxu0 0.0
    %8704 = vmatpush1.xpose.msra.mxu0 0.0
    %8705 = vmatprep.subr.mxu0 0.0
    %8706 = vmatpush1.xpose.msra.mxu0 0.0
    %8707 = vmatprep.subr.mxu0 0.0
    %8708 = vmatpush1.xpose.msra.mxu0 0.0
    %8709 = vmatprep.subr.mxu0 0.0
    %8710 = vmatpush1.xpose.msra.mxu0 0.0
    %8711 = vmatprep.subr.mxu0 0.0
    %8712 = vmatpush1.xpose.msra.mxu0 0.0
    %8713 = vmatprep.subr.mxu0 0.0
    %8714 = vmatpush1.xpose.msra.mxu0 0.0
    %8715 = vmatprep.mubr.f32.mxu0 0.0
    %v8716 = vand.u32 %v8493, 4294901760
    %v8717 = vsub.f32 %v8493, %v8716
    %8718 = vmatmul.mubr.f32.gmra.mrb[0].mxu0 %v8717
    %v8719 = vpop.f32.mrb[0].mxu0
    %v8720 = vadd.f32 %v8646, %v8719
    %v8721 = vpop.f32.mrb[0].mxu0
    %8722 = vdwg.mxu0
    %8723 = vmatprep.subr.mxu0 0.0
    %v8724 = vand.u32 %v8495, 4294901760
    %8725 = vmatpush1.xpose.msra.mxu0 %v8724
    %8726 = vmatprep.subr.mxu0 0.0
    %8727 = vmatpush1.xpose.msra.mxu0 0.0
    %8728 = vmatprep.subr.mxu0 0.0
    %8729 = vmatpush1.xpose.msra.mxu0 0.0
    %8730 = vmatprep.subr.mxu0 0.0
    %8731 = vmatpush1.xpose.msra.mxu0 0.0
    %8732 = vmatprep.subr.mxu0 0.0
    %8733 = vmatpush1.xpose.msra.mxu0 0.0
    %8734 = vmatprep.subr.mxu0 0.0
    %8735 = vmatpush1.xpose.msra.mxu0 0.0
    %8736 = vmatprep.subr.mxu0 0.0
    %8737 = vmatpush1.xpose.msra.mxu0 0.0
    %8738 = vmatprep.subr.mxu0 0.0
    %8739 = vmatpush1.xpose.msra.mxu0 0.0
    %8740 = vmatprep.subr.mxu0 0.0
    %8741 = vmatpush1.xpose.msra.mxu0 0.0
    %8742 = vmatprep.subr.mxu0 0.0
    %8743 = vmatpush1.xpose.msra.mxu0 0.0
    %8744 = vmatprep.subr.mxu0 0.0
    %8745 = vmatpush1.xpose.msra.mxu0 0.0
    %8746 = vmatprep.subr.mxu0 0.0
    %8747 = vmatpush1.xpose.msra.mxu0 0.0
    %8748 = vmatprep.subr.mxu0 0.0
    %8749 = vmatpush1.xpose.msra.mxu0 0.0
    %8750 = vmatprep.subr.mxu0 0.0
    %8751 = vmatpush1.xpose.msra.mxu0 0.0
    %8752 = vmatprep.subr.mxu0 0.0
    %8753 = vmatpush1.xpose.msra.mxu0 0.0
    %8754 = vmatprep.subr.mxu0 0.0
    %8755 = vmatpush1.xpose.msra.mxu0 0.0
    %8756 = vmatprep.subr.mxu0 0.0
    %8757 = vmatpush1.xpose.msra.mxu0 0.0
    %8758 = vmatprep.subr.mxu0 0.0
    %8759 = vmatpush1.xpose.msra.mxu0 0.0
    %8760 = vmatprep.subr.mxu0 0.0
    %8761 = vmatpush1.xpose.msra.mxu0 0.0
    %8762 = vmatprep.subr.mxu0 0.0
    %8763 = vmatpush1.xpose.msra.mxu0 0.0
    %8764 = vmatprep.subr.mxu0 0.0
    %8765 = vmatpush1.xpose.msra.mxu0 0.0
    %8766 = vmatprep.subr.mxu0 0.0
    %8767 = vmatpush1.xpose.msra.mxu0 0.0
    %8768 = vmatprep.subr.mxu0 0.0
    %8769 = vmatpush1.xpose.msra.mxu0 0.0
    %8770 = vmatprep.subr.mxu0 0.0
    %8771 = vmatpush1.xpose.msra.mxu0 0.0
    %8772 = vmatprep.subr.mxu0 0.0
    %8773 = vmatpush1.xpose.msra.mxu0 0.0
    %8774 = vmatprep.subr.mxu0 0.0
    %8775 = vmatpush1.xpose.msra.mxu0 0.0
    %8776 = vmatprep.subr.mxu0 0.0
    %8777 = vmatpush1.xpose.msra.mxu0 0.0
    %8778 = vmatprep.subr.mxu0 0.0
    %8779 = vmatpush1.xpose.msra.mxu0 0.0
    %8780 = vmatprep.subr.mxu0 0.0
    %8781 = vmatpush1.xpose.msra.mxu0 0.0
    %8782 = vmatprep.subr.mxu0 0.0
    %8783 = vmatpush1.xpose.msra.mxu0 0.0
    %8784 = vmatprep.subr.mxu0 0.0
    %8785 = vmatpush1.xpose.msra.mxu0 0.0
    %8786 = vmatprep.subr.mxu0 0.0
    %8787 = vmatpush1.xpose.msra.mxu0 0.0
    %8788 = vmatprep.mubr.f32.mxu0 0.0
    %v8789 = vand.u32 %v8493, 4294901760
    %v8790 = vsub.f32 %v8493, %v8789
    %v8791 = vand.u32 %v8790, 4294901760
    %8792 = vmatmul.mubr.f32.gmra.mrb[0].mxu0 %v8791
    %v8793 = vpop.f32.mrb[0].mxu0
    %v8794 = vadd.f32 %v8720, %v8793
    %v8795 = vpop.f32.mrb[0].mxu0
    %8796 = vdwg.mxu0
    %8797 = vmatprep.subr.mxu0 0.0
    %v8798 = vand.u32 %v8495, 4294901760
    %v8799 = vsub.f32 %v8495, %v8798
    %v8800 = vand.u32 %v8799, 4294901760
    %8801 = vmatpush1.xpose.msra.mxu0 %v8800
    %8802 = vmatprep.subr.mxu0 0.0
    %8803 = vmatpush1.xpose.msra.mxu0 0.0
    %8804 = vmatprep.subr.mxu0 0.0
    %8805 = vmatpush1.xpose.msra.mxu0 0.0
    %8806 = vmatprep.subr.mxu0 0.0
    %8807 = vmatpush1.xpose.msra.mxu0 0.0
    %8808 = vmatprep.subr.mxu0 0.0
    %8809 = vmatpush1.xpose.msra.mxu0 0.0
    %8810 = vmatprep.subr.mxu0 0.0
    %8811 = vmatpush1.xpose.msra.mxu0 0.0
    %8812 = vmatprep.subr.mxu0 0.0
    %8813 = vmatpush1.xpose.msra.mxu0 0.0
    %8814 = vmatprep.subr.mxu0 0.0
    %8815 = vmatpush1.xpose.msra.mxu0 0.0
    %8816 = vmatprep.subr.mxu0 0.0
    %8817 = vmatpush1.xpose.msra.mxu0 0.0
    %8818 = vmatprep.subr.mxu0 0.0
    %8819 = vmatpush1.xpose.msra.mxu0 0.0
    %8820 = vmatprep.subr.mxu0 0.0
    %8821 = vmatpush1.xpose.msra.mxu0 0.0
    %8822 = vmatprep.subr.mxu0 0.0
    %8823 = vmatpush1.xpose.msra.mxu0 0.0
    %8824 = vmatprep.subr.mxu0 0.0
    %8825 = vmatpush1.xpose.msra.mxu0 0.0
    %8826 = vmatprep.subr.mxu0 0.0
    %8827 = vmatpush1.xpose.msra.mxu0 0.0
    %8828 = vmatprep.subr.mxu0 0.0
    %8829 = vmatpush1.xpose.msra.mxu0 0.0
    %8830 = vmatprep.subr.mxu0 0.0
    %8831 = vmatpush1.xpose.msra.mxu0 0.0
    %8832 = vmatprep.subr.mxu0 0.0
    %8833 = vmatpush1.xpose.msra.mxu0 0.0
    %8834 = vmatprep.subr.mxu0 0.0
    %8835 = vmatpush1.xpose.msra.mxu0 0.0
    %8836 = vmatprep.subr.mxu0 0.0
    %8837 = vmatpush1.xpose.msra.mxu0 0.0
    %8838 = vmatprep.subr.mxu0 0.0
    %8839 = vmatpush1.xpose.msra.mxu0 0.0
    %8840 = vmatprep.subr.mxu0 0.0
    %8841 = vmatpush1.xpose.msra.mxu0 0.0
    %8842 = vmatprep.subr.mxu0 0.0
    %8843 = vmatpush1.xpose.msra.mxu0 0.0
    %8844 = vmatprep.subr.mxu0 0.0
    %8845 = vmatpush1.xpose.msra.mxu0 0.0
    %8846 = vmatprep.subr.mxu0 0.0
    %8847 = vmatpush1.xpose.msra.mxu0 0.0
    %8848 = vmatprep.subr.mxu0 0.0
    %8849 = vmatpush1.xpose.msra.mxu0 0.0
    %8850 = vmatprep.subr.mxu0 0.0
    %8851 = vmatpush1.xpose.msra.mxu0 0.0
    %8852 = vmatprep.subr.mxu0 0.0
    %8853 = vmatpush1.xpose.msra.mxu0 0.0
    %8854 = vmatprep.subr.mxu0 0.0
    %8855 = vmatpush1.xpose.msra.mxu0 0.0
    %8856 = vmatprep.subr.mxu0 0.0
    %8857 = vmatpush1.xpose.msra.mxu0 0.0
    %8858 = vmatprep.subr.mxu0 0.0
    %8859 = vmatpush1.xpose.msra.mxu0 0.0
    %8860 = vmatprep.subr.mxu0 0.0
    %8861 = vmatpush1.xpose.msra.mxu0 0.0
    %8862 = vmatprep.subr.mxu0 0.0
    %8863 = vmatpush1.xpose.msra.mxu0 0.0
    %8864 = vmatprep.mubr.f32.mxu0 0.0
    %v8865 = vand.u32 %v8493, 4294901760
    %8866 = vmatmul.mubr.f32.gmra.mrb[0].mxu0 %v8865
    %v8867 = vpop.f32.mrb[0].mxu0
    %v8868 = vadd.f32 %v8794, %v8867
    %v8869 = vpop.f32.mrb[0].mxu0
    %8870 = vdwg.mxu0
    %8871 = vmatprep.subr.mxu0 0.0
    %v8872 = vand.u32 %v8495, 4294901760
    %8873 = vmatpush1.xpose.msra.mxu0 %v8872
    %8874 = vmatprep.subr.mxu0 0.0
    %8875 = vmatpush1.xpose.msra.mxu0 0.0
    %8876 = vmatprep.subr.mxu0 0.0
    %8877 = vmatpush1.xpose.msra.mxu0 0.0
    %8878 = vmatprep.subr.mxu0 0.0
    %8879 = vmatpush1.xpose.msra.mxu0 0.0
    %8880 = vmatprep.subr.mxu0 0.0
    %8881 = vmatpush1.xpose.msra.mxu0 0.0
    %8882 = vmatprep.subr.mxu0 0.0
    %8883 = vmatpush1.xpose.msra.mxu0 0.0
    %8884 = vmatprep.subr.mxu0 0.0
    %8885 = vmatpush1.xpose.msra.mxu0 0.0
    %8886 = vmatprep.subr.mxu0 0.0
    %8887 = vmatpush1.xpose.msra.mxu0 0.0
    %8888 = vmatprep.subr.mxu0 0.0
    %8889 = vmatpush1.xpose.msra.mxu0 0.0
    %8890 = vmatprep.subr.mxu0 0.0
    %8891 = vmatpush1.xpose.msra.mxu0 0.0
    %8892 = vmatprep.subr.mxu0 0.0
    %8893 = vmatpush1.xpose.msra.mxu0 0.0
    %8894 = vmatprep.subr.mxu0 0.0
    %8895 = vmatpush1.xpose.msra.mxu0 0.0
    %8896 = vmatprep.subr.mxu0 0.0
    %8897 = vmatpush1.xpose.msra.mxu0 0.0
    %8898 = vmatprep.subr.mxu0 0.0
    %8899 = vmatpush1.xpose.msra.mxu0 0.0
    %8900 = vmatprep.subr.mxu0 0.0
    %8901 = vmatpush1.xpose.msra.mxu0 0.0
    %8902 = vmatprep.subr.mxu0 0.0
    %8903 = vmatpush1.xpose.msra.mxu0 0.0
    %8904 = vmatprep.subr.mxu0 0.0
    %8905 = vmatpush1.xpose.msra.mxu0 0.0
    %8906 = vmatprep.subr.mxu0 0.0
    %8907 = vmatpush1.xpose.msra.mxu0 0.0
    %8908 = vmatprep.subr.mxu0 0.0
    %8909 = vmatpush1.xpose.msra.mxu0 0.0
    %8910 = vmatprep.subr.mxu0 0.0
    %8911 = vmatpush1.xpose.msra.mxu0 0.0
    %8912 = vmatprep.subr.mxu0 0.0
    %8913 = vmatpush1.xpose.msra.mxu0 0.0
    %8914 = vmatprep.subr.mxu0 0.0
    %8915 = vmatpush1.xpose.msra.mxu0 0.0
    %8916 = vmatprep.subr.mxu0 0.0
    %8917 = vmatpush1.xpose.msra.mxu0 0.0
    %8918 = vmatprep.subr.mxu0 0.0
    %8919 = vmatpush1.xpose.msra.mxu0 0.0
    %8920 = vmatprep.subr.mxu0 0.0
    %8921 = vmatpush1.xpose.msra.mxu0 0.0
    %8922 = vmatprep.subr.mxu0 0.0
    %8923 = vmatpush1.xpose.msra.mxu0 0.0
    %8924 = vmatprep.subr.mxu0 0.0
    %8925 = vmatpush1.xpose.msra.mxu0 0.0
    %8926 = vmatprep.subr.mxu0 0.0
    %8927 = vmatpush1.xpose.msra.mxu0 0.0
    %8928 = vmatprep.subr.mxu0 0.0
    %8929 = vmatpush1.xpose.msra.mxu0 0.0
    %8930 = vmatprep.subr.mxu0 0.0
    %8931 = vmatpush1.xpose.msra.mxu0 0.0
    %8932 = vmatprep.subr.mxu0 0.0
    %8933 = vmatpush1.xpose.msra.mxu0 0.0
    %8934 = vmatprep.subr.mxu0 0.0
    %8935 = vmatpush1.xpose.msra.mxu0 0.0
    %8936 = vmatprep.mubr.f32.mxu0 0.0
    %v8937 = vand.u32 %v8493, 4294901760
    %8938 = vmatmul.mubr.f32.gmra.mrb[0].mxu0 %v8937
    %v8939 = vpop.f32.mrb[0].mxu0
    %v8940 = vadd.f32 %v8868, %v8939
    %v8941 = vpop.f32.mrb[0].mxu0
    %8942 = vdwg.mxu0
    %8943 = vrot.lane.b32.xlu0 %v6652, 112
    %v8944 = vpop.permute.xlu0 %8943
    %8945 = vrot.lane.b32.xlu0 %v6652, 80
    %v8946 = vpop.permute.xlu0 %8945
    %v8947 = vsel %vm645, %v8944, 0
    %v8949 = vsel %vm645, %v8946, 0
    %8951 = vmatprep.subr.mxu0 0.0
    %v8952 = vand.u32 %v8949, 4294901760
    %8953 = vmatpush1.xpose.msra.mxu0 %v8952
    %8954 = vmatprep.subr.mxu0 0.0
    %8955 = vmatpush1.xpose.msra.mxu0 0.0
    %8956 = vmatprep.subr.mxu0 0.0
    %8957 = vmatpush1.xpose.msra.mxu0 0.0
    %8958 = vmatprep.subr.mxu0 0.0
    %8959 = vmatpush1.xpose.msra.mxu0 0.0
    %8960 = vmatprep.subr.mxu0 0.0
    %8961 = vmatpush1.xpose.msra.mxu0 0.0
    %8962 = vmatprep.subr.mxu0 0.0
    %8963 = vmatpush1.xpose.msra.mxu0 0.0
    %8964 = vmatprep.subr.mxu0 0.0
    %8965 = vmatpush1.xpose.msra.mxu0 0.0
    %8966 = vmatprep.subr.mxu0 0.0
    %8967 = vmatpush1.xpose.msra.mxu0 0.0
    %8968 = vmatprep.subr.mxu0 0.0
    %8969 = vmatpush1.xpose.msra.mxu0 0.0
    %8970 = vmatprep.subr.mxu0 0.0
    %8971 = vmatpush1.xpose.msra.mxu0 0.0
    %8972 = vmatprep.subr.mxu0 0.0
    %8973 = vmatpush1.xpose.msra.mxu0 0.0
    %8974 = vmatprep.subr.mxu0 0.0
    %8975 = vmatpush1.xpose.msra.mxu0 0.0
    %8976 = vmatprep.subr.mxu0 0.0
    %8977 = vmatpush1.xpose.msra.mxu0 0.0
    %8978 = vmatprep.subr.mxu0 0.0
    %8979 = vmatpush1.xpose.msra.mxu0 0.0
    %8980 = vmatprep.subr.mxu0 0.0
    %8981 = vmatpush1.xpose.msra.mxu0 0.0
    %8982 = vmatprep.subr.mxu0 0.0
    %8983 = vmatpush1.xpose.msra.mxu0 0.0
    %8984 = vmatprep.subr.mxu0 0.0
    %8985 = vmatpush1.xpose.msra.mxu0 0.0
    %8986 = vmatprep.subr.mxu0 0.0
    %8987 = vmatpush1.xpose.msra.mxu0 0.0
    %8988 = vmatprep.subr.mxu0 0.0
    %8989 = vmatpush1.xpose.msra.mxu0 0.0
    %8990 = vmatprep.subr.mxu0 0.0
    %8991 = vmatpush1.xpose.msra.mxu0 0.0
    %8992 = vmatprep.subr.mxu0 0.0
    %8993 = vmatpush1.xpose.msra.mxu0 0.0
    %8994 = vmatprep.subr.mxu0 0.0
    %8995 = vmatpush1.xpose.msra.mxu0 0.0
    %8996 = vmatprep.subr.mxu0 0.0
    %8997 = vmatpush1.xpose.msra.mxu0 0.0
    %8998 = vmatprep.subr.mxu0 0.0
    %8999 = vmatpush1.xpose.msra.mxu0 0.0
    %9000 = vmatprep.subr.mxu0 0.0
    %9001 = vmatpush1.xpose.msra.mxu0 0.0
    %9002 = vmatprep.subr.mxu0 0.0
    %9003 = vmatpush1.xpose.msra.mxu0 0.0
    %9004 = vmatprep.subr.mxu0 0.0
    %9005 = vmatpush1.xpose.msra.mxu0 0.0
    %9006 = vmatprep.subr.mxu0 0.0
    %9007 = vmatpush1.xpose.msra.mxu0 0.0
    %9008 = vmatprep.subr.mxu0 0.0
    %9009 = vmatpush1.xpose.msra.mxu0 0.0
    %9010 = vmatprep.subr.mxu0 0.0
    %9011 = vmatpush1.xpose.msra.mxu0 0.0
    %9012 = vmatprep.subr.mxu0 0.0
    %9013 = vmatpush1.xpose.msra.mxu0 0.0
    %9014 = vmatprep.subr.mxu0 0.0
    %9015 = vmatpush1.xpose.msra.mxu0 0.0
    %9016 = vmatprep.mubr.f32.mxu0 0.0
    %v9017 = vand.u32 %v8947, 4294901760
    %v9018 = vsub.f32 %v8947, %v9017
    %v9019 = vand.u32 %v9018, 4294901760
    %v9020 = vsub.f32 %v9018, %v9019
    %v9021 = vand.u32 %v9020, 4294901760
    %9022 = vmatmul.mubr.f32.gmra.mrb[0].mxu0 %v9021
    %v9023 = vpop.f32.mrb[0].mxu0
    %v9024 = vadd.f32 0.0, %v9023
    %v9025 = vpop.f32.mrb[0].mxu0
    %9026 = vdwg.mxu0
    %9027 = vmatprep.subr.mxu0 0.0
    %v9028 = vand.u32 %v8949, 4294901760
    %v9029 = vsub.f32 %v8949, %v9028
    %v9030 = vand.u32 %v9029, 4294901760
    %v9031 = vsub.f32 %v9029, %v9030
    %v9032 = vand.u32 %v9031, 4294901760
    %9033 = vmatpush1.xpose.msra.mxu0 %v9032
    %9034 = vmatprep.subr.mxu0 0.0
    %9035 = vmatpush1.xpose.msra.mxu0 0.0
    %9036 = vmatprep.subr.mxu0 0.0
    %9037 = vmatpush1.xpose.msra.mxu0 0.0
    %9038 = vmatprep.subr.mxu0 0.0
    %9039 = vmatpush1.xpose.msra.mxu0 0.0
    %9040 = vmatprep.subr.mxu0 0.0
    %9041 = vmatpush1.xpose.msra.mxu0 0.0
    %9042 = vmatprep.subr.mxu0 0.0
    %9043 = vmatpush1.xpose.msra.mxu0 0.0
    %9044 = vmatprep.subr.mxu0 0.0
    %9045 = vmatpush1.xpose.msra.mxu0 0.0
    %9046 = vmatprep.subr.mxu0 0.0
    %9047 = vmatpush1.xpose.msra.mxu0 0.0
    %9048 = vmatprep.subr.mxu0 0.0
    %9049 = vmatpush1.xpose.msra.mxu0 0.0
    %9050 = vmatprep.subr.mxu0 0.0
    %9051 = vmatpush1.xpose.msra.mxu0 0.0
    %9052 = vmatprep.subr.mxu0 0.0
    %9053 = vmatpush1.xpose.msra.mxu0 0.0
    %9054 = vmatprep.subr.mxu0 0.0
    %9055 = vmatpush1.xpose.msra.mxu0 0.0
    %9056 = vmatprep.subr.mxu0 0.0
    %9057 = vmatpush1.xpose.msra.mxu0 0.0
    %9058 = vmatprep.subr.mxu0 0.0
    %9059 = vmatpush1.xpose.msra.mxu0 0.0
    %9060 = vmatprep.subr.mxu0 0.0
    %9061 = vmatpush1.xpose.msra.mxu0 0.0
    %9062 = vmatprep.subr.mxu0 0.0
    %9063 = vmatpush1.xpose.msra.mxu0 0.0
    %9064 = vmatprep.subr.mxu0 0.0
    %9065 = vmatpush1.xpose.msra.mxu0 0.0
    %9066 = vmatprep.subr.mxu0 0.0
    %9067 = vmatpush1.xpose.msra.mxu0 0.0
    %9068 = vmatprep.subr.mxu0 0.0
    %9069 = vmatpush1.xpose.msra.mxu0 0.0
    %9070 = vmatprep.subr.mxu0 0.0
    %9071 = vmatpush1.xpose.msra.mxu0 0.0
    %9072 = vmatprep.subr.mxu0 0.0
    %9073 = vmatpush1.xpose.msra.mxu0 0.0
    %9074 = vmatprep.subr.mxu0 0.0
    %9075 = vmatpush1.xpose.msra.mxu0 0.0
    %9076 = vmatprep.subr.mxu0 0.0
    %9077 = vmatpush1.xpose.msra.mxu0 0.0
    %9078 = vmatprep.subr.mxu0 0.0
    %9079 = vmatpush1.xpose.msra.mxu0 0.0
    %9080 = vmatprep.subr.mxu0 0.0
    %9081 = vmatpush1.xpose.msra.mxu0 0.0
    %9082 = vmatprep.subr.mxu0 0.0
    %9083 = vmatpush1.xpose.msra.mxu0 0.0
    %9084 = vmatprep.subr.mxu0 0.0
    %9085 = vmatpush1.xpose.msra.mxu0 0.0
    %9086 = vmatprep.subr.mxu0 0.0
    %9087 = vmatpush1.xpose.msra.mxu0 0.0
    %9088 = vmatprep.subr.mxu0 0.0
    %9089 = vmatpush1.xpose.msra.mxu0 0.0
    %9090 = vmatprep.subr.mxu0 0.0
    %9091 = vmatpush1.xpose.msra.mxu0 0.0
    %9092 = vmatprep.subr.mxu0 0.0
    %9093 = vmatpush1.xpose.msra.mxu0 0.0
    %9094 = vmatprep.subr.mxu0 0.0
    %9095 = vmatpush1.xpose.msra.mxu0 0.0
    %9096 = vmatprep.mubr.f32.mxu0 0.0
    %v9097 = vand.u32 %v8947, 4294901760
    %9098 = vmatmul.mubr.f32.gmra.mrb[0].mxu0 %v9097
    %v9099 = vpop.f32.mrb[0].mxu0
    %v9100 = vadd.f32 %v9024, %v9099
    %v9101 = vpop.f32.mrb[0].mxu0
    %9102 = vdwg.mxu0
    %9103 = vmatprep.subr.mxu0 0.0
    %v9104 = vand.u32 %v8949, 4294901760
    %v9105 = vsub.f32 %v8949, %v9104
    %9106 = vmatpush1.xpose.msra.mxu0 %v9105
    %9107 = vmatprep.subr.mxu0 0.0
    %9108 = vmatpush1.xpose.msra.mxu0 0.0
    %9109 = vmatprep.subr.mxu0 0.0
    %9110 = vmatpush1.xpose.msra.mxu0 0.0
    %9111 = vmatprep.subr.mxu0 0.0
    %9112 = vmatpush1.xpose.msra.mxu0 0.0
    %9113 = vmatprep.subr.mxu0 0.0
    %9114 = vmatpush1.xpose.msra.mxu0 0.0
    %9115 = vmatprep.subr.mxu0 0.0
    %9116 = vmatpush1.xpose.msra.mxu0 0.0
    %9117 = vmatprep.subr.mxu0 0.0
    %9118 = vmatpush1.xpose.msra.mxu0 0.0
    %9119 = vmatprep.subr.mxu0 0.0
    %9120 = vmatpush1.xpose.msra.mxu0 0.0
    %9121 = vmatprep.subr.mxu0 0.0
    %9122 = vmatpush1.xpose.msra.mxu0 0.0
    %9123 = vmatprep.subr.mxu0 0.0
    %9124 = vmatpush1.xpose.msra.mxu0 0.0
    %9125 = vmatprep.subr.mxu0 0.0
    %9126 = vmatpush1.xpose.msra.mxu0 0.0
    %9127 = vmatprep.subr.mxu0 0.0
    %9128 = vmatpush1.xpose.msra.mxu0 0.0
    %9129 = vmatprep.subr.mxu0 0.0
    %9130 = vmatpush1.xpose.msra.mxu0 0.0
    %9131 = vmatprep.subr.mxu0 0.0
    %9132 = vmatpush1.xpose.msra.mxu0 0.0
    %9133 = vmatprep.subr.mxu0 0.0
    %9134 = vmatpush1.xpose.msra.mxu0 0.0
    %9135 = vmatprep.subr.mxu0 0.0
    %9136 = vmatpush1.xpose.msra.mxu0 0.0
    %9137 = vmatprep.subr.mxu0 0.0
    %9138 = vmatpush1.xpose.msra.mxu0 0.0
    %9139 = vmatprep.subr.mxu0 0.0
    %9140 = vmatpush1.xpose.msra.mxu0 0.0
    %9141 = vmatprep.subr.mxu0 0.0
    %9142 = vmatpush1.xpose.msra.mxu0 0.0
    %9143 = vmatprep.subr.mxu0 0.0
    %9144 = vmatpush1.xpose.msra.mxu0 0.0
    %9145 = vmatprep.subr.mxu0 0.0
    %9146 = vmatpush1.xpose.msra.mxu0 0.0
    %9147 = vmatprep.subr.mxu0 0.0
    %9148 = vmatpush1.xpose.msra.mxu0 0.0
    %9149 = vmatprep.subr.mxu0 0.0
    %9150 = vmatpush1.xpose.msra.mxu0 0.0
    %9151 = vmatprep.subr.mxu0 0.0
    %9152 = vmatpush1.xpose.msra.mxu0 0.0
    %9153 = vmatprep.subr.mxu0 0.0
    %9154 = vmatpush1.xpose.msra.mxu0 0.0
    %9155 = vmatprep.subr.mxu0 0.0
    %9156 = vmatpush1.xpose.msra.mxu0 0.0
    %9157 = vmatprep.subr.mxu0 0.0
    %9158 = vmatpush1.xpose.msra.mxu0 0.0
    %9159 = vmatprep.subr.mxu0 0.0
    %9160 = vmatpush1.xpose.msra.mxu0 0.0
    %9161 = vmatprep.subr.mxu0 0.0
    %9162 = vmatpush1.xpose.msra.mxu0 0.0
    %9163 = vmatprep.subr.mxu0 0.0
    %9164 = vmatpush1.xpose.msra.mxu0 0.0
    %9165 = vmatprep.subr.mxu0 0.0
    %9166 = vmatpush1.xpose.msra.mxu0 0.0
    %9167 = vmatprep.subr.mxu0 0.0
    %9168 = vmatpush1.xpose.msra.mxu0 0.0
    %9169 = vmatprep.mubr.f32.mxu0 0.0
    %v9170 = vand.u32 %v8947, 4294901760
    %v9171 = vsub.f32 %v8947, %v9170
    %9172 = vmatmul.mubr.f32.gmra.mrb[0].mxu0 %v9171
    %v9173 = vpop.f32.mrb[0].mxu0
    %v9174 = vadd.f32 %v9100, %v9173
    %v9175 = vpop.f32.mrb[0].mxu0
    %9176 = vdwg.mxu0
    %9177 = vmatprep.subr.mxu0 0.0
    %v9178 = vand.u32 %v8949, 4294901760
    %9179 = vmatpush1.xpose.msra.mxu0 %v9178
    %9180 = vmatprep.subr.mxu0 0.0
    %9181 = vmatpush1.xpose.msra.mxu0 0.0
    %9182 = vmatprep.subr.mxu0 0.0
    %9183 = vmatpush1.xpose.msra.mxu0 0.0
    %9184 = vmatprep.subr.mxu0 0.0
    %9185 = vmatpush1.xpose.msra.mxu0 0.0
    %9186 = vmatprep.subr.mxu0 0.0
    %9187 = vmatpush1.xpose.msra.mxu0 0.0
    %9188 = vmatprep.subr.mxu0 0.0
    %9189 = vmatpush1.xpose.msra.mxu0 0.0
    %9190 = vmatprep.subr.mxu0 0.0
    %9191 = vmatpush1.xpose.msra.mxu0 0.0
    %9192 = vmatprep.subr.mxu0 0.0
    %9193 = vmatpush1.xpose.msra.mxu0 0.0
    %9194 = vmatprep.subr.mxu0 0.0
    %9195 = vmatpush1.xpose.msra.mxu0 0.0
    %9196 = vmatprep.subr.mxu0 0.0
    %9197 = vmatpush1.xpose.msra.mxu0 0.0
    %9198 = vmatprep.subr.mxu0 0.0
    %9199 = vmatpush1.xpose.msra.mxu0 0.0
    %9200 = vmatprep.subr.mxu0 0.0
    %9201 = vmatpush1.xpose.msra.mxu0 0.0
    %9202 = vmatprep.subr.mxu0 0.0
    %9203 = vmatpush1.xpose.msra.mxu0 0.0
    %9204 = vmatprep.subr.mxu0 0.0
    %9205 = vmatpush1.xpose.msra.mxu0 0.0
    %9206 = vmatprep.subr.mxu0 0.0
    %9207 = vmatpush1.xpose.msra.mxu0 0.0
    %9208 = vmatprep.subr.mxu0 0.0
    %9209 = vmatpush1.xpose.msra.mxu0 0.0
    %9210 = vmatprep.subr.mxu0 0.0
    %9211 = vmatpush1.xpose.msra.mxu0 0.0
    %9212 = vmatprep.subr.mxu0 0.0
    %9213 = vmatpush1.xpose.msra.mxu0 0.0
    %9214 = vmatprep.subr.mxu0 0.0
    %9215 = vmatpush1.xpose.msra.mxu0 0.0
    %9216 = vmatprep.subr.mxu0 0.0
    %9217 = vmatpush1.xpose.msra.mxu0 0.0
    %9218 = vmatprep.subr.mxu0 0.0
    %9219 = vmatpush1.xpose.msra.mxu0 0.0
    %9220 = vmatprep.subr.mxu0 0.0
    %9221 = vmatpush1.xpose.msra.mxu0 0.0
    %9222 = vmatprep.subr.mxu0 0.0
    %9223 = vmatpush1.xpose.msra.mxu0 0.0
    %9224 = vmatprep.subr.mxu0 0.0
    %9225 = vmatpush1.xpose.msra.mxu0 0.0
    %9226 = vmatprep.subr.mxu0 0.0
    %9227 = vmatpush1.xpose.msra.mxu0 0.0
    %9228 = vmatprep.subr.mxu0 0.0
    %9229 = vmatpush1.xpose.msra.mxu0 0.0
    %9230 = vmatprep.subr.mxu0 0.0
    %9231 = vmatpush1.xpose.msra.mxu0 0.0
    %9232 = vmatprep.subr.mxu0 0.0
    %9233 = vmatpush1.xpose.msra.mxu0 0.0
    %9234 = vmatprep.subr.mxu0 0.0
    %9235 = vmatpush1.xpose.msra.mxu0 0.0
    %9236 = vmatprep.subr.mxu0 0.0
    %9237 = vmatpush1.xpose.msra.mxu0 0.0
    %9238 = vmatprep.subr.mxu0 0.0
    %9239 = vmatpush1.xpose.msra.mxu0 0.0
    %9240 = vmatprep.subr.mxu0 0.0
    %9241 = vmatpush1.xpose.msra.mxu0 0.0
    %9242 = vmatprep.mubr.f32.mxu0 0.0
    %v9243 = vand.u32 %v8947, 4294901760
    %v9244 = vsub.f32 %v8947, %v9243
    %v9245 = vand.u32 %v9244, 4294901760
    %9246 = vmatmul.mubr.f32.gmra.mrb[0].mxu0 %v9245
    %v9247 = vpop.f32.mrb[0].mxu0
    %v9248 = vadd.f32 %v9174, %v9247
    %v9249 = vpop.f32.mrb[0].mxu0
    %9250 = vdwg.mxu0
    %9251 = vmatprep.subr.mxu0 0.0
    %v9252 = vand.u32 %v8949, 4294901760
    %v9253 = vsub.f32 %v8949, %v9252
    %v9254 = vand.u32 %v9253, 4294901760
    %9255 = vmatpush1.xpose.msra.mxu0 %v9254
    %9256 = vmatprep.subr.mxu0 0.0
    %9257 = vmatpush1.xpose.msra.mxu0 0.0
    %9258 = vmatprep.subr.mxu0 0.0
    %9259 = vmatpush1.xpose.msra.mxu0 0.0
    %9260 = vmatprep.subr.mxu0 0.0
    %9261 = vmatpush1.xpose.msra.mxu0 0.0
    %9262 = vmatprep.subr.mxu0 0.0
    %9263 = vmatpush1.xpose.msra.mxu0 0.0
    %9264 = vmatprep.subr.mxu0 0.0
    %9265 = vmatpush1.xpose.msra.mxu0 0.0
    %9266 = vmatprep.subr.mxu0 0.0
    %9267 = vmatpush1.xpose.msra.mxu0 0.0
    %9268 = vmatprep.subr.mxu0 0.0
    %9269 = vmatpush1.xpose.msra.mxu0 0.0
    %9270 = vmatprep.subr.mxu0 0.0
    %9271 = vmatpush1.xpose.msra.mxu0 0.0
    %9272 = vmatprep.subr.mxu0 0.0
    %9273 = vmatpush1.xpose.msra.mxu0 0.0
    %9274 = vmatprep.subr.mxu0 0.0
    %9275 = vmatpush1.xpose.msra.mxu0 0.0
    %9276 = vmatprep.subr.mxu0 0.0
    %9277 = vmatpush1.xpose.msra.mxu0 0.0
    %9278 = vmatprep.subr.mxu0 0.0
    %9279 = vmatpush1.xpose.msra.mxu0 0.0
    %9280 = vmatprep.subr.mxu0 0.0
    %9281 = vmatpush1.xpose.msra.mxu0 0.0
    %9282 = vmatprep.subr.mxu0 0.0
    %9283 = vmatpush1.xpose.msra.mxu0 0.0
    %9284 = vmatprep.subr.mxu0 0.0
    %9285 = vmatpush1.xpose.msra.mxu0 0.0
    %9286 = vmatprep.subr.mxu0 0.0
    %9287 = vmatpush1.xpose.msra.mxu0 0.0
    %9288 = vmatprep.subr.mxu0 0.0
    %9289 = vmatpush1.xpose.msra.mxu0 0.0
    %9290 = vmatprep.subr.mxu0 0.0
    %9291 = vmatpush1.xpose.msra.mxu0 0.0
    %9292 = vmatprep.subr.mxu0 0.0
    %9293 = vmatpush1.xpose.msra.mxu0 0.0
    %9294 = vmatprep.subr.mxu0 0.0
    %9295 = vmatpush1.xpose.msra.mxu0 0.0
    %9296 = vmatprep.subr.mxu0 0.0
    %9297 = vmatpush1.xpose.msra.mxu0 0.0
    %9298 = vmatprep.subr.mxu0 0.0
    %9299 = vmatpush1.xpose.msra.mxu0 0.0
    %9300 = vmatprep.subr.mxu0 0.0
    %9301 = vmatpush1.xpose.msra.mxu0 0.0
    %9302 = vmatprep.subr.mxu0 0.0
    %9303 = vmatpush1.xpose.msra.mxu0 0.0
    %9304 = vmatprep.subr.mxu0 0.0
    %9305 = vmatpush1.xpose.msra.mxu0 0.0
    %9306 = vmatprep.subr.mxu0 0.0
    %9307 = vmatpush1.xpose.msra.mxu0 0.0
    %9308 = vmatprep.subr.mxu0 0.0
    %9309 = vmatpush1.xpose.msra.mxu0 0.0
    %9310 = vmatprep.subr.mxu0 0.0
    %9311 = vmatpush1.xpose.msra.mxu0 0.0
    %9312 = vmatprep.subr.mxu0 0.0
    %9313 = vmatpush1.xpose.msra.mxu0 0.0
    %9314 = vmatprep.subr.mxu0 0.0
    %9315 = vmatpush1.xpose.msra.mxu0 0.0
    %9316 = vmatprep.subr.mxu0 0.0
    %9317 = vmatpush1.xpose.msra.mxu0 0.0
    %9318 = vmatprep.mubr.f32.mxu0 0.0
    %v9319 = vand.u32 %v8947, 4294901760
    %9320 = vmatmul.mubr.f32.gmra.mrb[0].mxu0 %v9319
    %v9321 = vpop.f32.mrb[0].mxu0
    %v9322 = vadd.f32 %v9248, %v9321
    %v9323 = vpop.f32.mrb[0].mxu0
    %9324 = vdwg.mxu0
    %9325 = vmatprep.subr.mxu0 0.0
    %v9326 = vand.u32 %v8949, 4294901760
    %9327 = vmatpush1.xpose.msra.mxu0 %v9326
    %9328 = vmatprep.subr.mxu0 0.0
    %9329 = vmatpush1.xpose.msra.mxu0 0.0
    %9330 = vmatprep.subr.mxu0 0.0
    %9331 = vmatpush1.xpose.msra.mxu0 0.0
    %9332 = vmatprep.subr.mxu0 0.0
    %9333 = vmatpush1.xpose.msra.mxu0 0.0
    %9334 = vmatprep.subr.mxu0 0.0
    %9335 = vmatpush1.xpose.msra.mxu0 0.0
    %9336 = vmatprep.subr.mxu0 0.0
    %9337 = vmatpush1.xpose.msra.mxu0 0.0
    %9338 = vmatprep.subr.mxu0 0.0
    %9339 = vmatpush1.xpose.msra.mxu0 0.0
    %9340 = vmatprep.subr.mxu0 0.0
    %9341 = vmatpush1.xpose.msra.mxu0 0.0
    %9342 = vmatprep.subr.mxu0 0.0
    %9343 = vmatpush1.xpose.msra.mxu0 0.0
    %9344 = vmatprep.subr.mxu0 0.0
    %9345 = vmatpush1.xpose.msra.mxu0 0.0
    %9346 = vmatprep.subr.mxu0 0.0
    %9347 = vmatpush1.xpose.msra.mxu0 0.0
    %9348 = vmatprep.subr.mxu0 0.0
    %9349 = vmatpush1.xpose.msra.mxu0 0.0
    %9350 = vmatprep.subr.mxu0 0.0
    %9351 = vmatpush1.xpose.msra.mxu0 0.0
    %9352 = vmatprep.subr.mxu0 0.0
    %9353 = vmatpush1.xpose.msra.mxu0 0.0
    %9354 = vmatprep.subr.mxu0 0.0
    %9355 = vmatpush1.xpose.msra.mxu0 0.0
    %9356 = vmatprep.subr.mxu0 0.0
    %9357 = vmatpush1.xpose.msra.mxu0 0.0
    %9358 = vmatprep.subr.mxu0 0.0
    %9359 = vmatpush1.xpose.msra.mxu0 0.0
    %9360 = vmatprep.subr.mxu0 0.0
    %9361 = vmatpush1.xpose.msra.mxu0 0.0
    %9362 = vmatprep.subr.mxu0 0.0
    %9363 = vmatpush1.xpose.msra.mxu0 0.0
    %9364 = vmatprep.subr.mxu0 0.0
    %9365 = vmatpush1.xpose.msra.mxu0 0.0
    %9366 = vmatprep.subr.mxu0 0.0
    %9367 = vmatpush1.xpose.msra.mxu0 0.0
    %9368 = vmatprep.subr.mxu0 0.0
    %9369 = vmatpush1.xpose.msra.mxu0 0.0
    %9370 = vmatprep.subr.mxu0 0.0
    %9371 = vmatpush1.xpose.msra.mxu0 0.0
    %9372 = vmatprep.subr.mxu0 0.0
    %9373 = vmatpush1.xpose.msra.mxu0 0.0
    %9374 = vmatprep.subr.mxu0 0.0
    %9375 = vmatpush1.xpose.msra.mxu0 0.0
    %9376 = vmatprep.subr.mxu0 0.0
    %9377 = vmatpush1.xpose.msra.mxu0 0.0
    %9378 = vmatprep.subr.mxu0 0.0
    %9379 = vmatpush1.xpose.msra.mxu0 0.0
    %9380 = vmatprep.subr.mxu0 0.0
    %9381 = vmatpush1.xpose.msra.mxu0 0.0
    %9382 = vmatprep.subr.mxu0 0.0
    %9383 = vmatpush1.xpose.msra.mxu0 0.0
    %9384 = vmatprep.subr.mxu0 0.0
    %9385 = vmatpush1.xpose.msra.mxu0 0.0
    %9386 = vmatprep.subr.mxu0 0.0
    %9387 = vmatpush1.xpose.msra.mxu0 0.0
    %9388 = vmatprep.subr.mxu0 0.0
    %9389 = vmatpush1.xpose.msra.mxu0 0.0
    %9390 = vmatprep.mubr.f32.mxu0 0.0
    %v9391 = vand.u32 %v8947, 4294901760
    %9392 = vmatmul.mubr.f32.gmra.mrb[0].mxu0 %v9391
    %v9393 = vpop.f32.mrb[0].mxu0
    %v9394 = vadd.f32 %v9322, %v9393
    %v9395 = vpop.f32.mrb[0].mxu0
    %9396 = vdwg.mxu0
    %v9397 = vmul.f32 %v8940, 0.25
    %v9398 = vmul.f32 %v9394, 0.25
    %v9399 = vsel %vm1551, %v9397, -inf
    %9400 = vmax.xlane.f32.xlu0 %v9399
    %v9401 = vpop.xlane.xlu0 %9400
    %v9402 = vsel %vm1551, %v9398, -inf
    %9403 = vmax.xlane.f32.xlu0 %v9402
    %v9404 = vpop.xlane.xlu0 %9403
    %v9405 = vsub.f32 %v9397, %v9401
    %v9406 = vsub.f32 %v9398, %v9404
    %v9407 = vmul.f32 %v9405, 1.442695
    %v9408 = vpow.pop %v9407
    %v9409 = vmul.f32 %v9406, 1.442695
    %v9410 = vpow.pop %v9409
    %v9411 = vsel %vm1551, %v9408, 0.0
    %9412 = vadd.xlane.f32.xlu0 %v9411
    %v9413 = vpop.xlane.xlu0 %9412
    %v9414 = vsel %vm1551, %v9410, 0.0
    %9415 = vadd.xlane.f32.xlu0 %v9414
    %v9416 = vpop.xlane.xlu0 %9415
    %v9417 = vrcp.pop %v9413
    %v9418 = vmul.f32 %v9408, %v9417
    %v9419 = vrcp.pop %v9416
    %v9420 = vmul.f32 %v9410, %v9419
    %9421 = vrot.lane.b32.xlu0 %v6646, 48
    %v9422 = vpop.permute.xlu0 %9421
    %v9425 = vsel %vm1551, %v9418, 0
    %9427 = vmatprep.subr.mxu0 0.0
    %v9428 = vand.u32 %v9422, 4294901760
    %9429 = vmatpush1.msra.mxu0 %v9428
    %9430 = vmatprep.subr.mxu0 0.0
    %9431 = vmatpush1.msra.mxu0 0.0
    %9432 = vmatprep.subr.mxu0 0.0
    %9433 = vmatpush1.msra.mxu0 0.0
    %9434 = vmatprep.subr.mxu0 0.0
    %9435 = vmatpush1.msra.mxu0 0.0
    %9436 = vmatprep.subr.mxu0 0.0
    %9437 = vmatpush1.msra.mxu0 0.0
    %9438 = vmatprep.subr.mxu0 0.0
    %9439 = vmatpush1.msra.mxu0 0.0
    %9440 = vmatprep.subr.mxu0 0.0
    %9441 = vmatpush1.msra.mxu0 0.0
    %9442 = vmatprep.subr.mxu0 0.0
    %9443 = vmatpush1.msra.mxu0 0.0
    %9444 = vmatprep.subr.mxu0 0.0
    %9445 = vmatpush1.msra.mxu0 0.0
    %9446 = vmatprep.subr.mxu0 0.0
    %9447 = vmatpush1.msra.mxu0 0.0
    %9448 = vmatprep.subr.mxu0 0.0
    %9449 = vmatpush1.msra.mxu0 0.0
    %9450 = vmatprep.subr.mxu0 0.0
    %9451 = vmatpush1.msra.mxu0 0.0
    %9452 = vmatprep.subr.mxu0 0.0
    %9453 = vmatpush1.msra.mxu0 0.0
    %9454 = vmatprep.subr.mxu0 0.0
    %9455 = vmatpush1.msra.mxu0 0.0
    %9456 = vmatprep.subr.mxu0 0.0
    %9457 = vmatpush1.msra.mxu0 0.0
    %9458 = vmatprep.subr.mxu0 0.0
    %9459 = vmatpush1.msra.mxu0 0.0
    %9460 = vmatprep.subr.mxu0 0.0
    %9461 = vmatpush1.msra.mxu0 0.0
    %9462 = vmatprep.subr.mxu0 0.0
    %9463 = vmatpush1.msra.mxu0 0.0
    %9464 = vmatprep.subr.mxu0 0.0
    %9465 = vmatpush1.msra.mxu0 0.0
    %9466 = vmatprep.subr.mxu0 0.0
    %9467 = vmatpush1.msra.mxu0 0.0
    %9468 = vmatprep.subr.mxu0 0.0
    %9469 = vmatpush1.msra.mxu0 0.0
    %9470 = vmatprep.subr.mxu0 0.0
    %9471 = vmatpush1.msra.mxu0 0.0
    %9472 = vmatprep.subr.mxu0 0.0
    %9473 = vmatpush1.msra.mxu0 0.0
    %9474 = vmatprep.subr.mxu0 0.0
    %9475 = vmatpush1.msra.mxu0 0.0
    %9476 = vmatprep.subr.mxu0 0.0
    %9477 = vmatpush1.msra.mxu0 0.0
    %9478 = vmatprep.subr.mxu0 0.0
    %9479 = vmatpush1.msra.mxu0 0.0
    %9480 = vmatprep.subr.mxu0 0.0
    %9481 = vmatpush1.msra.mxu0 0.0
    %9482 = vmatprep.subr.mxu0 0.0
    %9483 = vmatpush1.msra.mxu0 0.0
    %9484 = vmatprep.subr.mxu0 0.0
    %9485 = vmatpush1.msra.mxu0 0.0
    %9486 = vmatprep.subr.mxu0 0.0
    %9487 = vmatpush1.msra.mxu0 0.0
    %9488 = vmatprep.subr.mxu0 0.0
    %9489 = vmatpush1.msra.mxu0 0.0
    %9490 = vmatprep.subr.mxu0 0.0
    %9491 = vmatpush1.msra.mxu0 0.0
    %9492 = vmatprep.mubr.f32.mxu0 0.0
    %v9493 = vand.u32 %v9425, 4294901760
    %v9494 = vsub.f32 %v9425, %v9493
    %v9495 = vand.u32 %v9494, 4294901760
    %v9496 = vsub.f32 %v9494, %v9495
    %v9497 = vand.u32 %v9496, 4294901760
    %9498 = vmatmul.mubr.f32.gmra.mrb[0].mxu0 %v9497
    %v9499 = vpop.f32.mrb[0].mxu0
    %v9500 = vadd.f32 0.0, %v9499
    %v9501 = vpop.f32.mrb[0].mxu0
    %9502 = vdwg.mxu0
    %9503 = vmatprep.subr.mxu0 0.0
    %v9504 = vand.u32 %v9422, 4294901760
    %v9505 = vsub.f32 %v9422, %v9504
    %v9506 = vand.u32 %v9505, 4294901760
    %v9507 = vsub.f32 %v9505, %v9506
    %v9508 = vand.u32 %v9507, 4294901760
    %9509 = vmatpush1.msra.mxu0 %v9508
    %9510 = vmatprep.subr.mxu0 0.0
    %9511 = vmatpush1.msra.mxu0 0.0
    %9512 = vmatprep.subr.mxu0 0.0
    %9513 = vmatpush1.msra.mxu0 0.0
    %9514 = vmatprep.subr.mxu0 0.0
    %9515 = vmatpush1.msra.mxu0 0.0
    %9516 = vmatprep.subr.mxu0 0.0
    %9517 = vmatpush1.msra.mxu0 0.0
    %9518 = vmatprep.subr.mxu0 0.0
    %9519 = vmatpush1.msra.mxu0 0.0
    %9520 = vmatprep.subr.mxu0 0.0
    %9521 = vmatpush1.msra.mxu0 0.0
    %9522 = vmatprep.subr.mxu0 0.0
    %9523 = vmatpush1.msra.mxu0 0.0
    %9524 = vmatprep.subr.mxu0 0.0
    %9525 = vmatpush1.msra.mxu0 0.0
    %9526 = vmatprep.subr.mxu0 0.0
    %9527 = vmatpush1.msra.mxu0 0.0
    %9528 = vmatprep.subr.mxu0 0.0
    %9529 = vmatpush1.msra.mxu0 0.0
    %9530 = vmatprep.subr.mxu0 0.0
    %9531 = vmatpush1.msra.mxu0 0.0
    %9532 = vmatprep.subr.mxu0 0.0
    %9533 = vmatpush1.msra.mxu0 0.0
    %9534 = vmatprep.subr.mxu0 0.0
    %9535 = vmatpush1.msra.mxu0 0.0
    %9536 = vmatprep.subr.mxu0 0.0
    %9537 = vmatpush1.msra.mxu0 0.0
    %9538 = vmatprep.subr.mxu0 0.0
    %9539 = vmatpush1.msra.mxu0 0.0
    %9540 = vmatprep.subr.mxu0 0.0
    %9541 = vmatpush1.msra.mxu0 0.0
    %9542 = vmatprep.subr.mxu0 0.0
    %9543 = vmatpush1.msra.mxu0 0.0
    %9544 = vmatprep.subr.mxu0 0.0
    %9545 = vmatpush1.msra.mxu0 0.0
    %9546 = vmatprep.subr.mxu0 0.0
    %9547 = vmatpush1.msra.mxu0 0.0
    %9548 = vmatprep.subr.mxu0 0.0
    %9549 = vmatpush1.msra.mxu0 0.0
    %9550 = vmatprep.subr.mxu0 0.0
    %9551 = vmatpush1.msra.mxu0 0.0
    %9552 = vmatprep.subr.mxu0 0.0
    %9553 = vmatpush1.msra.mxu0 0.0
    %9554 = vmatprep.subr.mxu0 0.0
    %9555 = vmatpush1.msra.mxu0 0.0
    %9556 = vmatprep.subr.mxu0 0.0
    %9557 = vmatpush1.msra.mxu0 0.0
    %9558 = vmatprep.subr.mxu0 0.0
    %9559 = vmatpush1.msra.mxu0 0.0
    %9560 = vmatprep.subr.mxu0 0.0
    %9561 = vmatpush1.msra.mxu0 0.0
    %9562 = vmatprep.subr.mxu0 0.0
    %9563 = vmatpush1.msra.mxu0 0.0
    %9564 = vmatprep.subr.mxu0 0.0
    %9565 = vmatpush1.msra.mxu0 0.0
    %9566 = vmatprep.subr.mxu0 0.0
    %9567 = vmatpush1.msra.mxu0 0.0
    %9568 = vmatprep.subr.mxu0 0.0
    %9569 = vmatpush1.msra.mxu0 0.0
    %9570 = vmatprep.subr.mxu0 0.0
    %9571 = vmatpush1.msra.mxu0 0.0
    %9572 = vmatprep.mubr.f32.mxu0 0.0
    %v9573 = vand.u32 %v9425, 4294901760
    %9574 = vmatmul.mubr.f32.gmra.mrb[0].mxu0 %v9573
    %v9575 = vpop.f32.mrb[0].mxu0
    %v9576 = vadd.f32 %v9500, %v9575
    %v9577 = vpop.f32.mrb[0].mxu0
    %9578 = vdwg.mxu0
    %9579 = vmatprep.subr.mxu0 0.0
    %v9580 = vand.u32 %v9422, 4294901760
    %v9581 = vsub.f32 %v9422, %v9580
    %9582 = vmatpush1.msra.mxu0 %v9581
    %9583 = vmatprep.subr.mxu0 0.0
    %9584 = vmatpush1.msra.mxu0 0.0
    %9585 = vmatprep.subr.mxu0 0.0
    %9586 = vmatpush1.msra.mxu0 0.0
    %9587 = vmatprep.subr.mxu0 0.0
    %9588 = vmatpush1.msra.mxu0 0.0
    %9589 = vmatprep.subr.mxu0 0.0
    %9590 = vmatpush1.msra.mxu0 0.0
    %9591 = vmatprep.subr.mxu0 0.0
    %9592 = vmatpush1.msra.mxu0 0.0
    %9593 = vmatprep.subr.mxu0 0.0
    %9594 = vmatpush1.msra.mxu0 0.0
    %9595 = vmatprep.subr.mxu0 0.0
    %9596 = vmatpush1.msra.mxu0 0.0
    %9597 = vmatprep.subr.mxu0 0.0
    %9598 = vmatpush1.msra.mxu0 0.0
    %9599 = vmatprep.subr.mxu0 0.0
    %9600 = vmatpush1.msra.mxu0 0.0
    %9601 = vmatprep.subr.mxu0 0.0
    %9602 = vmatpush1.msra.mxu0 0.0
    %9603 = vmatprep.subr.mxu0 0.0
    %9604 = vmatpush1.msra.mxu0 0.0
    %9605 = vmatprep.subr.mxu0 0.0
    %9606 = vmatpush1.msra.mxu0 0.0
    %9607 = vmatprep.subr.mxu0 0.0
    %9608 = vmatpush1.msra.mxu0 0.0
    %9609 = vmatprep.subr.mxu0 0.0
    %9610 = vmatpush1.msra.mxu0 0.0
    %9611 = vmatprep.subr.mxu0 0.0
    %9612 = vmatpush1.msra.mxu0 0.0
    %9613 = vmatprep.subr.mxu0 0.0
    %9614 = vmatpush1.msra.mxu0 0.0
    %9615 = vmatprep.subr.mxu0 0.0
    %9616 = vmatpush1.msra.mxu0 0.0
    %9617 = vmatprep.subr.mxu0 0.0
    %9618 = vmatpush1.msra.mxu0 0.0
    %9619 = vmatprep.subr.mxu0 0.0
    %9620 = vmatpush1.msra.mxu0 0.0
    %9621 = vmatprep.subr.mxu0 0.0
    %9622 = vmatpush1.msra.mxu0 0.0
    %9623 = vmatprep.subr.mxu0 0.0
    %9624 = vmatpush1.msra.mxu0 0.0
    %9625 = vmatprep.subr.mxu0 0.0
    %9626 = vmatpush1.msra.mxu0 0.0
    %9627 = vmatprep.subr.mxu0 0.0
    %9628 = vmatpush1.msra.mxu0 0.0
    %9629 = vmatprep.subr.mxu0 0.0
    %9630 = vmatpush1.msra.mxu0 0.0
    %9631 = vmatprep.subr.mxu0 0.0
    %9632 = vmatpush1.msra.mxu0 0.0
    %9633 = vmatprep.subr.mxu0 0.0
    %9634 = vmatpush1.msra.mxu0 0.0
    %9635 = vmatprep.subr.mxu0 0.0
    %9636 = vmatpush1.msra.mxu0 0.0
    %9637 = vmatprep.subr.mxu0 0.0
    %9638 = vmatpush1.msra.mxu0 0.0
    %9639 = vmatprep.subr.mxu0 0.0
    %9640 = vmatpush1.msra.mxu0 0.0
    %9641 = vmatprep.subr.mxu0 0.0
    %9642 = vmatpush1.msra.mxu0 0.0
    %9643 = vmatprep.subr.mxu0 0.0
    %9644 = vmatpush1.msra.mxu0 0.0
    %9645 = vmatprep.mubr.f32.mxu0 0.0
    %v9646 = vand.u32 %v9425, 4294901760
    %v9647 = vsub.f32 %v9425, %v9646
    %9648 = vmatmul.mubr.f32.gmra.mrb[0].mxu0 %v9647
    %v9649 = vpop.f32.mrb[0].mxu0
    %v9650 = vadd.f32 %v9576, %v9649
    %v9651 = vpop.f32.mrb[0].mxu0
    %9652 = vdwg.mxu0
    %9653 = vmatprep.subr.mxu0 0.0
    %v9654 = vand.u32 %v9422, 4294901760
    %9655 = vmatpush1.msra.mxu0 %v9654
    %9656 = vmatprep.subr.mxu0 0.0
    %9657 = vmatpush1.msra.mxu0 0.0
    %9658 = vmatprep.subr.mxu0 0.0
    %9659 = vmatpush1.msra.mxu0 0.0
    %9660 = vmatprep.subr.mxu0 0.0
    %9661 = vmatpush1.msra.mxu0 0.0
    %9662 = vmatprep.subr.mxu0 0.0
    %9663 = vmatpush1.msra.mxu0 0.0
    %9664 = vmatprep.subr.mxu0 0.0
    %9665 = vmatpush1.msra.mxu0 0.0
    %9666 = vmatprep.subr.mxu0 0.0
    %9667 = vmatpush1.msra.mxu0 0.0
    %9668 = vmatprep.subr.mxu0 0.0
    %9669 = vmatpush1.msra.mxu0 0.0
    %9670 = vmatprep.subr.mxu0 0.0
    %9671 = vmatpush1.msra.mxu0 0.0
    %9672 = vmatprep.subr.mxu0 0.0
    %9673 = vmatpush1.msra.mxu0 0.0
    %9674 = vmatprep.subr.mxu0 0.0
    %9675 = vmatpush1.msra.mxu0 0.0
    %9676 = vmatprep.subr.mxu0 0.0
    %9677 = vmatpush1.msra.mxu0 0.0
    %9678 = vmatprep.subr.mxu0 0.0
    %9679 = vmatpush1.msra.mxu0 0.0
    %9680 = vmatprep.subr.mxu0 0.0
    %9681 = vmatpush1.msra.mxu0 0.0
    %9682 = vmatprep.subr.mxu0 0.0
    %9683 = vmatpush1.msra.mxu0 0.0
    %9684 = vmatprep.subr.mxu0 0.0
    %9685 = vmatpush1.msra.mxu0 0.0
    %9686 = vmatprep.subr.mxu0 0.0
    %9687 = vmatpush1.msra.mxu0 0.0
    %9688 = vmatprep.subr.mxu0 0.0
    %9689 = vmatpush1.msra.mxu0 0.0
    %9690 = vmatprep.subr.mxu0 0.0
    %9691 = vmatpush1.msra.mxu0 0.0
    %9692 = vmatprep.subr.mxu0 0.0
    %9693 = vmatpush1.msra.mxu0 0.0
    %9694 = vmatprep.subr.mxu0 0.0
    %9695 = vmatpush1.msra.mxu0 0.0
    %9696 = vmatprep.subr.mxu0 0.0
    %9697 = vmatpush1.msra.mxu0 0.0
    %9698 = vmatprep.subr.mxu0 0.0
    %9699 = vmatpush1.msra.mxu0 0.0
    %9700 = vmatprep.subr.mxu0 0.0
    %9701 = vmatpush1.msra.mxu0 0.0
    %9702 = vmatprep.subr.mxu0 0.0
    %9703 = vmatpush1.msra.mxu0 0.0
    %9704 = vmatprep.subr.mxu0 0.0
    %9705 = vmatpush1.msra.mxu0 0.0
    %9706 = vmatprep.subr.mxu0 0.0
    %9707 = vmatpush1.msra.mxu0 0.0
    %9708 = vmatprep.subr.mxu0 0.0
    %9709 = vmatpush1.msra.mxu0 0.0
    %9710 = vmatprep.subr.mxu0 0.0
    %9711 = vmatpush1.msra.mxu0 0.0
    %9712 = vmatprep.subr.mxu0 0.0
    %9713 = vmatpush1.msra.mxu0 0.0
    %9714 = vmatprep.subr.mxu0 0.0
    %9715 = vmatpush1.msra.mxu0 0.0
    %9716 = vmatprep.subr.mxu0 0.0
    %9717 = vmatpush1.msra.mxu0 0.0
    %9718 = vmatprep.mubr.f32.mxu0 0.0
    %v9719 = vand.u32 %v9425, 4294901760
    %v9720 = vsub.f32 %v9425, %v9719
    %v9721 = vand.u32 %v9720, 4294901760
    %9722 = vmatmul.mubr.f32.gmra.mrb[0].mxu0 %v9721
    %v9723 = vpop.f32.mrb[0].mxu0
    %v9724 = vadd.f32 %v9650, %v9723
    %v9725 = vpop.f32.mrb[0].mxu0
    %9726 = vdwg.mxu0
    %9727 = vmatprep.subr.mxu0 0.0
    %v9728 = vand.u32 %v9422, 4294901760
    %v9729 = vsub.f32 %v9422, %v9728
    %v9730 = vand.u32 %v9729, 4294901760
    %9731 = vmatpush1.msra.mxu0 %v9730
    %9732 = vmatprep.subr.mxu0 0.0
    %9733 = vmatpush1.msra.mxu0 0.0
    %9734 = vmatprep.subr.mxu0 0.0
    %9735 = vmatpush1.msra.mxu0 0.0
    %9736 = vmatprep.subr.mxu0 0.0
    %9737 = vmatpush1.msra.mxu0 0.0
    %9738 = vmatprep.subr.mxu0 0.0
    %9739 = vmatpush1.msra.mxu0 0.0
    %9740 = vmatprep.subr.mxu0 0.0
    %9741 = vmatpush1.msra.mxu0 0.0
    %9742 = vmatprep.subr.mxu0 0.0
    %9743 = vmatpush1.msra.mxu0 0.0
    %9744 = vmatprep.subr.mxu0 0.0
    %9745 = vmatpush1.msra.mxu0 0.0
    %9746 = vmatprep.subr.mxu0 0.0
    %9747 = vmatpush1.msra.mxu0 0.0
    %9748 = vmatprep.subr.mxu0 0.0
    %9749 = vmatpush1.msra.mxu0 0.0
    %9750 = vmatprep.subr.mxu0 0.0
    %9751 = vmatpush1.msra.mxu0 0.0
    %9752 = vmatprep.subr.mxu0 0.0
    %9753 = vmatpush1.msra.mxu0 0.0
    %9754 = vmatprep.subr.mxu0 0.0
    %9755 = vmatpush1.msra.mxu0 0.0
    %9756 = vmatprep.subr.mxu0 0.0
    %9757 = vmatpush1.msra.mxu0 0.0
    %9758 = vmatprep.subr.mxu0 0.0
    %9759 = vmatpush1.msra.mxu0 0.0
    %9760 = vmatprep.subr.mxu0 0.0
    %9761 = vmatpush1.msra.mxu0 0.0
    %9762 = vmatprep.subr.mxu0 0.0
    %9763 = vmatpush1.msra.mxu0 0.0
    %9764 = vmatprep.subr.mxu0 0.0
    %9765 = vmatpush1.msra.mxu0 0.0
    %9766 = vmatprep.subr.mxu0 0.0
    %9767 = vmatpush1.msra.mxu0 0.0
    %9768 = vmatprep.subr.mxu0 0.0
    %9769 = vmatpush1.msra.mxu0 0.0
    %9770 = vmatprep.subr.mxu0 0.0
    %9771 = vmatpush1.msra.mxu0 0.0
    %9772 = vmatprep.subr.mxu0 0.0
    %9773 = vmatpush1.msra.mxu0 0.0
    %9774 = vmatprep.subr.mxu0 0.0
    %9775 = vmatpush1.msra.mxu0 0.0
    %9776 = vmatprep.subr.mxu0 0.0
    %9777 = vmatpush1.msra.mxu0 0.0
    %9778 = vmatprep.subr.mxu0 0.0
    %9779 = vmatpush1.msra.mxu0 0.0
    %9780 = vmatprep.subr.mxu0 0.0
    %9781 = vmatpush1.msra.mxu0 0.0
    %9782 = vmatprep.subr.mxu0 0.0
    %9783 = vmatpush1.msra.mxu0 0.0
    %9784 = vmatprep.subr.mxu0 0.0
    %9785 = vmatpush1.msra.mxu0 0.0
    %9786 = vmatprep.subr.mxu0 0.0
    %9787 = vmatpush1.msra.mxu0 0.0
    %9788 = vmatprep.subr.mxu0 0.0
    %9789 = vmatpush1.msra.mxu0 0.0
    %9790 = vmatprep.subr.mxu0 0.0
    %9791 = vmatpush1.msra.mxu0 0.0
    %9792 = vmatprep.subr.mxu0 0.0
    %9793 = vmatpush1.msra.mxu0 0.0
    %9794 = vmatprep.mubr.f32.mxu0 0.0
    %v9795 = vand.u32 %v9425, 4294901760
    %9796 = vmatmul.mubr.f32.gmra.mrb[0].mxu0 %v9795
    %v9797 = vpop.f32.mrb[0].mxu0
    %v9798 = vadd.f32 %v9724, %v9797
    %v9799 = vpop.f32.mrb[0].mxu0
    %9800 = vdwg.mxu0
    %9801 = vmatprep.subr.mxu0 0.0
    %v9802 = vand.u32 %v9422, 4294901760
    %9803 = vmatpush1.msra.mxu0 %v9802
    %9804 = vmatprep.subr.mxu0 0.0
    %9805 = vmatpush1.msra.mxu0 0.0
    %9806 = vmatprep.subr.mxu0 0.0
    %9807 = vmatpush1.msra.mxu0 0.0
    %9808 = vmatprep.subr.mxu0 0.0
    %9809 = vmatpush1.msra.mxu0 0.0
    %9810 = vmatprep.subr.mxu0 0.0
    %9811 = vmatpush1.msra.mxu0 0.0
    %9812 = vmatprep.subr.mxu0 0.0
    %9813 = vmatpush1.msra.mxu0 0.0
    %9814 = vmatprep.subr.mxu0 0.0
    %9815 = vmatpush1.msra.mxu0 0.0
    %9816 = vmatprep.subr.mxu0 0.0
    %9817 = vmatpush1.msra.mxu0 0.0
    %9818 = vmatprep.subr.mxu0 0.0
    %9819 = vmatpush1.msra.mxu0 0.0
    %9820 = vmatprep.subr.mxu0 0.0
    %9821 = vmatpush1.msra.mxu0 0.0
    %9822 = vmatprep.subr.mxu0 0.0
    %9823 = vmatpush1.msra.mxu0 0.0
    %9824 = vmatprep.subr.mxu0 0.0
    %9825 = vmatpush1.msra.mxu0 0.0
    %9826 = vmatprep.subr.mxu0 0.0
    %9827 = vmatpush1.msra.mxu0 0.0
    %9828 = vmatprep.subr.mxu0 0.0
    %9829 = vmatpush1.msra.mxu0 0.0
    %9830 = vmatprep.subr.mxu0 0.0
    %9831 = vmatpush1.msra.mxu0 0.0
    %9832 = vmatprep.subr.mxu0 0.0
    %9833 = vmatpush1.msra.mxu0 0.0
    %9834 = vmatprep.subr.mxu0 0.0
    %9835 = vmatpush1.msra.mxu0 0.0
    %9836 = vmatprep.subr.mxu0 0.0
    %9837 = vmatpush1.msra.mxu0 0.0
    %9838 = vmatprep.subr.mxu0 0.0
    %9839 = vmatpush1.msra.mxu0 0.0
    %9840 = vmatprep.subr.mxu0 0.0
    %9841 = vmatpush1.msra.mxu0 0.0
    %9842 = vmatprep.subr.mxu0 0.0
    %9843 = vmatpush1.msra.mxu0 0.0
    %9844 = vmatprep.subr.mxu0 0.0
    %9845 = vmatpush1.msra.mxu0 0.0
    %9846 = vmatprep.subr.mxu0 0.0
    %9847 = vmatpush1.msra.mxu0 0.0
    %9848 = vmatprep.subr.mxu0 0.0
    %9849 = vmatpush1.msra.mxu0 0.0
    %9850 = vmatprep.subr.mxu0 0.0
    %9851 = vmatpush1.msra.mxu0 0.0
    %9852 = vmatprep.subr.mxu0 0.0
    %9853 = vmatpush1.msra.mxu0 0.0
    %9854 = vmatprep.subr.mxu0 0.0
    %9855 = vmatpush1.msra.mxu0 0.0
    %9856 = vmatprep.subr.mxu0 0.0
    %9857 = vmatpush1.msra.mxu0 0.0
    %9858 = vmatprep.subr.mxu0 0.0
    %9859 = vmatpush1.msra.mxu0 0.0
    %9860 = vmatprep.subr.mxu0 0.0
    %9861 = vmatpush1.msra.mxu0 0.0
    %9862 = vmatprep.subr.mxu0 0.0
    %9863 = vmatpush1.msra.mxu0 0.0
    %9864 = vmatprep.subr.mxu0 0.0
    %9865 = vmatpush1.msra.mxu0 0.0
    %9866 = vmatprep.mubr.f32.mxu0 0.0
    %v9867 = vand.u32 %v9425, 4294901760
    %9868 = vmatmul.mubr.f32.gmra.mrb[0].mxu0 %v9867
    %v9869 = vpop.f32.mrb[0].mxu0
    %v9870 = vadd.f32 %v9798, %v9869
    %v9871 = vpop.f32.mrb[0].mxu0
    %9872 = vdwg.mxu0
    %9873 = vrot.lane.b32.xlu0 %v6652, 48
    %v9874 = vpop.permute.xlu0 %9873
    %v9877 = vsel %vm1551, %v9420, 0
    %9879 = vmatprep.subr.mxu0 0.0
    %v9880 = vand.u32 %v9874, 4294901760
    %9881 = vmatpush1.msra.mxu0 %v9880
    %9882 = vmatprep.subr.mxu0 0.0
    %9883 = vmatpush1.msra.mxu0 0.0
    %9884 = vmatprep.subr.mxu0 0.0
    %9885 = vmatpush1.msra.mxu0 0.0
    %9886 = vmatprep.subr.mxu0 0.0
    %9887 = vmatpush1.msra.mxu0 0.0
    %9888 = vmatprep.subr.mxu0 0.0
    %9889 = vmatpush1.msra.mxu0 0.0
    %9890 = vmatprep.subr.mxu0 0.0
    %9891 = vmatpush1.msra.mxu0 0.0
    %9892 = vmatprep.subr.mxu0 0.0
    %9893 = vmatpush1.msra.mxu0 0.0
    %9894 = vmatprep.subr.mxu0 0.0
    %9895 = vmatpush1.msra.mxu0 0.0
    %9896 = vmatprep.subr.mxu0 0.0
    %9897 = vmatpush1.msra.mxu0 0.0
    %9898 = vmatprep.subr.mxu0 0.0
    %9899 = vmatpush1.msra.mxu0 0.0
    %9900 = vmatprep.subr.mxu0 0.0
    %9901 = vmatpush1.msra.mxu0 0.0
    %9902 = vmatprep.subr.mxu0 0.0
    %9903 = vmatpush1.msra.mxu0 0.0
    %9904 = vmatprep.subr.mxu0 0.0
    %9905 = vmatpush1.msra.mxu0 0.0
    %9906 = vmatprep.subr.mxu0 0.0
    %9907 = vmatpush1.msra.mxu0 0.0
    %9908 = vmatprep.subr.mxu0 0.0
    %9909 = vmatpush1.msra.mxu0 0.0
    %9910 = vmatprep.subr.mxu0 0.0
    %9911 = vmatpush1.msra.mxu0 0.0
    %9912 = vmatprep.subr.mxu0 0.0
    %9913 = vmatpush1.msra.mxu0 0.0
    %9914 = vmatprep.subr.mxu0 0.0
    %9915 = vmatpush1.msra.mxu0 0.0
    %9916 = vmatprep.subr.mxu0 0.0
    %9917 = vmatpush1.msra.mxu0 0.0
    %9918 = vmatprep.subr.mxu0 0.0
    %9919 = vmatpush1.msra.mxu0 0.0
    %9920 = vmatprep.subr.mxu0 0.0
    %9921 = vmatpush1.msra.mxu0 0.0
    %9922 = vmatprep.subr.mxu0 0.0
    %9923 = vmatpush1.msra.mxu0 0.0
    %9924 = vmatprep.subr.mxu0 0.0
    %9925 = vmatpush1.msra.mxu0 0.0
    %9926 = vmatprep.subr.mxu0 0.0
    %9927 = vmatpush1.msra.mxu0 0.0
    %9928 = vmatprep.subr.mxu0 0.0
    %9929 = vmatpush1.msra.mxu0 0.0
    %9930 = vmatprep.subr.mxu0 0.0
    %9931 = vmatpush1.msra.mxu0 0.0
    %9932 = vmatprep.subr.mxu0 0.0
    %9933 = vmatpush1.msra.mxu0 0.0
    %9934 = vmatprep.subr.mxu0 0.0
    %9935 = vmatpush1.msra.mxu0 0.0
    %9936 = vmatprep.subr.mxu0 0.0
    %9937 = vmatpush1.msra.mxu0 0.0
    %9938 = vmatprep.subr.mxu0 0.0
    %9939 = vmatpush1.msra.mxu0 0.0
    %9940 = vmatprep.subr.mxu0 0.0
    %9941 = vmatpush1.msra.mxu0 0.0
    %9942 = vmatprep.subr.mxu0 0.0
    %9943 = vmatpush1.msra.mxu0 0.0
    %9944 = vmatprep.mubr.f32.mxu0 0.0
    %v9945 = vand.u32 %v9877, 4294901760
    %v9946 = vsub.f32 %v9877, %v9945
    %v9947 = vand.u32 %v9946, 4294901760
    %v9948 = vsub.f32 %v9946, %v9947
    %v9949 = vand.u32 %v9948, 4294901760
    %9950 = vmatmul.mubr.f32.gmra.mrb[0].mxu0 %v9949
    %v9951 = vpop.f32.mrb[0].mxu0
    %v9952 = vadd.f32 0.0, %v9951
    %v9953 = vpop.f32.mrb[0].mxu0
    %9954 = vdwg.mxu0
    %9955 = vmatprep.subr.mxu0 0.0
    %v9956 = vand.u32 %v9874, 4294901760
    %v9957 = vsub.f32 %v9874, %v9956
    %v9958 = vand.u32 %v9957, 4294901760
    %v9959 = vsub.f32 %v9957, %v9958
    %v9960 = vand.u32 %v9959, 4294901760
    %9961 = vmatpush1.msra.mxu0 %v9960
    %9962 = vmatprep.subr.mxu0 0.0
    %9963 = vmatpush1.msra.mxu0 0.0
    %9964 = vmatprep.subr.mxu0 0.0
    %9965 = vmatpush1.msra.mxu0 0.0
    %9966 = vmatprep.subr.mxu0 0.0
    %9967 = vmatpush1.msra.mxu0 0.0
    %9968 = vmatprep.subr.mxu0 0.0
    %9969 = vmatpush1.msra.mxu0 0.0
    %9970 = vmatprep.subr.mxu0 0.0
    %9971 = vmatpush1.msra.mxu0 0.0
    %9972 = vmatprep.subr.mxu0 0.0
    %9973 = vmatpush1.msra.mxu0 0.0
    %9974 = vmatprep.subr.mxu0 0.0
    %9975 = vmatpush1.msra.mxu0 0.0
    %9976 = vmatprep.subr.mxu0 0.0
    %9977 = vmatpush1.msra.mxu0 0.0
    %9978 = vmatprep.subr.mxu0 0.0
    %9979 = vmatpush1.msra.mxu0 0.0
    %9980 = vmatprep.subr.mxu0 0.0
    %9981 = vmatpush1.msra.mxu0 0.0
    %9982 = vmatprep.subr.mxu0 0.0
    %9983 = vmatpush1.msra.mxu0 0.0
    %9984 = vmatprep.subr.mxu0 0.0
    %9985 = vmatpush1.msra.mxu0 0.0
    %9986 = vmatprep.subr.mxu0 0.0
    %9987 = vmatpush1.msra.mxu0 0.0
    %9988 = vmatprep.subr.mxu0 0.0
    %9989 = vmatpush1.msra.mxu0 0.0
    %9990 = vmatprep.subr.mxu0 0.0
    %9991 = vmatpush1.msra.mxu0 0.0
    %9992 = vmatprep.subr.mxu0 0.0
    %9993 = vmatpush1.msra.mxu0 0.0
    %9994 = vmatprep.subr.mxu0 0.0
    %9995 = vmatpush1.msra.mxu0 0.0
    %9996 = vmatprep.subr.mxu0 0.0
    %9997 = vmatpush1.msra.mxu0 0.0
    %9998 = vmatprep.subr.mxu0 0.0
    %9999 = vmatpush1.msra.mxu0 0.0
    %10000 = vmatprep.subr.mxu0 0.0
    %10001 = vmatpush1.msra.mxu0 0.0
    %10002 = vmatprep.subr.mxu0 0.0
    %10003 = vmatpush1.msra.mxu0 0.0
    %10004 = vmatprep.subr.mxu0 0.0
    %10005 = vmatpush1.msra.mxu0 0.0
    %10006 = vmatprep.subr.mxu0 0.0
    %10007 = vmatpush1.msra.mxu0 0.0
    %10008 = vmatprep.subr.mxu0 0.0
    %10009 = vmatpush1.msra.mxu0 0.0
    %10010 = vmatprep.subr.mxu0 0.0
    %10011 = vmatpush1.msra.mxu0 0.0
    %10012 = vmatprep.subr.mxu0 0.0
    %10013 = vmatpush1.msra.mxu0 0.0
    %10014 = vmatprep.subr.mxu0 0.0
    %10015 = vmatpush1.msra.mxu0 0.0
    %10016 = vmatprep.subr.mxu0 0.0
    %10017 = vmatpush1.msra.mxu0 0.0
    %10018 = vmatprep.subr.mxu0 0.0
    %10019 = vmatpush1.msra.mxu0 0.0
    %10020 = vmatprep.subr.mxu0 0.0
    %10021 = vmatpush1.msra.mxu0 0.0
    %10022 = vmatprep.subr.mxu0 0.0
    %10023 = vmatpush1.msra.mxu0 0.0
    %10024 = vmatprep.mubr.f32.mxu0 0.0
    %v10025 = vand.u32 %v9877, 4294901760
    %10026 = vmatmul.mubr.f32.gmra.mrb[0].mxu0 %v10025
    %v10027 = vpop.f32.mrb[0].mxu0
    %v10028 = vadd.f32 %v9952, %v10027
    %v10029 = vpop.f32.mrb[0].mxu0
    %10030 = vdwg.mxu0
    %10031 = vmatprep.subr.mxu0 0.0
    %v10032 = vand.u32 %v9874, 4294901760
    %v10033 = vsub.f32 %v9874, %v10032
    %10034 = vmatpush1.msra.mxu0 %v10033
    %10035 = vmatprep.subr.mxu0 0.0
    %10036 = vmatpush1.msra.mxu0 0.0
    %10037 = vmatprep.subr.mxu0 0.0
    %10038 = vmatpush1.msra.mxu0 0.0
    %10039 = vmatprep.subr.mxu0 0.0
    %10040 = vmatpush1.msra.mxu0 0.0
    %10041 = vmatprep.subr.mxu0 0.0
    %10042 = vmatpush1.msra.mxu0 0.0
    %10043 = vmatprep.subr.mxu0 0.0
    %10044 = vmatpush1.msra.mxu0 0.0
    %10045 = vmatprep.subr.mxu0 0.0
    %10046 = vmatpush1.msra.mxu0 0.0
    %10047 = vmatprep.subr.mxu0 0.0
    %10048 = vmatpush1.msra.mxu0 0.0
    %10049 = vmatprep.subr.mxu0 0.0
    %10050 = vmatpush1.msra.mxu0 0.0
    %10051 = vmatprep.subr.mxu0 0.0
    %10052 = vmatpush1.msra.mxu0 0.0
    %10053 = vmatprep.subr.mxu0 0.0
    %10054 = vmatpush1.msra.mxu0 0.0
    %10055 = vmatprep.subr.mxu0 0.0
    %10056 = vmatpush1.msra.mxu0 0.0
    %10057 = vmatprep.subr.mxu0 0.0
    %10058 = vmatpush1.msra.mxu0 0.0
    %10059 = vmatprep.subr.mxu0 0.0
    %10060 = vmatpush1.msra.mxu0 0.0
    %10061 = vmatprep.subr.mxu0 0.0
    %10062 = vmatpush1.msra.mxu0 0.0
    %10063 = vmatprep.subr.mxu0 0.0
    %10064 = vmatpush1.msra.mxu0 0.0
    %10065 = vmatprep.subr.mxu0 0.0
    %10066 = vmatpush1.msra.mxu0 0.0
    %10067 = vmatprep.subr.mxu0 0.0
    %10068 = vmatpush1.msra.mxu0 0.0
    %10069 = vmatprep.subr.mxu0 0.0
    %10070 = vmatpush1.msra.mxu0 0.0
    %10071 = vmatprep.subr.mxu0 0.0
    %10072 = vmatpush1.msra.mxu0 0.0
    %10073 = vmatprep.subr.mxu0 0.0
    %10074 = vmatpush1.msra.mxu0 0.0
    %10075 = vmatprep.subr.mxu0 0.0
    %10076 = vmatpush1.msra.mxu0 0.0
    %10077 = vmatprep.subr.mxu0 0.0
    %10078 = vmatpush1.msra.mxu0 0.0
    %10079 = vmatprep.subr.mxu0 0.0
    %10080 = vmatpush1.msra.mxu0 0.0
    %10081 = vmatprep.subr.mxu0 0.0
    %10082 = vmatpush1.msra.mxu0 0.0
    %10083 = vmatprep.subr.mxu0 0.0
    %10084 = vmatpush1.msra.mxu0 0.0
    %10085 = vmatprep.subr.mxu0 0.0
    %10086 = vmatpush1.msra.mxu0 0.0
    %10087 = vmatprep.subr.mxu0 0.0
    %10088 = vmatpush1.msra.mxu0 0.0
    %10089 = vmatprep.subr.mxu0 0.0
    %10090 = vmatpush1.msra.mxu0 0.0
    %10091 = vmatprep.subr.mxu0 0.0
    %10092 = vmatpush1.msra.mxu0 0.0
    %10093 = vmatprep.subr.mxu0 0.0
    %10094 = vmatpush1.msra.mxu0 0.0
    %10095 = vmatprep.subr.mxu0 0.0
    %10096 = vmatpush1.msra.mxu0 0.0
    %10097 = vmatprep.mubr.f32.mxu0 0.0
    %v10098 = vand.u32 %v9877, 4294901760
    %v10099 = vsub.f32 %v9877, %v10098
    %10100 = vmatmul.mubr.f32.gmra.mrb[0].mxu0 %v10099
    %v10101 = vpop.f32.mrb[0].mxu0
    %v10102 = vadd.f32 %v10028, %v10101
    %v10103 = vpop.f32.mrb[0].mxu0
    %10104 = vdwg.mxu0
    %10105 = vmatprep.subr.mxu0 0.0
    %v10106 = vand.u32 %v9874, 4294901760
    %10107 = vmatpush1.msra.mxu0 %v10106
    %10108 = vmatprep.subr.mxu0 0.0
    %10109 = vmatpush1.msra.mxu0 0.0
    %10110 = vmatprep.subr.mxu0 0.0
    %10111 = vmatpush1.msra.mxu0 0.0
    %10112 = vmatprep.subr.mxu0 0.0
    %10113 = vmatpush1.msra.mxu0 0.0
    %10114 = vmatprep.subr.mxu0 0.0
    %10115 = vmatpush1.msra.mxu0 0.0
    %10116 = vmatprep.subr.mxu0 0.0
    %10117 = vmatpush1.msra.mxu0 0.0
    %10118 = vmatprep.subr.mxu0 0.0
    %10119 = vmatpush1.msra.mxu0 0.0
    %10120 = vmatprep.subr.mxu0 0.0
    %10121 = vmatpush1.msra.mxu0 0.0
    %10122 = vmatprep.subr.mxu0 0.0
    %10123 = vmatpush1.msra.mxu0 0.0
    %10124 = vmatprep.subr.mxu0 0.0
    %10125 = vmatpush1.msra.mxu0 0.0
    %10126 = vmatprep.subr.mxu0 0.0
    %10127 = vmatpush1.msra.mxu0 0.0
    %10128 = vmatprep.subr.mxu0 0.0
    %10129 = vmatpush1.msra.mxu0 0.0
    %10130 = vmatprep.subr.mxu0 0.0
    %10131 = vmatpush1.msra.mxu0 0.0
    %10132 = vmatprep.subr.mxu0 0.0
    %10133 = vmatpush1.msra.mxu0 0.0
    %10134 = vmatprep.subr.mxu0 0.0
    %10135 = vmatpush1.msra.mxu0 0.0
    %10136 = vmatprep.subr.mxu0 0.0
    %10137 = vmatpush1.msra.mxu0 0.0
    %10138 = vmatprep.subr.mxu0 0.0
    %10139 = vmatpush1.msra.mxu0 0.0
    %10140 = vmatprep.subr.mxu0 0.0
    %10141 = vmatpush1.msra.mxu0 0.0
    %10142 = vmatprep.subr.mxu0 0.0
    %10143 = vmatpush1.msra.mxu0 0.0
    %10144 = vmatprep.subr.mxu0 0.0
    %10145 = vmatpush1.msra.mxu0 0.0
    %10146 = vmatprep.subr.mxu0 0.0
    %10147 = vmatpush1.msra.mxu0 0.0
    %10148 = vmatprep.subr.mxu0 0.0
    %10149 = vmatpush1.msra.mxu0 0.0
    %10150 = vmatprep.subr.mxu0 0.0
    %10151 = vmatpush1.msra.mxu0 0.0
    %10152 = vmatprep.subr.mxu0 0.0
    %10153 = vmatpush1.msra.mxu0 0.0
    %10154 = vmatprep.subr.mxu0 0.0
    %10155 = vmatpush1.msra.mxu0 0.0
    %10156 = vmatprep.subr.mxu0 0.0
    %10157 = vmatpush1.msra.mxu0 0.0
    %10158 = vmatprep.subr.mxu0 0.0
    %10159 = vmatpush1.msra.mxu0 0.0
    %10160 = vmatprep.subr.mxu0 0.0
    %10161 = vmatpush1.msra.mxu0 0.0
    %10162 = vmatprep.subr.mxu0 0.0
    %10163 = vmatpush1.msra.mxu0 0.0
    %10164 = vmatprep.subr.mxu0 0.0
    %10165 = vmatpush1.msra.mxu0 0.0
    %10166 = vmatprep.subr.mxu0 0.0
    %10167 = vmatpush1.msra.mxu0 0.0
    %10168 = vmatprep.subr.mxu0 0.0
    %10169 = vmatpush1.msra.mxu0 0.0
    %10170 = vmatprep.mubr.f32.mxu0 0.0
    %v10171 = vand.u32 %v9877, 4294901760
    %v10172 = vsub.f32 %v9877, %v10171
    %v10173 = vand.u32 %v10172, 4294901760
    %10174 = vmatmul.mubr.f32.gmra.mrb[0].mxu0 %v10173
    %v10175 = vpop.f32.mrb[0].mxu0
    %v10176 = vadd.f32 %v10102, %v10175
    %v10177 = vpop.f32.mrb[0].mxu0
    %10178 = vdwg.mxu0
    %10179 = vmatprep.subr.mxu0 0.0
    %v10180 = vand.u32 %v9874, 4294901760
    %v10181 = vsub.f32 %v9874, %v10180
    %v10182 = vand.u32 %v10181, 4294901760
    %10183 = vmatpush1.msra.mxu0 %v10182
    %10184 = vmatprep.subr.mxu0 0.0
    %10185 = vmatpush1.msra.mxu0 0.0
    %10186 = vmatprep.subr.mxu0 0.0
    %10187 = vmatpush1.msra.mxu0 0.0
    %10188 = vmatprep.subr.mxu0 0.0
    %10189 = vmatpush1.msra.mxu0 0.0
    %10190 = vmatprep.subr.mxu0 0.0
    %10191 = vmatpush1.msra.mxu0 0.0
    %10192 = vmatprep.subr.mxu0 0.0
    %10193 = vmatpush1.msra.mxu0 0.0
    %10194 = vmatprep.subr.mxu0 0.0
    %10195 = vmatpush1.msra.mxu0 0.0
    %10196 = vmatprep.subr.mxu0 0.0
    %10197 = vmatpush1.msra.mxu0 0.0
    %10198 = vmatprep.subr.mxu0 0.0
    %10199 = vmatpush1.msra.mxu0 0.0
    %10200 = vmatprep.subr.mxu0 0.0
    %10201 = vmatpush1.msra.mxu0 0.0
    %10202 = vmatprep.subr.mxu0 0.0
    %10203 = vmatpush1.msra.mxu0 0.0
    %10204 = vmatprep.subr.mxu0 0.0
    %10205 = vmatpush1.msra.mxu0 0.0
    %10206 = vmatprep.subr.mxu0 0.0
    %10207 = vmatpush1.msra.mxu0 0.0
    %10208 = vmatprep.subr.mxu0 0.0
    %10209 = vmatpush1.msra.mxu0 0.0
    %10210 = vmatprep.subr.mxu0 0.0
    %10211 = vmatpush1.msra.mxu0 0.0
    %10212 = vmatprep.subr.mxu0 0.0
    %10213 = vmatpush1.msra.mxu0 0.0
    %10214 = vmatprep.subr.mxu0 0.0
    %10215 = vmatpush1.msra.mxu0 0.0
    %10216 = vmatprep.subr.mxu0 0.0
    %10217 = vmatpush1.msra.mxu0 0.0
    %10218 = vmatprep.subr.mxu0 0.0
    %10219 = vmatpush1.msra.mxu0 0.0
    %10220 = vmatprep.subr.mxu0 0.0
    %10221 = vmatpush1.msra.mxu0 0.0
    %10222 = vmatprep.subr.mxu0 0.0
    %10223 = vmatpush1.msra.mxu0 0.0
    %10224 = vmatprep.subr.mxu0 0.0
    %10225 = vmatpush1.msra.mxu0 0.0
    %10226 = vmatprep.subr.mxu0 0.0
    %10227 = vmatpush1.msra.mxu0 0.0
    %10228 = vmatprep.subr.mxu0 0.0
    %10229 = vmatpush1.msra.mxu0 0.0
    %10230 = vmatprep.subr.mxu0 0.0
    %10231 = vmatpush1.msra.mxu0 0.0
    %10232 = vmatprep.subr.mxu0 0.0
    %10233 = vmatpush1.msra.mxu0 0.0
    %10234 = vmatprep.subr.mxu0 0.0
    %10235 = vmatpush1.msra.mxu0 0.0
    %10236 = vmatprep.subr.mxu0 0.0
    %10237 = vmatpush1.msra.mxu0 0.0
    %10238 = vmatprep.subr.mxu0 0.0
    %10239 = vmatpush1.msra.mxu0 0.0
    %10240 = vmatprep.subr.mxu0 0.0
    %10241 = vmatpush1.msra.mxu0 0.0
    %10242 = vmatprep.subr.mxu0 0.0
    %10243 = vmatpush1.msra.mxu0 0.0
    %10244 = vmatprep.subr.mxu0 0.0
    %10245 = vmatpush1.msra.mxu0 0.0
    %10246 = vmatprep.mubr.f32.mxu0 0.0
    %v10247 = vand.u32 %v9877, 4294901760
    %10248 = vmatmul.mubr.f32.gmra.mrb[0].mxu0 %v10247
    %v10249 = vpop.f32.mrb[0].mxu0
    %v10250 = vadd.f32 %v10176, %v10249
    %v10251 = vpop.f32.mrb[0].mxu0
    %10252 = vdwg.mxu0
    %10253 = vmatprep.subr.mxu0 0.0
    %v10254 = vand.u32 %v9874, 4294901760
    %10255 = vmatpush1.msra.mxu0 %v10254
    %10256 = vmatprep.subr.mxu0 0.0
    %10257 = vmatpush1.msra.mxu0 0.0
    %10258 = vmatprep.subr.mxu0 0.0
    %10259 = vmatpush1.msra.mxu0 0.0
    %10260 = vmatprep.subr.mxu0 0.0
    %10261 = vmatpush1.msra.mxu0 0.0
    %10262 = vmatprep.subr.mxu0 0.0
    %10263 = vmatpush1.msra.mxu0 0.0
    %10264 = vmatprep.subr.mxu0 0.0
    %10265 = vmatpush1.msra.mxu0 0.0
    %10266 = vmatprep.subr.mxu0 0.0
    %10267 = vmatpush1.msra.mxu0 0.0
    %10268 = vmatprep.subr.mxu0 0.0
    %10269 = vmatpush1.msra.mxu0 0.0
    %10270 = vmatprep.subr.mxu0 0.0
    %10271 = vmatpush1.msra.mxu0 0.0
    %10272 = vmatprep.subr.mxu0 0.0
    %10273 = vmatpush1.msra.mxu0 0.0
    %10274 = vmatprep.subr.mxu0 0.0
    %10275 = vmatpush1.msra.mxu0 0.0
    %10276 = vmatprep.subr.mxu0 0.0
    %10277 = vmatpush1.msra.mxu0 0.0
    %10278 = vmatprep.subr.mxu0 0.0
    %10279 = vmatpush1.msra.mxu0 0.0
    %10280 = vmatprep.subr.mxu0 0.0
    %10281 = vmatpush1.msra.mxu0 0.0
    %10282 = vmatprep.subr.mxu0 0.0
    %10283 = vmatpush1.msra.mxu0 0.0
    %10284 = vmatprep.subr.mxu0 0.0
    %10285 = vmatpush1.msra.mxu0 0.0
    %10286 = vmatprep.subr.mxu0 0.0
    %10287 = vmatpush1.msra.mxu0 0.0
    %10288 = vmatprep.subr.mxu0 0.0
    %10289 = vmatpush1.msra.mxu0 0.0
    %10290 = vmatprep.subr.mxu0 0.0
    %10291 = vmatpush1.msra.mxu0 0.0
    %10292 = vmatprep.subr.mxu0 0.0
    %10293 = vmatpush1.msra.mxu0 0.0
    %10294 = vmatprep.subr.mxu0 0.0
    %10295 = vmatpush1.msra.mxu0 0.0
    %10296 = vmatprep.subr.mxu0 0.0
    %10297 = vmatpush1.msra.mxu0 0.0
    %10298 = vmatprep.subr.mxu0 0.0
    %10299 = vmatpush1.msra.mxu0 0.0
    %10300 = vmatprep.subr.mxu0 0.0
    %10301 = vmatpush1.msra.mxu0 0.0
    %10302 = vmatprep.subr.mxu0 0.0
    %10303 = vmatpush1.msra.mxu0 0.0
    %10304 = vmatprep.subr.mxu0 0.0
    %10305 = vmatpush1.msra.mxu0 0.0
    %10306 = vmatprep.subr.mxu0 0.0
    %10307 = vmatpush1.msra.mxu0 0.0
    %10308 = vmatprep.subr.mxu0 0.0
    %10309 = vmatpush1.msra.mxu0 0.0
    %10310 = vmatprep.subr.mxu0 0.0
    %10311 = vmatpush1.msra.mxu0 0.0
    %10312 = vmatprep.subr.mxu0 0.0
    %10313 = vmatpush1.msra.mxu0 0.0
    %10314 = vmatprep.subr.mxu0 0.0
    %10315 = vmatpush1.msra.mxu0 0.0
    %10316 = vmatprep.subr.mxu0 0.0
    %10317 = vmatpush1.msra.mxu0 0.0
    %10318 = vmatprep.mubr.f32.mxu0 0.0
    %v10319 = vand.u32 %v9877, 4294901760
    %10320 = vmatmul.mubr.f32.gmra.mrb[0].mxu0 %v10319
    %v10321 = vpop.f32.mrb[0].mxu0
    %v10322 = vadd.f32 %v10250, %v10321
    %v10323 = vpop.f32.mrb[0].mxu0
    %10324 = vdwg.mxu0
    %10327 = vrot.lane.b32.xlu0 %v9870, 16
    %v10328 = vpop.permute.xlu0 %10327
    %10329 = vrot.lane.b32.xlu0 %v10322, 16
    %v10330 = vpop.permute.xlu0 %10329
    %v10333 = vsel %vm645, %v8034, %v10328
    %v10334 = vsel %vm645, %v8486, %v10330
    %s10335 = scalar_lea.vmem %s2, 32
    %v10336 = vld [vmem:[%s10335] sm:$0xff]
    %v10337 = vld [vmem:[%s10335 + $0x8] sm:$0xff]
    %v10338 = vld [vmem:[%s10335 + $0x10] sm:$0xff]
    %v10339 = vld [vmem:[%s10335 + $0x18] sm:$0xff]
    %v10341 = vsel %vm64, %v10333, 0
    %v10344 = vsel %vm64, %v10334, 0
    %10346 = vmatprep.subr.mxu0 0.0
    %v10347 = vand.u32 %v10336, 4294901760
    %10348 = vmatpush1.msra.mxu0 %v10347
    %10349 = vmatprep.subr.mxu0 0.0
    %v10350 = vand.u32 %v10337, 4294901760
    %10351 = vmatpush1.msra.mxu0 %v10350
    %10352 = vmatprep.subr.mxu0 0.0
    %v10353 = vand.u32 %v10338, 4294901760
    %10354 = vmatpush1.msra.mxu0 %v10353
    %10355 = vmatprep.subr.mxu0 0.0
    %v10356 = vand.u32 %v10339, 4294901760
    %10357 = vmatpush1.msra.mxu0 %v10356
    %10358 = vmatprep.subr.mxu0 0.0
    %10359 = vmatpush1.msra.mxu0 0.0
    %10360 = vmatprep.subr.mxu0 0.0
    %10361 = vmatpush1.msra.mxu0 0.0
    %10362 = vmatprep.subr.mxu0 0.0
    %10363 = vmatpush1.msra.mxu0 0.0
    %10364 = vmatprep.subr.mxu0 0.0
    %10365 = vmatpush1.msra.mxu0 0.0
    %10366 = vmatprep.subr.mxu0 0.0
    %10367 = vmatpush1.msra.mxu0 0.0
    %10368 = vmatprep.subr.mxu0 0.0
    %10369 = vmatpush1.msra.mxu0 0.0
    %10370 = vmatprep.subr.mxu0 0.0
    %10371 = vmatpush1.msra.mxu0 0.0
    %10372 = vmatprep.subr.mxu0 0.0
    %10373 = vmatpush1.msra.mxu0 0.0
    %10374 = vmatprep.subr.mxu0 0.0
    %10375 = vmatpush1.msra.mxu0 0.0
    %10376 = vmatprep.subr.mxu0 0.0
    %10377 = vmatpush1.msra.mxu0 0.0
    %10378 = vmatprep.subr.mxu0 0.0
    %10379 = vmatpush1.msra.mxu0 0.0
    %10380 = vmatprep.subr.mxu0 0.0
    %10381 = vmatpush1.msra.mxu0 0.0
    %10382 = vmatprep.subr.mxu0 0.0
    %10383 = vmatpush1.msra.mxu0 0.0
    %10384 = vmatprep.subr.mxu0 0.0
    %10385 = vmatpush1.msra.mxu0 0.0
    %10386 = vmatprep.subr.mxu0 0.0
    %10387 = vmatpush1.msra.mxu0 0.0
    %10388 = vmatprep.subr.mxu0 0.0
    %10389 = vmatpush1.msra.mxu0 0.0
    %10390 = vmatprep.subr.mxu0 0.0
    %10391 = vmatpush1.msra.mxu0 0.0
    %10392 = vmatprep.subr.mxu0 0.0
    %10393 = vmatpush1.msra.mxu0 0.0
    %10394 = vmatprep.subr.mxu0 0.0
    %10395 = vmatpush1.msra.mxu0 0.0
    %10396 = vmatprep.subr.mxu0 0.0
    %10397 = vmatpush1.msra.mxu0 0.0
    %10398 = vmatprep.subr.mxu0 0.0
    %10399 = vmatpush1.msra.mxu0 0.0
    %10400 = vmatprep.subr.mxu0 0.0
    %10401 = vmatpush1.msra.mxu0 0.0
    %10402 = vmatprep.subr.mxu0 0.0
    %10403 = vmatpush1.msra.mxu0 0.0
    %10404 = vmatprep.subr.mxu0 0.0
    %10405 = vmatpush1.msra.mxu0 0.0
    %10406 = vmatprep.subr.mxu0 0.0
    %10407 = vmatpush1.msra.mxu0 0.0
    %10408 = vmatprep.subr.mxu0 0.0
    %10409 = vmatpush1.msra.mxu0 0.0
    %10410 = vmatprep.subr.mxu0 0.0
    %10411 = vmatpush1.msra.mxu0 0.0
    %10412 = vmatprep.subr.mxu0 0.0
    %10413 = vmatpush1.msra.mxu0 0.0
    %10414 = vmatprep.mubr.f32.mxu0 0.0
    %v10415 = vand.u32 %v10341, 4294901760
    %v10416 = vsub.f32 %v10341, %v10415
    %v10417 = vand.u32 %v10416, 4294901760
    %v10418 = vsub.f32 %v10416, %v10417
    %v10419 = vand.u32 %v10418, 4294901760
    %10420 = vmatmul.mubr.f32.gmra.mrb[0].mxu0 %v10419
    %v10421 = vpop.f32.mrb[0].mxu0
    %v10422 = vadd.f32 0.0, %v10421
    %v10423 = vpop.f32.mrb[0].mxu0
    %10424 = vmatprep.mubr.f32.mxu0 0.0
    %v10425 = vand.u32 %v10344, 4294901760
    %v10426 = vsub.f32 %v10344, %v10425
    %v10427 = vand.u32 %v10426, 4294901760
    %v10428 = vsub.f32 %v10426, %v10427
    %v10429 = vand.u32 %v10428, 4294901760
    %10430 = vmatmul.mubr.f32.gmra.mrb[0].mxu0 %v10429
    %v10431 = vpop.f32.mrb[0].mxu0
    %v10432 = vadd.f32 0.0, %v10431
    %v10433 = vpop.f32.mrb[0].mxu0
    %10434 = vdwg.mxu0
    %10435 = vmatprep.subr.mxu0 0.0
    %v10436 = vand.u32 %v10336, 4294901760
    %v10437 = vsub.f32 %v10336, %v10436
    %v10438 = vand.u32 %v10437, 4294901760
    %v10439 = vsub.f32 %v10437, %v10438
    %v10440 = vand.u32 %v10439, 4294901760
    %10441 = vmatpush1.msra.mxu0 %v10440
    %10442 = vmatprep.subr.mxu0 0.0
    %v10443 = vand.u32 %v10337, 4294901760
    %v10444 = vsub.f32 %v10337, %v10443
    %v10445 = vand.u32 %v10444, 4294901760
    %v10446 = vsub.f32 %v10444, %v10445
    %v10447 = vand.u32 %v10446, 4294901760
    %10448 = vmatpush1.msra.mxu0 %v10447
    %10449 = vmatprep.subr.mxu0 0.0
    %v10450 = vand.u32 %v10338, 4294901760
    %v10451 = vsub.f32 %v10338, %v10450
    %v10452 = vand.u32 %v10451, 4294901760
    %v10453 = vsub.f32 %v10451, %v10452
    %v10454 = vand.u32 %v10453, 4294901760
    %10455 = vmatpush1.msra.mxu0 %v10454
    %10456 = vmatprep.subr.mxu0 0.0
    %v10457 = vand.u32 %v10339, 4294901760
    %v10458 = vsub.f32 %v10339, %v10457
    %v10459 = vand.u32 %v10458, 4294901760
    %v10460 = vsub.f32 %v10458, %v10459
    %v10461 = vand.u32 %v10460, 4294901760
    %10462 = vmatpush1.msra.mxu0 %v10461
    %10463 = vmatprep.subr.mxu0 0.0
    %10464 = vmatpush1.msra.mxu0 0.0
    %10465 = vmatprep.subr.mxu0 0.0
    %10466 = vmatpush1.msra.mxu0 0.0
    %10467 = vmatprep.subr.mxu0 0.0
    %10468 = vmatpush1.msra.mxu0 0.0
    %10469 = vmatprep.subr.mxu0 0.0
    %10470 = vmatpush1.msra.mxu0 0.0
    %10471 = vmatprep.subr.mxu0 0.0
    %10472 = vmatpush1.msra.mxu0 0.0
    %10473 = vmatprep.subr.mxu0 0.0
    %10474 = vmatpush1.msra.mxu0 0.0
    %10475 = vmatprep.subr.mxu0 0.0
    %10476 = vmatpush1.msra.mxu0 0.0
    %10477 = vmatprep.subr.mxu0 0.0
    %10478 = vmatpush1.msra.mxu0 0.0
    %10479 = vmatprep.subr.mxu0 0.0
    %10480 = vmatpush1.msra.mxu0 0.0
    %10481 = vmatprep.subr.mxu0 0.0
    %10482 = vmatpush1.msra.mxu0 0.0
    %10483 = vmatprep.subr.mxu0 0.0
    %10484 = vmatpush1.msra.mxu0 0.0
    %10485 = vmatprep.subr.mxu0 0.0
    %10486 = vmatpush1.msra.mxu0 0.0
    %10487 = vmatprep.subr.mxu0 0.0
    %10488 = vmatpush1.msra.mxu0 0.0
    %10489 = vmatprep.subr.mxu0 0.0
    %10490 = vmatpush1.msra.mxu0 0.0
    %10491 = vmatprep.subr.mxu0 0.0
    %10492 = vmatpush1.msra.mxu0 0.0
    %10493 = vmatprep.subr.mxu0 0.0
    %10494 = vmatpush1.msra.mxu0 0.0
    %10495 = vmatprep.subr.mxu0 0.0
    %10496 = vmatpush1.msra.mxu0 0.0
    %10497 = vmatprep.subr.mxu0 0.0
    %10498 = vmatpush1.msra.mxu0 0.0
    %10499 = vmatprep.subr.mxu0 0.0
    %10500 = vmatpush1.msra.mxu0 0.0
    %10501 = vmatprep.subr.mxu0 0.0
    %10502 = vmatpush1.msra.mxu0 0.0
    %10503 = vmatprep.subr.mxu0 0.0
    %10504 = vmatpush1.msra.mxu0 0.0
    %10505 = vmatprep.subr.mxu0 0.0
    %10506 = vmatpush1.msra.mxu0 0.0
    %10507 = vmatprep.subr.mxu0 0.0
    %10508 = vmatpush1.msra.mxu0 0.0
    %10509 = vmatprep.subr.mxu0 0.0
    %10510 = vmatpush1.msra.mxu0 0.0
    %10511 = vmatprep.subr.mxu0 0.0
    %10512 = vmatpush1.msra.mxu0 0.0
    %10513 = vmatprep.subr.mxu0 0.0
    %10514 = vmatpush1.msra.mxu0 0.0
    %10515 = vmatprep.subr.mxu0 0.0
    %10516 = vmatpush1.msra.mxu0 0.0
    %10517 = vmatprep.subr.mxu0 0.0
    %10518 = vmatpush1.msra.mxu0 0.0
    %10519 = vmatprep.mubr.f32.mxu0 0.0
    %v10520 = vand.u32 %v10341, 4294901760
    %10521 = vmatmul.mubr.f32.gmra.mrb[0].mxu0 %v10520
    %v10522 = vpop.f32.mrb[0].mxu0
    %v10523 = vadd.f32 %v10422, %v10522
    %v10524 = vpop.f32.mrb[0].mxu0
    %10525 = vmatprep.mubr.f32.mxu0 0.0
    %v10526 = vand.u32 %v10344, 4294901760
    %10527 = vmatmul.mubr.f32.gmra.mrb[0].mxu0 %v10526
    %v10528 = vpop.f32.mrb[0].mxu0
    %v10529 = vadd.f32 %v10432, %v10528
    %v10530 = vpop.f32.mrb[0].mxu0
    %10531 = vdwg.mxu0
    %10532 = vmatprep.subr.mxu0 0.0
    %v10533 = vand.u32 %v10336, 4294901760
    %v10534 = vsub.f32 %v10336, %v10533
    %10535 = vmatpush1.msra.mxu0 %v10534
    %10536 = vmatprep.subr.mxu0 0.0
    %v10537 = vand.u32 %v10337, 4294901760
    %v10538 = vsub.f32 %v10337, %v10537
    %10539 = vmatpush1.msra.mxu0 %v10538
    %10540 = vmatprep.subr.mxu0 0.0
    %v10541 = vand.u32 %v10338, 4294901760
    %v10542 = vsub.f32 %v10338, %v10541
    %10543 = vmatpush1.msra.mxu0 %v10542
    %10544 = vmatprep.subr.mxu0 0.0
    %v10545 = vand.u32 %v10339, 4294901760
    %v10546 = vsub.f32 %v10339, %v10545
    %10547 = vmatpush1.msra.mxu0 %v10546
    %10548 = vmatprep.subr.mxu0 0.0
    %10549 = vmatpush1.msra.mxu0 0.0
    %10550 = vmatprep.subr.mxu0 0.0
    %10551 = vmatpush1.msra.mxu0 0.0
    %10552 = vmatprep.subr.mxu0 0.0
    %10553 = vmatpush1.msra.mxu0 0.0
    %10554 = vmatprep.subr.mxu0 0.0
    %10555 = vmatpush1.msra.mxu0 0.0
    %10556 = vmatprep.subr.mxu0 0.0
    %10557 = vmatpush1.msra.mxu0 0.0
    %10558 = vmatprep.subr.mxu0 0.0
    %10559 = vmatpush1.msra.mxu0 0.0
    %10560 = vmatprep.subr.mxu0 0.0
    %10561 = vmatpush1.msra.mxu0 0.0
    %10562 = vmatprep.subr.mxu0 0.0
    %10563 = vmatpush1.msra.mxu0 0.0
    %10564 = vmatprep.subr.mxu0 0.0
    %10565 = vmatpush1.msra.mxu0 0.0
    %10566 = vmatprep.subr.mxu0 0.0
    %10567 = vmatpush1.msra.mxu0 0.0
    %10568 = vmatprep.subr.mxu0 0.0
    %10569 = vmatpush1.msra.mxu0 0.0
    %10570 = vmatprep.subr.mxu0 0.0
    %10571 = vmatpush1.msra.mxu0 0.0
    %10572 = vmatprep.subr.mxu0 0.0
    %10573 = vmatpush1.msra.mxu0 0.0
    %10574 = vmatprep.subr.mxu0 0.0
    %10575 = vmatpush1.msra.mxu0 0.0
    %10576 = vmatprep.subr.mxu0 0.0
    %10577 = vmatpush1.msra.mxu0 0.0
    %10578 = vmatprep.subr.mxu0 0.0
    %10579 = vmatpush1.msra.mxu0 0.0
    %10580 = vmatprep.subr.mxu0 0.0
    %10581 = vmatpush1.msra.mxu0 0.0
    %10582 = vmatprep.subr.mxu0 0.0
    %10583 = vmatpush1.msra.mxu0 0.0
    %10584 = vmatprep.subr.mxu0 0.0
    %10585 = vmatpush1.msra.mxu0 0.0
    %10586 = vmatprep.subr.mxu0 0.0
    %10587 = vmatpush1.msra.mxu0 0.0
    %10588 = vmatprep.subr.mxu0 0.0
    %10589 = vmatpush1.msra.mxu0 0.0
    %10590 = vmatprep.subr.mxu0 0.0
    %10591 = vmatpush1.msra.mxu0 0.0
    %10592 = vmatprep.subr.mxu0 0.0
    %10593 = vmatpush1.msra.mxu0 0.0
    %10594 = vmatprep.subr.mxu0 0.0
    %10595 = vmatpush1.msra.mxu0 0.0
    %10596 = vmatprep.subr.mxu0 0.0
    %10597 = vmatpush1.msra.mxu0 0.0
    %10598 = vmatprep.subr.mxu0 0.0
    %10599 = vmatpush1.msra.mxu0 0.0
    %10600 = vmatprep.subr.mxu0 0.0
    %10601 = vmatpush1.msra.mxu0 0.0
    %10602 = vmatprep.subr.mxu0 0.0
    %10603 = vmatpush1.msra.mxu0 0.0
    %10604 = vmatprep.mubr.f32.mxu0 0.0
    %v10605 = vand.u32 %v10341, 4294901760
    %v10606 = vsub.f32 %v10341, %v10605
    %10607 = vmatmul.mubr.f32.gmra.mrb[0].mxu0 %v10606
    %v10608 = vpop.f32.mrb[0].mxu0
    %v10609 = vadd.f32 %v10523, %v10608
    %v10610 = vpop.f32.mrb[0].mxu0
    %10611 = vmatprep.mubr.f32.mxu0 0.0
    %v10612 = vand.u32 %v10344, 4294901760
    %v10613 = vsub.f32 %v10344, %v10612
    %10614 = vmatmul.mubr.f32.gmra.mrb[0].mxu0 %v10613
    %v10615 = vpop.f32.mrb[0].mxu0
    %v10616 = vadd.f32 %v10529, %v10615
    %v10617 = vpop.f32.mrb[0].mxu0
    %10618 = vdwg.mxu0
    %10619 = vmatprep.subr.mxu0 0.0
    %v10620 = vand.u32 %v10336, 4294901760
    %10621 = vmatpush1.msra.mxu0 %v10620
    %10622 = vmatprep.subr.mxu0 0.0
    %v10623 = vand.u32 %v10337, 4294901760
    %10624 = vmatpush1.msra.mxu0 %v10623
    %10625 = vmatprep.subr.mxu0 0.0
    %v10626 = vand.u32 %v10338, 4294901760
    %10627 = vmatpush1.msra.mxu0 %v10626
    %10628 = vmatprep.subr.mxu0 0.0
    %v10629 = vand.u32 %v10339, 4294901760
    %10630 = vmatpush1.msra.mxu0 %v10629
    %10631 = vmatprep.subr.mxu0 0.0
    %10632 = vmatpush1.msra.mxu0 0.0
    %10633 = vmatprep.subr.mxu0 0.0
    %10634 = vmatpush1.msra.mxu0 0.0
    %10635 = vmatprep.subr.mxu0 0.0
    %10636 = vmatpush1.msra.mxu0 0.0
    %10637 = vmatprep.subr.mxu0 0.0
    %10638 = vmatpush1.msra.mxu0 0.0
    %10639 = vmatprep.subr.mxu0 0.0
    %10640 = vmatpush1.msra.mxu0 0.0
    %10641 = vmatprep.subr.mxu0 0.0
    %10642 = vmatpush1.msra.mxu0 0.0
    %10643 = vmatprep.subr.mxu0 0.0
    %10644 = vmatpush1.msra.mxu0 0.0
    %10645 = vmatprep.subr.mxu0 0.0
    %10646 = vmatpush1.msra.mxu0 0.0
    %10647 = vmatprep.subr.mxu0 0.0
    %10648 = vmatpush1.msra.mxu0 0.0
    %10649 = vmatprep.subr.mxu0 0.0
    %10650 = vmatpush1.msra.mxu0 0.0
    %10651 = vmatprep.subr.mxu0 0.0
    %10652 = vmatpush1.msra.mxu0 0.0
    %10653 = vmatprep.subr.mxu0 0.0
    %10654 = vmatpush1.msra.mxu0 0.0
    %10655 = vmatprep.subr.mxu0 0.0
    %10656 = vmatpush1.msra.mxu0 0.0
    %10657 = vmatprep.subr.mxu0 0.0
    %10658 = vmatpush1.msra.mxu0 0.0
    %10659 = vmatprep.subr.mxu0 0.0
    %10660 = vmatpush1.msra.mxu0 0.0
    %10661 = vmatprep.subr.mxu0 0.0
    %10662 = vmatpush1.msra.mxu0 0.0
    %10663 = vmatprep.subr.mxu0 0.0
    %10664 = vmatpush1.msra.mxu0 0.0
    %10665 = vmatprep.subr.mxu0 0.0
    %10666 = vmatpush1.msra.mxu0 0.0
    %10667 = vmatprep.subr.mxu0 0.0
    %10668 = vmatpush1.msra.mxu0 0.0
    %10669 = vmatprep.subr.mxu0 0.0
    %10670 = vmatpush1.msra.mxu0 0.0
    %10671 = vmatprep.subr.mxu0 0.0
    %10672 = vmatpush1.msra.mxu0 0.0
    %10673 = vmatprep.subr.mxu0 0.0
    %10674 = vmatpush1.msra.mxu0 0.0
    %10675 = vmatprep.subr.mxu0 0.0
    %10676 = vmatpush1.msra.mxu0 0.0
    %10677 = vmatprep.subr.mxu0 0.0
    %10678 = vmatpush1.msra.mxu0 0.0
    %10679 = vmatprep.subr.mxu0 0.0
    %10680 = vmatpush1.msra.mxu0 0.0
    %10681 = vmatprep.subr.mxu0 0.0
    %10682 = vmatpush1.msra.mxu0 0.0
    %10683 = vmatprep.subr.mxu0 0.0
    %10684 = vmatpush1.msra.mxu0 0.0
    %10685 = vmatprep.subr.mxu0 0.0
    %10686 = vmatpush1.msra.mxu0 0.0
    %10687 = vmatprep.mubr.f32.mxu0 0.0
    %v10688 = vand.u32 %v10341, 4294901760
    %v10689 = vsub.f32 %v10341, %v10688
    %v10690 = vand.u32 %v10689, 4294901760
    %10691 = vmatmul.mubr.f32.gmra.mrb[0].mxu0 %v10690
    %v10692 = vpop.f32.mrb[0].mxu0
    %v10693 = vadd.f32 %v10609, %v10692
    %v10694 = vpop.f32.mrb[0].mxu0
    %10695 = vmatprep.mubr.f32.mxu0 0.0
    %v10696 = vand.u32 %v10344, 4294901760
    %v10697 = vsub.f32 %v10344, %v10696
    %v10698 = vand.u32 %v10697, 4294901760
    %10699 = vmatmul.mubr.f32.gmra.mrb[0].mxu0 %v10698
    %v10700 = vpop.f32.mrb[0].mxu0
    %v10701 = vadd.f32 %v10616, %v10700
    %v10702 = vpop.f32.mrb[0].mxu0
    %10703 = vdwg.mxu0
    %10704 = vmatprep.subr.mxu0 0.0
    %v10705 = vand.u32 %v10336, 4294901760
    %v10706 = vsub.f32 %v10336, %v10705
    %v10707 = vand.u32 %v10706, 4294901760
    %10708 = vmatpush1.msra.mxu0 %v10707
    %10709 = vmatprep.subr.mxu0 0.0
    %v10710 = vand.u32 %v10337, 4294901760
    %v10711 = vsub.f32 %v10337, %v10710
    %v10712 = vand.u32 %v10711, 4294901760
    %10713 = vmatpush1.msra.mxu0 %v10712
    %10714 = vmatprep.subr.mxu0 0.0
    %v10715 = vand.u32 %v10338, 4294901760
    %v10716 = vsub.f32 %v10338, %v10715
    %v10717 = vand.u32 %v10716, 4294901760
    %10718 = vmatpush1.msra.mxu0 %v10717
    %10719 = vmatprep.subr.mxu0 0.0
    %v10720 = vand.u32 %v10339, 4294901760
    %v10721 = vsub.f32 %v10339, %v10720
    %v10722 = vand.u32 %v10721, 4294901760
    %10723 = vmatpush1.msra.mxu0 %v10722
    %10724 = vmatprep.subr.mxu0 0.0
    %10725 = vmatpush1.msra.mxu0 0.0
    %10726 = vmatprep.subr.mxu0 0.0
    %10727 = vmatpush1.msra.mxu0 0.0
    %10728 = vmatprep.subr.mxu0 0.0
    %10729 = vmatpush1.msra.mxu0 0.0
    %10730 = vmatprep.subr.mxu0 0.0
    %10731 = vmatpush1.msra.mxu0 0.0
    %10732 = vmatprep.subr.mxu0 0.0
    %10733 = vmatpush1.msra.mxu0 0.0
    %10734 = vmatprep.subr.mxu0 0.0
    %10735 = vmatpush1.msra.mxu0 0.0
    %10736 = vmatprep.subr.mxu0 0.0
    %10737 = vmatpush1.msra.mxu0 0.0
    %10738 = vmatprep.subr.mxu0 0.0
    %10739 = vmatpush1.msra.mxu0 0.0
    %10740 = vmatprep.subr.mxu0 0.0
    %10741 = vmatpush1.msra.mxu0 0.0
    %10742 = vmatprep.subr.mxu0 0.0
    %10743 = vmatpush1.msra.mxu0 0.0
    %10744 = vmatprep.subr.mxu0 0.0
    %10745 = vmatpush1.msra.mxu0 0.0
    %10746 = vmatprep.subr.mxu0 0.0
    %10747 = vmatpush1.msra.mxu0 0.0
    %10748 = vmatprep.subr.mxu0 0.0
    %10749 = vmatpush1.msra.mxu0 0.0
    %10750 = vmatprep.subr.mxu0 0.0
    %10751 = vmatpush1.msra.mxu0 0.0
    %10752 = vmatprep.subr.mxu0 0.0
    %10753 = vmatpush1.msra.mxu0 0.0
    %10754 = vmatprep.subr.mxu0 0.0
    %10755 = vmatpush1.msra.mxu0 0.0
    %10756 = vmatprep.subr.mxu0 0.0
    %10757 = vmatpush1.msra.mxu0 0.0
    %10758 = vmatprep.subr.mxu0 0.0
    %10759 = vmatpush1.msra.mxu0 0.0
    %10760 = vmatprep.subr.mxu0 0.0
    %10761 = vmatpush1.msra.mxu0 0.0
    %10762 = vmatprep.subr.mxu0 0.0
    %10763 = vmatpush1.msra.mxu0 0.0
    %10764 = vmatprep.subr.mxu0 0.0
    %10765 = vmatpush1.msra.mxu0 0.0
    %10766 = vmatprep.subr.mxu0 0.0
    %10767 = vmatpush1.msra.mxu0 0.0
    %10768 = vmatprep.subr.mxu0 0.0
    %10769 = vmatpush1.msra.mxu0 0.0
    %10770 = vmatprep.subr.mxu0 0.0
    %10771 = vmatpush1.msra.mxu0 0.0
    %10772 = vmatprep.subr.mxu0 0.0
    %10773 = vmatpush1.msra.mxu0 0.0
    %10774 = vmatprep.subr.mxu0 0.0
    %10775 = vmatpush1.msra.mxu0 0.0
    %10776 = vmatprep.subr.mxu0 0.0
    %10777 = vmatpush1.msra.mxu0 0.0
    %10778 = vmatprep.subr.mxu0 0.0
    %10779 = vmatpush1.msra.mxu0 0.0
    %10780 = vmatprep.mubr.f32.mxu0 0.0
    %v10781 = vand.u32 %v10341, 4294901760
    %10782 = vmatmul.mubr.f32.gmra.mrb[0].mxu0 %v10781
    %v10783 = vpop.f32.mrb[0].mxu0
    %v10784 = vadd.f32 %v10693, %v10783
    %v10785 = vpop.f32.mrb[0].mxu0
    %10786 = vmatprep.mubr.f32.mxu0 0.0
    %v10787 = vand.u32 %v10344, 4294901760
    %10788 = vmatmul.mubr.f32.gmra.mrb[0].mxu0 %v10787
    %v10789 = vpop.f32.mrb[0].mxu0
    %v10790 = vadd.f32 %v10701, %v10789
    %v10791 = vpop.f32.mrb[0].mxu0
    %10792 = vdwg.mxu0
    %10793 = vmatprep.subr.mxu0 0.0
    %v10794 = vand.u32 %v10336, 4294901760
    %10795 = vmatpush1.msra.mxu0 %v10794
    %10796 = vmatprep.subr.mxu0 0.0
    %v10797 = vand.u32 %v10337, 4294901760
    %10798 = vmatpush1.msra.mxu0 %v10797
    %10799 = vmatprep.subr.mxu0 0.0
    %v10800 = vand.u32 %v10338, 4294901760
    %10801 = vmatpush1.msra.mxu0 %v10800
    %10802 = vmatprep.subr.mxu0 0.0
    %v10803 = vand.u32 %v10339, 4294901760
    %10804 = vmatpush1.msra.mxu0 %v10803
    %10805 = vmatprep.subr.mxu0 0.0
    %10806 = vmatpush1.msra.mxu0 0.0
    %10807 = vmatprep.subr.mxu0 0.0
    %10808 = vmatpush1.msra.mxu0 0.0
    %10809 = vmatprep.subr.mxu0 0.0
    %10810 = vmatpush1.msra.mxu0 0.0
    %10811 = vmatprep.subr.mxu0 0.0
    %10812 = vmatpush1.msra.mxu0 0.0
    %10813 = vmatprep.subr.mxu0 0.0
    %10814 = vmatpush1.msra.mxu0 0.0
    %10815 = vmatprep.subr.mxu0 0.0
    %10816 = vmatpush1.msra.mxu0 0.0
    %10817 = vmatprep.subr.mxu0 0.0
    %10818 = vmatpush1.msra.mxu0 0.0
    %10819 = vmatprep.subr.mxu0 0.0
    %10820 = vmatpush1.msra.mxu0 0.0
    %10821 = vmatprep.subr.mxu0 0.0
    %10822 = vmatpush1.msra.mxu0 0.0
    %10823 = vmatprep.subr.mxu0 0.0
    %10824 = vmatpush1.msra.mxu0 0.0
    %10825 = vmatprep.subr.mxu0 0.0
    %10826 = vmatpush1.msra.mxu0 0.0
    %10827 = vmatprep.subr.mxu0 0.0
    %10828 = vmatpush1.msra.mxu0 0.0
    %10829 = vmatprep.subr.mxu0 0.0
    %10830 = vmatpush1.msra.mxu0 0.0
    %10831 = vmatprep.subr.mxu0 0.0
    %10832 = vmatpush1.msra.mxu0 0.0
    %10833 = vmatprep.subr.mxu0 0.0
    %10834 = vmatpush1.msra.mxu0 0.0
    %10835 = vmatprep.subr.mxu0 0.0
    %10836 = vmatpush1.msra.mxu0 0.0
    %10837 = vmatprep.subr.mxu0 0.0
    %10838 = vmatpush1.msra.mxu0 0.0
    %10839 = vmatprep.subr.mxu0 0.0
    %10840 = vmatpush1.msra.mxu0 0.0
    %10841 = vmatprep.subr.mxu0 0.0
    %10842 = vmatpush1.msra.mxu0 0.0
    %10843 = vmatprep.subr.mxu0 0.0
    %10844 = vmatpush1.msra.mxu0 0.0
    %10845 = vmatprep.subr.mxu0 0.0
    %10846 = vmatpush1.msra.mxu0 0.0
    %10847 = vmatprep.subr.mxu0 0.0
    %10848 = vmatpush1.msra.mxu0 0.0
    %10849 = vmatprep.subr.mxu0 0.0
    %10850 = vmatpush1.msra.mxu0 0.0
    %10851 = vmatprep.subr.mxu0 0.0
    %10852 = vmatpush1.msra.mxu0 0.0
    %10853 = vmatprep.subr.mxu0 0.0
    %10854 = vmatpush1.msra.mxu0 0.0
    %10855 = vmatprep.subr.mxu0 0.0
    %10856 = vmatpush1.msra.mxu0 0.0
    %10857 = vmatprep.subr.mxu0 0.0
    %10858 = vmatpush1.msra.mxu0 0.0
    %10859 = vmatprep.subr.mxu0 0.0
    %10860 = vmatpush1.msra.mxu0 0.0
    %10861 = vmatprep.mubr.f32.mxu0 0.0
    %v10862 = vand.u32 %v10341, 4294901760
    %10863 = vmatmul.mubr.f32.gmra.mrb[0].mxu0 %v10862
    %v10864 = vpop.f32.mrb[0].mxu0
    %v10865 = vadd.f32 %v10784, %v10864
    %v10866 = vpop.f32.mrb[0].mxu0
    %10867 = vmatprep.mubr.f32.mxu0 0.0
    %v10868 = vand.u32 %v10344, 4294901760
    %10869 = vmatmul.mubr.f32.gmra.mrb[0].mxu0 %v10868
    %v10870 = vpop.f32.mrb[0].mxu0
    %v10871 = vadd.f32 %v10790, %v10870
    %v10872 = vpop.f32.mrb[0].mxu0
    %10873 = vdwg.mxu0
    %v10874 = vadd.f32 %v6069, %v10865
    %v10875 = vadd.f32 %v6070, %v10871
    %v10876 = vlaneseq
    %v10877 = vshrl.u32 %v10876, 7
    %v10878 = vsub.s32 0, %v10877
    %v10879 = vrot.slane %v6075, %v10878
    %v10880 = vadd.f32 %v10874, %v10879
    %v10881 = vadd.f32 %v10875, %v10879
    %v10882 = vsel %vm64, %v10880, 0.0
    %10883 = vadd.xlane.f32.xlu0 %v10882
    %v10884 = vpop.xlane.xlu0 %10883
    %v10885 = vsel %vm64, %v10881, 0.0
    %10886 = vadd.xlane.f32.xlu0 %v10885
    %v10887 = vpop.xlane.xlu0 %10886
    %v10888 = vmul.f32 %v10884, %v71
    %v10889 = vmul.f32 %v10887, %v71
    %v10890 = vsub.f32 %v10880, %v10888
    %v10891 = vsub.f32 %v10881, %v10889
    %v10892 = vmul.f32 %v10890, %v10890
    %v10893 = vmul.f32 %v10891, %v10891
    %v10894 = vsel %vm64, %v10892, 0.0
    %10895 = vadd.xlane.f32.xlu0 %v10894
    %v10896 = vpop.xlane.xlu0 %10895
    %v10897 = vsel %vm64, %v10893, 0.0
    %10898 = vadd.xlane.f32.xlu0 %v10897
    %v10899 = vpop.xlane.xlu0 %10898
    %v10900 = vmul.f32 %v10896, %v71
    %v10901 = vmul.f32 %v10899, %v71
    %v10902 = vadd.f32 %v10900, 1e-05
    %v10903 = vadd.f32 %v10901, 1e-05
    %v10904 = vrsqrt.pop %v10902
    %v10905 = vrsqrt.pop %v10903
    %v10906 = vmul.f32 %v10890, %v10904
    %v10907 = vmul.f32 %v10891, %v10905
    %v10908 = vlaneseq
    %v10909 = vshrl.u32 %v10908, 7
    %v10910 = vsub.s32 0, %v10909
    %v10911 = vrot.slane %v6073, %v10910
    %v10912 = vmul.f32 %v10906, %v10911
    %v10913 = vmul.f32 %v10907, %v10911
    %v10914 = vlaneseq
    %v10915 = vshrl.u32 %v10914, 7
    %v10916 = vsub.s32 0, %v10915
    %v10917 = vrot.slane %v6074, %v10916
    %v10918 = vadd.f32 %v10912, %v10917
    %v10919 = vadd.f32 %v10913, %v10917
    %s10920 = scalar_lea.vmem %s3, 32
    %v10921 = vld [vmem:[%s10920] sm:$0xff]
    %v10922 = vld [vmem:[%s10920 + $0x8] sm:$0xff]
    %v10923 = vld [vmem:[%s10920 + $0x10] sm:$0xff]
    %v10924 = vld [vmem:[%s10920 + $0x18] sm:$0xff]
    %v10925 = vlaneseq
    %v10926 = vshrl.u32 %v10925, 7
    %v10927 = vsub.s32 0, %v10926
    %v10928 = vrot.slane %v6077, %v10927
    %v10930 = vsel %vm64, %v10918, 0
    %v10933 = vsel %vm64, %v10919, 0
    %10935 = vmatprep.subr.mxu0 0.0
    %v10936 = vand.u32 %v10921, 4294901760
    %10937 = vmatpush1.msra.mxu0 %v10936
    %10938 = vmatprep.subr.mxu0 0.0
    %v10939 = vand.u32 %v10922, 4294901760
    %10940 = vmatpush1.msra.mxu0 %v10939
    %10941 = vmatprep.subr.mxu0 0.0
    %v10942 = vand.u32 %v10923, 4294901760
    %10943 = vmatpush1.msra.mxu0 %v10942
    %10944 = vmatprep.subr.mxu0 0.0
    %v10945 = vand.u32 %v10924, 4294901760
    %10946 = vmatpush1.msra.mxu0 %v10945
    %10947 = vmatprep.subr.mxu0 0.0
    %10948 = vmatpush1.msra.mxu0 0.0
    %10949 = vmatprep.subr.mxu0 0.0
    %10950 = vmatpush1.msra.mxu0 0.0
    %10951 = vmatprep.subr.mxu0 0.0
    %10952 = vmatpush1.msra.mxu0 0.0
    %10953 = vmatprep.subr.mxu0 0.0
    %10954 = vmatpush1.msra.mxu0 0.0
    %10955 = vmatprep.subr.mxu0 0.0
    %10956 = vmatpush1.msra.mxu0 0.0
    %10957 = vmatprep.subr.mxu0 0.0
    %10958 = vmatpush1.msra.mxu0 0.0
    %10959 = vmatprep.subr.mxu0 0.0
    %10960 = vmatpush1.msra.mxu0 0.0
    %10961 = vmatprep.subr.mxu0 0.0
    %10962 = vmatpush1.msra.mxu0 0.0
    %10963 = vmatprep.subr.mxu0 0.0
    %10964 = vmatpush1.msra.mxu0 0.0
    %10965 = vmatprep.subr.mxu0 0.0
    %10966 = vmatpush1.msra.mxu0 0.0
    %10967 = vmatprep.subr.mxu0 0.0
    %10968 = vmatpush1.msra.mxu0 0.0
    %10969 = vmatprep.subr.mxu0 0.0
    %10970 = vmatpush1.msra.mxu0 0.0
    %10971 = vmatprep.subr.mxu0 0.0
    %10972 = vmatpush1.msra.mxu0 0.0
    %10973 = vmatprep.subr.mxu0 0.0
    %10974 = vmatpush1.msra.mxu0 0.0
    %10975 = vmatprep.subr.mxu0 0.0
    %10976 = vmatpush1.msra.mxu0 0.0
    %10977 = vmatprep.subr.mxu0 0.0
    %10978 = vmatpush1.msra.mxu0 0.0
    %10979 = vmatprep.subr.mxu0 0.0
    %10980 = vmatpush1.msra.mxu0 0.0
    %10981 = vmatprep.subr.mxu0 0.0
    %10982 = vmatpush1.msra.mxu0 0.0
    %10983 = vmatprep.subr.mxu0 0.0
    %10984 = vmatpush1.msra.mxu0 0.0
    %10985 = vmatprep.subr.mxu0 0.0
    %10986 = vmatpush1.msra.mxu0 0.0
    %10987 = vmatprep.subr.mxu0 0.0
    %10988 = vmatpush1.msra.mxu0 0.0
    %10989 = vmatprep.subr.mxu0 0.0
    %10990 = vmatpush1.msra.mxu0 0.0
    %10991 = vmatprep.subr.mxu0 0.0
    %10992 = vmatpush1.msra.mxu0 0.0
    %10993 = vmatprep.subr.mxu0 0.0
    %10994 = vmatpush1.msra.mxu0 0.0
    %10995 = vmatprep.subr.mxu0 0.0
    %10996 = vmatpush1.msra.mxu0 0.0
    %10997 = vmatprep.subr.mxu0 0.0
    %10998 = vmatpush1.msra.mxu0 0.0
    %10999 = vmatprep.subr.mxu0 0.0
    %11000 = vmatpush1.msra.mxu0 0.0
    %11001 = vmatprep.subr.mxu0 0.0
    %11002 = vmatpush1.msra.mxu0 0.0
    %11003 = vmatprep.mubr.f32.mxu0 0.0
    %v11004 = vand.u32 %v10930, 4294901760
    %v11005 = vsub.f32 %v10930, %v11004
    %v11006 = vand.u32 %v11005, 4294901760
    %v11007 = vsub.f32 %v11005, %v11006
    %v11008 = vand.u32 %v11007, 4294901760
    %11009 = vmatmul.mubr.f32.gmra.mrb[0].mxu0 %v11008
    %v11010 = vpop.f32.mrb[0].mxu0
    %v11011 = vadd.f32 %v10928, %v11010
    %v11012 = vpop.f32.mrb[0].mxu0
    %11013 = vmatprep.mubr.f32.mxu0 0.0
    %v11014 = vand.u32 %v10933, 4294901760
    %v11015 = vsub.f32 %v10933, %v11014
    %v11016 = vand.u32 %v11015, 4294901760
    %v11017 = vsub.f32 %v11015, %v11016
    %v11018 = vand.u32 %v11017, 4294901760
    %11019 = vmatmul.mubr.f32.gmra.mrb[0].mxu0 %v11018
    %v11020 = vpop.f32.mrb[0].mxu0
    %v11021 = vadd.f32 %v10928, %v11020
    %v11022 = vpop.f32.mrb[0].mxu0
    %11023 = vdwg.mxu0
    %11024 = vmatprep.subr.mxu0 0.0
    %v11025 = vand.u32 %v10921, 4294901760
    %v11026 = vsub.f32 %v10921, %v11025
    %v11027 = vand.u32 %v11026, 4294901760
    %v11028 = vsub.f32 %v11026, %v11027
    %v11029 = vand.u32 %v11028, 4294901760
    %11030 = vmatpush1.msra.mxu0 %v11029
    %11031 = vmatprep.subr.mxu0 0.0
    %v11032 = vand.u32 %v10922, 4294901760
    %v11033 = vsub.f32 %v10922, %v11032
    %v11034 = vand.u32 %v11033, 4294901760
    %v11035 = vsub.f32 %v11033, %v11034
    %v11036 = vand.u32 %v11035, 4294901760
    %11037 = vmatpush1.msra.mxu0 %v11036
    %11038 = vmatprep.subr.mxu0 0.0
    %v11039 = vand.u32 %v10923, 4294901760
    %v11040 = vsub.f32 %v10923, %v11039
    %v11041 = vand.u32 %v11040, 4294901760
    %v11042 = vsub.f32 %v11040, %v11041
    %v11043 = vand.u32 %v11042, 4294901760
    %11044 = vmatpush1.msra.mxu0 %v11043
    %11045 = vmatprep.subr.mxu0 0.0
    %v11046 = vand.u32 %v10924, 4294901760
    %v11047 = vsub.f32 %v10924, %v11046
    %v11048 = vand.u32 %v11047, 4294901760
    %v11049 = vsub.f32 %v11047, %v11048
    %v11050 = vand.u32 %v11049, 4294901760
    %11051 = vmatpush1.msra.mxu0 %v11050
    %11052 = vmatprep.subr.mxu0 0.0
    %11053 = vmatpush1.msra.mxu0 0.0
    %11054 = vmatprep.subr.mxu0 0.0
    %11055 = vmatpush1.msra.mxu0 0.0
    %11056 = vmatprep.subr.mxu0 0.0
    %11057 = vmatpush1.msra.mxu0 0.0
    %11058 = vmatprep.subr.mxu0 0.0
    %11059 = vmatpush1.msra.mxu0 0.0
    %11060 = vmatprep.subr.mxu0 0.0
    %11061 = vmatpush1.msra.mxu0 0.0
    %11062 = vmatprep.subr.mxu0 0.0
    %11063 = vmatpush1.msra.mxu0 0.0
    %11064 = vmatprep.subr.mxu0 0.0
    %11065 = vmatpush1.msra.mxu0 0.0
    %11066 = vmatprep.subr.mxu0 0.0
    %11067 = vmatpush1.msra.mxu0 0.0
    %11068 = vmatprep.subr.mxu0 0.0
    %11069 = vmatpush1.msra.mxu0 0.0
    %11070 = vmatprep.subr.mxu0 0.0
    %11071 = vmatpush1.msra.mxu0 0.0
    %11072 = vmatprep.subr.mxu0 0.0
    %11073 = vmatpush1.msra.mxu0 0.0
    %11074 = vmatprep.subr.mxu0 0.0
    %11075 = vmatpush1.msra.mxu0 0.0
    %11076 = vmatprep.subr.mxu0 0.0
    %11077 = vmatpush1.msra.mxu0 0.0
    %11078 = vmatprep.subr.mxu0 0.0
    %11079 = vmatpush1.msra.mxu0 0.0
    %11080 = vmatprep.subr.mxu0 0.0
    %11081 = vmatpush1.msra.mxu0 0.0
    %11082 = vmatprep.subr.mxu0 0.0
    %11083 = vmatpush1.msra.mxu0 0.0
    %11084 = vmatprep.subr.mxu0 0.0
    %11085 = vmatpush1.msra.mxu0 0.0
    %11086 = vmatprep.subr.mxu0 0.0
    %11087 = vmatpush1.msra.mxu0 0.0
    %11088 = vmatprep.subr.mxu0 0.0
    %11089 = vmatpush1.msra.mxu0 0.0
    %11090 = vmatprep.subr.mxu0 0.0
    %11091 = vmatpush1.msra.mxu0 0.0
    %11092 = vmatprep.subr.mxu0 0.0
    %11093 = vmatpush1.msra.mxu0 0.0
    %11094 = vmatprep.subr.mxu0 0.0
    %11095 = vmatpush1.msra.mxu0 0.0
    %11096 = vmatprep.subr.mxu0 0.0
    %11097 = vmatpush1.msra.mxu0 0.0
    %11098 = vmatprep.subr.mxu0 0.0
    %11099 = vmatpush1.msra.mxu0 0.0
    %11100 = vmatprep.subr.mxu0 0.0
    %11101 = vmatpush1.msra.mxu0 0.0
    %11102 = vmatprep.subr.mxu0 0.0
    %11103 = vmatpush1.msra.mxu0 0.0
    %11104 = vmatprep.subr.mxu0 0.0
    %11105 = vmatpush1.msra.mxu0 0.0
    %11106 = vmatprep.subr.mxu0 0.0
    %11107 = vmatpush1.msra.mxu0 0.0
    %11108 = vmatprep.mubr.f32.mxu0 0.0
    %v11109 = vand.u32 %v10930, 4294901760
    %11110 = vmatmul.mubr.f32.gmra.mrb[0].mxu0 %v11109
    %v11111 = vpop.f32.mrb[0].mxu0
    %v11112 = vadd.f32 %v11011, %v11111
    %v11113 = vpop.f32.mrb[0].mxu0
    %11114 = vmatprep.mubr.f32.mxu0 0.0
    %v11115 = vand.u32 %v10933, 4294901760
    %11116 = vmatmul.mubr.f32.gmra.mrb[0].mxu0 %v11115
    %v11117 = vpop.f32.mrb[0].mxu0
    %v11118 = vadd.f32 %v11021, %v11117
    %v11119 = vpop.f32.mrb[0].mxu0
    %11120 = vdwg.mxu0
    %11121 = vmatprep.subr.mxu0 0.0
    %v11122 = vand.u32 %v10921, 4294901760
    %v11123 = vsub.f32 %v10921, %v11122
    %11124 = vmatpush1.msra.mxu0 %v11123
    %11125 = vmatprep.subr.mxu0 0.0
    %v11126 = vand.u32 %v10922, 4294901760
    %v11127 = vsub.f32 %v10922, %v11126
    %11128 = vmatpush1.msra.mxu0 %v11127
    %11129 = vmatprep.subr.mxu0 0.0
    %v11130 = vand.u32 %v10923, 4294901760
    %v11131 = vsub.f32 %v10923, %v11130
    %11132 = vmatpush1.msra.mxu0 %v11131
    %11133 = vmatprep.subr.mxu0 0.0
    %v11134 = vand.u32 %v10924, 4294901760
    %v11135 = vsub.f32 %v10924, %v11134
    %11136 = vmatpush1.msra.mxu0 %v11135
    %11137 = vmatprep.subr.mxu0 0.0
    %11138 = vmatpush1.msra.mxu0 0.0
    %11139 = vmatprep.subr.mxu0 0.0
    %11140 = vmatpush1.msra.mxu0 0.0
    %11141 = vmatprep.subr.mxu0 0.0
    %11142 = vmatpush1.msra.mxu0 0.0
    %11143 = vmatprep.subr.mxu0 0.0
    %11144 = vmatpush1.msra.mxu0 0.0
    %11145 = vmatprep.subr.mxu0 0.0
    %11146 = vmatpush1.msra.mxu0 0.0
    %11147 = vmatprep.subr.mxu0 0.0
    %11148 = vmatpush1.msra.mxu0 0.0
    %11149 = vmatprep.subr.mxu0 0.0
    %11150 = vmatpush1.msra.mxu0 0.0
    %11151 = vmatprep.subr.mxu0 0.0
    %11152 = vmatpush1.msra.mxu0 0.0
    %11153 = vmatprep.subr.mxu0 0.0
    %11154 = vmatpush1.msra.mxu0 0.0
    %11155 = vmatprep.subr.mxu0 0.0
    %11156 = vmatpush1.msra.mxu0 0.0
    %11157 = vmatprep.subr.mxu0 0.0
    %11158 = vmatpush1.msra.mxu0 0.0
    %11159 = vmatprep.subr.mxu0 0.0
    %11160 = vmatpush1.msra.mxu0 0.0
    %11161 = vmatprep.subr.mxu0 0.0
    %11162 = vmatpush1.msra.mxu0 0.0
    %11163 = vmatprep.subr.mxu0 0.0
    %11164 = vmatpush1.msra.mxu0 0.0
    %11165 = vmatprep.subr.mxu0 0.0
    %11166 = vmatpush1.msra.mxu0 0.0
    %11167 = vmatprep.subr.mxu0 0.0
    %11168 = vmatpush1.msra.mxu0 0.0
    %11169 = vmatprep.subr.mxu0 0.0
    %11170 = vmatpush1.msra.mxu0 0.0
    %11171 = vmatprep.subr.mxu0 0.0
    %11172 = vmatpush1.msra.mxu0 0.0
    %11173 = vmatprep.subr.mxu0 0.0
    %11174 = vmatpush1.msra.mxu0 0.0
    %11175 = vmatprep.subr.mxu0 0.0
    %11176 = vmatpush1.msra.mxu0 0.0
    %11177 = vmatprep.subr.mxu0 0.0
    %11178 = vmatpush1.msra.mxu0 0.0
    %11179 = vmatprep.subr.mxu0 0.0
    %11180 = vmatpush1.msra.mxu0 0.0
    %11181 = vmatprep.subr.mxu0 0.0
    %11182 = vmatpush1.msra.mxu0 0.0
    %11183 = vmatprep.subr.mxu0 0.0
    %11184 = vmatpush1.msra.mxu0 0.0
    %11185 = vmatprep.subr.mxu0 0.0
    %11186 = vmatpush1.msra.mxu0 0.0
    %11187 = vmatprep.subr.mxu0 0.0
    %11188 = vmatpush1.msra.mxu0 0.0
    %11189 = vmatprep.subr.mxu0 0.0
    %11190 = vmatpush1.msra.mxu0 0.0
    %11191 = vmatprep.subr.mxu0 0.0
    %11192 = vmatpush1.msra.mxu0 0.0
    %11193 = vmatprep.mubr.f32.mxu0 0.0
    %v11194 = vand.u32 %v10930, 4294901760
    %v11195 = vsub.f32 %v10930, %v11194
    %11196 = vmatmul.mubr.f32.gmra.mrb[0].mxu0 %v11195
    %v11197 = vpop.f32.mrb[0].mxu0
    %v11198 = vadd.f32 %v11112, %v11197
    %v11199 = vpop.f32.mrb[0].mxu0
    %11200 = vmatprep.mubr.f32.mxu0 0.0
    %v11201 = vand.u32 %v10933, 4294901760
    %v11202 = vsub.f32 %v10933, %v11201
    %11203 = vmatmul.mubr.f32.gmra.mrb[0].mxu0 %v11202
    %v11204 = vpop.f32.mrb[0].mxu0
    %v11205 = vadd.f32 %v11118, %v11204
    %v11206 = vpop.f32.mrb[0].mxu0
    %11207 = vdwg.mxu0
    %11208 = vmatprep.subr.mxu0 0.0
    %v11209 = vand.u32 %v10921, 4294901760
    %11210 = vmatpush1.msra.mxu0 %v11209
    %11211 = vmatprep.subr.mxu0 0.0
    %v11212 = vand.u32 %v10922, 4294901760
    %11213 = vmatpush1.msra.mxu0 %v11212
    %11214 = vmatprep.subr.mxu0 0.0
    %v11215 = vand.u32 %v10923, 4294901760
    %11216 = vmatpush1.msra.mxu0 %v11215
    %11217 = vmatprep.subr.mxu0 0.0
    %v11218 = vand.u32 %v10924, 4294901760
    %11219 = vmatpush1.msra.mxu0 %v11218
    %11220 = vmatprep.subr.mxu0 0.0
    %11221 = vmatpush1.msra.mxu0 0.0
    %11222 = vmatprep.subr.mxu0 0.0
    %11223 = vmatpush1.msra.mxu0 0.0
    %11224 = vmatprep.subr.mxu0 0.0
    %11225 = vmatpush1.msra.mxu0 0.0
    %11226 = vmatprep.subr.mxu0 0.0
    %11227 = vmatpush1.msra.mxu0 0.0
    %11228 = vmatprep.subr.mxu0 0.0
    %11229 = vmatpush1.msra.mxu0 0.0
    %11230 = vmatprep.subr.mxu0 0.0
    %11231 = vmatpush1.msra.mxu0 0.0
    %11232 = vmatprep.subr.mxu0 0.0
    %11233 = vmatpush1.msra.mxu0 0.0
    %11234 = vmatprep.subr.mxu0 0.0
    %11235 = vmatpush1.msra.mxu0 0.0
    %11236 = vmatprep.subr.mxu0 0.0
    %11237 = vmatpush1.msra.mxu0 0.0
    %11238 = vmatprep.subr.mxu0 0.0
    %11239 = vmatpush1.msra.mxu0 0.0
    %11240 = vmatprep.subr.mxu0 0.0
    %11241 = vmatpush1.msra.mxu0 0.0
    %11242 = vmatprep.subr.mxu0 0.0
    %11243 = vmatpush1.msra.mxu0 0.0
    %11244 = vmatprep.subr.mxu0 0.0
    %11245 = vmatpush1.msra.mxu0 0.0
    %11246 = vmatprep.subr.mxu0 0.0
    %11247 = vmatpush1.msra.mxu0 0.0
    %11248 = vmatprep.subr.mxu0 0.0
    %11249 = vmatpush1.msra.mxu0 0.0
    %11250 = vmatprep.subr.mxu0 0.0
    %11251 = vmatpush1.msra.mxu0 0.0
    %11252 = vmatprep.subr.mxu0 0.0
    %11253 = vmatpush1.msra.mxu0 0.0
    %11254 = vmatprep.subr.mxu0 0.0
    %11255 = vmatpush1.msra.mxu0 0.0
    %11256 = vmatprep.subr.mxu0 0.0
    %11257 = vmatpush1.msra.mxu0 0.0
    %11258 = vmatprep.subr.mxu0 0.0
    %11259 = vmatpush1.msra.mxu0 0.0
    %11260 = vmatprep.subr.mxu0 0.0
    %11261 = vmatpush1.msra.mxu0 0.0
    %11262 = vmatprep.subr.mxu0 0.0
    %11263 = vmatpush1.msra.mxu0 0.0
    %11264 = vmatprep.subr.mxu0 0.0
    %11265 = vmatpush1.msra.mxu0 0.0
    %11266 = vmatprep.subr.mxu0 0.0
    %11267 = vmatpush1.msra.mxu0 0.0
    %11268 = vmatprep.subr.mxu0 0.0
    %11269 = vmatpush1.msra.mxu0 0.0
    %11270 = vmatprep.subr.mxu0 0.0
    %11271 = vmatpush1.msra.mxu0 0.0
    %11272 = vmatprep.subr.mxu0 0.0
    %11273 = vmatpush1.msra.mxu0 0.0
    %11274 = vmatprep.subr.mxu0 0.0
    %11275 = vmatpush1.msra.mxu0 0.0
    %11276 = vmatprep.mubr.f32.mxu0 0.0
    %v11277 = vand.u32 %v10930, 4294901760
    %v11278 = vsub.f32 %v10930, %v11277
    %v11279 = vand.u32 %v11278, 4294901760
    %11280 = vmatmul.mubr.f32.gmra.mrb[0].mxu0 %v11279
    %v11281 = vpop.f32.mrb[0].mxu0
    %v11282 = vadd.f32 %v11198, %v11281
    %v11283 = vpop.f32.mrb[0].mxu0
    %11284 = vmatprep.mubr.f32.mxu0 0.0
    %v11285 = vand.u32 %v10933, 4294901760
    %v11286 = vsub.f32 %v10933, %v11285
    %v11287 = vand.u32 %v11286, 4294901760
    %11288 = vmatmul.mubr.f32.gmra.mrb[0].mxu0 %v11287
    %v11289 = vpop.f32.mrb[0].mxu0
    %v11290 = vadd.f32 %v11205, %v11289
    %v11291 = vpop.f32.mrb[0].mxu0
    %11292 = vdwg.mxu0
    %11293 = vmatprep.subr.mxu0 0.0
    %v11294 = vand.u32 %v10921, 4294901760
    %v11295 = vsub.f32 %v10921, %v11294
    %v11296 = vand.u32 %v11295, 4294901760
    %11297 = vmatpush1.msra.mxu0 %v11296
    %11298 = vmatprep.subr.mxu0 0.0
    %v11299 = vand.u32 %v10922, 4294901760
    %v11300 = vsub.f32 %v10922, %v11299
    %v11301 = vand.u32 %v11300, 4294901760
    %11302 = vmatpush1.msra.mxu0 %v11301
    %11303 = vmatprep.subr.mxu0 0.0
    %v11304 = vand.u32 %v10923, 4294901760
    %v11305 = vsub.f32 %v10923, %v11304
    %v11306 = vand.u32 %v11305, 4294901760
    %11307 = vmatpush1.msra.mxu0 %v11306
    %11308 = vmatprep.subr.mxu0 0.0
    %v11309 = vand.u32 %v10924, 4294901760
    %v11310 = vsub.f32 %v10924, %v11309
    %v11311 = vand.u32 %v11310, 4294901760
    %11312 = vmatpush1.msra.mxu0 %v11311
    %11313 = vmatprep.subr.mxu0 0.0
    %11314 = vmatpush1.msra.mxu0 0.0
    %11315 = vmatprep.subr.mxu0 0.0
    %11316 = vmatpush1.msra.mxu0 0.0
    %11317 = vmatprep.subr.mxu0 0.0
    %11318 = vmatpush1.msra.mxu0 0.0
    %11319 = vmatprep.subr.mxu0 0.0
    %11320 = vmatpush1.msra.mxu0 0.0
    %11321 = vmatprep.subr.mxu0 0.0
    %11322 = vmatpush1.msra.mxu0 0.0
    %11323 = vmatprep.subr.mxu0 0.0
    %11324 = vmatpush1.msra.mxu0 0.0
    %11325 = vmatprep.subr.mxu0 0.0
    %11326 = vmatpush1.msra.mxu0 0.0
    %11327 = vmatprep.subr.mxu0 0.0
    %11328 = vmatpush1.msra.mxu0 0.0
    %11329 = vmatprep.subr.mxu0 0.0
    %11330 = vmatpush1.msra.mxu0 0.0
    %11331 = vmatprep.subr.mxu0 0.0
    %11332 = vmatpush1.msra.mxu0 0.0
    %11333 = vmatprep.subr.mxu0 0.0
    %11334 = vmatpush1.msra.mxu0 0.0
    %11335 = vmatprep.subr.mxu0 0.0
    %11336 = vmatpush1.msra.mxu0 0.0
    %11337 = vmatprep.subr.mxu0 0.0
    %11338 = vmatpush1.msra.mxu0 0.0
    %11339 = vmatprep.subr.mxu0 0.0
    %11340 = vmatpush1.msra.mxu0 0.0
    %11341 = vmatprep.subr.mxu0 0.0
    %11342 = vmatpush1.msra.mxu0 0.0
    %11343 = vmatprep.subr.mxu0 0.0
    %11344 = vmatpush1.msra.mxu0 0.0
    %11345 = vmatprep.subr.mxu0 0.0
    %11346 = vmatpush1.msra.mxu0 0.0
    %11347 = vmatprep.subr.mxu0 0.0
    %11348 = vmatpush1.msra.mxu0 0.0
    %11349 = vmatprep.subr.mxu0 0.0
    %11350 = vmatpush1.msra.mxu0 0.0
    %11351 = vmatprep.subr.mxu0 0.0
    %11352 = vmatpush1.msra.mxu0 0.0
    %11353 = vmatprep.subr.mxu0 0.0
    %11354 = vmatpush1.msra.mxu0 0.0
    %11355 = vmatprep.subr.mxu0 0.0
    %11356 = vmatpush1.msra.mxu0 0.0
    %11357 = vmatprep.subr.mxu0 0.0
    %11358 = vmatpush1.msra.mxu0 0.0
    %11359 = vmatprep.subr.mxu0 0.0
    %11360 = vmatpush1.msra.mxu0 0.0
    %11361 = vmatprep.subr.mxu0 0.0
    %11362 = vmatpush1.msra.mxu0 0.0
    %11363 = vmatprep.subr.mxu0 0.0
    %11364 = vmatpush1.msra.mxu0 0.0
    %11365 = vmatprep.subr.mxu0 0.0
    %11366 = vmatpush1.msra.mxu0 0.0
    %11367 = vmatprep.subr.mxu0 0.0
    %11368 = vmatpush1.msra.mxu0 0.0
    %11369 = vmatprep.mubr.f32.mxu0 0.0
    %v11370 = vand.u32 %v10930, 4294901760
    %11371 = vmatmul.mubr.f32.gmra.mrb[0].mxu0 %v11370
    %v11372 = vpop.f32.mrb[0].mxu0
    %v11373 = vadd.f32 %v11282, %v11372
    %v11374 = vpop.f32.mrb[0].mxu0
    %11375 = vmatprep.mubr.f32.mxu0 0.0
    %v11376 = vand.u32 %v10933, 4294901760
    %11377 = vmatmul.mubr.f32.gmra.mrb[0].mxu0 %v11376
    %v11378 = vpop.f32.mrb[0].mxu0
    %v11379 = vadd.f32 %v11290, %v11378
    %v11380 = vpop.f32.mrb[0].mxu0
    %11381 = vdwg.mxu0
    %11382 = vmatprep.subr.mxu0 0.0
    %v11383 = vand.u32 %v10921, 4294901760
    %11384 = vmatpush1.msra.mxu0 %v11383
    %11385 = vmatprep.subr.mxu0 0.0
    %v11386 = vand.u32 %v10922, 4294901760
    %11387 = vmatpush1.msra.mxu0 %v11386
    %11388 = vmatprep.subr.mxu0 0.0
    %v11389 = vand.u32 %v10923, 4294901760
    %11390 = vmatpush1.msra.mxu0 %v11389
    %11391 = vmatprep.subr.mxu0 0.0
    %v11392 = vand.u32 %v10924, 4294901760
    %11393 = vmatpush1.msra.mxu0 %v11392
    %11394 = vmatprep.subr.mxu0 0.0
    %11395 = vmatpush1.msra.mxu0 0.0
    %11396 = vmatprep.subr.mxu0 0.0
    %11397 = vmatpush1.msra.mxu0 0.0
    %11398 = vmatprep.subr.mxu0 0.0
    %11399 = vmatpush1.msra.mxu0 0.0
    %11400 = vmatprep.subr.mxu0 0.0
    %11401 = vmatpush1.msra.mxu0 0.0
    %11402 = vmatprep.subr.mxu0 0.0
    %11403 = vmatpush1.msra.mxu0 0.0
    %11404 = vmatprep.subr.mxu0 0.0
    %11405 = vmatpush1.msra.mxu0 0.0
    %11406 = vmatprep.subr.mxu0 0.0
    %11407 = vmatpush1.msra.mxu0 0.0
    %11408 = vmatprep.subr.mxu0 0.0
    %11409 = vmatpush1.msra.mxu0 0.0
    %11410 = vmatprep.subr.mxu0 0.0
    %11411 = vmatpush1.msra.mxu0 0.0
    %11412 = vmatprep.subr.mxu0 0.0
    %11413 = vmatpush1.msra.mxu0 0.0
    %11414 = vmatprep.subr.mxu0 0.0
    %11415 = vmatpush1.msra.mxu0 0.0
    %11416 = vmatprep.subr.mxu0 0.0
    %11417 = vmatpush1.msra.mxu0 0.0
    %11418 = vmatprep.subr.mxu0 0.0
    %11419 = vmatpush1.msra.mxu0 0.0
    %11420 = vmatprep.subr.mxu0 0.0
    %11421 = vmatpush1.msra.mxu0 0.0
    %11422 = vmatprep.subr.mxu0 0.0
    %11423 = vmatpush1.msra.mxu0 0.0
    %11424 = vmatprep.subr.mxu0 0.0
    %11425 = vmatpush1.msra.mxu0 0.0
    %11426 = vmatprep.subr.mxu0 0.0
    %11427 = vmatpush1.msra.mxu0 0.0
    %11428 = vmatprep.subr.mxu0 0.0
    %11429 = vmatpush1.msra.mxu0 0.0
    %11430 = vmatprep.subr.mxu0 0.0
    %11431 = vmatpush1.msra.mxu0 0.0
    %11432 = vmatprep.subr.mxu0 0.0
    %11433 = vmatpush1.msra.mxu0 0.0
    %11434 = vmatprep.subr.mxu0 0.0
    %11435 = vmatpush1.msra.mxu0 0.0
    %11436 = vmatprep.subr.mxu0 0.0
    %11437 = vmatpush1.msra.mxu0 0.0
    %11438 = vmatprep.subr.mxu0 0.0
    %11439 = vmatpush1.msra.mxu0 0.0
    %11440 = vmatprep.subr.mxu0 0.0
    %11441 = vmatpush1.msra.mxu0 0.0
    %11442 = vmatprep.subr.mxu0 0.0
    %11443 = vmatpush1.msra.mxu0 0.0
    %11444 = vmatprep.subr.mxu0 0.0
    %11445 = vmatpush1.msra.mxu0 0.0
    %11446 = vmatprep.subr.mxu0 0.0
    %11447 = vmatpush1.msra.mxu0 0.0
    %11448 = vmatprep.subr.mxu0 0.0
    %11449 = vmatpush1.msra.mxu0 0.0
    %11450 = vmatprep.mubr.f32.mxu0 0.0
    %v11451 = vand.u32 %v10930, 4294901760
    %11452 = vmatmul.mubr.f32.gmra.mrb[0].mxu0 %v11451
    %v11453 = vpop.f32.mrb[0].mxu0
    %v11454 = vadd.f32 %v11373, %v11453
    %v11455 = vpop.f32.mrb[0].mxu0
    %11456 = vmatprep.mubr.f32.mxu0 0.0
    %v11457 = vand.u32 %v10933, 4294901760
    %11458 = vmatmul.mubr.f32.gmra.mrb[0].mxu0 %v11457
    %v11459 = vpop.f32.mrb[0].mxu0
    %v11460 = vadd.f32 %v11379, %v11459
    %v11461 = vpop.f32.mrb[0].mxu0
    %11462 = vdwg.mxu0
    %v11463 = vmul.f32 %v11454, 0.5
    %v11464 = vmul.f32 %v11460, 0.5
    %v11465 = vmul.f32 %v11454, 0.044715
    %v11466 = vmul.f32 %v11460, 0.044715
    %v11467 = vmul.f32 %v11465, %v11454
    %v11468 = vmul.f32 %v11466, %v11460
    %v11469 = vmul.f32 %v11467, %v11454
    %v11470 = vmul.f32 %v11468, %v11460
    %v11471 = vadd.f32 %v11454, %v11469
    %v11472 = vadd.f32 %v11460, %v11470
    %v11473 = vmul.f32 %v11471, 0.7978846
    %v11474 = vmul.f32 %v11472, 0.7978846
    %v11475 = vtanh.pop %v11473
    %v11476 = vtanh.pop %v11474
    %v11477 = vadd.f32 %v11475, 1.0
    %v11478 = vadd.f32 %v11476, 1.0
    %v11479 = vmul.f32 %v11463, %v11477
    %v11480 = vmul.f32 %v11464, %v11478
    %s11481 = scalar_lea.vmem %s4, 64
    %v11482 = vld [vmem:[%s11481] sm:$0xff]
    %v11483 = vld [vmem:[%s11481 + $0x8] sm:$0xff]
    %v11484 = vld [vmem:[%s11481 + $0x10] sm:$0xff]
    %v11485 = vld [vmem:[%s11481 + $0x18] sm:$0xff]
    %v11486 = vld [vmem:[%s11481 + $0x20] sm:$0xff]
    %v11487 = vld [vmem:[%s11481 + $0x28] sm:$0xff]
    %v11488 = vld [vmem:[%s11481 + $0x30] sm:$0xff]
    %v11489 = vld [vmem:[%s11481 + $0x38] sm:$0xff]
    %v11491 = vsel %vm5476, %v11479, 0
    %v11494 = vsel %vm5476, %v11480, 0
    %11496 = vmatprep.subr.mxu0 0.0
    %v11497 = vand.u32 %v11482, 4294901760
    %11498 = vmatpush1.msra.mxu0 %v11497
    %11499 = vmatprep.subr.mxu0 0.0
    %v11500 = vand.u32 %v11483, 4294901760
    %11501 = vmatpush1.msra.mxu0 %v11500
    %11502 = vmatprep.subr.mxu0 0.0
    %v11503 = vand.u32 %v11484, 4294901760
    %11504 = vmatpush1.msra.mxu0 %v11503
    %11505 = vmatprep.subr.mxu0 0.0
    %v11506 = vand.u32 %v11485, 4294901760
    %11507 = vmatpush1.msra.mxu0 %v11506
    %11508 = vmatprep.subr.mxu0 0.0
    %v11509 = vand.u32 %v11486, 4294901760
    %11510 = vmatpush1.msra.mxu0 %v11509
    %11511 = vmatprep.subr.mxu0 0.0
    %v11512 = vand.u32 %v11487, 4294901760
    %11513 = vmatpush1.msra.mxu0 %v11512
    %11514 = vmatprep.subr.mxu0 0.0
    %v11515 = vand.u32 %v11488, 4294901760
    %11516 = vmatpush1.msra.mxu0 %v11515
    %11517 = vmatprep.subr.mxu0 0.0
    %v11518 = vand.u32 %v11489, 4294901760
    %11519 = vmatpush1.msra.mxu0 %v11518
    %11520 = vmatprep.subr.mxu0 0.0
    %11521 = vmatpush1.msra.mxu0 0.0
    %11522 = vmatprep.subr.mxu0 0.0
    %11523 = vmatpush1.msra.mxu0 0.0
    %11524 = vmatprep.subr.mxu0 0.0
    %11525 = vmatpush1.msra.mxu0 0.0
    %11526 = vmatprep.subr.mxu0 0.0
    %11527 = vmatpush1.msra.mxu0 0.0
    %11528 = vmatprep.subr.mxu0 0.0
    %11529 = vmatpush1.msra.mxu0 0.0
    %11530 = vmatprep.subr.mxu0 0.0
    %11531 = vmatpush1.msra.mxu0 0.0
    %11532 = vmatprep.subr.mxu0 0.0
    %11533 = vmatpush1.msra.mxu0 0.0
    %11534 = vmatprep.subr.mxu0 0.0
    %11535 = vmatpush1.msra.mxu0 0.0
    %11536 = vmatprep.subr.mxu0 0.0
    %11537 = vmatpush1.msra.mxu0 0.0
    %11538 = vmatprep.subr.mxu0 0.0
    %11539 = vmatpush1.msra.mxu0 0.0
    %11540 = vmatprep.subr.mxu0 0.0
    %11541 = vmatpush1.msra.mxu0 0.0
    %11542 = vmatprep.subr.mxu0 0.0
    %11543 = vmatpush1.msra.mxu0 0.0
    %11544 = vmatprep.subr.mxu0 0.0
    %11545 = vmatpush1.msra.mxu0 0.0
    %11546 = vmatprep.subr.mxu0 0.0
    %11547 = vmatpush1.msra.mxu0 0.0
    %11548 = vmatprep.subr.mxu0 0.0
    %11549 = vmatpush1.msra.mxu0 0.0
    %11550 = vmatprep.subr.mxu0 0.0
    %11551 = vmatpush1.msra.mxu0 0.0
    %11552 = vmatprep.subr.mxu0 0.0
    %11553 = vmatpush1.msra.mxu0 0.0
    %11554 = vmatprep.subr.mxu0 0.0
    %11555 = vmatpush1.msra.mxu0 0.0
    %11556 = vmatprep.subr.mxu0 0.0
    %11557 = vmatpush1.msra.mxu0 0.0
    %11558 = vmatprep.subr.mxu0 0.0
    %11559 = vmatpush1.msra.mxu0 0.0
    %11560 = vmatprep.subr.mxu0 0.0
    %11561 = vmatpush1.msra.mxu0 0.0
    %11562 = vmatprep.subr.mxu0 0.0
    %11563 = vmatpush1.msra.mxu0 0.0
    %11564 = vmatprep.subr.mxu0 0.0
    %11565 = vmatpush1.msra.mxu0 0.0
    %11566 = vmatprep.subr.mxu0 0.0
    %11567 = vmatpush1.msra.mxu0 0.0
    %11568 = vmatprep.mubr.f32.mxu0 0.0
    %v11569 = vand.u32 %v11491, 4294901760
    %v11570 = vsub.f32 %v11491, %v11569
    %v11571 = vand.u32 %v11570, 4294901760
    %v11572 = vsub.f32 %v11570, %v11571
    %v11573 = vand.u32 %v11572, 4294901760
    %11574 = vmatmul.mubr.f32.gmra.mrb[0].mxu0 %v11573
    %v11575 = vpop.f32.mrb[0].mxu0
    %v11576 = vadd.f32 0.0, %v11575
    %v11577 = vpop.f32.mrb[0].mxu0
    %11578 = vmatprep.mubr.f32.mxu0 0.0
    %v11579 = vand.u32 %v11494, 4294901760
    %v11580 = vsub.f32 %v11494, %v11579
    %v11581 = vand.u32 %v11580, 4294901760
    %v11582 = vsub.f32 %v11580, %v11581
    %v11583 = vand.u32 %v11582, 4294901760
    %11584 = vmatmul.mubr.f32.gmra.mrb[0].mxu0 %v11583
    %v11585 = vpop.f32.mrb[0].mxu0
    %v11586 = vadd.f32 0.0, %v11585
    %v11587 = vpop.f32.mrb[0].mxu0
    %11588 = vdwg.mxu0
    %11589 = vmatprep.subr.mxu0 0.0
    %v11590 = vand.u32 %v11482, 4294901760
    %v11591 = vsub.f32 %v11482, %v11590
    %v11592 = vand.u32 %v11591, 4294901760
    %v11593 = vsub.f32 %v11591, %v11592
    %v11594 = vand.u32 %v11593, 4294901760
    %11595 = vmatpush1.msra.mxu0 %v11594
    %11596 = vmatprep.subr.mxu0 0.0
    %v11597 = vand.u32 %v11483, 4294901760
    %v11598 = vsub.f32 %v11483, %v11597
    %v11599 = vand.u32 %v11598, 4294901760
    %v11600 = vsub.f32 %v11598, %v11599
    %v11601 = vand.u32 %v11600, 4294901760
    %11602 = vmatpush1.msra.mxu0 %v11601
    %11603 = vmatprep.subr.mxu0 0.0
    %v11604 = vand.u32 %v11484, 4294901760
    %v11605 = vsub.f32 %v11484, %v11604
    %v11606 = vand.u32 %v11605, 4294901760
    %v11607 = vsub.f32 %v11605, %v11606
    %v11608 = vand.u32 %v11607, 4294901760
    %11609 = vmatpush1.msra.mxu0 %v11608
    %11610 = vmatprep.subr.mxu0 0.0
    %v11611 = vand.u32 %v11485, 4294901760
    %v11612 = vsub.f32 %v11485, %v11611
    %v11613 = vand.u32 %v11612, 4294901760
    %v11614 = vsub.f32 %v11612, %v11613
    %v11615 = vand.u32 %v11614, 4294901760
    %11616 = vmatpush1.msra.mxu0 %v11615
    %11617 = vmatprep.subr.mxu0 0.0
    %v11618 = vand.u32 %v11486, 4294901760
    %v11619 = vsub.f32 %v11486, %v11618
    %v11620 = vand.u32 %v11619, 4294901760
    %v11621 = vsub.f32 %v11619, %v11620
    %v11622 = vand.u32 %v11621, 4294901760
    %11623 = vmatpush1.msra.mxu0 %v11622
    %11624 = vmatprep.subr.mxu0 0.0
    %v11625 = vand.u32 %v11487, 4294901760
    %v11626 = vsub.f32 %v11487, %v11625
    %v11627 = vand.u32 %v11626, 4294901760
    %v11628 = vsub.f32 %v11626, %v11627
    %v11629 = vand.u32 %v11628, 4294901760
    %11630 = vmatpush1.msra.mxu0 %v11629
    %11631 = vmatprep.subr.mxu0 0.0
    %v11632 = vand.u32 %v11488, 4294901760
    %v11633 = vsub.f32 %v11488, %v11632
    %v11634 = vand.u32 %v11633, 4294901760
    %v11635 = vsub.f32 %v11633, %v11634
    %v11636 = vand.u32 %v11635, 4294901760
    %11637 = vmatpush1.msra.mxu0 %v11636
    %11638 = vmatprep.subr.mxu0 0.0
    %v11639 = vand.u32 %v11489, 4294901760
    %v11640 = vsub.f32 %v11489, %v11639
    %v11641 = vand.u32 %v11640, 4294901760
    %v11642 = vsub.f32 %v11640, %v11641
    %v11643 = vand.u32 %v11642, 4294901760
    %11644 = vmatpush1.msra.mxu0 %v11643
    %11645 = vmatprep.subr.mxu0 0.0
    %11646 = vmatpush1.msra.mxu0 0.0
    %11647 = vmatprep.subr.mxu0 0.0
    %11648 = vmatpush1.msra.mxu0 0.0
    %11649 = vmatprep.subr.mxu0 0.0
    %11650 = vmatpush1.msra.mxu0 0.0
    %11651 = vmatprep.subr.mxu0 0.0
    %11652 = vmatpush1.msra.mxu0 0.0
    %11653 = vmatprep.subr.mxu0 0.0
    %11654 = vmatpush1.msra.mxu0 0.0
    %11655 = vmatprep.subr.mxu0 0.0
    %11656 = vmatpush1.msra.mxu0 0.0
    %11657 = vmatprep.subr.mxu0 0.0
    %11658 = vmatpush1.msra.mxu0 0.0
    %11659 = vmatprep.subr.mxu0 0.0
    %11660 = vmatpush1.msra.mxu0 0.0
    %11661 = vmatprep.subr.mxu0 0.0
    %11662 = vmatpush1.msra.mxu0 0.0
    %11663 = vmatprep.subr.mxu0 0.0
    %11664 = vmatpush1.msra.mxu0 0.0
    %11665 = vmatprep.subr.mxu0 0.0
    %11666 = vmatpush1.msra.mxu0 0.0
    %11667 = vmatprep.subr.mxu0 0.0
    %11668 = vmatpush1.msra.mxu0 0.0
    %11669 = vmatprep.subr.mxu0 0.0
    %11670 = vmatpush1.msra.mxu0 0.0
    %11671 = vmatprep.subr.mxu0 0.0
    %11672 = vmatpush1.msra.mxu0 0.0
    %11673 = vmatprep.subr.mxu0 0.0
    %11674 = vmatpush1.msra.mxu0 0.0
    %11675 = vmatprep.subr.mxu0 0.0
    %11676 = vmatpush1.msra.mxu0 0.0
    %11677 = vmatprep.subr.mxu0 0.0
    %11678 = vmatpush1.msra.mxu0 0.0
    %11679 = vmatprep.subr.mxu0 0.0
    %11680 = vmatpush1.msra.mxu0 0.0
    %11681 = vmatprep.subr.mxu0 0.0
    %11682 = vmatpush1.msra.mxu0 0.0
    %11683 = vmatprep.subr.mxu0 0.0
    %11684 = vmatpush1.msra.mxu0 0.0
    %11685 = vmatprep.subr.mxu0 0.0
    %11686 = vmatpush1.msra.mxu0 0.0
    %11687 = vmatprep.subr.mxu0 0.0
    %11688 = vmatpush1.msra.mxu0 0.0
    %11689 = vmatprep.subr.mxu0 0.0
    %11690 = vmatpush1.msra.mxu0 0.0
    %11691 = vmatprep.subr.mxu0 0.0
    %11692 = vmatpush1.msra.mxu0 0.0
    %11693 = vmatprep.mubr.f32.mxu0 0.0
    %v11694 = vand.u32 %v11491, 4294901760
    %11695 = vmatmul.mubr.f32.gmra.mrb[0].mxu0 %v11694
    %v11696 = vpop.f32.mrb[0].mxu0
    %v11697 = vadd.f32 %v11576, %v11696
    %v11698 = vpop.f32.mrb[0].mxu0
    %11699 = vmatprep.mubr.f32.mxu0 0.0
    %v11700 = vand.u32 %v11494, 4294901760
    %11701 = vmatmul.mubr.f32.gmra.mrb[0].mxu0 %v11700
    %v11702 = vpop.f32.mrb[0].mxu0
    %v11703 = vadd.f32 %v11586, %v11702
    %v11704 = vpop.f32.mrb[0].mxu0
    %11705 = vdwg.mxu0
    %11706 = vmatprep.subr.mxu0 0.0
    %v11707 = vand.u32 %v11482, 4294901760
    %v11708 = vsub.f32 %v11482, %v11707
    %11709 = vmatpush1.msra.mxu0 %v11708
    %11710 = vmatprep.subr.mxu0 0.0
    %v11711 = vand.u32 %v11483, 4294901760
    %v11712 = vsub.f32 %v11483, %v11711
    %11713 = vmatpush1.msra.mxu0 %v11712
    %11714 = vmatprep.subr.mxu0 0.0
    %v11715 = vand.u32 %v11484, 4294901760
    %v11716 = vsub.f32 %v11484, %v11715
    %11717 = vmatpush1.msra.mxu0 %v11716
    %11718 = vmatprep.subr.mxu0 0.0
    %v11719 = vand.u32 %v11485, 4294901760
    %v11720 = vsub.f32 %v11485, %v11719
    %11721 = vmatpush1.msra.mxu0 %v11720
    %11722 = vmatprep.subr.mxu0 0.0
    %v11723 = vand.u32 %v11486, 4294901760
    %v11724 = vsub.f32 %v11486, %v11723
    %11725 = vmatpush1.msra.mxu0 %v11724
    %11726 = vmatprep.subr.mxu0 0.0
    %v11727 = vand.u32 %v11487, 4294901760
    %v11728 = vsub.f32 %v11487, %v11727
    %11729 = vmatpush1.msra.mxu0 %v11728
    %11730 = vmatprep.subr.mxu0 0.0
    %v11731 = vand.u32 %v11488, 4294901760
    %v11732 = vsub.f32 %v11488, %v11731
    %11733 = vmatpush1.msra.mxu0 %v11732
    %11734 = vmatprep.subr.mxu0 0.0
    %v11735 = vand.u32 %v11489, 4294901760
    %v11736 = vsub.f32 %v11489, %v11735
    %11737 = vmatpush1.msra.mxu0 %v11736
    %11738 = vmatprep.subr.mxu0 0.0
    %11739 = vmatpush1.msra.mxu0 0.0
    %11740 = vmatprep.subr.mxu0 0.0
    %11741 = vmatpush1.msra.mxu0 0.0
    %11742 = vmatprep.subr.mxu0 0.0
    %11743 = vmatpush1.msra.mxu0 0.0
    %11744 = vmatprep.subr.mxu0 0.0
    %11745 = vmatpush1.msra.mxu0 0.0
    %11746 = vmatprep.subr.mxu0 0.0
    %11747 = vmatpush1.msra.mxu0 0.0
    %11748 = vmatprep.subr.mxu0 0.0
    %11749 = vmatpush1.msra.mxu0 0.0
    %11750 = vmatprep.subr.mxu0 0.0
    %11751 = vmatpush1.msra.mxu0 0.0
    %11752 = vmatprep.subr.mxu0 0.0
    %11753 = vmatpush1.msra.mxu0 0.0
    %11754 = vmatprep.subr.mxu0 0.0
    %11755 = vmatpush1.msra.mxu0 0.0
    %11756 = vmatprep.subr.mxu0 0.0
    %11757 = vmatpush1.msra.mxu0 0.0
    %11758 = vmatprep.subr.mxu0 0.0
    %11759 = vmatpush1.msra.mxu0 0.0
    %11760 = vmatprep.subr.mxu0 0.0
    %11761 = vmatpush1.msra.mxu0 0.0
    %11762 = vmatprep.subr.mxu0 0.0
    %11763 = vmatpush1.msra.mxu0 0.0
    %11764 = vmatprep.subr.mxu0 0.0
    %11765 = vmatpush1.msra.mxu0 0.0
    %11766 = vmatprep.subr.mxu0 0.0
    %11767 = vmatpush1.msra.mxu0 0.0
    %11768 = vmatprep.subr.mxu0 0.0
    %11769 = vmatpush1.msra.mxu0 0.0
    %11770 = vmatprep.subr.mxu0 0.0
    %11771 = vmatpush1.msra.mxu0 0.0
    %11772 = vmatprep.subr.mxu0 0.0
    %11773 = vmatpush1.msra.mxu0 0.0
    %11774 = vmatprep.subr.mxu0 0.0
    %11775 = vmatpush1.msra.mxu0 0.0
    %11776 = vmatprep.subr.mxu0 0.0
    %11777 = vmatpush1.msra.mxu0 0.0
    %11778 = vmatprep.subr.mxu0 0.0
    %11779 = vmatpush1.msra.mxu0 0.0
    %11780 = vmatprep.subr.mxu0 0.0
    %11781 = vmatpush1.msra.mxu0 0.0
    %11782 = vmatprep.subr.mxu0 0.0
    %11783 = vmatpush1.msra.mxu0 0.0
    %11784 = vmatprep.subr.mxu0 0.0
    %11785 = vmatpush1.msra.mxu0 0.0
    %11786 = vmatprep.mubr.f32.mxu0 0.0
    %v11787 = vand.u32 %v11491, 4294901760
    %v11788 = vsub.f32 %v11491, %v11787
    %11789 = vmatmul.mubr.f32.gmra.mrb[0].mxu0 %v11788
    %v11790 = vpop.f32.mrb[0].mxu0
    %v11791 = vadd.f32 %v11697, %v11790
    %v11792 = vpop.f32.mrb[0].mxu0
    %11793 = vmatprep.mubr.f32.mxu0 0.0
    %v11794 = vand.u32 %v11494, 4294901760
    %v11795 = vsub.f32 %v11494, %v11794
    %11796 = vmatmul.mubr.f32.gmra.mrb[0].mxu0 %v11795
    %v11797 = vpop.f32.mrb[0].mxu0
    %v11798 = vadd.f32 %v11703, %v11797
    %v11799 = vpop.f32.mrb[0].mxu0
    %11800 = vdwg.mxu0
    %11801 = vmatprep.subr.mxu0 0.0
    %v11802 = vand.u32 %v11482, 4294901760
    %11803 = vmatpush1.msra.mxu0 %v11802
    %11804 = vmatprep.subr.mxu0 0.0
    %v11805 = vand.u32 %v11483, 4294901760
    %11806 = vmatpush1.msra.mxu0 %v11805
    %11807 = vmatprep.subr.mxu0 0.0
    %v11808 = vand.u32 %v11484, 4294901760
    %11809 = vmatpush1.msra.mxu0 %v11808
    %11810 = vmatprep.subr.mxu0 0.0
    %v11811 = vand.u32 %v11485, 4294901760
    %11812 = vmatpush1.msra.mxu0 %v11811
    %11813 = vmatprep.subr.mxu0 0.0
    %v11814 = vand.u32 %v11486, 4294901760
    %11815 = vmatpush1.msra.mxu0 %v11814
    %11816 = vmatprep.subr.mxu0 0.0
    %v11817 = vand.u32 %v11487, 4294901760
    %11818 = vmatpush1.msra.mxu0 %v11817
    %11819 = vmatprep.subr.mxu0 0.0
    %v11820 = vand.u32 %v11488, 4294901760
    %11821 = vmatpush1.msra.mxu0 %v11820
    %11822 = vmatprep.subr.mxu0 0.0
    %v11823 = vand.u32 %v11489, 4294901760
    %11824 = vmatpush1.msra.mxu0 %v11823
    %11825 = vmatprep.subr.mxu0 0.0
    %11826 = vmatpush1.msra.mxu0 0.0
    %11827 = vmatprep.subr.mxu0 0.0
    %11828 = vmatpush1.msra.mxu0 0.0
    %11829 = vmatprep.subr.mxu0 0.0
    %11830 = vmatpush1.msra.mxu0 0.0
    %11831 = vmatprep.subr.mxu0 0.0
    %11832 = vmatpush1.msra.mxu0 0.0
    %11833 = vmatprep.subr.mxu0 0.0
    %11834 = vmatpush1.msra.mxu0 0.0
    %11835 = vmatprep.subr.mxu0 0.0
    %11836 = vmatpush1.msra.mxu0 0.0
    %11837 = vmatprep.subr.mxu0 0.0
    %11838 = vmatpush1.msra.mxu0 0.0
    %11839 = vmatprep.subr.mxu0 0.0
    %11840 = vmatpush1.msra.mxu0 0.0
    %11841 = vmatprep.subr.mxu0 0.0
    %11842 = vmatpush1.msra.mxu0 0.0
    %11843 = vmatprep.subr.mxu0 0.0
    %11844 = vmatpush1.msra.mxu0 0.0
    %11845 = vmatprep.subr.mxu0 0.0
    %11846 = vmatpush1.msra.mxu0 0.0
    %11847 = vmatprep.subr.mxu0 0.0
    %11848 = vmatpush1.msra.mxu0 0.0
    %11849 = vmatprep.subr.mxu0 0.0
    %11850 = vmatpush1.msra.mxu0 0.0
    %11851 = vmatprep.subr.mxu0 0.0
    %11852 = vmatpush1.msra.mxu0 0.0
    %11853 = vmatprep.subr.mxu0 0.0
    %11854 = vmatpush1.msra.mxu0 0.0
    %11855 = vmatprep.subr.mxu0 0.0
    %11856 = vmatpush1.msra.mxu0 0.0
    %11857 = vmatprep.subr.mxu0 0.0
    %11858 = vmatpush1.msra.mxu0 0.0
    %11859 = vmatprep.subr.mxu0 0.0
    %11860 = vmatpush1.msra.mxu0 0.0
    %11861 = vmatprep.subr.mxu0 0.0
    %11862 = vmatpush1.msra.mxu0 0.0
    %11863 = vmatprep.subr.mxu0 0.0
    %11864 = vmatpush1.msra.mxu0 0.0
    %11865 = vmatprep.subr.mxu0 0.0
    %11866 = vmatpush1.msra.mxu0 0.0
    %11867 = vmatprep.subr.mxu0 0.0
    %11868 = vmatpush1.msra.mxu0 0.0
    %11869 = vmatprep.subr.mxu0 0.0
    %11870 = vmatpush1.msra.mxu0 0.0
    %11871 = vmatprep.subr.mxu0 0.0
    %11872 = vmatpush1.msra.mxu0 0.0
    %11873 = vmatprep.mubr.f32.mxu0 0.0
    %v11874 = vand.u32 %v11491, 4294901760
    %v11875 = vsub.f32 %v11491, %v11874
    %v11876 = vand.u32 %v11875, 4294901760
    %11877 = vmatmul.mubr.f32.gmra.mrb[0].mxu0 %v11876
    %v11878 = vpop.f32.mrb[0].mxu0
    %v11879 = vadd.f32 %v11791, %v11878
    %v11880 = vpop.f32.mrb[0].mxu0
    %11881 = vmatprep.mubr.f32.mxu0 0.0
    %v11882 = vand.u32 %v11494, 4294901760
    %v11883 = vsub.f32 %v11494, %v11882
    %v11884 = vand.u32 %v11883, 4294901760
    %11885 = vmatmul.mubr.f32.gmra.mrb[0].mxu0 %v11884
    %v11886 = vpop.f32.mrb[0].mxu0
    %v11887 = vadd.f32 %v11798, %v11886
    %v11888 = vpop.f32.mrb[0].mxu0
    %11889 = vdwg.mxu0
    %11890 = vmatprep.subr.mxu0 0.0
    %v11891 = vand.u32 %v11482, 4294901760
    %v11892 = vsub.f32 %v11482, %v11891
    %v11893 = vand.u32 %v11892, 4294901760
    %11894 = vmatpush1.msra.mxu0 %v11893
    %11895 = vmatprep.subr.mxu0 0.0
    %v11896 = vand.u32 %v11483, 4294901760
    %v11897 = vsub.f32 %v11483, %v11896
    %v11898 = vand.u32 %v11897, 4294901760
    %11899 = vmatpush1.msra.mxu0 %v11898
    %11900 = vmatprep.subr.mxu0 0.0
    %v11901 = vand.u32 %v11484, 4294901760
    %v11902 = vsub.f32 %v11484, %v11901
    %v11903 = vand.u32 %v11902, 4294901760
    %11904 = vmatpush1.msra.mxu0 %v11903
    %11905 = vmatprep.subr.mxu0 0.0
    %v11906 = vand.u32 %v11485, 4294901760
    %v11907 = vsub.f32 %v11485, %v11906
    %v11908 = vand.u32 %v11907, 4294901760
    %11909 = vmatpush1.msra.mxu0 %v11908
    %11910 = vmatprep.subr.mxu0 0.0
    %v11911 = vand.u32 %v11486, 4294901760
    %v11912 = vsub.f32 %v11486, %v11911
    %v11913 = vand.u32 %v11912, 4294901760
    %11914 = vmatpush1.msra.mxu0 %v11913
    %11915 = vmatprep.subr.mxu0 0.0
    %v11916 = vand.u32 %v11487, 4294901760
    %v11917 = vsub.f32 %v11487, %v11916
    %v11918 = vand.u32 %v11917, 4294901760
    %11919 = vmatpush1.msra.mxu0 %v11918
    %11920 = vmatprep.subr.mxu0 0.0
    %v11921 = vand.u32 %v11488, 4294901760
    %v11922 = vsub.f32 %v11488, %v11921
    %v11923 = vand.u32 %v11922, 4294901760
    %11924 = vmatpush1.msra.mxu0 %v11923
    %11925 = vmatprep.subr.mxu0 0.0
    %v11926 = vand.u32 %v11489, 4294901760
    %v11927 = vsub.f32 %v11489, %v11926
    %v11928 = vand.u32 %v11927, 4294901760
    %11929 = vmatpush1.msra.mxu0 %v11928
    %11930 = vmatprep.subr.mxu0 0.0
    %11931 = vmatpush1.msra.mxu0 0.0
    %11932 = vmatprep.subr.mxu0 0.0
    %11933 = vmatpush1.msra.mxu0 0.0
    %11934 = vmatprep.subr.mxu0 0.0
    %11935 = vmatpush1.msra.mxu0 0.0
    %11936 = vmatprep.subr.mxu0 0.0
    %11937 = vmatpush1.msra.mxu0 0.0
    %11938 = vmatprep.subr.mxu0 0.0
    %11939 = vmatpush1.msra.mxu0 0.0
    %11940 = vmatprep.subr.mxu0 0.0
    %11941 = vmatpush1.msra.mxu0 0.0
    %11942 = vmatprep.subr.mxu0 0.0
    %11943 = vmatpush1.msra.mxu0 0.0
    %11944 = vmatprep.subr.mxu0 0.0
    %11945 = vmatpush1.msra.mxu0 0.0
    %11946 = vmatprep.subr.mxu0 0.0
    %11947 = vmatpush1.msra.mxu0 0.0
    %11948 = vmatprep.subr.mxu0 0.0
    %11949 = vmatpush1.msra.mxu0 0.0
    %11950 = vmatprep.subr.mxu0 0.0
    %11951 = vmatpush1.msra.mxu0 0.0
    %11952 = vmatprep.subr.mxu0 0.0
    %11953 = vmatpush1.msra.mxu0 0.0
    %11954 = vmatprep.subr.mxu0 0.0
    %11955 = vmatpush1.msra.mxu0 0.0
    %11956 = vmatprep.subr.mxu0 0.0
    %11957 = vmatpush1.msra.mxu0 0.0
    %11958 = vmatprep.subr.mxu0 0.0
    %11959 = vmatpush1.msra.mxu0 0.0
    %11960 = vmatprep.subr.mxu0 0.0
    %11961 = vmatpush1.msra.mxu0 0.0
    %11962 = vmatprep.subr.mxu0 0.0
    %11963 = vmatpush1.msra.mxu0 0.0
    %11964 = vmatprep.subr.mxu0 0.0
    %11965 = vmatpush1.msra.mxu0 0.0
    %11966 = vmatprep.subr.mxu0 0.0
    %11967 = vmatpush1.msra.mxu0 0.0
    %11968 = vmatprep.subr.mxu0 0.0
    %11969 = vmatpush1.msra.mxu0 0.0
    %11970 = vmatprep.subr.mxu0 0.0
    %11971 = vmatpush1.msra.mxu0 0.0
    %11972 = vmatprep.subr.mxu0 0.0
    %11973 = vmatpush1.msra.mxu0 0.0
    %11974 = vmatprep.subr.mxu0 0.0
    %11975 = vmatpush1.msra.mxu0 0.0
    %11976 = vmatprep.subr.mxu0 0.0
    %11977 = vmatpush1.msra.mxu0 0.0
    %11978 = vmatprep.mubr.f32.mxu0 0.0
    %v11979 = vand.u32 %v11491, 4294901760
    %11980 = vmatmul.mubr.f32.gmra.mrb[0].mxu0 %v11979
    %v11981 = vpop.f32.mrb[0].mxu0
    %v11982 = vadd.f32 %v11879, %v11981
    %v11983 = vpop.f32.mrb[0].mxu0
    %11984 = vmatprep.mubr.f32.mxu0 0.0
    %v11985 = vand.u32 %v11494, 4294901760
    %11986 = vmatmul.mubr.f32.gmra.mrb[0].mxu0 %v11985
    %v11987 = vpop.f32.mrb[0].mxu0
    %v11988 = vadd.f32 %v11887, %v11987
    %v11989 = vpop.f32.mrb[0].mxu0
    %11990 = vdwg.mxu0
    %11991 = vmatprep.subr.mxu0 0.0
    %v11992 = vand.u32 %v11482, 4294901760
    %11993 = vmatpush1.msra.mxu0 %v11992
    %11994 = vmatprep.subr.mxu0 0.0
    %v11995 = vand.u32 %v11483, 4294901760
    %11996 = vmatpush1.msra.mxu0 %v11995
    %11997 = vmatprep.subr.mxu0 0.0
    %v11998 = vand.u32 %v11484, 4294901760
    %11999 = vmatpush1.msra.mxu0 %v11998
    %12000 = vmatprep.subr.mxu0 0.0
    %v12001 = vand.u32 %v11485, 4294901760
    %12002 = vmatpush1.msra.mxu0 %v12001
    %12003 = vmatprep.subr.mxu0 0.0
    %v12004 = vand.u32 %v11486, 4294901760
    %12005 = vmatpush1.msra.mxu0 %v12004
    %12006 = vmatprep.subr.mxu0 0.0
    %v12007 = vand.u32 %v11487, 4294901760
    %12008 = vmatpush1.msra.mxu0 %v12007
    %12009 = vmatprep.subr.mxu0 0.0
    %v12010 = vand.u32 %v11488, 4294901760
    %12011 = vmatpush1.msra.mxu0 %v12010
    %12012 = vmatprep.subr.mxu0 0.0
    %v12013 = vand.u32 %v11489, 4294901760
    %12014 = vmatpush1.msra.mxu0 %v12013
    %12015 = vmatprep.subr.mxu0 0.0
    %12016 = vmatpush1.msra.mxu0 0.0
    %12017 = vmatprep.subr.mxu0 0.0
    %12018 = vmatpush1.msra.mxu0 0.0
    %12019 = vmatprep.subr.mxu0 0.0
    %12020 = vmatpush1.msra.mxu0 0.0
    %12021 = vmatprep.subr.mxu0 0.0
    %12022 = vmatpush1.msra.mxu0 0.0
    %12023 = vmatprep.subr.mxu0 0.0
    %12024 = vmatpush1.msra.mxu0 0.0
    %12025 = vmatprep.subr.mxu0 0.0
    %12026 = vmatpush1.msra.mxu0 0.0
    %12027 = vmatprep.subr.mxu0 0.0
    %12028 = vmatpush1.msra.mxu0 0.0
    %12029 = vmatprep.subr.mxu0 0.0
    %12030 = vmatpush1.msra.mxu0 0.0
    %12031 = vmatprep.subr.mxu0 0.0
    %12032 = vmatpush1.msra.mxu0 0.0
    %12033 = vmatprep.subr.mxu0 0.0
    %12034 = vmatpush1.msra.mxu0 0.0
    %12035 = vmatprep.subr.mxu0 0.0
    %12036 = vmatpush1.msra.mxu0 0.0
    %12037 = vmatprep.subr.mxu0 0.0
    %12038 = vmatpush1.msra.mxu0 0.0
    %12039 = vmatprep.subr.mxu0 0.0
    %12040 = vmatpush1.msra.mxu0 0.0
    %12041 = vmatprep.subr.mxu0 0.0
    %12042 = vmatpush1.msra.mxu0 0.0
    %12043 = vmatprep.subr.mxu0 0.0
    %12044 = vmatpush1.msra.mxu0 0.0
    %12045 = vmatprep.subr.mxu0 0.0
    %12046 = vmatpush1.msra.mxu0 0.0
    %12047 = vmatprep.subr.mxu0 0.0
    %12048 = vmatpush1.msra.mxu0 0.0
    %12049 = vmatprep.subr.mxu0 0.0
    %12050 = vmatpush1.msra.mxu0 0.0
    %12051 = vmatprep.subr.mxu0 0.0
    %12052 = vmatpush1.msra.mxu0 0.0
    %12053 = vmatprep.subr.mxu0 0.0
    %12054 = vmatpush1.msra.mxu0 0.0
    %12055 = vmatprep.subr.mxu0 0.0
    %12056 = vmatpush1.msra.mxu0 0.0
    %12057 = vmatprep.subr.mxu0 0.0
    %12058 = vmatpush1.msra.mxu0 0.0
    %12059 = vmatprep.subr.mxu0 0.0
    %12060 = vmatpush1.msra.mxu0 0.0
    %12061 = vmatprep.subr.mxu0 0.0
    %12062 = vmatpush1.msra.mxu0 0.0
    %12063 = vmatprep.mubr.f32.mxu0 0.0
    %v12064 = vand.u32 %v11491, 4294901760
    %12065 = vmatmul.mubr.f32.gmra.mrb[0].mxu0 %v12064
    %v12066 = vpop.f32.mrb[0].mxu0
    %v12067 = vadd.f32 %v11982, %v12066
    %v12068 = vpop.f32.mrb[0].mxu0
    %12069 = vmatprep.mubr.f32.mxu0 0.0
    %v12070 = vand.u32 %v11494, 4294901760
    %12071 = vmatmul.mubr.f32.gmra.mrb[0].mxu0 %v12070
    %v12072 = vpop.f32.mrb[0].mxu0
    %v12073 = vadd.f32 %v11988, %v12072
    %v12074 = vpop.f32.mrb[0].mxu0
    %12075 = vdwg.mxu0
    %v12076 = vadd.f32 %v10880, %v12067
    %v12077 = vadd.f32 %v10881, %v12073
    %v12078 = vlaneseq
    %v12079 = vshrl.u32 %v12078, 7
    %v12080 = vsub.s32 0, %v12079
    %v12081 = vrot.slane %v6076, %v12080
    %v12082 = vadd.f32 %v12076, %v12081
    %v12083 = vadd.f32 %v12077, %v12081
    %v12084 = vld [vmem:[#allocation5 + $0xc] sm:$0x1]
    %v12085 = vld [vmem:[#allocation5 + $0xd] sm:$0x1]
    %v12086 = vsel %vm64, %v12082, 0.0
    %12087 = vadd.xlane.f32.xlu0 %v12086
    %v12088 = vpop.xlane.xlu0 %12087
    %v12089 = vsel %vm64, %v12083, 0.0
    %12090 = vadd.xlane.f32.xlu0 %v12089
    %v12091 = vpop.xlane.xlu0 %12090
    %v12092 = vmul.f32 %v12088, %v71
    %v12093 = vmul.f32 %v12091, %v71
    %v12094 = vsub.f32 %v12082, %v12092
    %v12095 = vsub.f32 %v12083, %v12093
    %v12096 = vmul.f32 %v12094, %v12094
    %v12097 = vmul.f32 %v12095, %v12095
    %v12098 = vsel %vm64, %v12096, 0.0
    %12099 = vadd.xlane.f32.xlu0 %v12098
    %v12100 = vpop.xlane.xlu0 %12099
    %v12101 = vsel %vm64, %v12097, 0.0
    %12102 = vadd.xlane.f32.xlu0 %v12101
    %v12103 = vpop.xlane.xlu0 %12102
    %v12104 = vmul.f32 %v12100, %v71
    %v12105 = vmul.f32 %v12103, %v71
    %v12106 = vadd.f32 %v12104, 1e-05
    %v12107 = vadd.f32 %v12105, 1e-05
    %v12108 = vrsqrt.pop %v12106
    %v12109 = vrsqrt.pop %v12107
    %v12110 = vmul.f32 %v12094, %v12108
    %v12111 = vmul.f32 %v12095, %v12109
    %v12112 = vlaneseq
    %v12113 = vshrl.u32 %v12112, 7
    %v12114 = vsub.s32 0, %v12113
    %v12115 = vrot.slane %v12084, %v12114
    %v12116 = vmul.f32 %v12110, %v12115
    %v12117 = vmul.f32 %v12111, %v12115
    %v12118 = vlaneseq
    %v12119 = vshrl.u32 %v12118, 7
    %v12120 = vsub.s32 0, %v12119
    %v12121 = vrot.slane %v12085, %v12120
    %v12122 = vadd.f32 %v12116, %v12121
    %v12123 = vadd.f32 %v12117, %v12121
    %12124 = vst.msk [vmem:[#allocation7] sm:$0xff] %vm64, %v12122
    %12125 = vst.msk [vmem:[#allocation7 + $0x8] sm:$0xff] %vm64, %v12123
    // Predicated region
    $region38: #{transformer_forward.1} parent=1 // pred_check
      _
    $region39: #{transformer_forward.1} parent=1 // pred_check_branch
      %12127 = sbr.rel (0) target = $region41
    $region40: #{transformer_forward.1} parent=1 // pred_region
      %s12129 = ssub.s32 256, 256
      %12130 = vsyncadd [#allocation4], %s12129
      %s12131 = sshll.u32 [#allocation7], 4
      %s12132 = int_to_ptr.vmem [resolvable:$true] %s12131
      %12137 = dma.vmem_to_hbm [thread:$0]  %s12132, 256, %s7, [#allocation4], 128, 128, 8
    $region41: #{transformer_forward.1} parent=1 // pred_fallthru
      _
    // Predicated region
    $region42: #{transformer_forward.1} parent=1 // pred_check
      _
    $region43: #{transformer_forward.1} parent=1 // pred_check_branch
      %12139 = sbr.rel (0) target = $region45
    $region44: #{transformer_forward.1} parent=1 // pred_region
      %12140 = dma.done [#allocation4], 256
    $region45: #{transformer_forward.1} parent=1 // pred_fallthru
      _
    %12141 = vsyncpa [#allocation3], 1
    %12142 = vsyncpa [#allocation6], 1
    %12143 = vsyncpa [#allocation4], 1

</llo_original>
